<compile_context>
chip_gen: v5e
topology: v5e:2x2
jax: 0.10.0
libtpu: 0.0.40
codegen_flags: <defaults>
</compile_context>

<pallas_src>
import functools

import jax
import jax.numpy as jnp
import numpy as np
from jax.experimental import pallas as pl
from jax.experimental.pallas import tpu as pltpu

VMEM = pltpu.MemorySpace.VMEM
F32 = jnp.float32
BF16 = jnp.bfloat16


# ----------------------------------------------------------------------------
# One LSTM cell update from pre-activation gates.
# ----------------------------------------------------------------------------
def _lstm_cell(gates, c_prev, H):
    if H % 128 == 0:
        i_g = jax.nn.sigmoid(gates[:, 0 * H:1 * H])
        f_g = jax.nn.sigmoid(gates[:, 1 * H:2 * H])
        g_g = jnp.tanh(gates[:, 2 * H:3 * H])
        o_g = jax.nn.sigmoid(gates[:, 3 * H:4 * H])
    else:
        # H < 128 (lstm2): keep EUP work full-lane-width, slice afterwards.
        sig = jax.nn.sigmoid(gates)
        tnh = jnp.tanh(gates)
        i_g = sig[:, 0 * H:1 * H]
        f_g = sig[:, 1 * H:2 * H]
        g_g = tnh[:, 2 * H:3 * H]
        o_g = sig[:, 3 * H:4 * H]
    c_new = f_g * c_prev + i_g * g_g
    h_new = o_g * jnp.tanh(c_new)
    return h_new, c_new


# ----------------------------------------------------------------------------
# Emit one wavefront step s of a multi-layer LSTM tower.
#   layer l processes timestep t = s - l (if 0 <= t < T).
# Layers are emitted in descending order so hs[l-1] still holds its value from
# wavefront step s-1 (= layer l-1's hidden at timestep t) when layer l reads it.
# hs / cs are Python lists of (B, H) f32 values, mutated in place.
# ----------------------------------------------------------------------------
def _emit_wavefront_step(s, hs, cs, xp_ref, whh0_ref, wcat_ref, bias_ref,
                         T, B, H, L):
    for layer in reversed(range(L)):
        t = s - layer
        if t < 0 or t >= T:
            continue
        if layer == 0:
            # hoisted input projection (bias already folded in) + recurrent dot
            gates = (xp_ref[t * B:(t + 1) * B, :]
                     + jnp.dot(hs[0].astype(BF16), whh0_ref[...],
                               preferred_element_type=F32))
        else:
            if (2 * H) % 128 == 0:
                # fused [h_below ; h_prev] @ [W_ih ; W_hh]: one K=2H MXU dot.
                lhs = jnp.concatenate([hs[layer - 1], hs[layer]], axis=-1)
                rec = jnp.dot(lhs.astype(BF16), wcat_ref[layer - 1],
                              preferred_element_type=F32)
            else:
                # small tower: avoid intra-vreg lane concat, two tiny dots.
                rec = (jnp.dot(hs[layer - 1].astype(BF16),
                               wcat_ref[layer - 1, 0:H, :],
                               preferred_element_type=F32)
                       + jnp.dot(hs[layer].astype(BF16),
                                 wcat_ref[layer - 1, H:2 * H, :],
                                 preferred_element_type=F32))
            gates = rec + bias_ref[layer]
        hs[layer], cs[layer] = _lstm_cell(gates, cs[layer], H)


# ----------------------------------------------------------------------------
# Fused forward kernel: lstm1 + lstm2 (interleaved wavefronts) + head.
# ----------------------------------------------------------------------------
def fused_kernel(x1_ref, x2_ref,
                 l1_wih0, l1_whh0, l1_wcat, l1_bias,
                 l2_wih0, l2_whh0, l2_wcat, l2_bias,
                 w1a_ref, w1b_ref, b1_ref, w2_ref, b2_ref,
                 w3_ref, b3_ref, w4_ref, b4_ref,
                 out_ref,
                 xp1, xp2,
                 *, T1, T2, B, H1, H2, L1, L2):
    # Hoisted layer-0 input projections: one batched MXU matmul per tower,
    # off the serial critical path (bias b_ih + b_hh folded in).
    xp1[...] = (jnp.dot(x1_ref[...], l1_wih0[...], preferred_element_type=F32)
                + l1_bias[0])
    xp2[...] = (jnp.dot(x2_ref[...], l2_wih0[...], preferred_element_type=F32)
                + l2_bias[0])

    hs1 = [jnp.zeros((B, H1), F32) for _ in range(L1)]
    cs1 = [jnp.zeros((B, H1), F32) for _ in range(L1)]
    hs2 = [jnp.zeros((B, H2), F32) for _ in range(L2)]
    cs2 = [jnp.zeros((B, H2), F32) for _ in range(L2)]

    n_steps1 = T1 + L1 - 1
    n_steps2 = T2 + L2 - 1
    # Interleave the two (independent) towers so lstm2 hides under lstm1's
    # MXU -> EUP -> VPU latency bubbles.
    for s in range(max(n_steps1, n_steps2)):
        if s < n_steps1:
            _emit_wavefront_step(s, hs1, cs1, xp1, l1_whh0, l1_wcat, l1_bias,
                                 T1, B, H1, L1)
        if s < n_steps2:
            _emit_wavefront_step(s, hs2, cs2, xp2, l2_whh0, l2_wcat, l2_bias,
                                 T2, B, H2, L2)

    h1 = hs1[-1]   # h_n[-1] of lstm1, (B, 128)
    h2 = hs2[-1]   # h_n[-1] of lstm2, (B, 32)

    # fc1 (bn1 folded) on [h1 ; h2] expressed as a split matmul -> no concat.
    z = (jnp.dot(h1.astype(BF16), w1a_ref[...], preferred_element_type=F32)
         + jnp.dot(h2.astype(BF16), w1b_ref[...], preferred_element_type=F32)
         + b1_ref[...])
    z = jnp.maximum(z, 0.0)
    # fc2 / fc3 with bn2 / bn3 folded; dropout is identity in eval mode.
    z = jnp.maximum(
        jnp.dot(z.astype(BF16), w2_ref[...], preferred_element_type=F32)
        + b2_ref[...], 0.0)
    z = jnp.maximum(
        jnp.dot(z.astype(BF16), w3_ref[...], preferred_element_type=F32)
        + b3_ref[...], 0.0)
    # fc4 has a single output feature: lane-reduction instead of an N=1 matmul.
    out_ref[...] = jnp.sum(z * w4_ref[...], axis=1, keepdims=True) + b4_ref[...]


# ----------------------------------------------------------------------------
# Wrapper
# ----------------------------------------------------------------------------
@jax.jit
def simple_nn_forward(X_nums, X_news_nums, X_news_tkids, lstm1_p, lstm2_p, head_p):
    del X_news_tkids  # unused by the PyTorch forward as well
    B, T1, D1 = X_nums.shape
    _, T2, D2 = X_news_nums.shape
    L1, H1 = lstm1_p["bias"].shape[0], lstm1_p["whh0"].shape[0]
    L2, H2 = lstm2_p["bias"].shape[0], lstm2_p["whh0"].shape[0]

    # Time-major, flattened to (T*B, D): row t*B + b. Keeps every per-timestep
    # slice a sublane-aligned (B, D) window (B multiple of 8) and lets each
    # layer-0 input projection run as a single (T*B, D) @ (D, 4H) matmul.
    x1 = jnp.transpose(X_nums, (1, 0, 2)).reshape(T1 * B, D1).astype(F32)
    x2 = jnp.transpose(X_news_nums, (1, 0, 2)).reshape(T2 * B, D2).astype(F32)

    kernel = functools.partial(
        fused_kernel, T1=T1, T2=T2, B=B, H1=H1, H2=H2, L1=L1, L2=L2)

    args = (x1, x2,
            lstm1_p["wih0"], lstm1_p["whh0"], lstm1_p["wcat"], lstm1_p["bias"],
            lstm2_p["wih0"], lstm2_p["whh0"], lstm2_p["wcat"], lstm2_p["bias"],
            head_p["w1a"], head_p["w1b"], head_p["b1"],
            head_p["w2"], head_p["b2"], head_p["w3"], head_p["b3"],
            head_p["w4"], head_p["b4"])

    return pl.pallas_call(
        kernel,
        out_shape=jax.ShapeDtypeStruct((B, 1), F32),
        in_specs=[pl.BlockSpec(memory_space=VMEM)] * len(args),
        out_specs=pl.BlockSpec(memory_space=VMEM),
        scratch_shapes=[
            pltpu.VMEM((T1 * B, 4 * H1), F32),  # lstm1 hoisted input projections
            pltpu.VMEM((T2 * B, 4 * H2), F32),  # lstm2 hoisted input projections
        ],
    )(*args)


# ----------------------------------------------------------------------------
# Deterministic parameter construction (matching SimpleNN.__init__ semantics)
# ----------------------------------------------------------------------------
def init_lstm_params(key, num_layers, input_dim, hidden_dim):
    """PyTorch nn.LSTM default init; weights packed/transposed for the kernel."""
    H = hidden_dim
    bound = 1.0 / np.sqrt(H)
    wih, whh, bias = [], [], []
    for layer in range(num_layers):
        din = input_dim if layer == 0 else H
        key, k1, k2, k3, k4 = jax.random.split(key, 5)
        w_ih = jax.random.uniform(k1, (4 * H, din), minval=-bound, maxval=bound,
                                  dtype=F32)
        w_hh = jax.random.uniform(k2, (4 * H, H), minval=-bound, maxval=bound,
                                  dtype=F32)
        b_ih = jax.random.uniform(k3, (4 * H,), minval=-bound, maxval=bound,
                                  dtype=F32)
        b_hh = jax.random.uniform(k4, (4 * H,), minval=-bound, maxval=bound,
                                  dtype=F32)
        wih.append(w_ih.T)                              # (din, 4H)
        whh.append(w_hh.T)                              # (H,  4H)
        bias.append((b_ih + b_hh).reshape(1, 4 * H))    # (1,  4H)
    if num_layers > 1:
        # Layers >= 1: stacked [W_ih ; W_hh] -> (L-1, 2H, 4H) for the fused dot.
        wcat = jnp.stack(
            [jnp.concatenate([wih[l], whh[l]], axis=0)
             for l in range(1, num_layers)], axis=0)
    else:
        wcat = jnp.zeros((1, 2 * H, 4 * H), F32)        # dummy if L == 1
    params = dict(
        wih0=wih[0],                                    # (D_in, 4H) f32 (hoisted)
        whh0=whh[0].astype(BF16),                       # (H, 4H)    bf16
        wcat=wcat.astype(BF16),                         # (L-1,2H,4H) bf16
        bias=jnp.stack(bias, axis=0))                   # (L, 1, 4H) f32
    return key, params


def _init_linear(key, in_f, out_f):
    # kaiming_normal_(mode='fan_out', nonlinearity='relu'): std = sqrt(2/out_f)
    key, kw = jax.random.split(key)
    w_t = (jax.random.normal(kw, (out_f, in_f), dtype=F32)
           * np.sqrt(2.0 / out_f)).T                    # (in_f, out_f)
    b = jnp.zeros((1, out_f), F32)                      # constant_(bias, 0)
    return key, w_t, b


def _fold_bn(w_t, b, gamma, beta, mean, var, eps=1e-5):
    """Fold eval-mode BatchNorm1d into the preceding Linear."""
    scale = gamma * jax.lax.rsqrt(var + eps)            # (1, out)
    return w_t * scale, (b - mean) * scale + beta


def init_head_params(key):
    key, w1, b1 = _init_linear(key, 160, 128)
    key, w2, b2 = _init_linear(key, 128, 64)
    key, w3, b3 = _init_linear(key, 64, 32)
    key, w4, b4 = _init_linear(key, 32, 1)

    def bn_identity(n):  # fresh BatchNorm1d (eval mode) running stats
        return (jnp.ones((1, n), F32), jnp.zeros((1, n), F32),
                jnp.zeros((1, n), F32), jnp.ones((1, n), F32))

    w1, b1 = _fold_bn(w1, b1, *bn_identity(128))
    w2, b2 = _fold_bn(w2, b2, *bn_identity(64))
    w3, b3 = _fold_bn(w3, b3, *bn_identity(32))
    params = dict(w1a=w1[:128, :].astype(BF16),   # fc1 rows acting on h_n[-1]
                  w1b=w1[128:, :].astype(BF16),   # fc1 rows acting on h_n2[-1]
                  b1=b1,
                  w2=w2.astype(BF16), b2=b2,
                  w3=w3.astype(BF16), b3=b3,
                  w4=jnp.transpose(w4),           # (1, 32) f32 row for fc4 reduction
                  b4=b4)                          # (1, 1)
    return key, params


if __name__ == "__main__":
    B, T1, T2 = 8, 8, 8
    INPUT_DIM, HIDDEN_DIM, NUM_LAYERS = 6, 128, 4   # HyperParams (lstm)
    NEWS_DIM, NEWS_HIDDEN, NEWS_LAYERS = 5, 32, 2   # lstm2

    key = jax.random.PRNGKey(0)
    key, lstm1_p = init_lstm_params(key, NUM_LAYERS, INPUT_DIM, HIDDEN_DIM)
    key, lstm2_p = init_lstm_params(key, NEWS_LAYERS, NEWS_DIM, NEWS_HIDDEN)
    key, head_p = init_head_params(key)

    key, kx1, kx2, kx3 = jax.random.split(key, 4)
    X_nums = jax.random.normal(kx1, (B, T1, INPUT_DIM), dtype=jnp.float32)
    X_news_nums = jax.random.normal(kx2, (B, T2, NEWS_DIM), dtype=jnp.float32)
    X_news_tkids = jax.random.randint(kx3, (B, T2, 16), 0, 1000)  # unused in fwd
    # TODO(synk): TweetsBlock / X_news_tkids are unused by SimpleNN.forward, so
    # they are intentionally not translated.

    out = simple_nn_forward(X_nums, X_news_nums, X_news_tkids,
                            lstm1_p, lstm2_p, head_p)
    out = jax.block_until_ready(out)
    assert out.shape == (B, 1) and out.dtype == jnp.float32
    assert bool(jnp.all(jnp.isfinite(out)))
    print("KERNEL_OK")
</pallas_src>

<mosaic_0001>
module attributes {stable_mosaic.version = 11 : i64} {
  func.func @fused_kernel(%arg0: memref<64x6xf32, #tpu.memory_space<vmem>>, %arg1: memref<64x5xf32, #tpu.memory_space<vmem>>, %arg2: memref<6x512xf32, #tpu.memory_space<vmem>>, %arg3: memref<128x512xbf16, #tpu.memory_space<vmem>>, %arg4: memref<3x256x512xbf16, #tpu.memory_space<vmem>>, %arg5: memref<4x1x512xf32, #tpu.memory_space<vmem>>, %arg6: memref<5x128xf32, #tpu.memory_space<vmem>>, %arg7: memref<32x128xbf16, #tpu.memory_space<vmem>>, %arg8: memref<1x64x128xbf16, #tpu.memory_space<vmem>>, %arg9: memref<2x1x128xf32, #tpu.memory_space<vmem>>, %arg10: memref<128x128xbf16, #tpu.memory_space<vmem>>, %arg11: memref<32x128xbf16, #tpu.memory_space<vmem>>, %arg12: memref<1x128xf32, #tpu.memory_space<vmem>>, %arg13: memref<128x64xbf16, #tpu.memory_space<vmem>>, %arg14: memref<1x64xf32, #tpu.memory_space<vmem>>, %arg15: memref<64x32xbf16, #tpu.memory_space<vmem>>, %arg16: memref<1x32xf32, #tpu.memory_space<vmem>>, %arg17: memref<1x32xf32, #tpu.memory_space<vmem>>, %arg18: memref<1x1xf32, #tpu.memory_space<vmem>>, %arg19: memref<8x1xf32, #tpu.memory_space<vmem>>, %arg20: memref<64x512xf32, #tpu.memory_space<vmem>>, %arg21: memref<64x128xf32, #tpu.memory_space<vmem>>) attributes {dimension_semantics = [], scalar_prefetch = 0 : i64, scratch_operands = 2 : i64, tpu.core_type = #tpu.core_type<tc>} {
    %c0 = arith.constant 0 : index
    %c0_0 = arith.constant 0 : index
    %0 = vector.load %arg0[%c0, %c0_0] : memref<64x6xf32, #tpu.memory_space<vmem>>, vector<64x6xf32>
    %c0_1 = arith.constant 0 : index
    %c0_2 = arith.constant 0 : index
    %1 = vector.load %arg2[%c0_1, %c0_2] : memref<6x512xf32, #tpu.memory_space<vmem>>, vector<6x512xf32>
    %cst = arith.constant dense<0.000000e+00> : vector<64x512xf32>
    %2 = tpu.matmul %0, %1, %cst {dimension_numbers = #tpu.dot_dimension_numbers<[1], [0], [0], [1], [0, 0, 1, 1], [], []>} : vector<64x6xf32>, vector<6x512xf32>, vector<64x512xf32> -> vector<64x512xf32>
    %c0_3 = arith.constant 0 : index
    %c0_4 = arith.constant 0 : index
    %c0_5 = arith.constant 0 : index
    %3 = vector.load %arg5[%c0_3, %c0_4, %c0_5] : memref<4x1x512xf32, #tpu.memory_space<vmem>>, vector<1x1x512xf32>
    %4 = vector.shape_cast %3 : vector<1x1x512xf32> to vector<1x512xf32>
    %5 = vector.broadcast %4 : vector<1x512xf32> to vector<64x512xf32>
    %6 = arith.addf %2, %5 : vector<64x512xf32>
    %c0_6 = arith.constant 0 : index
    %c0_7 = arith.constant 0 : index
    %7 = vector.load %arg20[%c0_6, %c0_7] : memref<64x512xf32, #tpu.memory_space<vmem>>, vector<64x512xf32>
    tpu.vector_store %arg20[%c0_6, %c0_7], %6 {strides = array<i32>} : memref<64x512xf32, #tpu.memory_space<vmem>>, vector<64x512xf32>,
    %c0_8 = arith.constant 0 : index
    %c0_9 = arith.constant 0 : index
    %8 = vector.load %arg1[%c0_8, %c0_9] : memref<64x5xf32, #tpu.memory_space<vmem>>, vector<64x5xf32>
    %c0_10 = arith.constant 0 : index
    %c0_11 = arith.constant 0 : index
    %9 = vector.load %arg6[%c0_10, %c0_11] : memref<5x128xf32, #tpu.memory_space<vmem>>, vector<5x128xf32>
    %cst_12 = arith.constant dense<0.000000e+00> : vector<64x128xf32>
    %10 = tpu.matmul %8, %9, %cst_12 {dimension_numbers = #tpu.dot_dimension_numbers<[1], [0], [0], [1], [0, 0, 1, 1], [], []>} : vector<64x5xf32>, vector<5x128xf32>, vector<64x128xf32> -> vector<64x128xf32>
    %c0_13 = arith.constant 0 : index
    %c0_14 = arith.constant 0 : index
    %c0_15 = arith.constant 0 : index
    %11 = vector.load %arg9[%c0_13, %c0_14, %c0_15] : memref<2x1x128xf32, #tpu.memory_space<vmem>>, vector<1x1x128xf32>
    %12 = vector.shape_cast %11 : vector<1x1x128xf32> to vector<1x128xf32>
    %13 = vector.broadcast %12 : vector<1x128xf32> to vector<64x128xf32>
    %14 = arith.addf %10, %13 : vector<64x128xf32>
    %c0_16 = arith.constant 0 : index
    %c0_17 = arith.constant 0 : index
    %15 = vector.load %arg21[%c0_16, %c0_17] : memref<64x128xf32, #tpu.memory_space<vmem>>, vector<64x128xf32>
    tpu.vector_store %arg21[%c0_16, %c0_17], %14 {strides = array<i32>} : memref<64x128xf32, #tpu.memory_space<vmem>>, vector<64x128xf32>,
    %cst_18 = arith.constant 0.000000e+00 : f32
    %16 = vector.broadcast %cst_18 : f32 to vector<8x128xf32>
    %cst_19 = arith.constant 0.000000e+00 : f32
    %17 = vector.broadcast %cst_19 : f32 to vector<8x128xf32>
    %cst_20 = arith.constant 0.000000e+00 : f32
    %18 = vector.broadcast %cst_20 : f32 to vector<8x128xf32>
    %cst_21 = arith.constant 0.000000e+00 : f32
    %19 = vector.broadcast %cst_21 : f32 to vector<8x128xf32>
    %cst_22 = arith.constant 0.000000e+00 : f32
    %20 = vector.broadcast %cst_22 : f32 to vector<8x128xf32>
    %cst_23 = arith.constant 0.000000e+00 : f32
    %21 = vector.broadcast %cst_23 : f32 to vector<8x128xf32>
    %cst_24 = arith.constant 0.000000e+00 : f32
    %22 = vector.broadcast %cst_24 : f32 to vector<8x128xf32>
    %cst_25 = arith.constant 0.000000e+00 : f32
    %23 = vector.broadcast %cst_25 : f32 to vector<8x128xf32>
    %cst_26 = arith.constant 0.000000e+00 : f32
    %24 = vector.broadcast %cst_26 : f32 to vector<8x32xf32>
    %cst_27 = arith.constant 0.000000e+00 : f32
    %25 = vector.broadcast %cst_27 : f32 to vector<8x32xf32>
    %cst_28 = arith.constant 0.000000e+00 : f32
    %26 = vector.broadcast %cst_28 : f32 to vector<8x32xf32>
    %cst_29 = arith.constant 0.000000e+00 : f32
    %27 = vector.broadcast %cst_29 : f32 to vector<8x32xf32>
    %c0_30 = arith.constant 0 : index
    %c0_31 = arith.constant 0 : index
    %28 = vector.load %arg20[%c0_30, %c0_31] : memref<64x512xf32, #tpu.memory_space<vmem>>, vector<8x512xf32>
    %29 = arith.truncf %16 : vector<8x128xf32> to vector<8x128xbf16>
    %c0_32 = arith.constant 0 : index
    %c0_33 = arith.constant 0 : index
    %30 = vector.load %arg3[%c0_32, %c0_33] : memref<128x512xbf16, #tpu.memory_space<vmem>>, vector<128x512xbf16>
    %cst_34 = arith.constant dense<0.000000e+00> : vector<8x512xf32>
    %31 = tpu.matmul %29, %30, %cst_34 {dimension_numbers = #tpu.dot_dimension_numbers<[1], [0], [0], [1], [0, 0, 1, 1], [], []>} : vector<8x128xbf16>, vector<128x512xbf16>, vector<8x512xf32> -> vector<8x512xf32>
    %32 = arith.addf %28, %31 : vector<8x512xf32>
    %33 = vector.extract_strided_slice %32 {offsets = [0, 0], sizes = [8, 128], strides = [1, 1]} : vector<8x512xf32> to vector<8x128xf32>
    %34 = arith.negf %33 : vector<8x128xf32>
    %35 = math.exp %34 : vector<8x128xf32>
    %cst_35 = arith.constant 1.000000e+00 : f32
    %36 = vector.broadcast %cst_35 : f32 to vector<8x128xf32>
    %37 = arith.addf %36, %35 : vector<8x128xf32>
    %38 = arith.divf %36, %37 : vector<8x128xf32>
    %39 = vector.extract_strided_slice %32 {offsets = [0, 128], sizes = [8, 128], strides = [1, 1]} : vector<8x512xf32> to vector<8x128xf32>
    %40 = arith.negf %39 : vector<8x128xf32>
    %41 = math.exp %40 : vector<8x128xf32>
    %cst_36 = arith.constant 1.000000e+00 : f32
    %42 = vector.broadcast %cst_36 : f32 to vector<8x128xf32>
    %43 = arith.addf %42, %41 : vector<8x128xf32>
    %44 = arith.divf %42, %43 : vector<8x128xf32>
    %45 = vector.extract_strided_slice %32 {offsets = [0, 256], sizes = [8, 128], strides = [1, 1]} : vector<8x512xf32> to vector<8x128xf32>
    %46 = math.tanh %45 : vector<8x128xf32>
    %47 = vector.extract_strided_slice %32 {offsets = [0, 384], sizes = [8, 128], strides = [1, 1]} : vector<8x512xf32> to vector<8x128xf32>
    %48 = arith.negf %47 : vector<8x128xf32>
    %49 = math.exp %48 : vector<8x128xf32>
    %cst_37 = arith.constant 1.000000e+00 : f32
    %50 = vector.broadcast %cst_37 : f32 to vector<8x128xf32>
    %51 = arith.addf %50, %49 : vector<8x128xf32>
    %52 = arith.divf %50, %51 : vector<8x128xf32>
    %53 = arith.mulf %44, %20 : vector<8x128xf32>
    %54 = arith.mulf %38, %46 : vector<8x128xf32>
    %55 = arith.addf %53, %54 : vector<8x128xf32>
    %56 = math.tanh %55 : vector<8x128xf32>
    %57 = arith.mulf %52, %56 : vector<8x128xf32>
    %c0_38 = arith.constant 0 : index
    %c0_39 = arith.constant 0 : index
    %58 = vector.load %arg21[%c0_38, %c0_39] : memref<64x128xf32, #tpu.memory_space<vmem>>, vector<8x128xf32>
    %59 = arith.truncf %24 : vector<8x32xf32> to vector<8x32xbf16>
    %c0_40 = arith.constant 0 : index
    %c0_41 = arith.constant 0 : index
    %60 = vector.load %arg7[%c0_40, %c0_41] : memref<32x128xbf16, #tpu.memory_space<vmem>>, vector<32x128xbf16>
    %cst_42 = arith.constant dense<0.000000e+00> : vector<8x128xf32>
    %61 = tpu.matmul %59, %60, %cst_42 {dimension_numbers = #tpu.dot_dimension_numbers<[1], [0], [0], [1], [0, 0, 1, 1], [], []>} : vector<8x32xbf16>, vector<32x128xbf16>, vector<8x128xf32> -> vector<8x128xf32>
    %62 = arith.addf %58, %61 : vector<8x128xf32>
    %63 = arith.negf %62 : vector<8x128xf32>
    %64 = math.exp %63 : vector<8x128xf32>
    %cst_43 = arith.constant 1.000000e+00 : f32
    %65 = vector.broadcast %cst_43 : f32 to vector<8x128xf32>
    %66 = arith.addf %65, %64 : vector<8x128xf32>
    %67 = arith.divf %65, %66 : vector<8x128xf32>
    %68 = math.tanh %62 : vector<8x128xf32>
    %69 = vector.extract_strided_slice %67 {offsets = [0, 0], sizes = [8, 32], strides = [1, 1]} : vector<8x128xf32> to vector<8x32xf32>
    %70 = vector.extract_strided_slice %67 {offsets = [0, 32], sizes = [8, 32], strides = [1, 1]} : vector<8x128xf32> to vector<8x32xf32>
    %71 = vector.extract_strided_slice %68 {offsets = [0, 64], sizes = [8, 32], strides = [1, 1]} : vector<8x128xf32> to vector<8x32xf32>
    %72 = vector.extract_strided_slice %67 {offsets = [0, 96], sizes = [8, 32], strides = [1, 1]} : vector<8x128xf32> to vector<8x32xf32>
    %73 = arith.mulf %70, %26 : vector<8x32xf32>
    %74 = arith.mulf %69, %71 : vector<8x32xf32>
    %75 = arith.addf %73, %74 : vector<8x32xf32>
    %76 = math.tanh %75 : vector<8x32xf32>
    %77 = arith.mulf %72, %76 : vector<8x32xf32>
    %78 = tpu.concatenate %57, %17 in 1 : vector<8x128xf32>, vector<8x128xf32> -> vector<8x256xf32>
    %79 = arith.truncf %78 : vector<8x256xf32> to vector<8x256xbf16>
    %c0_44 = arith.constant 0 : index
    %c0_45 = arith.constant 0 : index
    %c0_46 = arith.constant 0 : index
    %80 = vector.load %arg4[%c0_44, %c0_45, %c0_46] : memref<3x256x512xbf16, #tpu.memory_space<vmem>>, vector<1x256x512xbf16>
    %81 = vector.shape_cast %80 : vector<1x256x512xbf16> to vector<256x512xbf16>
    %cst_47 = arith.constant dense<0.000000e+00> : vector<8x512xf32>
    %82 = tpu.matmul %79, %81, %cst_47 {dimension_numbers = #tpu.dot_dimension_numbers<[1], [0], [0], [1], [0, 0, 1, 1], [], []>} : vector<8x256xbf16>, vector<256x512xbf16>, vector<8x512xf32> -> vector<8x512xf32>
    %c1 = arith.constant 1 : index
    %c0_48 = arith.constant 0 : index
    %c0_49 = arith.constant 0 : index
    %83 = vector.load %arg5[%c1, %c0_48, %c0_49] : memref<4x1x512xf32, #tpu.memory_space<vmem>>, vector<1x1x512xf32>
    %84 = vector.shape_cast %83 : vector<1x1x512xf32> to vector<1x512xf32>
    %85 = vector.broadcast %84 : vector<1x512xf32> to vector<8x512xf32>
    %86 = arith.addf %82, %85 : vector<8x512xf32>
    %87 = vector.extract_strided_slice %86 {offsets = [0, 0], sizes = [8, 128], strides = [1, 1]} : vector<8x512xf32> to vector<8x128xf32>
    %88 = arith.negf %87 : vector<8x128xf32>
    %89 = math.exp %88 : vector<8x128xf32>
    %cst_50 = arith.constant 1.000000e+00 : f32
    %90 = vector.broadcast %cst_50 : f32 to vector<8x128xf32>
    %91 = arith.addf %90, %89 : vector<8x128xf32>
    %92 = arith.divf %90, %91 : vector<8x128xf32>
    %93 = vector.extract_strided_slice %86 {offsets = [0, 128], sizes = [8, 128], strides = [1, 1]} : vector<8x512xf32> to vector<8x128xf32>
    %94 = arith.negf %93 : vector<8x128xf32>
    %95 = math.exp %94 : vector<8x128xf32>
    %cst_51 = arith.constant 1.000000e+00 : f32
    %96 = vector.broadcast %cst_51 : f32 to vector<8x128xf32>
    %97 = arith.addf %96, %95 : vector<8x128xf32>
    %98 = arith.divf %96, %97 : vector<8x128xf32>
    %99 = vector.extract_strided_slice %86 {offsets = [0, 256], sizes = [8, 128], strides = [1, 1]} : vector<8x512xf32> to vector<8x128xf32>
    %100 = math.tanh %99 : vector<8x128xf32>
    %101 = vector.extract_strided_slice %86 {offsets = [0, 384], sizes = [8, 128], strides = [1, 1]} : vector<8x512xf32> to vector<8x128xf32>
    %102 = arith.negf %101 : vector<8x128xf32>
    %103 = math.exp %102 : vector<8x128xf32>
    %cst_52 = arith.constant 1.000000e+00 : f32
    %104 = vector.broadcast %cst_52 : f32 to vector<8x128xf32>
    %105 = arith.addf %104, %103 : vector<8x128xf32>
    %106 = arith.divf %104, %105 : vector<8x128xf32>
    %107 = arith.mulf %98, %21 : vector<8x128xf32>
    %108 = arith.mulf %92, %100 : vector<8x128xf32>
    %109 = arith.addf %107, %108 : vector<8x128xf32>
    %110 = math.tanh %109 : vector<8x128xf32>
    %111 = arith.mulf %106, %110 : vector<8x128xf32>
    %c8 = arith.constant 8 : index
    %c0_53 = arith.constant 0 : index
    %112 = vector.load %arg20[%c8, %c0_53] : memref<64x512xf32, #tpu.memory_space<vmem>>, vector<8x512xf32>
    %113 = arith.truncf %57 : vector<8x128xf32> to vector<8x128xbf16>
    %c0_54 = arith.constant 0 : index
    %c0_55 = arith.constant 0 : index
    %114 = vector.load %arg3[%c0_54, %c0_55] : memref<128x512xbf16, #tpu.memory_space<vmem>>, vector<128x512xbf16>
    %cst_56 = arith.constant dense<0.000000e+00> : vector<8x512xf32>
    %115 = tpu.matmul %113, %114, %cst_56 {dimension_numbers = #tpu.dot_dimension_numbers<[1], [0], [0], [1], [0, 0, 1, 1], [], []>} : vector<8x128xbf16>, vector<128x512xbf16>, vector<8x512xf32> -> vector<8x512xf32>
    %116 = arith.addf %112, %115 : vector<8x512xf32>
    %117 = vector.extract_strided_slice %116 {offsets = [0, 0], sizes = [8, 128], strides = [1, 1]} : vector<8x512xf32> to vector<8x128xf32>
    %118 = arith.negf %117 : vector<8x128xf32>
    %119 = math.exp %118 : vector<8x128xf32>
    %cst_57 = arith.constant 1.000000e+00 : f32
    %120 = vector.broadcast %cst_57 : f32 to vector<8x128xf32>
    %121 = arith.addf %120, %119 : vector<8x128xf32>
    %122 = arith.divf %120, %121 : vector<8x128xf32>
    %123 = vector.extract_strided_slice %116 {offsets = [0, 128], sizes = [8, 128], strides = [1, 1]} : vector<8x512xf32> to vector<8x128xf32>
    %124 = arith.negf %123 : vector<8x128xf32>
    %125 = math.exp %124 : vector<8x128xf32>
    %cst_58 = arith.constant 1.000000e+00 : f32
    %126 = vector.broadcast %cst_58 : f32 to vector<8x128xf32>
    %127 = arith.addf %126, %125 : vector<8x128xf32>
    %128 = arith.divf %126, %127 : vector<8x128xf32>
    %129 = vector.extract_strided_slice %116 {offsets = [0, 256], sizes = [8, 128], strides = [1, 1]} : vector<8x512xf32> to vector<8x128xf32>
    %130 = math.tanh %129 : vector<8x128xf32>
    %131 = vector.extract_strided_slice %116 {offsets = [0, 384], sizes = [8, 128], strides = [1, 1]} : vector<8x512xf32> to vector<8x128xf32>
    %132 = arith.negf %131 : vector<8x128xf32>
    %133 = math.exp %132 : vector<8x128xf32>
    %cst_59 = arith.constant 1.000000e+00 : f32
    %134 = vector.broadcast %cst_59 : f32 to vector<8x128xf32>
    %135 = arith.addf %134, %133 : vector<8x128xf32>
    %136 = arith.divf %134, %135 : vector<8x128xf32>
    %137 = arith.mulf %128, %55 : vector<8x128xf32>
    %138 = arith.mulf %122, %130 : vector<8x128xf32>
    %139 = arith.addf %137, %138 : vector<8x128xf32>
    %140 = math.tanh %139 : vector<8x128xf32>
    %141 = arith.mulf %136, %140 : vector<8x128xf32>
    %142 = arith.truncf %77 : vector<8x32xf32> to vector<8x32xbf16>
    %c0_60 = arith.constant 0 : index
    %c0_61 = arith.constant 0 : index
    %c0_62 = arith.constant 0 : index
    %143 = vector.load %arg8[%c0_60, %c0_61, %c0_62] : memref<1x64x128xbf16, #tpu.memory_space<vmem>>, vector<1x32x128xbf16>
    %144 = vector.shape_cast %143 : vector<1x32x128xbf16> to vector<32x128xbf16>
    %cst_63 = arith.constant dense<0.000000e+00> : vector<8x128xf32>
    %145 = tpu.matmul %142, %144, %cst_63 {dimension_numbers = #tpu.dot_dimension_numbers<[1], [0], [0], [1], [0, 0, 1, 1], [], []>} : vector<8x32xbf16>, vector<32x128xbf16>, vector<8x128xf32> -> vector<8x128xf32>
    %146 = arith.truncf %25 : vector<8x32xf32> to vector<8x32xbf16>
    %c0_64 = arith.constant 0 : index
    %c32 = arith.constant 32 : index
    %c0_65 = arith.constant 0 : index
    %147 = vector.load %arg8[%c0_64, %c32, %c0_65] : memref<1x64x128xbf16, #tpu.memory_space<vmem>>, vector<1x32x128xbf16>
    %148 = vector.shape_cast %147 : vector<1x32x128xbf16> to vector<32x128xbf16>
    %cst_66 = arith.constant dense<0.000000e+00> : vector<8x128xf32>
    %149 = tpu.matmul %146, %148, %cst_66 {dimension_numbers = #tpu.dot_dimension_numbers<[1], [0], [0], [1], [0, 0, 1, 1], [], []>} : vector<8x32xbf16>, vector<32x128xbf16>, vector<8x128xf32> -> vector<8x128xf32>
    %150 = arith.addf %145, %149 : vector<8x128xf32>
    %c1_67 = arith.constant 1 : index
    %c0_68 = arith.constant 0 : index
    %c0_69 = arith.constant 0 : index
    %151 = vector.load %arg9[%c1_67, %c0_68, %c0_69] : memref<2x1x128xf32, #tpu.memory_space<vmem>>, vector<1x1x128xf32>
    %152 = vector.shape_cast %151 : vector<1x1x128xf32> to vector<1x128xf32>
    %153 = vector.broadcast %152 : vector<1x128xf32> to vector<8x128xf32>
    %154 = arith.addf %150, %153 : vector<8x128xf32>
    %155 = arith.negf %154 : vector<8x128xf32>
    %156 = math.exp %155 : vector<8x128xf32>
    %cst_70 = arith.constant 1.000000e+00 : f32
    %157 = vector.broadcast %cst_70 : f32 to vector<8x128xf32>
    %158 = arith.addf %157, %156 : vector<8x128xf32>
    %159 = arith.divf %157, %158 : vector<8x128xf32>
    %160 = math.tanh %154 : vector<8x128xf32>
    %161 = vector.extract_strided_slice %159 {offsets = [0, 0], sizes = [8, 32], strides = [1, 1]} : vector<8x128xf32> to vector<8x32xf32>
    %162 = vector.extract_strided_slice %159 {offsets = [0, 32], sizes = [8, 32], strides = [1, 1]} : vector<8x128xf32> to vector<8x32xf32>
    %163 = vector.extract_strided_slice %160 {offsets = [0, 64], sizes = [8, 32], strides = [1, 1]} : vector<8x128xf32> to vector<8x32xf32>
    %164 = vector.extract_strided_slice %159 {offsets = [0, 96], sizes = [8, 32], strides = [1, 1]} : vector<8x128xf32> to vector<8x32xf32>
    %165 = arith.mulf %162, %27 : vector<8x32xf32>
    %166 = arith.mulf %161, %163 : vector<8x32xf32>
    %167 = arith.addf %165, %166 : vector<8x32xf32>
    %168 = math.tanh %167 : vector<8x32xf32>
    %169 = arith.mulf %164, %168 : vector<8x32xf32>
    %c8_71 = arith.constant 8 : index
    %c0_72 = arith.constant 0 : index
    %170 = vector.load %arg21[%c8_71, %c0_72] : memref<64x128xf32, #tpu.memory_space<vmem>>, vector<8x128xf32>
    %171 = arith.truncf %77 : vector<8x32xf32> to vector<8x32xbf16>
    %c0_73 = arith.constant 0 : index
    %c0_74 = arith.constant 0 : index
    %172 = vector.load %arg7[%c0_73, %c0_74] : memref<32x128xbf16, #tpu.memory_space<vmem>>, vector<32x128xbf16>
    %cst_75 = arith.constant dense<0.000000e+00> : vector<8x128xf32>
    %173 = tpu.matmul %171, %172, %cst_75 {dimension_numbers = #tpu.dot_dimension_numbers<[1], [0], [0], [1], [0, 0, 1, 1], [], []>} : vector<8x32xbf16>, vector<32x128xbf16>, vector<8x128xf32> -> vector<8x128xf32>
    %174 = arith.addf %170, %173 : vector<8x128xf32>
    %175 = arith.negf %174 : vector<8x128xf32>
    %176 = math.exp %175 : vector<8x128xf32>
    %cst_76 = arith.constant 1.000000e+00 : f32
    %177 = vector.broadcast %cst_76 : f32 to vector<8x128xf32>
    %178 = arith.addf %177, %176 : vector<8x128xf32>
    %179 = arith.divf %177, %178 : vector<8x128xf32>
    %180 = math.tanh %174 : vector<8x128xf32>
    %181 = vector.extract_strided_slice %179 {offsets = [0, 0], sizes = [8, 32], strides = [1, 1]} : vector<8x128xf32> to vector<8x32xf32>
    %182 = vector.extract_strided_slice %179 {offsets = [0, 32], sizes = [8, 32], strides = [1, 1]} : vector<8x128xf32> to vector<8x32xf32>
    %183 = vector.extract_strided_slice %180 {offsets = [0, 64], sizes = [8, 32], strides = [1, 1]} : vector<8x128xf32> to vector<8x32xf32>
    %184 = vector.extract_strided_slice %179 {offsets = [0, 96], sizes = [8, 32], strides = [1, 1]} : vector<8x128xf32> to vector<8x32xf32>
    %185 = arith.mulf %182, %75 : vector<8x32xf32>
    %186 = arith.mulf %181, %183 : vector<8x32xf32>
    %187 = arith.addf %185, %186 : vector<8x32xf32>
    %188 = math.tanh %187 : vector<8x32xf32>
    %189 = arith.mulf %184, %188 : vector<8x32xf32>
    %190 = tpu.concatenate %111, %18 in 1 : vector<8x128xf32>, vector<8x128xf32> -> vector<8x256xf32>
    %191 = arith.truncf %190 : vector<8x256xf32> to vector<8x256xbf16>
    %c1_77 = arith.constant 1 : index
    %c0_78 = arith.constant 0 : index
    %c0_79 = arith.constant 0 : index
    %192 = vector.load %arg4[%c1_77, %c0_78, %c0_79] : memref<3x256x512xbf16, #tpu.memory_space<vmem>>, vector<1x256x512xbf16>
    %193 = vector.shape_cast %192 : vector<1x256x512xbf16> to vector<256x512xbf16>
    %cst_80 = arith.constant dense<0.000000e+00> : vector<8x512xf32>
    %194 = tpu.matmul %191, %193, %cst_80 {dimension_numbers = #tpu.dot_dimension_numbers<[1], [0], [0], [1], [0, 0, 1, 1], [], []>} : vector<8x256xbf16>, vector<256x512xbf16>, vector<8x512xf32> -> vector<8x512xf32>
    %c2 = arith.constant 2 : index
    %c0_81 = arith.constant 0 : index
    %c0_82 = arith.constant 0 : index
    %195 = vector.load %arg5[%c2, %c0_81, %c0_82] : memref<4x1x512xf32, #tpu.memory_space<vmem>>, vector<1x1x512xf32>
    %196 = vector.shape_cast %195 : vector<1x1x512xf32> to vector<1x512xf32>
    %197 = vector.broadcast %196 : vector<1x512xf32> to vector<8x512xf32>
    %198 = arith.addf %194, %197 : vector<8x512xf32>
    %199 = vector.extract_strided_slice %198 {offsets = [0, 0], sizes = [8, 128], strides = [1, 1]} : vector<8x512xf32> to vector<8x128xf32>
    %200 = arith.negf %199 : vector<8x128xf32>
    %201 = math.exp %200 : vector<8x128xf32>
    %cst_83 = arith.constant 1.000000e+00 : f32
    %202 = vector.broadcast %cst_83 : f32 to vector<8x128xf32>
    %203 = arith.addf %202, %201 : vector<8x128xf32>
    %204 = arith.divf %202, %203 : vector<8x128xf32>
    %205 = vector.extract_strided_slice %198 {offsets = [0, 128], sizes = [8, 128], strides = [1, 1]} : vector<8x512xf32> to vector<8x128xf32>
    %206 = arith.negf %205 : vector<8x128xf32>
    %207 = math.exp %206 : vector<8x128xf32>
    %cst_84 = arith.constant 1.000000e+00 : f32
    %208 = vector.broadcast %cst_84 : f32 to vector<8x128xf32>
    %209 = arith.addf %208, %207 : vector<8x128xf32>
    %210 = arith.divf %208, %209 : vector<8x128xf32>
    %211 = vector.extract_strided_slice %198 {offsets = [0, 256], sizes = [8, 128], strides = [1, 1]} : vector<8x512xf32> to vector<8x128xf32>
    %212 = math.tanh %211 : vector<8x128xf32>
    %213 = vector.extract_strided_slice %198 {offsets = [0, 384], sizes = [8, 128], strides = [1, 1]} : vector<8x512xf32> to vector<8x128xf32>
    %214 = arith.negf %213 : vector<8x128xf32>
    %215 = math.exp %214 : vector<8x128xf32>
    %cst_85 = arith.constant 1.000000e+00 : f32
    %216 = vector.broadcast %cst_85 : f32 to vector<8x128xf32>
    %217 = arith.addf %216, %215 : vector<8x128xf32>
    %218 = arith.divf %216, %217 : vector<8x128xf32>
    %219 = arith.mulf %210, %22 : vector<8x128xf32>
    %220 = arith.mulf %204, %212 : vector<8x128xf32>
    %221 = arith.addf %219, %220 : vector<8x128xf32>
    %222 = math.tanh %221 : vector<8x128xf32>
    %223 = arith.mulf %218, %222 : vector<8x128xf32>
    %224 = tpu.concatenate %141, %111 in 1 : vector<8x128xf32>, vector<8x128xf32> -> vector<8x256xf32>
    %225 = arith.truncf %224 : vector<8x256xf32> to vector<8x256xbf16>
    %c0_86 = arith.constant 0 : index
    %c0_87 = arith.constant 0 : index
    %c0_88 = arith.constant 0 : index
    %226 = vector.load %arg4[%c0_86, %c0_87, %c0_88] : memref<3x256x512xbf16, #tpu.memory_space<vmem>>, vector<1x256x512xbf16>
    %227 = vector.shape_cast %226 : vector<1x256x512xbf16> to vector<256x512xbf16>
    %cst_89 = arith.constant dense<0.000000e+00> : vector<8x512xf32>
    %228 = tpu.matmul %225, %227, %cst_89 {dimension_numbers = #tpu.dot_dimension_numbers<[1], [0], [0], [1], [0, 0, 1, 1], [], []>} : vector<8x256xbf16>, vector<256x512xbf16>, vector<8x512xf32> -> vector<8x512xf32>
    %c1_90 = arith.constant 1 : index
    %c0_91 = arith.constant 0 : index
    %c0_92 = arith.constant 0 : index
    %229 = vector.load %arg5[%c1_90, %c0_91, %c0_92] : memref<4x1x512xf32, #tpu.memory_space<vmem>>, vector<1x1x512xf32>
    %230 = vector.shape_cast %229 : vector<1x1x512xf32> to vector<1x512xf32>
    %231 = vector.broadcast %230 : vector<1x512xf32> to vector<8x512xf32>
    %232 = arith.addf %228, %231 : vector<8x512xf32>
    %233 = vector.extract_strided_slice %232 {offsets = [0, 0], sizes = [8, 128], strides = [1, 1]} : vector<8x512xf32> to vector<8x128xf32>
    %234 = arith.negf %233 : vector<8x128xf32>
    %235 = math.exp %234 : vector<8x128xf32>
    %cst_93 = arith.constant 1.000000e+00 : f32
    %236 = vector.broadcast %cst_93 : f32 to vector<8x128xf32>
    %237 = arith.addf %236, %235 : vector<8x128xf32>
    %238 = arith.divf %236, %237 : vector<8x128xf32>
    %239 = vector.extract_strided_slice %232 {offsets = [0, 128], sizes = [8, 128], strides = [1, 1]} : vector<8x512xf32> to vector<8x128xf32>
    %240 = arith.negf %239 : vector<8x128xf32>
    %241 = math.exp %240 : vector<8x128xf32>
    %cst_94 = arith.constant 1.000000e+00 : f32
    %242 = vector.broadcast %cst_94 : f32 to vector<8x128xf32>
    %243 = arith.addf %242, %241 : vector<8x128xf32>
    %244 = arith.divf %242, %243 : vector<8x128xf32>
    %245 = vector.extract_strided_slice %232 {offsets = [0, 256], sizes = [8, 128], strides = [1, 1]} : vector<8x512xf32> to vector<8x128xf32>
    %246 = math.tanh %245 : vector<8x128xf32>
    %247 = vector.extract_strided_slice %232 {offsets = [0, 384], sizes = [8, 128], strides = [1, 1]} : vector<8x512xf32> to vector<8x128xf32>
    %248 = arith.negf %247 : vector<8x128xf32>
    %249 = math.exp %248 : vector<8x128xf32>
    %cst_95 = arith.constant 1.000000e+00 : f32
    %250 = vector.broadcast %cst_95 : f32 to vector<8x128xf32>
    %251 = arith.addf %250, %249 : vector<8x128xf32>
    %252 = arith.divf %250, %251 : vector<8x128xf32>
    %253 = arith.mulf %244, %109 : vector<8x128xf32>
    %254 = arith.mulf %238, %246 : vector<8x128xf32>
    %255 = arith.addf %253, %254 : vector<8x128xf32>
    %256 = math.tanh %255 : vector<8x128xf32>
    %257 = arith.mulf %252, %256 : vector<8x128xf32>
    %c16 = arith.constant 16 : index
    %c0_96 = arith.constant 0 : index
    %258 = vector.load %arg20[%c16, %c0_96] : memref<64x512xf32, #tpu.memory_space<vmem>>, vector<8x512xf32>
    %259 = arith.truncf %141 : vector<8x128xf32> to vector<8x128xbf16>
    %c0_97 = arith.constant 0 : index
    %c0_98 = arith.constant 0 : index
    %260 = vector.load %arg3[%c0_97, %c0_98] : memref<128x512xbf16, #tpu.memory_space<vmem>>, vector<128x512xbf16>
    %cst_99 = arith.constant dense<0.000000e+00> : vector<8x512xf32>
    %261 = tpu.matmul %259, %260, %cst_99 {dimension_numbers = #tpu.dot_dimension_numbers<[1], [0], [0], [1], [0, 0, 1, 1], [], []>} : vector<8x128xbf16>, vector<128x512xbf16>, vector<8x512xf32> -> vector<8x512xf32>
    %262 = arith.addf %258, %261 : vector<8x512xf32>
    %263 = vector.extract_strided_slice %262 {offsets = [0, 0], sizes = [8, 128], strides = [1, 1]} : vector<8x512xf32> to vector<8x128xf32>
    %264 = arith.negf %263 : vector<8x128xf32>
    %265 = math.exp %264 : vector<8x128xf32>
    %cst_100 = arith.constant 1.000000e+00 : f32
    %266 = vector.broadcast %cst_100 : f32 to vector<8x128xf32>
    %267 = arith.addf %266, %265 : vector<8x128xf32>
    %268 = arith.divf %266, %267 : vector<8x128xf32>
    %269 = vector.extract_strided_slice %262 {offsets = [0, 128], sizes = [8, 128], strides = [1, 1]} : vector<8x512xf32> to vector<8x128xf32>
    %270 = arith.negf %269 : vector<8x128xf32>
    %271 = math.exp %270 : vector<8x128xf32>
    %cst_101 = arith.constant 1.000000e+00 : f32
    %272 = vector.broadcast %cst_101 : f32 to vector<8x128xf32>
    %273 = arith.addf %272, %271 : vector<8x128xf32>
    %274 = arith.divf %272, %273 : vector<8x128xf32>
    %275 = vector.extract_strided_slice %262 {offsets = [0, 256], sizes = [8, 128], strides = [1, 1]} : vector<8x512xf32> to vector<8x128xf32>
    %276 = math.tanh %275 : vector<8x128xf32>
    %277 = vector.extract_strided_slice %262 {offsets = [0, 384], sizes = [8, 128], strides = [1, 1]} : vector<8x512xf32> to vector<8x128xf32>
    %278 = arith.negf %277 : vector<8x128xf32>
    %279 = math.exp %278 : vector<8x128xf32>
    %cst_102 = arith.constant 1.000000e+00 : f32
    %280 = vector.broadcast %cst_102 : f32 to vector<8x128xf32>
    %281 = arith.addf %280, %279 : vector<8x128xf32>
    %282 = arith.divf %280, %281 : vector<8x128xf32>
    %283 = arith.mulf %274, %139 : vector<8x128xf32>
    %284 = arith.mulf %268, %276 : vector<8x128xf32>
    %285 = arith.addf %283, %284 : vector<8x128xf32>
    %286 = math.tanh %285 : vector<8x128xf32>
    %287 = arith.mulf %282, %286 : vector<8x128xf32>
    %288 = arith.truncf %189 : vector<8x32xf32> to vector<8x32xbf16>
    %c0_103 = arith.constant 0 : index
    %c0_104 = arith.constant 0 : index
    %c0_105 = arith.constant 0 : index
    %289 = vector.load %arg8[%c0_103, %c0_104, %c0_105] : memref<1x64x128xbf16, #tpu.memory_space<vmem>>, vector<1x32x128xbf16>
    %290 = vector.shape_cast %289 : vector<1x32x128xbf16> to vector<32x128xbf16>
    %cst_106 = arith.constant dense<0.000000e+00> : vector<8x128xf32>
    %291 = tpu.matmul %288, %290, %cst_106 {dimension_numbers = #tpu.dot_dimension_numbers<[1], [0], [0], [1], [0, 0, 1, 1], [], []>} : vector<8x32xbf16>, vector<32x128xbf16>, vector<8x128xf32> -> vector<8x128xf32>
    %292 = arith.truncf %169 : vector<8x32xf32> to vector<8x32xbf16>
    %c0_107 = arith.constant 0 : index
    %c32_108 = arith.constant 32 : index
    %c0_109 = arith.constant 0 : index
    %293 = vector.load %arg8[%c0_107, %c32_108, %c0_109] : memref<1x64x128xbf16, #tpu.memory_space<vmem>>, vector<1x32x128xbf16>
    %294 = vector.shape_cast %293 : vector<1x32x128xbf16> to vector<32x128xbf16>
    %cst_110 = arith.constant dense<0.000000e+00> : vector<8x128xf32>
    %295 = tpu.matmul %292, %294, %cst_110 {dimension_numbers = #tpu.dot_dimension_numbers<[1], [0], [0], [1], [0, 0, 1, 1], [], []>} : vector<8x32xbf16>, vector<32x128xbf16>, vector<8x128xf32> -> vector<8x128xf32>
    %296 = arith.addf %291, %295 : vector<8x128xf32>
    %c1_111 = arith.constant 1 : index
    %c0_112 = arith.constant 0 : index
    %c0_113 = arith.constant 0 : index
    %297 = vector.load %arg9[%c1_111, %c0_112, %c0_113] : memref<2x1x128xf32, #tpu.memory_space<vmem>>, vector<1x1x128xf32>
    %298 = vector.shape_cast %297 : vector<1x1x128xf32> to vector<1x128xf32>
    %299 = vector.broadcast %298 : vector<1x128xf32> to vector<8x128xf32>
    %300 = arith.addf %296, %299 : vector<8x128xf32>
    %301 = arith.negf %300 : vector<8x128xf32>
    %302 = math.exp %301 : vector<8x128xf32>
    %cst_114 = arith.constant 1.000000e+00 : f32
    %303 = vector.broadcast %cst_114 : f32 to vector<8x128xf32>
    %304 = arith.addf %303, %302 : vector<8x128xf32>
    %305 = arith.divf %303, %304 : vector<8x128xf32>
    %306 = math.tanh %300 : vector<8x128xf32>
    %307 = vector.extract_strided_slice %305 {offsets = [0, 0], sizes = [8, 32], strides = [1, 1]} : vector<8x128xf32> to vector<8x32xf32>
    %308 = vector.extract_strided_slice %305 {offsets = [0, 32], sizes = [8, 32], strides = [1, 1]} : vector<8x128xf32> to vector<8x32xf32>
    %309 = vector.extract_strided_slice %306 {offsets = [0, 64], sizes = [8, 32], strides = [1, 1]} : vector<8x128xf32> to vector<8x32xf32>
    %310 = vector.extract_strided_slice %305 {offsets = [0, 96], sizes = [8, 32], strides = [1, 1]} : vector<8x128xf32> to vector<8x32xf32>
    %311 = arith.mulf %308, %167 : vector<8x32xf32>
    %312 = arith.mulf %307, %309 : vector<8x32xf32>
    %313 = arith.addf %311, %312 : vector<8x32xf32>
    %314 = math.tanh %313 : vector<8x32xf32>
    %315 = arith.mulf %310, %314 : vector<8x32xf32>
    %c16_115 = arith.constant 16 : index
    %c0_116 = arith.constant 0 : index
    %316 = vector.load %arg21[%c16_115, %c0_116] : memref<64x128xf32, #tpu.memory_space<vmem>>, vector<8x128xf32>
    %317 = arith.truncf %189 : vector<8x32xf32> to vector<8x32xbf16>
    %c0_117 = arith.constant 0 : index
    %c0_118 = arith.constant 0 : index
    %318 = vector.load %arg7[%c0_117, %c0_118] : memref<32x128xbf16, #tpu.memory_space<vmem>>, vector<32x128xbf16>
    %cst_119 = arith.constant dense<0.000000e+00> : vector<8x128xf32>
    %319 = tpu.matmul %317, %318, %cst_119 {dimension_numbers = #tpu.dot_dimension_numbers<[1], [0], [0], [1], [0, 0, 1, 1], [], []>} : vector<8x32xbf16>, vector<32x128xbf16>, vector<8x128xf32> -> vector<8x128xf32>
    %320 = arith.addf %316, %319 : vector<8x128xf32>
    %321 = arith.negf %320 : vector<8x128xf32>
    %322 = math.exp %321 : vector<8x128xf32>
    %cst_120 = arith.constant 1.000000e+00 : f32
    %323 = vector.broadcast %cst_120 : f32 to vector<8x128xf32>
    %324 = arith.addf %323, %322 : vector<8x128xf32>
    %325 = arith.divf %323, %324 : vector<8x128xf32>
    %326 = math.tanh %320 : vector<8x128xf32>
    %327 = vector.extract_strided_slice %325 {offsets = [0, 0], sizes = [8, 32], strides = [1, 1]} : vector<8x128xf32> to vector<8x32xf32>
    %328 = vector.extract_strided_slice %325 {offsets = [0, 32], sizes = [8, 32], strides = [1, 1]} : vector<8x128xf32> to vector<8x32xf32>
    %329 = vector.extract_strided_slice %326 {offsets = [0, 64], sizes = [8, 32], strides = [1, 1]} : vector<8x128xf32> to vector<8x32xf32>
    %330 = vector.extract_strided_slice %325 {offsets = [0, 96], sizes = [8, 32], strides = [1, 1]} : vector<8x128xf32> to vector<8x32xf32>
    %331 = arith.mulf %328, %187 : vector<8x32xf32>
    %332 = arith.mulf %327, %329 : vector<8x32xf32>
    %333 = arith.addf %331, %332 : vector<8x32xf32>
    %334 = math.tanh %333 : vector<8x32xf32>
    %335 = arith.mulf %330, %334 : vector<8x32xf32>
    %336 = tpu.concatenate %223, %19 in 1 : vector<8x128xf32>, vector<8x128xf32> -> vector<8x256xf32>
    %337 = arith.truncf %336 : vector<8x256xf32> to vector<8x256xbf16>
    %c2_121 = arith.constant 2 : index
    %c0_122 = arith.constant 0 : index
    %c0_123 = arith.constant 0 : index
    %338 = vector.load %arg4[%c2_121, %c0_122, %c0_123] : memref<3x256x512xbf16, #tpu.memory_space<vmem>>, vector<1x256x512xbf16>
    %339 = vector.shape_cast %338 : vector<1x256x512xbf16> to vector<256x512xbf16>
    %cst_124 = arith.constant dense<0.000000e+00> : vector<8x512xf32>
    %340 = tpu.matmul %337, %339, %cst_124 {dimension_numbers = #tpu.dot_dimension_numbers<[1], [0], [0], [1], [0, 0, 1, 1], [], []>} : vector<8x256xbf16>, vector<256x512xbf16>, vector<8x512xf32> -> vector<8x512xf32>
    %c3 = arith.constant 3 : index
    %c0_125 = arith.constant 0 : index
    %c0_126 = arith.constant 0 : index
    %341 = vector.load %arg5[%c3, %c0_125, %c0_126] : memref<4x1x512xf32, #tpu.memory_space<vmem>>, vector<1x1x512xf32>
    %342 = vector.shape_cast %341 : vector<1x1x512xf32> to vector<1x512xf32>
    %343 = vector.broadcast %342 : vector<1x512xf32> to vector<8x512xf32>
    %344 = arith.addf %340, %343 : vector<8x512xf32>
    %345 = vector.extract_strided_slice %344 {offsets = [0, 0], sizes = [8, 128], strides = [1, 1]} : vector<8x512xf32> to vector<8x128xf32>
    %346 = arith.negf %345 : vector<8x128xf32>
    %347 = math.exp %346 : vector<8x128xf32>
    %cst_127 = arith.constant 1.000000e+00 : f32
    %348 = vector.broadcast %cst_127 : f32 to vector<8x128xf32>
    %349 = arith.addf %348, %347 : vector<8x128xf32>
    %350 = arith.divf %348, %349 : vector<8x128xf32>
    %351 = vector.extract_strided_slice %344 {offsets = [0, 128], sizes = [8, 128], strides = [1, 1]} : vector<8x512xf32> to vector<8x128xf32>
    %352 = arith.negf %351 : vector<8x128xf32>
    %353 = math.exp %352 : vector<8x128xf32>
    %cst_128 = arith.constant 1.000000e+00 : f32
    %354 = vector.broadcast %cst_128 : f32 to vector<8x128xf32>
    %355 = arith.addf %354, %353 : vector<8x128xf32>
    %356 = arith.divf %354, %355 : vector<8x128xf32>
    %357 = vector.extract_strided_slice %344 {offsets = [0, 256], sizes = [8, 128], strides = [1, 1]} : vector<8x512xf32> to vector<8x128xf32>
    %358 = math.tanh %357 : vector<8x128xf32>
    %359 = vector.extract_strided_slice %344 {offsets = [0, 384], sizes = [8, 128], strides = [1, 1]} : vector<8x512xf32> to vector<8x128xf32>
    %360 = arith.negf %359 : vector<8x128xf32>
    %361 = math.exp %360 : vector<8x128xf32>
    %cst_129 = arith.constant 1.000000e+00 : f32
    %362 = vector.broadcast %cst_129 : f32 to vector<8x128xf32>
    %363 = arith.addf %362, %361 : vector<8x128xf32>
    %364 = arith.divf %362, %363 : vector<8x128xf32>
    %365 = arith.mulf %356, %23 : vector<8x128xf32>
    %366 = arith.mulf %350, %358 : vector<8x128xf32>
    %367 = arith.addf %365, %366 : vector<8x128xf32>
    %368 = math.tanh %367 : vector<8x128xf32>
    %369 = arith.mulf %364, %368 : vector<8x128xf32>
    %370 = tpu.concatenate %257, %223 in 1 : vector<8x128xf32>, vector<8x128xf32> -> vector<8x256xf32>
    %371 = arith.truncf %370 : vector<8x256xf32> to vector<8x256xbf16>
    %c1_130 = arith.constant 1 : index
    %c0_131 = arith.constant 0 : index
    %c0_132 = arith.constant 0 : index
    %372 = vector.load %arg4[%c1_130, %c0_131, %c0_132] : memref<3x256x512xbf16, #tpu.memory_space<vmem>>, vector<1x256x512xbf16>
    %373 = vector.shape_cast %372 : vector<1x256x512xbf16> to vector<256x512xbf16>
    %cst_133 = arith.constant dense<0.000000e+00> : vector<8x512xf32>
    %374 = tpu.matmul %371, %373, %cst_133 {dimension_numbers = #tpu.dot_dimension_numbers<[1], [0], [0], [1], [0, 0, 1, 1], [], []>} : vector<8x256xbf16>, vector<256x512xbf16>, vector<8x512xf32> -> vector<8x512xf32>
    %c2_134 = arith.constant 2 : index
    %c0_135 = arith.constant 0 : index
    %c0_136 = arith.constant 0 : index
    %375 = vector.load %arg5[%c2_134, %c0_135, %c0_136] : memref<4x1x512xf32, #tpu.memory_space<vmem>>, vector<1x1x512xf32>
    %376 = vector.shape_cast %375 : vector<1x1x512xf32> to vector<1x512xf32>
    %377 = vector.broadcast %376 : vector<1x512xf32> to vector<8x512xf32>
    %378 = arith.addf %374, %377 : vector<8x512xf32>
    %379 = vector.extract_strided_slice %378 {offsets = [0, 0], sizes = [8, 128], strides = [1, 1]} : vector<8x512xf32> to vector<8x128xf32>
    %380 = arith.negf %379 : vector<8x128xf32>
    %381 = math.exp %380 : vector<8x128xf32>
    %cst_137 = arith.constant 1.000000e+00 : f32
    %382 = vector.broadcast %cst_137 : f32 to vector<8x128xf32>
    %383 = arith.addf %382, %381 : vector<8x128xf32>
    %384 = arith.divf %382, %383 : vector<8x128xf32>
    %385 = vector.extract_strided_slice %378 {offsets = [0, 128], sizes = [8, 128], strides = [1, 1]} : vector<8x512xf32> to vector<8x128xf32>
    %386 = arith.negf %385 : vector<8x128xf32>
    %387 = math.exp %386 : vector<8x128xf32>
    %cst_138 = arith.constant 1.000000e+00 : f32
    %388 = vector.broadcast %cst_138 : f32 to vector<8x128xf32>
    %389 = arith.addf %388, %387 : vector<8x128xf32>
    %390 = arith.divf %388, %389 : vector<8x128xf32>
    %391 = vector.extract_strided_slice %378 {offsets = [0, 256], sizes = [8, 128], strides = [1, 1]} : vector<8x512xf32> to vector<8x128xf32>
    %392 = math.tanh %391 : vector<8x128xf32>
    %393 = vector.extract_strided_slice %378 {offsets = [0, 384], sizes = [8, 128], strides = [1, 1]} : vector<8x512xf32> to vector<8x128xf32>
    %394 = arith.negf %393 : vector<8x128xf32>
    %395 = math.exp %394 : vector<8x128xf32>
    %cst_139 = arith.constant 1.000000e+00 : f32
    %396 = vector.broadcast %cst_139 : f32 to vector<8x128xf32>
    %397 = arith.addf %396, %395 : vector<8x128xf32>
    %398 = arith.divf %396, %397 : vector<8x128xf32>
    %399 = arith.mulf %390, %221 : vector<8x128xf32>
    %400 = arith.mulf %384, %392 : vector<8x128xf32>
    %401 = arith.addf %399, %400 : vector<8x128xf32>
    %402 = math.tanh %401 : vector<8x128xf32>
    %403 = arith.mulf %398, %402 : vector<8x128xf32>
    %404 = tpu.concatenate %287, %257 in 1 : vector<8x128xf32>, vector<8x128xf32> -> vector<8x256xf32>
    %405 = arith.truncf %404 : vector<8x256xf32> to vector<8x256xbf16>
    %c0_140 = arith.constant 0 : index
    %c0_141 = arith.constant 0 : index
    %c0_142 = arith.constant 0 : index
    %406 = vector.load %arg4[%c0_140, %c0_141, %c0_142] : memref<3x256x512xbf16, #tpu.memory_space<vmem>>, vector<1x256x512xbf16>
    %407 = vector.shape_cast %406 : vector<1x256x512xbf16> to vector<256x512xbf16>
    %cst_143 = arith.constant dense<0.000000e+00> : vector<8x512xf32>
    %408 = tpu.matmul %405, %407, %cst_143 {dimension_numbers = #tpu.dot_dimension_numbers<[1], [0], [0], [1], [0, 0, 1, 1], [], []>} : vector<8x256xbf16>, vector<256x512xbf16>, vector<8x512xf32> -> vector<8x512xf32>
    %c1_144 = arith.constant 1 : index
    %c0_145 = arith.constant 0 : index
    %c0_146 = arith.constant 0 : index
    %409 = vector.load %arg5[%c1_144, %c0_145, %c0_146] : memref<4x1x512xf32, #tpu.memory_space<vmem>>, vector<1x1x512xf32>
    %410 = vector.shape_cast %409 : vector<1x1x512xf32> to vector<1x512xf32>
    %411 = vector.broadcast %410 : vector<1x512xf32> to vector<8x512xf32>
    %412 = arith.addf %408, %411 : vector<8x512xf32>
    %413 = vector.extract_strided_slice %412 {offsets = [0, 0], sizes = [8, 128], strides = [1, 1]} : vector<8x512xf32> to vector<8x128xf32>
    %414 = arith.negf %413 : vector<8x128xf32>
    %415 = math.exp %414 : vector<8x128xf32>
    %cst_147 = arith.constant 1.000000e+00 : f32
    %416 = vector.broadcast %cst_147 : f32 to vector<8x128xf32>
    %417 = arith.addf %416, %415 : vector<8x128xf32>
    %418 = arith.divf %416, %417 : vector<8x128xf32>
    %419 = vector.extract_strided_slice %412 {offsets = [0, 128], sizes = [8, 128], strides = [1, 1]} : vector<8x512xf32> to vector<8x128xf32>
    %420 = arith.negf %419 : vector<8x128xf32>
    %421 = math.exp %420 : vector<8x128xf32>
    %cst_148 = arith.constant 1.000000e+00 : f32
    %422 = vector.broadcast %cst_148 : f32 to vector<8x128xf32>
    %423 = arith.addf %422, %421 : vector<8x128xf32>
    %424 = arith.divf %422, %423 : vector<8x128xf32>
    %425 = vector.extract_strided_slice %412 {offsets = [0, 256], sizes = [8, 128], strides = [1, 1]} : vector<8x512xf32> to vector<8x128xf32>
    %426 = math.tanh %425 : vector<8x128xf32>
    %427 = vector.extract_strided_slice %412 {offsets = [0, 384], sizes = [8, 128], strides = [1, 1]} : vector<8x512xf32> to vector<8x128xf32>
    %428 = arith.negf %427 : vector<8x128xf32>
    %429 = math.exp %428 : vector<8x128xf32>
    %cst_149 = arith.constant 1.000000e+00 : f32
    %430 = vector.broadcast %cst_149 : f32 to vector<8x128xf32>
    %431 = arith.addf %430, %429 : vector<8x128xf32>
    %432 = arith.divf %430, %431 : vector<8x128xf32>
    %433 = arith.mulf %424, %255 : vector<8x128xf32>
    %434 = arith.mulf %418, %426 : vector<8x128xf32>
    %435 = arith.addf %433, %434 : vector<8x128xf32>
    %436 = math.tanh %435 : vector<8x128xf32>
    %437 = arith.mulf %432, %436 : vector<8x128xf32>
    %c24 = arith.constant 24 : index
    %c0_150 = arith.constant 0 : index
    %438 = vector.load %arg20[%c24, %c0_150] : memref<64x512xf32, #tpu.memory_space<vmem>>, vector<8x512xf32>
    %439 = arith.truncf %287 : vector<8x128xf32> to vector<8x128xbf16>
    %c0_151 = arith.constant 0 : index
    %c0_152 = arith.constant 0 : index
    %440 = vector.load %arg3[%c0_151, %c0_152] : memref<128x512xbf16, #tpu.memory_space<vmem>>, vector<128x512xbf16>
    %cst_153 = arith.constant dense<0.000000e+00> : vector<8x512xf32>
    %441 = tpu.matmul %439, %440, %cst_153 {dimension_numbers = #tpu.dot_dimension_numbers<[1], [0], [0], [1], [0, 0, 1, 1], [], []>} : vector<8x128xbf16>, vector<128x512xbf16>, vector<8x512xf32> -> vector<8x512xf32>
    %442 = arith.addf %438, %441 : vector<8x512xf32>
    %443 = vector.extract_strided_slice %442 {offsets = [0, 0], sizes = [8, 128], strides = [1, 1]} : vector<8x512xf32> to vector<8x128xf32>
    %444 = arith.negf %443 : vector<8x128xf32>
    %445 = math.exp %444 : vector<8x128xf32>
    %cst_154 = arith.constant 1.000000e+00 : f32
    %446 = vector.broadcast %cst_154 : f32 to vector<8x128xf32>
    %447 = arith.addf %446, %445 : vector<8x128xf32>
    %448 = arith.divf %446, %447 : vector<8x128xf32>
    %449 = vector.extract_strided_slice %442 {offsets = [0, 128], sizes = [8, 128], strides = [1, 1]} : vector<8x512xf32> to vector<8x128xf32>
    %450 = arith.negf %449 : vector<8x128xf32>
    %451 = math.exp %450 : vector<8x128xf32>
    %cst_155 = arith.constant 1.000000e+00 : f32
    %452 = vector.broadcast %cst_155 : f32 to vector<8x128xf32>
    %453 = arith.addf %452, %451 : vector<8x128xf32>
    %454 = arith.divf %452, %453 : vector<8x128xf32>
    %455 = vector.extract_strided_slice %442 {offsets = [0, 256], sizes = [8, 128], strides = [1, 1]} : vector<8x512xf32> to vector<8x128xf32>
    %456 = math.tanh %455 : vector<8x128xf32>
    %457 = vector.extract_strided_slice %442 {offsets = [0, 384], sizes = [8, 128], strides = [1, 1]} : vector<8x512xf32> to vector<8x128xf32>
    %458 = arith.negf %457 : vector<8x128xf32>
    %459 = math.exp %458 : vector<8x128xf32>
    %cst_156 = arith.constant 1.000000e+00 : f32
    %460 = vector.broadcast %cst_156 : f32 to vector<8x128xf32>
    %461 = arith.addf %460, %459 : vector<8x128xf32>
    %462 = arith.divf %460, %461 : vector<8x128xf32>
    %463 = arith.mulf %454, %285 : vector<8x128xf32>
    %464 = arith.mulf %448, %456 : vector<8x128xf32>
    %465 = arith.addf %463, %464 : vector<8x128xf32>
    %466 = math.tanh %465 : vector<8x128xf32>
    %467 = arith.mulf %462, %466 : vector<8x128xf32>
    %468 = arith.truncf %335 : vector<8x32xf32> to vector<8x32xbf16>
    %c0_157 = arith.constant 0 : index
    %c0_158 = arith.constant 0 : index
    %c0_159 = arith.constant 0 : index
    %469 = vector.load %arg8[%c0_157, %c0_158, %c0_159] : memref<1x64x128xbf16, #tpu.memory_space<vmem>>, vector<1x32x128xbf16>
    %470 = vector.shape_cast %469 : vector<1x32x128xbf16> to vector<32x128xbf16>
    %cst_160 = arith.constant dense<0.000000e+00> : vector<8x128xf32>
    %471 = tpu.matmul %468, %470, %cst_160 {dimension_numbers = #tpu.dot_dimension_numbers<[1], [0], [0], [1], [0, 0, 1, 1], [], []>} : vector<8x32xbf16>, vector<32x128xbf16>, vector<8x128xf32> -> vector<8x128xf32>
    %472 = arith.truncf %315 : vector<8x32xf32> to vector<8x32xbf16>
    %c0_161 = arith.constant 0 : index
    %c32_162 = arith.constant 32 : index
    %c0_163 = arith.constant 0 : index
    %473 = vector.load %arg8[%c0_161, %c32_162, %c0_163] : memref<1x64x128xbf16, #tpu.memory_space<vmem>>, vector<1x32x128xbf16>
    %474 = vector.shape_cast %473 : vector<1x32x128xbf16> to vector<32x128xbf16>
    %cst_164 = arith.constant dense<0.000000e+00> : vector<8x128xf32>
    %475 = tpu.matmul %472, %474, %cst_164 {dimension_numbers = #tpu.dot_dimension_numbers<[1], [0], [0], [1], [0, 0, 1, 1], [], []>} : vector<8x32xbf16>, vector<32x128xbf16>, vector<8x128xf32> -> vector<8x128xf32>
    %476 = arith.addf %471, %475 : vector<8x128xf32>
    %c1_165 = arith.constant 1 : index
    %c0_166 = arith.constant 0 : index
    %c0_167 = arith.constant 0 : index
    %477 = vector.load %arg9[%c1_165, %c0_166, %c0_167] : memref<2x1x128xf32, #tpu.memory_space<vmem>>, vector<1x1x128xf32>
    %478 = vector.shape_cast %477 : vector<1x1x128xf32> to vector<1x128xf32>
    %479 = vector.broadcast %478 : vector<1x128xf32> to vector<8x128xf32>
    %480 = arith.addf %476, %479 : vector<8x128xf32>
    %481 = arith.negf %480 : vector<8x128xf32>
    %482 = math.exp %481 : vector<8x128xf32>
    %cst_168 = arith.constant 1.000000e+00 : f32
    %483 = vector.broadcast %cst_168 : f32 to vector<8x128xf32>
    %484 = arith.addf %483, %482 : vector<8x128xf32>
    %485 = arith.divf %483, %484 : vector<8x128xf32>
    %486 = math.tanh %480 : vector<8x128xf32>
    %487 = vector.extract_strided_slice %485 {offsets = [0, 0], sizes = [8, 32], strides = [1, 1]} : vector<8x128xf32> to vector<8x32xf32>
    %488 = vector.extract_strided_slice %485 {offsets = [0, 32], sizes = [8, 32], strides = [1, 1]} : vector<8x128xf32> to vector<8x32xf32>
    %489 = vector.extract_strided_slice %486 {offsets = [0, 64], sizes = [8, 32], strides = [1, 1]} : vector<8x128xf32> to vector<8x32xf32>
    %490 = vector.extract_strided_slice %485 {offsets = [0, 96], sizes = [8, 32], strides = [1, 1]} : vector<8x128xf32> to vector<8x32xf32>
    %491 = arith.mulf %488, %313 : vector<8x32xf32>
    %492 = arith.mulf %487, %489 : vector<8x32xf32>
    %493 = arith.addf %491, %492 : vector<8x32xf32>
    %494 = math.tanh %493 : vector<8x32xf32>
    %495 = arith.mulf %490, %494 : vector<8x32xf32>
    %c24_169 = arith.constant 24 : index
    %c0_170 = arith.constant 0 : index
    %496 = vector.load %arg21[%c24_169, %c0_170] : memref<64x128xf32, #tpu.memory_space<vmem>>, vector<8x128xf32>
    %497 = arith.truncf %335 : vector<8x32xf32> to vector<8x32xbf16>
    %c0_171 = arith.constant 0 : index
    %c0_172 = arith.constant 0 : index
    %498 = vector.load %arg7[%c0_171, %c0_172] : memref<32x128xbf16, #tpu.memory_space<vmem>>, vector<32x128xbf16>
    %cst_173 = arith.constant dense<0.000000e+00> : vector<8x128xf32>
    %499 = tpu.matmul %497, %498, %cst_173 {dimension_numbers = #tpu.dot_dimension_numbers<[1], [0], [0], [1], [0, 0, 1, 1], [], []>} : vector<8x32xbf16>, vector<32x128xbf16>, vector<8x128xf32> -> vector<8x128xf32>
    %500 = arith.addf %496, %499 : vector<8x128xf32>
    %501 = arith.negf %500 : vector<8x128xf32>
    %502 = math.exp %501 : vector<8x128xf32>
    %cst_174 = arith.constant 1.000000e+00 : f32
    %503 = vector.broadcast %cst_174 : f32 to vector<8x128xf32>
    %504 = arith.addf %503, %502 : vector<8x128xf32>
    %505 = arith.divf %503, %504 : vector<8x128xf32>
    %506 = math.tanh %500 : vector<8x128xf32>
    %507 = vector.extract_strided_slice %505 {offsets = [0, 0], sizes = [8, 32], strides = [1, 1]} : vector<8x128xf32> to vector<8x32xf32>
    %508 = vector.extract_strided_slice %505 {offsets = [0, 32], sizes = [8, 32], strides = [1, 1]} : vector<8x128xf32> to vector<8x32xf32>
    %509 = vector.extract_strided_slice %506 {offsets = [0, 64], sizes = [8, 32], strides = [1, 1]} : vector<8x128xf32> to vector<8x32xf32>
    %510 = vector.extract_strided_slice %505 {offsets = [0, 96], sizes = [8, 32], strides = [1, 1]} : vector<8x128xf32> to vector<8x32xf32>
    %511 = arith.mulf %508, %333 : vector<8x32xf32>
    %512 = arith.mulf %507, %509 : vector<8x32xf32>
    %513 = arith.addf %511, %512 : vector<8x32xf32>
    %514 = math.tanh %513 : vector<8x32xf32>
    %515 = arith.mulf %510, %514 : vector<8x32xf32>
    %516 = tpu.concatenate %403, %369 in 1 : vector<8x128xf32>, vector<8x128xf32> -> vector<8x256xf32>
    %517 = arith.truncf %516 : vector<8x256xf32> to vector<8x256xbf16>
    %c2_175 = arith.constant 2 : index
    %c0_176 = arith.constant 0 : index
    %c0_177 = arith.constant 0 : index
    %518 = vector.load %arg4[%c2_175, %c0_176, %c0_177] : memref<3x256x512xbf16, #tpu.memory_space<vmem>>, vector<1x256x512xbf16>
    %519 = vector.shape_cast %518 : vector<1x256x512xbf16> to vector<256x512xbf16>
    %cst_178 = arith.constant dense<0.000000e+00> : vector<8x512xf32>
    %520 = tpu.matmul %517, %519, %cst_178 {dimension_numbers = #tpu.dot_dimension_numbers<[1], [0], [0], [1], [0, 0, 1, 1], [], []>} : vector<8x256xbf16>, vector<256x512xbf16>, vector<8x512xf32> -> vector<8x512xf32>
    %c3_179 = arith.constant 3 : index
    %c0_180 = arith.constant 0 : index
    %c0_181 = arith.constant 0 : index
    %521 = vector.load %arg5[%c3_179, %c0_180, %c0_181] : memref<4x1x512xf32, #tpu.memory_space<vmem>>, vector<1x1x512xf32>
    %522 = vector.shape_cast %521 : vector<1x1x512xf32> to vector<1x512xf32>
    %523 = vector.broadcast %522 : vector<1x512xf32> to vector<8x512xf32>
    %524 = arith.addf %520, %523 : vector<8x512xf32>
    %525 = vector.extract_strided_slice %524 {offsets = [0, 0], sizes = [8, 128], strides = [1, 1]} : vector<8x512xf32> to vector<8x128xf32>
    %526 = arith.negf %525 : vector<8x128xf32>
    %527 = math.exp %526 : vector<8x128xf32>
    %cst_182 = arith.constant 1.000000e+00 : f32
    %528 = vector.broadcast %cst_182 : f32 to vector<8x128xf32>
    %529 = arith.addf %528, %527 : vector<8x128xf32>
    %530 = arith.divf %528, %529 : vector<8x128xf32>
    %531 = vector.extract_strided_slice %524 {offsets = [0, 128], sizes = [8, 128], strides = [1, 1]} : vector<8x512xf32> to vector<8x128xf32>
    %532 = arith.negf %531 : vector<8x128xf32>
    %533 = math.exp %532 : vector<8x128xf32>
    %cst_183 = arith.constant 1.000000e+00 : f32
    %534 = vector.broadcast %cst_183 : f32 to vector<8x128xf32>
    %535 = arith.addf %534, %533 : vector<8x128xf32>
    %536 = arith.divf %534, %535 : vector<8x128xf32>
    %537 = vector.extract_strided_slice %524 {offsets = [0, 256], sizes = [8, 128], strides = [1, 1]} : vector<8x512xf32> to vector<8x128xf32>
    %538 = math.tanh %537 : vector<8x128xf32>
    %539 = vector.extract_strided_slice %524 {offsets = [0, 384], sizes = [8, 128], strides = [1, 1]} : vector<8x512xf32> to vector<8x128xf32>
    %540 = arith.negf %539 : vector<8x128xf32>
    %541 = math.exp %540 : vector<8x128xf32>
    %cst_184 = arith.constant 1.000000e+00 : f32
    %542 = vector.broadcast %cst_184 : f32 to vector<8x128xf32>
    %543 = arith.addf %542, %541 : vector<8x128xf32>
    %544 = arith.divf %542, %543 : vector<8x128xf32>
    %545 = arith.mulf %536, %367 : vector<8x128xf32>
    %546 = arith.mulf %530, %538 : vector<8x128xf32>
    %547 = arith.addf %545, %546 : vector<8x128xf32>
    %548 = math.tanh %547 : vector<8x128xf32>
    %549 = arith.mulf %544, %548 : vector<8x128xf32>
    %550 = tpu.concatenate %437, %403 in 1 : vector<8x128xf32>, vector<8x128xf32> -> vector<8x256xf32>
    %551 = arith.truncf %550 : vector<8x256xf32> to vector<8x256xbf16>
    %c1_185 = arith.constant 1 : index
    %c0_186 = arith.constant 0 : index
    %c0_187 = arith.constant 0 : index
    %552 = vector.load %arg4[%c1_185, %c0_186, %c0_187] : memref<3x256x512xbf16, #tpu.memory_space<vmem>>, vector<1x256x512xbf16>
    %553 = vector.shape_cast %552 : vector<1x256x512xbf16> to vector<256x512xbf16>
    %cst_188 = arith.constant dense<0.000000e+00> : vector<8x512xf32>
    %554 = tpu.matmul %551, %553, %cst_188 {dimension_numbers = #tpu.dot_dimension_numbers<[1], [0], [0], [1], [0, 0, 1, 1], [], []>} : vector<8x256xbf16>, vector<256x512xbf16>, vector<8x512xf32> -> vector<8x512xf32>
    %c2_189 = arith.constant 2 : index
    %c0_190 = arith.constant 0 : index
    %c0_191 = arith.constant 0 : index
    %555 = vector.load %arg5[%c2_189, %c0_190, %c0_191] : memref<4x1x512xf32, #tpu.memory_space<vmem>>, vector<1x1x512xf32>
    %556 = vector.shape_cast %555 : vector<1x1x512xf32> to vector<1x512xf32>
    %557 = vector.broadcast %556 : vector<1x512xf32> to vector<8x512xf32>
    %558 = arith.addf %554, %557 : vector<8x512xf32>
    %559 = vector.extract_strided_slice %558 {offsets = [0, 0], sizes = [8, 128], strides = [1, 1]} : vector<8x512xf32> to vector<8x128xf32>
    %560 = arith.negf %559 : vector<8x128xf32>
    %561 = math.exp %560 : vector<8x128xf32>
    %cst_192 = arith.constant 1.000000e+00 : f32
    %562 = vector.broadcast %cst_192 : f32 to vector<8x128xf32>
    %563 = arith.addf %562, %561 : vector<8x128xf32>
    %564 = arith.divf %562, %563 : vector<8x128xf32>
    %565 = vector.extract_strided_slice %558 {offsets = [0, 128], sizes = [8, 128], strides = [1, 1]} : vector<8x512xf32> to vector<8x128xf32>
    %566 = arith.negf %565 : vector<8x128xf32>
    %567 = math.exp %566 : vector<8x128xf32>
    %cst_193 = arith.constant 1.000000e+00 : f32
    %568 = vector.broadcast %cst_193 : f32 to vector<8x128xf32>
    %569 = arith.addf %568, %567 : vector<8x128xf32>
    %570 = arith.divf %568, %569 : vector<8x128xf32>
    %571 = vector.extract_strided_slice %558 {offsets = [0, 256], sizes = [8, 128], strides = [1, 1]} : vector<8x512xf32> to vector<8x128xf32>
    %572 = math.tanh %571 : vector<8x128xf32>
    %573 = vector.extract_strided_slice %558 {offsets = [0, 384], sizes = [8, 128], strides = [1, 1]} : vector<8x512xf32> to vector<8x128xf32>
    %574 = arith.negf %573 : vector<8x128xf32>
    %575 = math.exp %574 : vector<8x128xf32>
    %cst_194 = arith.constant 1.000000e+00 : f32
    %576 = vector.broadcast %cst_194 : f32 to vector<8x128xf32>
    %577 = arith.addf %576, %575 : vector<8x128xf32>
    %578 = arith.divf %576, %577 : vector<8x128xf32>
    %579 = arith.mulf %570, %401 : vector<8x128xf32>
    %580 = arith.mulf %564, %572 : vector<8x128xf32>
    %581 = arith.addf %579, %580 : vector<8x128xf32>
    %582 = math.tanh %581 : vector<8x128xf32>
    %583 = arith.mulf %578, %582 : vector<8x128xf32>
    %584 = tpu.concatenate %467, %437 in 1 : vector<8x128xf32>, vector<8x128xf32> -> vector<8x256xf32>
    %585 = arith.truncf %584 : vector<8x256xf32> to vector<8x256xbf16>
    %c0_195 = arith.constant 0 : index
    %c0_196 = arith.constant 0 : index
    %c0_197 = arith.constant 0 : index
    %586 = vector.load %arg4[%c0_195, %c0_196, %c0_197] : memref<3x256x512xbf16, #tpu.memory_space<vmem>>, vector<1x256x512xbf16>
    %587 = vector.shape_cast %586 : vector<1x256x512xbf16> to vector<256x512xbf16>
    %cst_198 = arith.constant dense<0.000000e+00> : vector<8x512xf32>
    %588 = tpu.matmul %585, %587, %cst_198 {dimension_numbers = #tpu.dot_dimension_numbers<[1], [0], [0], [1], [0, 0, 1, 1], [], []>} : vector<8x256xbf16>, vector<256x512xbf16>, vector<8x512xf32> -> vector<8x512xf32>
    %c1_199 = arith.constant 1 : index
    %c0_200 = arith.constant 0 : index
    %c0_201 = arith.constant 0 : index
    %589 = vector.load %arg5[%c1_199, %c0_200, %c0_201] : memref<4x1x512xf32, #tpu.memory_space<vmem>>, vector<1x1x512xf32>
    %590 = vector.shape_cast %589 : vector<1x1x512xf32> to vector<1x512xf32>
    %591 = vector.broadcast %590 : vector<1x512xf32> to vector<8x512xf32>
    %592 = arith.addf %588, %591 : vector<8x512xf32>
    %593 = vector.extract_strided_slice %592 {offsets = [0, 0], sizes = [8, 128], strides = [1, 1]} : vector<8x512xf32> to vector<8x128xf32>
    %594 = arith.negf %593 : vector<8x128xf32>
    %595 = math.exp %594 : vector<8x128xf32>
    %cst_202 = arith.constant 1.000000e+00 : f32
    %596 = vector.broadcast %cst_202 : f32 to vector<8x128xf32>
    %597 = arith.addf %596, %595 : vector<8x128xf32>
    %598 = arith.divf %596, %597 : vector<8x128xf32>
    %599 = vector.extract_strided_slice %592 {offsets = [0, 128], sizes = [8, 128], strides = [1, 1]} : vector<8x512xf32> to vector<8x128xf32>
    %600 = arith.negf %599 : vector<8x128xf32>
    %601 = math.exp %600 : vector<8x128xf32>
    %cst_203 = arith.constant 1.000000e+00 : f32
    %602 = vector.broadcast %cst_203 : f32 to vector<8x128xf32>
    %603 = arith.addf %602, %601 : vector<8x128xf32>
    %604 = arith.divf %602, %603 : vector<8x128xf32>
    %605 = vector.extract_strided_slice %592 {offsets = [0, 256], sizes = [8, 128], strides = [1, 1]} : vector<8x512xf32> to vector<8x128xf32>
    %606 = math.tanh %605 : vector<8x128xf32>
    %607 = vector.extract_strided_slice %592 {offsets = [0, 384], sizes = [8, 128], strides = [1, 1]} : vector<8x512xf32> to vector<8x128xf32>
    %608 = arith.negf %607 : vector<8x128xf32>
    %609 = math.exp %608 : vector<8x128xf32>
    %cst_204 = arith.constant 1.000000e+00 : f32
    %610 = vector.broadcast %cst_204 : f32 to vector<8x128xf32>
    %611 = arith.addf %610, %609 : vector<8x128xf32>
    %612 = arith.divf %610, %611 : vector<8x128xf32>
    %613 = arith.mulf %604, %435 : vector<8x128xf32>
    %614 = arith.mulf %598, %606 : vector<8x128xf32>
    %615 = arith.addf %613, %614 : vector<8x128xf32>
    %616 = math.tanh %615 : vector<8x128xf32>
    %617 = arith.mulf %612, %616 : vector<8x128xf32>
    %c32_205 = arith.constant 32 : index
    %c0_206 = arith.constant 0 : index
    %618 = vector.load %arg20[%c32_205, %c0_206] : memref<64x512xf32, #tpu.memory_space<vmem>>, vector<8x512xf32>
    %619 = arith.truncf %467 : vector<8x128xf32> to vector<8x128xbf16>
    %c0_207 = arith.constant 0 : index
    %c0_208 = arith.constant 0 : index
    %620 = vector.load %arg3[%c0_207, %c0_208] : memref<128x512xbf16, #tpu.memory_space<vmem>>, vector<128x512xbf16>
    %cst_209 = arith.constant dense<0.000000e+00> : vector<8x512xf32>
    %621 = tpu.matmul %619, %620, %cst_209 {dimension_numbers = #tpu.dot_dimension_numbers<[1], [0], [0], [1], [0, 0, 1, 1], [], []>} : vector<8x128xbf16>, vector<128x512xbf16>, vector<8x512xf32> -> vector<8x512xf32>
    %622 = arith.addf %618, %621 : vector<8x512xf32>
    %623 = vector.extract_strided_slice %622 {offsets = [0, 0], sizes = [8, 128], strides = [1, 1]} : vector<8x512xf32> to vector<8x128xf32>
    %624 = arith.negf %623 : vector<8x128xf32>
    %625 = math.exp %624 : vector<8x128xf32>
    %cst_210 = arith.constant 1.000000e+00 : f32
    %626 = vector.broadcast %cst_210 : f32 to vector<8x128xf32>
    %627 = arith.addf %626, %625 : vector<8x128xf32>
    %628 = arith.divf %626, %627 : vector<8x128xf32>
    %629 = vector.extract_strided_slice %622 {offsets = [0, 128], sizes = [8, 128], strides = [1, 1]} : vector<8x512xf32> to vector<8x128xf32>
    %630 = arith.negf %629 : vector<8x128xf32>
    %631 = math.exp %630 : vector<8x128xf32>
    %cst_211 = arith.constant 1.000000e+00 : f32
    %632 = vector.broadcast %cst_211 : f32 to vector<8x128xf32>
    %633 = arith.addf %632, %631 : vector<8x128xf32>
    %634 = arith.divf %632, %633 : vector<8x128xf32>
    %635 = vector.extract_strided_slice %622 {offsets = [0, 256], sizes = [8, 128], strides = [1, 1]} : vector<8x512xf32> to vector<8x128xf32>
    %636 = math.tanh %635 : vector<8x128xf32>
    %637 = vector.extract_strided_slice %622 {offsets = [0, 384], sizes = [8, 128], strides = [1, 1]} : vector<8x512xf32> to vector<8x128xf32>
    %638 = arith.negf %637 : vector<8x128xf32>
    %639 = math.exp %638 : vector<8x128xf32>
    %cst_212 = arith.constant 1.000000e+00 : f32
    %640 = vector.broadcast %cst_212 : f32 to vector<8x128xf32>
    %641 = arith.addf %640, %639 : vector<8x128xf32>
    %642 = arith.divf %640, %641 : vector<8x128xf32>
    %643 = arith.mulf %634, %465 : vector<8x128xf32>
    %644 = arith.mulf %628, %636 : vector<8x128xf32>
    %645 = arith.addf %643, %644 : vector<8x128xf32>
    %646 = math.tanh %645 : vector<8x128xf32>
    %647 = arith.mulf %642, %646 : vector<8x128xf32>
    %648 = arith.truncf %515 : vector<8x32xf32> to vector<8x32xbf16>
    %c0_213 = arith.constant 0 : index
    %c0_214 = arith.constant 0 : index
    %c0_215 = arith.constant 0 : index
    %649 = vector.load %arg8[%c0_213, %c0_214, %c0_215] : memref<1x64x128xbf16, #tpu.memory_space<vmem>>, vector<1x32x128xbf16>
    %650 = vector.shape_cast %649 : vector<1x32x128xbf16> to vector<32x128xbf16>
    %cst_216 = arith.constant dense<0.000000e+00> : vector<8x128xf32>
    %651 = tpu.matmul %648, %650, %cst_216 {dimension_numbers = #tpu.dot_dimension_numbers<[1], [0], [0], [1], [0, 0, 1, 1], [], []>} : vector<8x32xbf16>, vector<32x128xbf16>, vector<8x128xf32> -> vector<8x128xf32>
    %652 = arith.truncf %495 : vector<8x32xf32> to vector<8x32xbf16>
    %c0_217 = arith.constant 0 : index
    %c32_218 = arith.constant 32 : index
    %c0_219 = arith.constant 0 : index
    %653 = vector.load %arg8[%c0_217, %c32_218, %c0_219] : memref<1x64x128xbf16, #tpu.memory_space<vmem>>, vector<1x32x128xbf16>
    %654 = vector.shape_cast %653 : vector<1x32x128xbf16> to vector<32x128xbf16>
    %cst_220 = arith.constant dense<0.000000e+00> : vector<8x128xf32>
    %655 = tpu.matmul %652, %654, %cst_220 {dimension_numbers = #tpu.dot_dimension_numbers<[1], [0], [0], [1], [0, 0, 1, 1], [], []>} : vector<8x32xbf16>, vector<32x128xbf16>, vector<8x128xf32> -> vector<8x128xf32>
    %656 = arith.addf %651, %655 : vector<8x128xf32>
    %c1_221 = arith.constant 1 : index
    %c0_222 = arith.constant 0 : index
    %c0_223 = arith.constant 0 : index
    %657 = vector.load %arg9[%c1_221, %c0_222, %c0_223] : memref<2x1x128xf32, #tpu.memory_space<vmem>>, vector<1x1x128xf32>
    %658 = vector.shape_cast %657 : vector<1x1x128xf32> to vector<1x128xf32>
    %659 = vector.broadcast %658 : vector<1x128xf32> to vector<8x128xf32>
    %660 = arith.addf %656, %659 : vector<8x128xf32>
    %661 = arith.negf %660 : vector<8x128xf32>
    %662 = math.exp %661 : vector<8x128xf32>
    %cst_224 = arith.constant 1.000000e+00 : f32
    %663 = vector.broadcast %cst_224 : f32 to vector<8x128xf32>
    %664 = arith.addf %663, %662 : vector<8x128xf32>
    %665 = arith.divf %663, %664 : vector<8x128xf32>
    %666 = math.tanh %660 : vector<8x128xf32>
    %667 = vector.extract_strided_slice %665 {offsets = [0, 0], sizes = [8, 32], strides = [1, 1]} : vector<8x128xf32> to vector<8x32xf32>
    %668 = vector.extract_strided_slice %665 {offsets = [0, 32], sizes = [8, 32], strides = [1, 1]} : vector<8x128xf32> to vector<8x32xf32>
    %669 = vector.extract_strided_slice %666 {offsets = [0, 64], sizes = [8, 32], strides = [1, 1]} : vector<8x128xf32> to vector<8x32xf32>
    %670 = vector.extract_strided_slice %665 {offsets = [0, 96], sizes = [8, 32], strides = [1, 1]} : vector<8x128xf32> to vector<8x32xf32>
    %671 = arith.mulf %668, %493 : vector<8x32xf32>
    %672 = arith.mulf %667, %669 : vector<8x32xf32>
    %673 = arith.addf %671, %672 : vector<8x32xf32>
    %674 = math.tanh %673 : vector<8x32xf32>
    %675 = arith.mulf %670, %674 : vector<8x32xf32>
    %c32_225 = arith.constant 32 : index
    %c0_226 = arith.constant 0 : index
    %676 = vector.load %arg21[%c32_225, %c0_226] : memref<64x128xf32, #tpu.memory_space<vmem>>, vector<8x128xf32>
    %677 = arith.truncf %515 : vector<8x32xf32> to vector<8x32xbf16>
    %c0_227 = arith.constant 0 : index
    %c0_228 = arith.constant 0 : index
    %678 = vector.load %arg7[%c0_227, %c0_228] : memref<32x128xbf16, #tpu.memory_space<vmem>>, vector<32x128xbf16>
    %cst_229 = arith.constant dense<0.000000e+00> : vector<8x128xf32>
    %679 = tpu.matmul %677, %678, %cst_229 {dimension_numbers = #tpu.dot_dimension_numbers<[1], [0], [0], [1], [0, 0, 1, 1], [], []>} : vector<8x32xbf16>, vector<32x128xbf16>, vector<8x128xf32> -> vector<8x128xf32>
    %680 = arith.addf %676, %679 : vector<8x128xf32>
    %681 = arith.negf %680 : vector<8x128xf32>
    %682 = math.exp %681 : vector<8x128xf32>
    %cst_230 = arith.constant 1.000000e+00 : f32
    %683 = vector.broadcast %cst_230 : f32 to vector<8x128xf32>
    %684 = arith.addf %683, %682 : vector<8x128xf32>
    %685 = arith.divf %683, %684 : vector<8x128xf32>
    %686 = math.tanh %680 : vector<8x128xf32>
    %687 = vector.extract_strided_slice %685 {offsets = [0, 0], sizes = [8, 32], strides = [1, 1]} : vector<8x128xf32> to vector<8x32xf32>
    %688 = vector.extract_strided_slice %685 {offsets = [0, 32], sizes = [8, 32], strides = [1, 1]} : vector<8x128xf32> to vector<8x32xf32>
    %689 = vector.extract_strided_slice %686 {offsets = [0, 64], sizes = [8, 32], strides = [1, 1]} : vector<8x128xf32> to vector<8x32xf32>
    %690 = vector.extract_strided_slice %685 {offsets = [0, 96], sizes = [8, 32], strides = [1, 1]} : vector<8x128xf32> to vector<8x32xf32>
    %691 = arith.mulf %688, %513 : vector<8x32xf32>
    %692 = arith.mulf %687, %689 : vector<8x32xf32>
    %693 = arith.addf %691, %692 : vector<8x32xf32>
    %694 = math.tanh %693 : vector<8x32xf32>
    %695 = arith.mulf %690, %694 : vector<8x32xf32>
    %696 = tpu.concatenate %583, %549 in 1 : vector<8x128xf32>, vector<8x128xf32> -> vector<8x256xf32>
    %697 = arith.truncf %696 : vector<8x256xf32> to vector<8x256xbf16>
    %c2_231 = arith.constant 2 : index
    %c0_232 = arith.constant 0 : index
    %c0_233 = arith.constant 0 : index
    %698 = vector.load %arg4[%c2_231, %c0_232, %c0_233] : memref<3x256x512xbf16, #tpu.memory_space<vmem>>, vector<1x256x512xbf16>
    %699 = vector.shape_cast %698 : vector<1x256x512xbf16> to vector<256x512xbf16>
    %cst_234 = arith.constant dense<0.000000e+00> : vector<8x512xf32>
    %700 = tpu.matmul %697, %699, %cst_234 {dimension_numbers = #tpu.dot_dimension_numbers<[1], [0], [0], [1], [0, 0, 1, 1], [], []>} : vector<8x256xbf16>, vector<256x512xbf16>, vector<8x512xf32> -> vector<8x512xf32>
    %c3_235 = arith.constant 3 : index
    %c0_236 = arith.constant 0 : index
    %c0_237 = arith.constant 0 : index
    %701 = vector.load %arg5[%c3_235, %c0_236, %c0_237] : memref<4x1x512xf32, #tpu.memory_space<vmem>>, vector<1x1x512xf32>
    %702 = vector.shape_cast %701 : vector<1x1x512xf32> to vector<1x512xf32>
    %703 = vector.broadcast %702 : vector<1x512xf32> to vector<8x512xf32>
    %704 = arith.addf %700, %703 : vector<8x512xf32>
    %705 = vector.extract_strided_slice %704 {offsets = [0, 0], sizes = [8, 128], strides = [1, 1]} : vector<8x512xf32> to vector<8x128xf32>
    %706 = arith.negf %705 : vector<8x128xf32>
    %707 = math.exp %706 : vector<8x128xf32>
    %cst_238 = arith.constant 1.000000e+00 : f32
    %708 = vector.broadcast %cst_238 : f32 to vector<8x128xf32>
    %709 = arith.addf %708, %707 : vector<8x128xf32>
    %710 = arith.divf %708, %709 : vector<8x128xf32>
    %711 = vector.extract_strided_slice %704 {offsets = [0, 128], sizes = [8, 128], strides = [1, 1]} : vector<8x512xf32> to vector<8x128xf32>
    %712 = arith.negf %711 : vector<8x128xf32>
    %713 = math.exp %712 : vector<8x128xf32>
    %cst_239 = arith.constant 1.000000e+00 : f32
    %714 = vector.broadcast %cst_239 : f32 to vector<8x128xf32>
    %715 = arith.addf %714, %713 : vector<8x128xf32>
    %716 = arith.divf %714, %715 : vector<8x128xf32>
    %717 = vector.extract_strided_slice %704 {offsets = [0, 256], sizes = [8, 128], strides = [1, 1]} : vector<8x512xf32> to vector<8x128xf32>
    %718 = math.tanh %717 : vector<8x128xf32>
    %719 = vector.extract_strided_slice %704 {offsets = [0, 384], sizes = [8, 128], strides = [1, 1]} : vector<8x512xf32> to vector<8x128xf32>
    %720 = arith.negf %719 : vector<8x128xf32>
    %721 = math.exp %720 : vector<8x128xf32>
    %cst_240 = arith.constant 1.000000e+00 : f32
    %722 = vector.broadcast %cst_240 : f32 to vector<8x128xf32>
    %723 = arith.addf %722, %721 : vector<8x128xf32>
    %724 = arith.divf %722, %723 : vector<8x128xf32>
    %725 = arith.mulf %716, %547 : vector<8x128xf32>
    %726 = arith.mulf %710, %718 : vector<8x128xf32>
    %727 = arith.addf %725, %726 : vector<8x128xf32>
    %728 = math.tanh %727 : vector<8x128xf32>
    %729 = arith.mulf %724, %728 : vector<8x128xf32>
    %730 = tpu.concatenate %617, %583 in 1 : vector<8x128xf32>, vector<8x128xf32> -> vector<8x256xf32>
    %731 = arith.truncf %730 : vector<8x256xf32> to vector<8x256xbf16>
    %c1_241 = arith.constant 1 : index
    %c0_242 = arith.constant 0 : index
    %c0_243 = arith.constant 0 : index
    %732 = vector.load %arg4[%c1_241, %c0_242, %c0_243] : memref<3x256x512xbf16, #tpu.memory_space<vmem>>, vector<1x256x512xbf16>
    %733 = vector.shape_cast %732 : vector<1x256x512xbf16> to vector<256x512xbf16>
    %cst_244 = arith.constant dense<0.000000e+00> : vector<8x512xf32>
    %734 = tpu.matmul %731, %733, %cst_244 {dimension_numbers = #tpu.dot_dimension_numbers<[1], [0], [0], [1], [0, 0, 1, 1], [], []>} : vector<8x256xbf16>, vector<256x512xbf16>, vector<8x512xf32> -> vector<8x512xf32>
    %c2_245 = arith.constant 2 : index
    %c0_246 = arith.constant 0 : index
    %c0_247 = arith.constant 0 : index
    %735 = vector.load %arg5[%c2_245, %c0_246, %c0_247] : memref<4x1x512xf32, #tpu.memory_space<vmem>>, vector<1x1x512xf32>
    %736 = vector.shape_cast %735 : vector<1x1x512xf32> to vector<1x512xf32>
    %737 = vector.broadcast %736 : vector<1x512xf32> to vector<8x512xf32>
    %738 = arith.addf %734, %737 : vector<8x512xf32>
    %739 = vector.extract_strided_slice %738 {offsets = [0, 0], sizes = [8, 128], strides = [1, 1]} : vector<8x512xf32> to vector<8x128xf32>
    %740 = arith.negf %739 : vector<8x128xf32>
    %741 = math.exp %740 : vector<8x128xf32>
    %cst_248 = arith.constant 1.000000e+00 : f32
    %742 = vector.broadcast %cst_248 : f32 to vector<8x128xf32>
    %743 = arith.addf %742, %741 : vector<8x128xf32>
    %744 = arith.divf %742, %743 : vector<8x128xf32>
    %745 = vector.extract_strided_slice %738 {offsets = [0, 128], sizes = [8, 128], strides = [1, 1]} : vector<8x512xf32> to vector<8x128xf32>
    %746 = arith.negf %745 : vector<8x128xf32>
    %747 = math.exp %746 : vector<8x128xf32>
    %cst_249 = arith.constant 1.000000e+00 : f32
    %748 = vector.broadcast %cst_249 : f32 to vector<8x128xf32>
    %749 = arith.addf %748, %747 : vector<8x128xf32>
    %750 = arith.divf %748, %749 : vector<8x128xf32>
    %751 = vector.extract_strided_slice %738 {offsets = [0, 256], sizes = [8, 128], strides = [1, 1]} : vector<8x512xf32> to vector<8x128xf32>
    %752 = math.tanh %751 : vector<8x128xf32>
    %753 = vector.extract_strided_slice %738 {offsets = [0, 384], sizes = [8, 128], strides = [1, 1]} : vector<8x512xf32> to vector<8x128xf32>
    %754 = arith.negf %753 : vector<8x128xf32>
    %755 = math.exp %754 : vector<8x128xf32>
    %cst_250 = arith.constant 1.000000e+00 : f32
    %756 = vector.broadcast %cst_250 : f32 to vector<8x128xf32>
    %757 = arith.addf %756, %755 : vector<8x128xf32>
    %758 = arith.divf %756, %757 : vector<8x128xf32>
    %759 = arith.mulf %750, %581 : vector<8x128xf32>
    %760 = arith.mulf %744, %752 : vector<8x128xf32>
    %761 = arith.addf %759, %760 : vector<8x128xf32>
    %762 = math.tanh %761 : vector<8x128xf32>
    %763 = arith.mulf %758, %762 : vector<8x128xf32>
    %764 = tpu.concatenate %647, %617 in 1 : vector<8x128xf32>, vector<8x128xf32> -> vector<8x256xf32>
    %765 = arith.truncf %764 : vector<8x256xf32> to vector<8x256xbf16>
    %c0_251 = arith.constant 0 : index
    %c0_252 = arith.constant 0 : index
    %c0_253 = arith.constant 0 : index
    %766 = vector.load %arg4[%c0_251, %c0_252, %c0_253] : memref<3x256x512xbf16, #tpu.memory_space<vmem>>, vector<1x256x512xbf16>
    %767 = vector.shape_cast %766 : vector<1x256x512xbf16> to vector<256x512xbf16>
    %cst_254 = arith.constant dense<0.000000e+00> : vector<8x512xf32>
    %768 = tpu.matmul %765, %767, %cst_254 {dimension_numbers = #tpu.dot_dimension_numbers<[1], [0], [0], [1], [0, 0, 1, 1], [], []>} : vector<8x256xbf16>, vector<256x512xbf16>, vector<8x512xf32> -> vector<8x512xf32>
    %c1_255 = arith.constant 1 : index
    %c0_256 = arith.constant 0 : index
    %c0_257 = arith.constant 0 : index
    %769 = vector.load %arg5[%c1_255, %c0_256, %c0_257] : memref<4x1x512xf32, #tpu.memory_space<vmem>>, vector<1x1x512xf32>
    %770 = vector.shape_cast %769 : vector<1x1x512xf32> to vector<1x512xf32>
    %771 = vector.broadcast %770 : vector<1x512xf32> to vector<8x512xf32>
    %772 = arith.addf %768, %771 : vector<8x512xf32>
    %773 = vector.extract_strided_slice %772 {offsets = [0, 0], sizes = [8, 128], strides = [1, 1]} : vector<8x512xf32> to vector<8x128xf32>
    %774 = arith.negf %773 : vector<8x128xf32>
    %775 = math.exp %774 : vector<8x128xf32>
    %cst_258 = arith.constant 1.000000e+00 : f32
    %776 = vector.broadcast %cst_258 : f32 to vector<8x128xf32>
    %777 = arith.addf %776, %775 : vector<8x128xf32>
    %778 = arith.divf %776, %777 : vector<8x128xf32>
    %779 = vector.extract_strided_slice %772 {offsets = [0, 128], sizes = [8, 128], strides = [1, 1]} : vector<8x512xf32> to vector<8x128xf32>
    %780 = arith.negf %779 : vector<8x128xf32>
    %781 = math.exp %780 : vector<8x128xf32>
    %cst_259 = arith.constant 1.000000e+00 : f32
    %782 = vector.broadcast %cst_259 : f32 to vector<8x128xf32>
    %783 = arith.addf %782, %781 : vector<8x128xf32>
    %784 = arith.divf %782, %783 : vector<8x128xf32>
    %785 = vector.extract_strided_slice %772 {offsets = [0, 256], sizes = [8, 128], strides = [1, 1]} : vector<8x512xf32> to vector<8x128xf32>
    %786 = math.tanh %785 : vector<8x128xf32>
    %787 = vector.extract_strided_slice %772 {offsets = [0, 384], sizes = [8, 128], strides = [1, 1]} : vector<8x512xf32> to vector<8x128xf32>
    %788 = arith.negf %787 : vector<8x128xf32>
    %789 = math.exp %788 : vector<8x128xf32>
    %cst_260 = arith.constant 1.000000e+00 : f32
    %790 = vector.broadcast %cst_260 : f32 to vector<8x128xf32>
    %791 = arith.addf %790, %789 : vector<8x128xf32>
    %792 = arith.divf %790, %791 : vector<8x128xf32>
    %793 = arith.mulf %784, %615 : vector<8x128xf32>
    %794 = arith.mulf %778, %786 : vector<8x128xf32>
    %795 = arith.addf %793, %794 : vector<8x128xf32>
    %796 = math.tanh %795 : vector<8x128xf32>
    %797 = arith.mulf %792, %796 : vector<8x128xf32>
    %c40 = arith.constant 40 : index
    %c0_261 = arith.constant 0 : index
    %798 = vector.load %arg20[%c40, %c0_261] : memref<64x512xf32, #tpu.memory_space<vmem>>, vector<8x512xf32>
    %799 = arith.truncf %647 : vector<8x128xf32> to vector<8x128xbf16>
    %c0_262 = arith.constant 0 : index
    %c0_263 = arith.constant 0 : index
    %800 = vector.load %arg3[%c0_262, %c0_263] : memref<128x512xbf16, #tpu.memory_space<vmem>>, vector<128x512xbf16>
    %cst_264 = arith.constant dense<0.000000e+00> : vector<8x512xf32>
    %801 = tpu.matmul %799, %800, %cst_264 {dimension_numbers = #tpu.dot_dimension_numbers<[1], [0], [0], [1], [0, 0, 1, 1], [], []>} : vector<8x128xbf16>, vector<128x512xbf16>, vector<8x512xf32> -> vector<8x512xf32>
    %802 = arith.addf %798, %801 : vector<8x512xf32>
    %803 = vector.extract_strided_slice %802 {offsets = [0, 0], sizes = [8, 128], strides = [1, 1]} : vector<8x512xf32> to vector<8x128xf32>
    %804 = arith.negf %803 : vector<8x128xf32>
    %805 = math.exp %804 : vector<8x128xf32>
    %cst_265 = arith.constant 1.000000e+00 : f32
    %806 = vector.broadcast %cst_265 : f32 to vector<8x128xf32>
    %807 = arith.addf %806, %805 : vector<8x128xf32>
    %808 = arith.divf %806, %807 : vector<8x128xf32>
    %809 = vector.extract_strided_slice %802 {offsets = [0, 128], sizes = [8, 128], strides = [1, 1]} : vector<8x512xf32> to vector<8x128xf32>
    %810 = arith.negf %809 : vector<8x128xf32>
    %811 = math.exp %810 : vector<8x128xf32>
    %cst_266 = arith.constant 1.000000e+00 : f32
    %812 = vector.broadcast %cst_266 : f32 to vector<8x128xf32>
    %813 = arith.addf %812, %811 : vector<8x128xf32>
    %814 = arith.divf %812, %813 : vector<8x128xf32>
    %815 = vector.extract_strided_slice %802 {offsets = [0, 256], sizes = [8, 128], strides = [1, 1]} : vector<8x512xf32> to vector<8x128xf32>
    %816 = math.tanh %815 : vector<8x128xf32>
    %817 = vector.extract_strided_slice %802 {offsets = [0, 384], sizes = [8, 128], strides = [1, 1]} : vector<8x512xf32> to vector<8x128xf32>
    %818 = arith.negf %817 : vector<8x128xf32>
    %819 = math.exp %818 : vector<8x128xf32>
    %cst_267 = arith.constant 1.000000e+00 : f32
    %820 = vector.broadcast %cst_267 : f32 to vector<8x128xf32>
    %821 = arith.addf %820, %819 : vector<8x128xf32>
    %822 = arith.divf %820, %821 : vector<8x128xf32>
    %823 = arith.mulf %814, %645 : vector<8x128xf32>
    %824 = arith.mulf %808, %816 : vector<8x128xf32>
    %825 = arith.addf %823, %824 : vector<8x128xf32>
    %826 = math.tanh %825 : vector<8x128xf32>
    %827 = arith.mulf %822, %826 : vector<8x128xf32>
    %828 = arith.truncf %695 : vector<8x32xf32> to vector<8x32xbf16>
    %c0_268 = arith.constant 0 : index
    %c0_269 = arith.constant 0 : index
    %c0_270 = arith.constant 0 : index
    %829 = vector.load %arg8[%c0_268, %c0_269, %c0_270] : memref<1x64x128xbf16, #tpu.memory_space<vmem>>, vector<1x32x128xbf16>
    %830 = vector.shape_cast %829 : vector<1x32x128xbf16> to vector<32x128xbf16>
    %cst_271 = arith.constant dense<0.000000e+00> : vector<8x128xf32>
    %831 = tpu.matmul %828, %830, %cst_271 {dimension_numbers = #tpu.dot_dimension_numbers<[1], [0], [0], [1], [0, 0, 1, 1], [], []>} : vector<8x32xbf16>, vector<32x128xbf16>, vector<8x128xf32> -> vector<8x128xf32>
    %832 = arith.truncf %675 : vector<8x32xf32> to vector<8x32xbf16>
    %c0_272 = arith.constant 0 : index
    %c32_273 = arith.constant 32 : index
    %c0_274 = arith.constant 0 : index
    %833 = vector.load %arg8[%c0_272, %c32_273, %c0_274] : memref<1x64x128xbf16, #tpu.memory_space<vmem>>, vector<1x32x128xbf16>
    %834 = vector.shape_cast %833 : vector<1x32x128xbf16> to vector<32x128xbf16>
    %cst_275 = arith.constant dense<0.000000e+00> : vector<8x128xf32>
    %835 = tpu.matmul %832, %834, %cst_275 {dimension_numbers = #tpu.dot_dimension_numbers<[1], [0], [0], [1], [0, 0, 1, 1], [], []>} : vector<8x32xbf16>, vector<32x128xbf16>, vector<8x128xf32> -> vector<8x128xf32>
    %836 = arith.addf %831, %835 : vector<8x128xf32>
    %c1_276 = arith.constant 1 : index
    %c0_277 = arith.constant 0 : index
    %c0_278 = arith.constant 0 : index
    %837 = vector.load %arg9[%c1_276, %c0_277, %c0_278] : memref<2x1x128xf32, #tpu.memory_space<vmem>>, vector<1x1x128xf32>
    %838 = vector.shape_cast %837 : vector<1x1x128xf32> to vector<1x128xf32>
    %839 = vector.broadcast %838 : vector<1x128xf32> to vector<8x128xf32>
    %840 = arith.addf %836, %839 : vector<8x128xf32>
    %841 = arith.negf %840 : vector<8x128xf32>
    %842 = math.exp %841 : vector<8x128xf32>
    %cst_279 = arith.constant 1.000000e+00 : f32
    %843 = vector.broadcast %cst_279 : f32 to vector<8x128xf32>
    %844 = arith.addf %843, %842 : vector<8x128xf32>
    %845 = arith.divf %843, %844 : vector<8x128xf32>
    %846 = math.tanh %840 : vector<8x128xf32>
    %847 = vector.extract_strided_slice %845 {offsets = [0, 0], sizes = [8, 32], strides = [1, 1]} : vector<8x128xf32> to vector<8x32xf32>
    %848 = vector.extract_strided_slice %845 {offsets = [0, 32], sizes = [8, 32], strides = [1, 1]} : vector<8x128xf32> to vector<8x32xf32>
    %849 = vector.extract_strided_slice %846 {offsets = [0, 64], sizes = [8, 32], strides = [1, 1]} : vector<8x128xf32> to vector<8x32xf32>
    %850 = vector.extract_strided_slice %845 {offsets = [0, 96], sizes = [8, 32], strides = [1, 1]} : vector<8x128xf32> to vector<8x32xf32>
    %851 = arith.mulf %848, %673 : vector<8x32xf32>
    %852 = arith.mulf %847, %849 : vector<8x32xf32>
    %853 = arith.addf %851, %852 : vector<8x32xf32>
    %854 = math.tanh %853 : vector<8x32xf32>
    %855 = arith.mulf %850, %854 : vector<8x32xf32>
    %c40_280 = arith.constant 40 : index
    %c0_281 = arith.constant 0 : index
    %856 = vector.load %arg21[%c40_280, %c0_281] : memref<64x128xf32, #tpu.memory_space<vmem>>, vector<8x128xf32>
    %857 = arith.truncf %695 : vector<8x32xf32> to vector<8x32xbf16>
    %c0_282 = arith.constant 0 : index
    %c0_283 = arith.constant 0 : index
    %858 = vector.load %arg7[%c0_282, %c0_283] : memref<32x128xbf16, #tpu.memory_space<vmem>>, vector<32x128xbf16>
    %cst_284 = arith.constant dense<0.000000e+00> : vector<8x128xf32>
    %859 = tpu.matmul %857, %858, %cst_284 {dimension_numbers = #tpu.dot_dimension_numbers<[1], [0], [0], [1], [0, 0, 1, 1], [], []>} : vector<8x32xbf16>, vector<32x128xbf16>, vector<8x128xf32> -> vector<8x128xf32>
    %860 = arith.addf %856, %859 : vector<8x128xf32>
    %861 = arith.negf %860 : vector<8x128xf32>
    %862 = math.exp %861 : vector<8x128xf32>
    %cst_285 = arith.constant 1.000000e+00 : f32
    %863 = vector.broadcast %cst_285 : f32 to vector<8x128xf32>
    %864 = arith.addf %863, %862 : vector<8x128xf32>
    %865 = arith.divf %863, %864 : vector<8x128xf32>
    %866 = math.tanh %860 : vector<8x128xf32>
    %867 = vector.extract_strided_slice %865 {offsets = [0, 0], sizes = [8, 32], strides = [1, 1]} : vector<8x128xf32> to vector<8x32xf32>
    %868 = vector.extract_strided_slice %865 {offsets = [0, 32], sizes = [8, 32], strides = [1, 1]} : vector<8x128xf32> to vector<8x32xf32>
    %869 = vector.extract_strided_slice %866 {offsets = [0, 64], sizes = [8, 32], strides = [1, 1]} : vector<8x128xf32> to vector<8x32xf32>
    %870 = vector.extract_strided_slice %865 {offsets = [0, 96], sizes = [8, 32], strides = [1, 1]} : vector<8x128xf32> to vector<8x32xf32>
    %871 = arith.mulf %868, %693 : vector<8x32xf32>
    %872 = arith.mulf %867, %869 : vector<8x32xf32>
    %873 = arith.addf %871, %872 : vector<8x32xf32>
    %874 = math.tanh %873 : vector<8x32xf32>
    %875 = arith.mulf %870, %874 : vector<8x32xf32>
    %876 = tpu.concatenate %763, %729 in 1 : vector<8x128xf32>, vector<8x128xf32> -> vector<8x256xf32>
    %877 = arith.truncf %876 : vector<8x256xf32> to vector<8x256xbf16>
    %c2_286 = arith.constant 2 : index
    %c0_287 = arith.constant 0 : index
    %c0_288 = arith.constant 0 : index
    %878 = vector.load %arg4[%c2_286, %c0_287, %c0_288] : memref<3x256x512xbf16, #tpu.memory_space<vmem>>, vector<1x256x512xbf16>
    %879 = vector.shape_cast %878 : vector<1x256x512xbf16> to vector<256x512xbf16>
    %cst_289 = arith.constant dense<0.000000e+00> : vector<8x512xf32>
    %880 = tpu.matmul %877, %879, %cst_289 {dimension_numbers = #tpu.dot_dimension_numbers<[1], [0], [0], [1], [0, 0, 1, 1], [], []>} : vector<8x256xbf16>, vector<256x512xbf16>, vector<8x512xf32> -> vector<8x512xf32>
    %c3_290 = arith.constant 3 : index
    %c0_291 = arith.constant 0 : index
    %c0_292 = arith.constant 0 : index
    %881 = vector.load %arg5[%c3_290, %c0_291, %c0_292] : memref<4x1x512xf32, #tpu.memory_space<vmem>>, vector<1x1x512xf32>
    %882 = vector.shape_cast %881 : vector<1x1x512xf32> to vector<1x512xf32>
    %883 = vector.broadcast %882 : vector<1x512xf32> to vector<8x512xf32>
    %884 = arith.addf %880, %883 : vector<8x512xf32>
    %885 = vector.extract_strided_slice %884 {offsets = [0, 0], sizes = [8, 128], strides = [1, 1]} : vector<8x512xf32> to vector<8x128xf32>
    %886 = arith.negf %885 : vector<8x128xf32>
    %887 = math.exp %886 : vector<8x128xf32>
    %cst_293 = arith.constant 1.000000e+00 : f32
    %888 = vector.broadcast %cst_293 : f32 to vector<8x128xf32>
    %889 = arith.addf %888, %887 : vector<8x128xf32>
    %890 = arith.divf %888, %889 : vector<8x128xf32>
    %891 = vector.extract_strided_slice %884 {offsets = [0, 128], sizes = [8, 128], strides = [1, 1]} : vector<8x512xf32> to vector<8x128xf32>
    %892 = arith.negf %891 : vector<8x128xf32>
    %893 = math.exp %892 : vector<8x128xf32>
    %cst_294 = arith.constant 1.000000e+00 : f32
    %894 = vector.broadcast %cst_294 : f32 to vector<8x128xf32>
    %895 = arith.addf %894, %893 : vector<8x128xf32>
    %896 = arith.divf %894, %895 : vector<8x128xf32>
    %897 = vector.extract_strided_slice %884 {offsets = [0, 256], sizes = [8, 128], strides = [1, 1]} : vector<8x512xf32> to vector<8x128xf32>
    %898 = math.tanh %897 : vector<8x128xf32>
    %899 = vector.extract_strided_slice %884 {offsets = [0, 384], sizes = [8, 128], strides = [1, 1]} : vector<8x512xf32> to vector<8x128xf32>
    %900 = arith.negf %899 : vector<8x128xf32>
    %901 = math.exp %900 : vector<8x128xf32>
    %cst_295 = arith.constant 1.000000e+00 : f32
    %902 = vector.broadcast %cst_295 : f32 to vector<8x128xf32>
    %903 = arith.addf %902, %901 : vector<8x128xf32>
    %904 = arith.divf %902, %903 : vector<8x128xf32>
    %905 = arith.mulf %896, %727 : vector<8x128xf32>
    %906 = arith.mulf %890, %898 : vector<8x128xf32>
    %907 = arith.addf %905, %906 : vector<8x128xf32>
    %908 = math.tanh %907 : vector<8x128xf32>
    %909 = arith.mulf %904, %908 : vector<8x128xf32>
    %910 = tpu.concatenate %797, %763 in 1 : vector<8x128xf32>, vector<8x128xf32> -> vector<8x256xf32>
    %911 = arith.truncf %910 : vector<8x256xf32> to vector<8x256xbf16>
    %c1_296 = arith.constant 1 : index
    %c0_297 = arith.constant 0 : index
    %c0_298 = arith.constant 0 : index
    %912 = vector.load %arg4[%c1_296, %c0_297, %c0_298] : memref<3x256x512xbf16, #tpu.memory_space<vmem>>, vector<1x256x512xbf16>
    %913 = vector.shape_cast %912 : vector<1x256x512xbf16> to vector<256x512xbf16>
    %cst_299 = arith.constant dense<0.000000e+00> : vector<8x512xf32>
    %914 = tpu.matmul %911, %913, %cst_299 {dimension_numbers = #tpu.dot_dimension_numbers<[1], [0], [0], [1], [0, 0, 1, 1], [], []>} : vector<8x256xbf16>, vector<256x512xbf16>, vector<8x512xf32> -> vector<8x512xf32>
    %c2_300 = arith.constant 2 : index
    %c0_301 = arith.constant 0 : index
    %c0_302 = arith.constant 0 : index
    %915 = vector.load %arg5[%c2_300, %c0_301, %c0_302] : memref<4x1x512xf32, #tpu.memory_space<vmem>>, vector<1x1x512xf32>
    %916 = vector.shape_cast %915 : vector<1x1x512xf32> to vector<1x512xf32>
    %917 = vector.broadcast %916 : vector<1x512xf32> to vector<8x512xf32>
    %918 = arith.addf %914, %917 : vector<8x512xf32>
    %919 = vector.extract_strided_slice %918 {offsets = [0, 0], sizes = [8, 128], strides = [1, 1]} : vector<8x512xf32> to vector<8x128xf32>
    %920 = arith.negf %919 : vector<8x128xf32>
    %921 = math.exp %920 : vector<8x128xf32>
    %cst_303 = arith.constant 1.000000e+00 : f32
    %922 = vector.broadcast %cst_303 : f32 to vector<8x128xf32>
    %923 = arith.addf %922, %921 : vector<8x128xf32>
    %924 = arith.divf %922, %923 : vector<8x128xf32>
    %925 = vector.extract_strided_slice %918 {offsets = [0, 128], sizes = [8, 128], strides = [1, 1]} : vector<8x512xf32> to vector<8x128xf32>
    %926 = arith.negf %925 : vector<8x128xf32>
    %927 = math.exp %926 : vector<8x128xf32>
    %cst_304 = arith.constant 1.000000e+00 : f32
    %928 = vector.broadcast %cst_304 : f32 to vector<8x128xf32>
    %929 = arith.addf %928, %927 : vector<8x128xf32>
    %930 = arith.divf %928, %929 : vector<8x128xf32>
    %931 = vector.extract_strided_slice %918 {offsets = [0, 256], sizes = [8, 128], strides = [1, 1]} : vector<8x512xf32> to vector<8x128xf32>
    %932 = math.tanh %931 : vector<8x128xf32>
    %933 = vector.extract_strided_slice %918 {offsets = [0, 384], sizes = [8, 128], strides = [1, 1]} : vector<8x512xf32> to vector<8x128xf32>
    %934 = arith.negf %933 : vector<8x128xf32>
    %935 = math.exp %934 : vector<8x128xf32>
    %cst_305 = arith.constant 1.000000e+00 : f32
    %936 = vector.broadcast %cst_305 : f32 to vector<8x128xf32>
    %937 = arith.addf %936, %935 : vector<8x128xf32>
    %938 = arith.divf %936, %937 : vector<8x128xf32>
    %939 = arith.mulf %930, %761 : vector<8x128xf32>
    %940 = arith.mulf %924, %932 : vector<8x128xf32>
    %941 = arith.addf %939, %940 : vector<8x128xf32>
    %942 = math.tanh %941 : vector<8x128xf32>
    %943 = arith.mulf %938, %942 : vector<8x128xf32>
    %944 = tpu.concatenate %827, %797 in 1 : vector<8x128xf32>, vector<8x128xf32> -> vector<8x256xf32>
    %945 = arith.truncf %944 : vector<8x256xf32> to vector<8x256xbf16>
    %c0_306 = arith.constant 0 : index
    %c0_307 = arith.constant 0 : index
    %c0_308 = arith.constant 0 : index
    %946 = vector.load %arg4[%c0_306, %c0_307, %c0_308] : memref<3x256x512xbf16, #tpu.memory_space<vmem>>, vector<1x256x512xbf16>
    %947 = vector.shape_cast %946 : vector<1x256x512xbf16> to vector<256x512xbf16>
    %cst_309 = arith.constant dense<0.000000e+00> : vector<8x512xf32>
    %948 = tpu.matmul %945, %947, %cst_309 {dimension_numbers = #tpu.dot_dimension_numbers<[1], [0], [0], [1], [0, 0, 1, 1], [], []>} : vector<8x256xbf16>, vector<256x512xbf16>, vector<8x512xf32> -> vector<8x512xf32>
    %c1_310 = arith.constant 1 : index
    %c0_311 = arith.constant 0 : index
    %c0_312 = arith.constant 0 : index
    %949 = vector.load %arg5[%c1_310, %c0_311, %c0_312] : memref<4x1x512xf32, #tpu.memory_space<vmem>>, vector<1x1x512xf32>
    %950 = vector.shape_cast %949 : vector<1x1x512xf32> to vector<1x512xf32>
    %951 = vector.broadcast %950 : vector<1x512xf32> to vector<8x512xf32>
    %952 = arith.addf %948, %951 : vector<8x512xf32>
    %953 = vector.extract_strided_slice %952 {offsets = [0, 0], sizes = [8, 128], strides = [1, 1]} : vector<8x512xf32> to vector<8x128xf32>
    %954 = arith.negf %953 : vector<8x128xf32>
    %955 = math.exp %954 : vector<8x128xf32>
    %cst_313 = arith.constant 1.000000e+00 : f32
    %956 = vector.broadcast %cst_313 : f32 to vector<8x128xf32>
    %957 = arith.addf %956, %955 : vector<8x128xf32>
    %958 = arith.divf %956, %957 : vector<8x128xf32>
    %959 = vector.extract_strided_slice %952 {offsets = [0, 128], sizes = [8, 128], strides = [1, 1]} : vector<8x512xf32> to vector<8x128xf32>
    %960 = arith.negf %959 : vector<8x128xf32>
    %961 = math.exp %960 : vector<8x128xf32>
    %cst_314 = arith.constant 1.000000e+00 : f32
    %962 = vector.broadcast %cst_314 : f32 to vector<8x128xf32>
    %963 = arith.addf %962, %961 : vector<8x128xf32>
    %964 = arith.divf %962, %963 : vector<8x128xf32>
    %965 = vector.extract_strided_slice %952 {offsets = [0, 256], sizes = [8, 128], strides = [1, 1]} : vector<8x512xf32> to vector<8x128xf32>
    %966 = math.tanh %965 : vector<8x128xf32>
    %967 = vector.extract_strided_slice %952 {offsets = [0, 384], sizes = [8, 128], strides = [1, 1]} : vector<8x512xf32> to vector<8x128xf32>
    %968 = arith.negf %967 : vector<8x128xf32>
    %969 = math.exp %968 : vector<8x128xf32>
    %cst_315 = arith.constant 1.000000e+00 : f32
    %970 = vector.broadcast %cst_315 : f32 to vector<8x128xf32>
    %971 = arith.addf %970, %969 : vector<8x128xf32>
    %972 = arith.divf %970, %971 : vector<8x128xf32>
    %973 = arith.mulf %964, %795 : vector<8x128xf32>
    %974 = arith.mulf %958, %966 : vector<8x128xf32>
    %975 = arith.addf %973, %974 : vector<8x128xf32>
    %976 = math.tanh %975 : vector<8x128xf32>
    %977 = arith.mulf %972, %976 : vector<8x128xf32>
    %c48 = arith.constant 48 : index
    %c0_316 = arith.constant 0 : index
    %978 = vector.load %arg20[%c48, %c0_316] : memref<64x512xf32, #tpu.memory_space<vmem>>, vector<8x512xf32>
    %979 = arith.truncf %827 : vector<8x128xf32> to vector<8x128xbf16>
    %c0_317 = arith.constant 0 : index
    %c0_318 = arith.constant 0 : index
    %980 = vector.load %arg3[%c0_317, %c0_318] : memref<128x512xbf16, #tpu.memory_space<vmem>>, vector<128x512xbf16>
    %cst_319 = arith.constant dense<0.000000e+00> : vector<8x512xf32>
    %981 = tpu.matmul %979, %980, %cst_319 {dimension_numbers = #tpu.dot_dimension_numbers<[1], [0], [0], [1], [0, 0, 1, 1], [], []>} : vector<8x128xbf16>, vector<128x512xbf16>, vector<8x512xf32> -> vector<8x512xf32>
    %982 = arith.addf %978, %981 : vector<8x512xf32>
    %983 = vector.extract_strided_slice %982 {offsets = [0, 0], sizes = [8, 128], strides = [1, 1]} : vector<8x512xf32> to vector<8x128xf32>
    %984 = arith.negf %983 : vector<8x128xf32>
    %985 = math.exp %984 : vector<8x128xf32>
    %cst_320 = arith.constant 1.000000e+00 : f32
    %986 = vector.broadcast %cst_320 : f32 to vector<8x128xf32>
    %987 = arith.addf %986, %985 : vector<8x128xf32>
    %988 = arith.divf %986, %987 : vector<8x128xf32>
    %989 = vector.extract_strided_slice %982 {offsets = [0, 128], sizes = [8, 128], strides = [1, 1]} : vector<8x512xf32> to vector<8x128xf32>
    %990 = arith.negf %989 : vector<8x128xf32>
    %991 = math.exp %990 : vector<8x128xf32>
    %cst_321 = arith.constant 1.000000e+00 : f32
    %992 = vector.broadcast %cst_321 : f32 to vector<8x128xf32>
    %993 = arith.addf %992, %991 : vector<8x128xf32>
    %994 = arith.divf %992, %993 : vector<8x128xf32>
    %995 = vector.extract_strided_slice %982 {offsets = [0, 256], sizes = [8, 128], strides = [1, 1]} : vector<8x512xf32> to vector<8x128xf32>
    %996 = math.tanh %995 : vector<8x128xf32>
    %997 = vector.extract_strided_slice %982 {offsets = [0, 384], sizes = [8, 128], strides = [1, 1]} : vector<8x512xf32> to vector<8x128xf32>
    %998 = arith.negf %997 : vector<8x128xf32>
    %999 = math.exp %998 : vector<8x128xf32>
    %cst_322 = arith.constant 1.000000e+00 : f32
    %1000 = vector.broadcast %cst_322 : f32 to vector<8x128xf32>
    %1001 = arith.addf %1000, %999 : vector<8x128xf32>
    %1002 = arith.divf %1000, %1001 : vector<8x128xf32>
    %1003 = arith.mulf %994, %825 : vector<8x128xf32>
    %1004 = arith.mulf %988, %996 : vector<8x128xf32>
    %1005 = arith.addf %1003, %1004 : vector<8x128xf32>
    %1006 = math.tanh %1005 : vector<8x128xf32>
    %1007 = arith.mulf %1002, %1006 : vector<8x128xf32>
    %1008 = arith.truncf %875 : vector<8x32xf32> to vector<8x32xbf16>
    %c0_323 = arith.constant 0 : index
    %c0_324 = arith.constant 0 : index
    %c0_325 = arith.constant 0 : index
    %1009 = vector.load %arg8[%c0_323, %c0_324, %c0_325] : memref<1x64x128xbf16, #tpu.memory_space<vmem>>, vector<1x32x128xbf16>
    %1010 = vector.shape_cast %1009 : vector<1x32x128xbf16> to vector<32x128xbf16>
    %cst_326 = arith.constant dense<0.000000e+00> : vector<8x128xf32>
    %1011 = tpu.matmul %1008, %1010, %cst_326 {dimension_numbers = #tpu.dot_dimension_numbers<[1], [0], [0], [1], [0, 0, 1, 1], [], []>} : vector<8x32xbf16>, vector<32x128xbf16>, vector<8x128xf32> -> vector<8x128xf32>
    %1012 = arith.truncf %855 : vector<8x32xf32> to vector<8x32xbf16>
    %c0_327 = arith.constant 0 : index
    %c32_328 = arith.constant 32 : index
    %c0_329 = arith.constant 0 : index
    %1013 = vector.load %arg8[%c0_327, %c32_328, %c0_329] : memref<1x64x128xbf16, #tpu.memory_space<vmem>>, vector<1x32x128xbf16>
    %1014 = vector.shape_cast %1013 : vector<1x32x128xbf16> to vector<32x128xbf16>
    %cst_330 = arith.constant dense<0.000000e+00> : vector<8x128xf32>
    %1015 = tpu.matmul %1012, %1014, %cst_330 {dimension_numbers = #tpu.dot_dimension_numbers<[1], [0], [0], [1], [0, 0, 1, 1], [], []>} : vector<8x32xbf16>, vector<32x128xbf16>, vector<8x128xf32> -> vector<8x128xf32>
    %1016 = arith.addf %1011, %1015 : vector<8x128xf32>
    %c1_331 = arith.constant 1 : index
    %c0_332 = arith.constant 0 : index
    %c0_333 = arith.constant 0 : index
    %1017 = vector.load %arg9[%c1_331, %c0_332, %c0_333] : memref<2x1x128xf32, #tpu.memory_space<vmem>>, vector<1x1x128xf32>
    %1018 = vector.shape_cast %1017 : vector<1x1x128xf32> to vector<1x128xf32>
    %1019 = vector.broadcast %1018 : vector<1x128xf32> to vector<8x128xf32>
    %1020 = arith.addf %1016, %1019 : vector<8x128xf32>
    %1021 = arith.negf %1020 : vector<8x128xf32>
    %1022 = math.exp %1021 : vector<8x128xf32>
    %cst_334 = arith.constant 1.000000e+00 : f32
    %1023 = vector.broadcast %cst_334 : f32 to vector<8x128xf32>
    %1024 = arith.addf %1023, %1022 : vector<8x128xf32>
    %1025 = arith.divf %1023, %1024 : vector<8x128xf32>
    %1026 = math.tanh %1020 : vector<8x128xf32>
    %1027 = vector.extract_strided_slice %1025 {offsets = [0, 0], sizes = [8, 32], strides = [1, 1]} : vector<8x128xf32> to vector<8x32xf32>
    %1028 = vector.extract_strided_slice %1025 {offsets = [0, 32], sizes = [8, 32], strides = [1, 1]} : vector<8x128xf32> to vector<8x32xf32>
    %1029 = vector.extract_strided_slice %1026 {offsets = [0, 64], sizes = [8, 32], strides = [1, 1]} : vector<8x128xf32> to vector<8x32xf32>
    %1030 = vector.extract_strided_slice %1025 {offsets = [0, 96], sizes = [8, 32], strides = [1, 1]} : vector<8x128xf32> to vector<8x32xf32>
    %1031 = arith.mulf %1028, %853 : vector<8x32xf32>
    %1032 = arith.mulf %1027, %1029 : vector<8x32xf32>
    %1033 = arith.addf %1031, %1032 : vector<8x32xf32>
    %1034 = math.tanh %1033 : vector<8x32xf32>
    %1035 = arith.mulf %1030, %1034 : vector<8x32xf32>
    %c48_335 = arith.constant 48 : index
    %c0_336 = arith.constant 0 : index
    %1036 = vector.load %arg21[%c48_335, %c0_336] : memref<64x128xf32, #tpu.memory_space<vmem>>, vector<8x128xf32>
    %1037 = arith.truncf %875 : vector<8x32xf32> to vector<8x32xbf16>
    %c0_337 = arith.constant 0 : index
    %c0_338 = arith.constant 0 : index
    %1038 = vector.load %arg7[%c0_337, %c0_338] : memref<32x128xbf16, #tpu.memory_space<vmem>>, vector<32x128xbf16>
    %cst_339 = arith.constant dense<0.000000e+00> : vector<8x128xf32>
    %1039 = tpu.matmul %1037, %1038, %cst_339 {dimension_numbers = #tpu.dot_dimension_numbers<[1], [0], [0], [1], [0, 0, 1, 1], [], []>} : vector<8x32xbf16>, vector<32x128xbf16>, vector<8x128xf32> -> vector<8x128xf32>
    %1040 = arith.addf %1036, %1039 : vector<8x128xf32>
    %1041 = arith.negf %1040 : vector<8x128xf32>
    %1042 = math.exp %1041 : vector<8x128xf32>
    %cst_340 = arith.constant 1.000000e+00 : f32
    %1043 = vector.broadcast %cst_340 : f32 to vector<8x128xf32>
    %1044 = arith.addf %1043, %1042 : vector<8x128xf32>
    %1045 = arith.divf %1043, %1044 : vector<8x128xf32>
    %1046 = math.tanh %1040 : vector<8x128xf32>
    %1047 = vector.extract_strided_slice %1045 {offsets = [0, 0], sizes = [8, 32], strides = [1, 1]} : vector<8x128xf32> to vector<8x32xf32>
    %1048 = vector.extract_strided_slice %1045 {offsets = [0, 32], sizes = [8, 32], strides = [1, 1]} : vector<8x128xf32> to vector<8x32xf32>
    %1049 = vector.extract_strided_slice %1046 {offsets = [0, 64], sizes = [8, 32], strides = [1, 1]} : vector<8x128xf32> to vector<8x32xf32>
    %1050 = vector.extract_strided_slice %1045 {offsets = [0, 96], sizes = [8, 32], strides = [1, 1]} : vector<8x128xf32> to vector<8x32xf32>
    %1051 = arith.mulf %1048, %873 : vector<8x32xf32>
    %1052 = arith.mulf %1047, %1049 : vector<8x32xf32>
    %1053 = arith.addf %1051, %1052 : vector<8x32xf32>
    %1054 = math.tanh %1053 : vector<8x32xf32>
    %1055 = arith.mulf %1050, %1054 : vector<8x32xf32>
    %1056 = tpu.concatenate %943, %909 in 1 : vector<8x128xf32>, vector<8x128xf32> -> vector<8x256xf32>
    %1057 = arith.truncf %1056 : vector<8x256xf32> to vector<8x256xbf16>
    %c2_341 = arith.constant 2 : index
    %c0_342 = arith.constant 0 : index
    %c0_343 = arith.constant 0 : index
    %1058 = vector.load %arg4[%c2_341, %c0_342, %c0_343] : memref<3x256x512xbf16, #tpu.memory_space<vmem>>, vector<1x256x512xbf16>
    %1059 = vector.shape_cast %1058 : vector<1x256x512xbf16> to vector<256x512xbf16>
    %cst_344 = arith.constant dense<0.000000e+00> : vector<8x512xf32>
    %1060 = tpu.matmul %1057, %1059, %cst_344 {dimension_numbers = #tpu.dot_dimension_numbers<[1], [0], [0], [1], [0, 0, 1, 1], [], []>} : vector<8x256xbf16>, vector<256x512xbf16>, vector<8x512xf32> -> vector<8x512xf32>
    %c3_345 = arith.constant 3 : index
    %c0_346 = arith.constant 0 : index
    %c0_347 = arith.constant 0 : index
    %1061 = vector.load %arg5[%c3_345, %c0_346, %c0_347] : memref<4x1x512xf32, #tpu.memory_space<vmem>>, vector<1x1x512xf32>
    %1062 = vector.shape_cast %1061 : vector<1x1x512xf32> to vector<1x512xf32>
    %1063 = vector.broadcast %1062 : vector<1x512xf32> to vector<8x512xf32>
    %1064 = arith.addf %1060, %1063 : vector<8x512xf32>
    %1065 = vector.extract_strided_slice %1064 {offsets = [0, 0], sizes = [8, 128], strides = [1, 1]} : vector<8x512xf32> to vector<8x128xf32>
    %1066 = arith.negf %1065 : vector<8x128xf32>
    %1067 = math.exp %1066 : vector<8x128xf32>
    %cst_348 = arith.constant 1.000000e+00 : f32
    %1068 = vector.broadcast %cst_348 : f32 to vector<8x128xf32>
    %1069 = arith.addf %1068, %1067 : vector<8x128xf32>
    %1070 = arith.divf %1068, %1069 : vector<8x128xf32>
    %1071 = vector.extract_strided_slice %1064 {offsets = [0, 128], sizes = [8, 128], strides = [1, 1]} : vector<8x512xf32> to vector<8x128xf32>
    %1072 = arith.negf %1071 : vector<8x128xf32>
    %1073 = math.exp %1072 : vector<8x128xf32>
    %cst_349 = arith.constant 1.000000e+00 : f32
    %1074 = vector.broadcast %cst_349 : f32 to vector<8x128xf32>
    %1075 = arith.addf %1074, %1073 : vector<8x128xf32>
    %1076 = arith.divf %1074, %1075 : vector<8x128xf32>
    %1077 = vector.extract_strided_slice %1064 {offsets = [0, 256], sizes = [8, 128], strides = [1, 1]} : vector<8x512xf32> to vector<8x128xf32>
    %1078 = math.tanh %1077 : vector<8x128xf32>
    %1079 = vector.extract_strided_slice %1064 {offsets = [0, 384], sizes = [8, 128], strides = [1, 1]} : vector<8x512xf32> to vector<8x128xf32>
    %1080 = arith.negf %1079 : vector<8x128xf32>
    %1081 = math.exp %1080 : vector<8x128xf32>
    %cst_350 = arith.constant 1.000000e+00 : f32
    %1082 = vector.broadcast %cst_350 : f32 to vector<8x128xf32>
    %1083 = arith.addf %1082, %1081 : vector<8x128xf32>
    %1084 = arith.divf %1082, %1083 : vector<8x128xf32>
    %1085 = arith.mulf %1076, %907 : vector<8x128xf32>
    %1086 = arith.mulf %1070, %1078 : vector<8x128xf32>
    %1087 = arith.addf %1085, %1086 : vector<8x128xf32>
    %1088 = math.tanh %1087 : vector<8x128xf32>
    %1089 = arith.mulf %1084, %1088 : vector<8x128xf32>
    %1090 = tpu.concatenate %977, %943 in 1 : vector<8x128xf32>, vector<8x128xf32> -> vector<8x256xf32>
    %1091 = arith.truncf %1090 : vector<8x256xf32> to vector<8x256xbf16>
    %c1_351 = arith.constant 1 : index
    %c0_352 = arith.constant 0 : index
    %c0_353 = arith.constant 0 : index
    %1092 = vector.load %arg4[%c1_351, %c0_352, %c0_353] : memref<3x256x512xbf16, #tpu.memory_space<vmem>>, vector<1x256x512xbf16>
    %1093 = vector.shape_cast %1092 : vector<1x256x512xbf16> to vector<256x512xbf16>
    %cst_354 = arith.constant dense<0.000000e+00> : vector<8x512xf32>
    %1094 = tpu.matmul %1091, %1093, %cst_354 {dimension_numbers = #tpu.dot_dimension_numbers<[1], [0], [0], [1], [0, 0, 1, 1], [], []>} : vector<8x256xbf16>, vector<256x512xbf16>, vector<8x512xf32> -> vector<8x512xf32>
    %c2_355 = arith.constant 2 : index
    %c0_356 = arith.constant 0 : index
    %c0_357 = arith.constant 0 : index
    %1095 = vector.load %arg5[%c2_355, %c0_356, %c0_357] : memref<4x1x512xf32, #tpu.memory_space<vmem>>, vector<1x1x512xf32>
    %1096 = vector.shape_cast %1095 : vector<1x1x512xf32> to vector<1x512xf32>
    %1097 = vector.broadcast %1096 : vector<1x512xf32> to vector<8x512xf32>
    %1098 = arith.addf %1094, %1097 : vector<8x512xf32>
    %1099 = vector.extract_strided_slice %1098 {offsets = [0, 0], sizes = [8, 128], strides = [1, 1]} : vector<8x512xf32> to vector<8x128xf32>
    %1100 = arith.negf %1099 : vector<8x128xf32>
    %1101 = math.exp %1100 : vector<8x128xf32>
    %cst_358 = arith.constant 1.000000e+00 : f32
    %1102 = vector.broadcast %cst_358 : f32 to vector<8x128xf32>
    %1103 = arith.addf %1102, %1101 : vector<8x128xf32>
    %1104 = arith.divf %1102, %1103 : vector<8x128xf32>
    %1105 = vector.extract_strided_slice %1098 {offsets = [0, 128], sizes = [8, 128], strides = [1, 1]} : vector<8x512xf32> to vector<8x128xf32>
    %1106 = arith.negf %1105 : vector<8x128xf32>
    %1107 = math.exp %1106 : vector<8x128xf32>
    %cst_359 = arith.constant 1.000000e+00 : f32
    %1108 = vector.broadcast %cst_359 : f32 to vector<8x128xf32>
    %1109 = arith.addf %1108, %1107 : vector<8x128xf32>
    %1110 = arith.divf %1108, %1109 : vector<8x128xf32>
    %1111 = vector.extract_strided_slice %1098 {offsets = [0, 256], sizes = [8, 128], strides = [1, 1]} : vector<8x512xf32> to vector<8x128xf32>
    %1112 = math.tanh %1111 : vector<8x128xf32>
    %1113 = vector.extract_strided_slice %1098 {offsets = [0, 384], sizes = [8, 128], strides = [1, 1]} : vector<8x512xf32> to vector<8x128xf32>
    %1114 = arith.negf %1113 : vector<8x128xf32>
    %1115 = math.exp %1114 : vector<8x128xf32>
    %cst_360 = arith.constant 1.000000e+00 : f32
    %1116 = vector.broadcast %cst_360 : f32 to vector<8x128xf32>
    %1117 = arith.addf %1116, %1115 : vector<8x128xf32>
    %1118 = arith.divf %1116, %1117 : vector<8x128xf32>
    %1119 = arith.mulf %1110, %941 : vector<8x128xf32>
    %1120 = arith.mulf %1104, %1112 : vector<8x128xf32>
    %1121 = arith.addf %1119, %1120 : vector<8x128xf32>
    %1122 = math.tanh %1121 : vector<8x128xf32>
    %1123 = arith.mulf %1118, %1122 : vector<8x128xf32>
    %1124 = tpu.concatenate %1007, %977 in 1 : vector<8x128xf32>, vector<8x128xf32> -> vector<8x256xf32>
    %1125 = arith.truncf %1124 : vector<8x256xf32> to vector<8x256xbf16>
    %c0_361 = arith.constant 0 : index
    %c0_362 = arith.constant 0 : index
    %c0_363 = arith.constant 0 : index
    %1126 = vector.load %arg4[%c0_361, %c0_362, %c0_363] : memref<3x256x512xbf16, #tpu.memory_space<vmem>>, vector<1x256x512xbf16>
    %1127 = vector.shape_cast %1126 : vector<1x256x512xbf16> to vector<256x512xbf16>
    %cst_364 = arith.constant dense<0.000000e+00> : vector<8x512xf32>
    %1128 = tpu.matmul %1125, %1127, %cst_364 {dimension_numbers = #tpu.dot_dimension_numbers<[1], [0], [0], [1], [0, 0, 1, 1], [], []>} : vector<8x256xbf16>, vector<256x512xbf16>, vector<8x512xf32> -> vector<8x512xf32>
    %c1_365 = arith.constant 1 : index
    %c0_366 = arith.constant 0 : index
    %c0_367 = arith.constant 0 : index
    %1129 = vector.load %arg5[%c1_365, %c0_366, %c0_367] : memref<4x1x512xf32, #tpu.memory_space<vmem>>, vector<1x1x512xf32>
    %1130 = vector.shape_cast %1129 : vector<1x1x512xf32> to vector<1x512xf32>
    %1131 = vector.broadcast %1130 : vector<1x512xf32> to vector<8x512xf32>
    %1132 = arith.addf %1128, %1131 : vector<8x512xf32>
    %1133 = vector.extract_strided_slice %1132 {offsets = [0, 0], sizes = [8, 128], strides = [1, 1]} : vector<8x512xf32> to vector<8x128xf32>
    %1134 = arith.negf %1133 : vector<8x128xf32>
    %1135 = math.exp %1134 : vector<8x128xf32>
    %cst_368 = arith.constant 1.000000e+00 : f32
    %1136 = vector.broadcast %cst_368 : f32 to vector<8x128xf32>
    %1137 = arith.addf %1136, %1135 : vector<8x128xf32>
    %1138 = arith.divf %1136, %1137 : vector<8x128xf32>
    %1139 = vector.extract_strided_slice %1132 {offsets = [0, 128], sizes = [8, 128], strides = [1, 1]} : vector<8x512xf32> to vector<8x128xf32>
    %1140 = arith.negf %1139 : vector<8x128xf32>
    %1141 = math.exp %1140 : vector<8x128xf32>
    %cst_369 = arith.constant 1.000000e+00 : f32
    %1142 = vector.broadcast %cst_369 : f32 to vector<8x128xf32>
    %1143 = arith.addf %1142, %1141 : vector<8x128xf32>
    %1144 = arith.divf %1142, %1143 : vector<8x128xf32>
    %1145 = vector.extract_strided_slice %1132 {offsets = [0, 256], sizes = [8, 128], strides = [1, 1]} : vector<8x512xf32> to vector<8x128xf32>
    %1146 = math.tanh %1145 : vector<8x128xf32>
    %1147 = vector.extract_strided_slice %1132 {offsets = [0, 384], sizes = [8, 128], strides = [1, 1]} : vector<8x512xf32> to vector<8x128xf32>
    %1148 = arith.negf %1147 : vector<8x128xf32>
    %1149 = math.exp %1148 : vector<8x128xf32>
    %cst_370 = arith.constant 1.000000e+00 : f32
    %1150 = vector.broadcast %cst_370 : f32 to vector<8x128xf32>
    %1151 = arith.addf %1150, %1149 : vector<8x128xf32>
    %1152 = arith.divf %1150, %1151 : vector<8x128xf32>
    %1153 = arith.mulf %1144, %975 : vector<8x128xf32>
    %1154 = arith.mulf %1138, %1146 : vector<8x128xf32>
    %1155 = arith.addf %1153, %1154 : vector<8x128xf32>
    %1156 = math.tanh %1155 : vector<8x128xf32>
    %1157 = arith.mulf %1152, %1156 : vector<8x128xf32>
    %c56 = arith.constant 56 : index
    %c0_371 = arith.constant 0 : index
    %1158 = vector.load %arg20[%c56, %c0_371] : memref<64x512xf32, #tpu.memory_space<vmem>>, vector<8x512xf32>
    %1159 = arith.truncf %1007 : vector<8x128xf32> to vector<8x128xbf16>
    %c0_372 = arith.constant 0 : index
    %c0_373 = arith.constant 0 : index
    %1160 = vector.load %arg3[%c0_372, %c0_373] : memref<128x512xbf16, #tpu.memory_space<vmem>>, vector<128x512xbf16>
    %cst_374 = arith.constant dense<0.000000e+00> : vector<8x512xf32>
    %1161 = tpu.matmul %1159, %1160, %cst_374 {dimension_numbers = #tpu.dot_dimension_numbers<[1], [0], [0], [1], [0, 0, 1, 1], [], []>} : vector<8x128xbf16>, vector<128x512xbf16>, vector<8x512xf32> -> vector<8x512xf32>
    %1162 = arith.addf %1158, %1161 : vector<8x512xf32>
    %1163 = vector.extract_strided_slice %1162 {offsets = [0, 0], sizes = [8, 128], strides = [1, 1]} : vector<8x512xf32> to vector<8x128xf32>
    %1164 = arith.negf %1163 : vector<8x128xf32>
    %1165 = math.exp %1164 : vector<8x128xf32>
    %cst_375 = arith.constant 1.000000e+00 : f32
    %1166 = vector.broadcast %cst_375 : f32 to vector<8x128xf32>
    %1167 = arith.addf %1166, %1165 : vector<8x128xf32>
    %1168 = arith.divf %1166, %1167 : vector<8x128xf32>
    %1169 = vector.extract_strided_slice %1162 {offsets = [0, 128], sizes = [8, 128], strides = [1, 1]} : vector<8x512xf32> to vector<8x128xf32>
    %1170 = arith.negf %1169 : vector<8x128xf32>
    %1171 = math.exp %1170 : vector<8x128xf32>
    %cst_376 = arith.constant 1.000000e+00 : f32
    %1172 = vector.broadcast %cst_376 : f32 to vector<8x128xf32>
    %1173 = arith.addf %1172, %1171 : vector<8x128xf32>
    %1174 = arith.divf %1172, %1173 : vector<8x128xf32>
    %1175 = vector.extract_strided_slice %1162 {offsets = [0, 256], sizes = [8, 128], strides = [1, 1]} : vector<8x512xf32> to vector<8x128xf32>
    %1176 = math.tanh %1175 : vector<8x128xf32>
    %1177 = vector.extract_strided_slice %1162 {offsets = [0, 384], sizes = [8, 128], strides = [1, 1]} : vector<8x512xf32> to vector<8x128xf32>
    %1178 = arith.negf %1177 : vector<8x128xf32>
    %1179 = math.exp %1178 : vector<8x128xf32>
    %cst_377 = arith.constant 1.000000e+00 : f32
    %1180 = vector.broadcast %cst_377 : f32 to vector<8x128xf32>
    %1181 = arith.addf %1180, %1179 : vector<8x128xf32>
    %1182 = arith.divf %1180, %1181 : vector<8x128xf32>
    %1183 = arith.mulf %1174, %1005 : vector<8x128xf32>
    %1184 = arith.mulf %1168, %1176 : vector<8x128xf32>
    %1185 = arith.addf %1183, %1184 : vector<8x128xf32>
    %1186 = math.tanh %1185 : vector<8x128xf32>
    %1187 = arith.mulf %1182, %1186 : vector<8x128xf32>
    %1188 = arith.truncf %1055 : vector<8x32xf32> to vector<8x32xbf16>
    %c0_378 = arith.constant 0 : index
    %c0_379 = arith.constant 0 : index
    %c0_380 = arith.constant 0 : index
    %1189 = vector.load %arg8[%c0_378, %c0_379, %c0_380] : memref<1x64x128xbf16, #tpu.memory_space<vmem>>, vector<1x32x128xbf16>
    %1190 = vector.shape_cast %1189 : vector<1x32x128xbf16> to vector<32x128xbf16>
    %cst_381 = arith.constant dense<0.000000e+00> : vector<8x128xf32>
    %1191 = tpu.matmul %1188, %1190, %cst_381 {dimension_numbers = #tpu.dot_dimension_numbers<[1], [0], [0], [1], [0, 0, 1, 1], [], []>} : vector<8x32xbf16>, vector<32x128xbf16>, vector<8x128xf32> -> vector<8x128xf32>
    %1192 = arith.truncf %1035 : vector<8x32xf32> to vector<8x32xbf16>
    %c0_382 = arith.constant 0 : index
    %c32_383 = arith.constant 32 : index
    %c0_384 = arith.constant 0 : index
    %1193 = vector.load %arg8[%c0_382, %c32_383, %c0_384] : memref<1x64x128xbf16, #tpu.memory_space<vmem>>, vector<1x32x128xbf16>
    %1194 = vector.shape_cast %1193 : vector<1x32x128xbf16> to vector<32x128xbf16>
    %cst_385 = arith.constant dense<0.000000e+00> : vector<8x128xf32>
    %1195 = tpu.matmul %1192, %1194, %cst_385 {dimension_numbers = #tpu.dot_dimension_numbers<[1], [0], [0], [1], [0, 0, 1, 1], [], []>} : vector<8x32xbf16>, vector<32x128xbf16>, vector<8x128xf32> -> vector<8x128xf32>
    %1196 = arith.addf %1191, %1195 : vector<8x128xf32>
    %c1_386 = arith.constant 1 : index
    %c0_387 = arith.constant 0 : index
    %c0_388 = arith.constant 0 : index
    %1197 = vector.load %arg9[%c1_386, %c0_387, %c0_388] : memref<2x1x128xf32, #tpu.memory_space<vmem>>, vector<1x1x128xf32>
    %1198 = vector.shape_cast %1197 : vector<1x1x128xf32> to vector<1x128xf32>
    %1199 = vector.broadcast %1198 : vector<1x128xf32> to vector<8x128xf32>
    %1200 = arith.addf %1196, %1199 : vector<8x128xf32>
    %1201 = arith.negf %1200 : vector<8x128xf32>
    %1202 = math.exp %1201 : vector<8x128xf32>
    %cst_389 = arith.constant 1.000000e+00 : f32
    %1203 = vector.broadcast %cst_389 : f32 to vector<8x128xf32>
    %1204 = arith.addf %1203, %1202 : vector<8x128xf32>
    %1205 = arith.divf %1203, %1204 : vector<8x128xf32>
    %1206 = math.tanh %1200 : vector<8x128xf32>
    %1207 = vector.extract_strided_slice %1205 {offsets = [0, 0], sizes = [8, 32], strides = [1, 1]} : vector<8x128xf32> to vector<8x32xf32>
    %1208 = vector.extract_strided_slice %1205 {offsets = [0, 32], sizes = [8, 32], strides = [1, 1]} : vector<8x128xf32> to vector<8x32xf32>
    %1209 = vector.extract_strided_slice %1206 {offsets = [0, 64], sizes = [8, 32], strides = [1, 1]} : vector<8x128xf32> to vector<8x32xf32>
    %1210 = vector.extract_strided_slice %1205 {offsets = [0, 96], sizes = [8, 32], strides = [1, 1]} : vector<8x128xf32> to vector<8x32xf32>
    %1211 = arith.mulf %1208, %1033 : vector<8x32xf32>
    %1212 = arith.mulf %1207, %1209 : vector<8x32xf32>
    %1213 = arith.addf %1211, %1212 : vector<8x32xf32>
    %1214 = math.tanh %1213 : vector<8x32xf32>
    %1215 = arith.mulf %1210, %1214 : vector<8x32xf32>
    %c56_390 = arith.constant 56 : index
    %c0_391 = arith.constant 0 : index
    %1216 = vector.load %arg21[%c56_390, %c0_391] : memref<64x128xf32, #tpu.memory_space<vmem>>, vector<8x128xf32>
    %1217 = arith.truncf %1055 : vector<8x32xf32> to vector<8x32xbf16>
    %c0_392 = arith.constant 0 : index
    %c0_393 = arith.constant 0 : index
    %1218 = vector.load %arg7[%c0_392, %c0_393] : memref<32x128xbf16, #tpu.memory_space<vmem>>, vector<32x128xbf16>
    %cst_394 = arith.constant dense<0.000000e+00> : vector<8x128xf32>
    %1219 = tpu.matmul %1217, %1218, %cst_394 {dimension_numbers = #tpu.dot_dimension_numbers<[1], [0], [0], [1], [0, 0, 1, 1], [], []>} : vector<8x32xbf16>, vector<32x128xbf16>, vector<8x128xf32> -> vector<8x128xf32>
    %1220 = arith.addf %1216, %1219 : vector<8x128xf32>
    %1221 = arith.negf %1220 : vector<8x128xf32>
    %1222 = math.exp %1221 : vector<8x128xf32>
    %cst_395 = arith.constant 1.000000e+00 : f32
    %1223 = vector.broadcast %cst_395 : f32 to vector<8x128xf32>
    %1224 = arith.addf %1223, %1222 : vector<8x128xf32>
    %1225 = arith.divf %1223, %1224 : vector<8x128xf32>
    %1226 = math.tanh %1220 : vector<8x128xf32>
    %1227 = vector.extract_strided_slice %1225 {offsets = [0, 0], sizes = [8, 32], strides = [1, 1]} : vector<8x128xf32> to vector<8x32xf32>
    %1228 = vector.extract_strided_slice %1225 {offsets = [0, 32], sizes = [8, 32], strides = [1, 1]} : vector<8x128xf32> to vector<8x32xf32>
    %1229 = vector.extract_strided_slice %1226 {offsets = [0, 64], sizes = [8, 32], strides = [1, 1]} : vector<8x128xf32> to vector<8x32xf32>
    %1230 = vector.extract_strided_slice %1225 {offsets = [0, 96], sizes = [8, 32], strides = [1, 1]} : vector<8x128xf32> to vector<8x32xf32>
    %1231 = arith.mulf %1228, %1053 : vector<8x32xf32>
    %1232 = arith.mulf %1227, %1229 : vector<8x32xf32>
    %1233 = arith.addf %1231, %1232 : vector<8x32xf32>
    %1234 = math.tanh %1233 : vector<8x32xf32>
    %1235 = arith.mulf %1230, %1234 : vector<8x32xf32>
    %1236 = tpu.concatenate %1123, %1089 in 1 : vector<8x128xf32>, vector<8x128xf32> -> vector<8x256xf32>
    %1237 = arith.truncf %1236 : vector<8x256xf32> to vector<8x256xbf16>
    %c2_396 = arith.constant 2 : index
    %c0_397 = arith.constant 0 : index
    %c0_398 = arith.constant 0 : index
    %1238 = vector.load %arg4[%c2_396, %c0_397, %c0_398] : memref<3x256x512xbf16, #tpu.memory_space<vmem>>, vector<1x256x512xbf16>
    %1239 = vector.shape_cast %1238 : vector<1x256x512xbf16> to vector<256x512xbf16>
    %cst_399 = arith.constant dense<0.000000e+00> : vector<8x512xf32>
    %1240 = tpu.matmul %1237, %1239, %cst_399 {dimension_numbers = #tpu.dot_dimension_numbers<[1], [0], [0], [1], [0, 0, 1, 1], [], []>} : vector<8x256xbf16>, vector<256x512xbf16>, vector<8x512xf32> -> vector<8x512xf32>
    %c3_400 = arith.constant 3 : index
    %c0_401 = arith.constant 0 : index
    %c0_402 = arith.constant 0 : index
    %1241 = vector.load %arg5[%c3_400, %c0_401, %c0_402] : memref<4x1x512xf32, #tpu.memory_space<vmem>>, vector<1x1x512xf32>
    %1242 = vector.shape_cast %1241 : vector<1x1x512xf32> to vector<1x512xf32>
    %1243 = vector.broadcast %1242 : vector<1x512xf32> to vector<8x512xf32>
    %1244 = arith.addf %1240, %1243 : vector<8x512xf32>
    %1245 = vector.extract_strided_slice %1244 {offsets = [0, 0], sizes = [8, 128], strides = [1, 1]} : vector<8x512xf32> to vector<8x128xf32>
    %1246 = arith.negf %1245 : vector<8x128xf32>
    %1247 = math.exp %1246 : vector<8x128xf32>
    %cst_403 = arith.constant 1.000000e+00 : f32
    %1248 = vector.broadcast %cst_403 : f32 to vector<8x128xf32>
    %1249 = arith.addf %1248, %1247 : vector<8x128xf32>
    %1250 = arith.divf %1248, %1249 : vector<8x128xf32>
    %1251 = vector.extract_strided_slice %1244 {offsets = [0, 128], sizes = [8, 128], strides = [1, 1]} : vector<8x512xf32> to vector<8x128xf32>
    %1252 = arith.negf %1251 : vector<8x128xf32>
    %1253 = math.exp %1252 : vector<8x128xf32>
    %cst_404 = arith.constant 1.000000e+00 : f32
    %1254 = vector.broadcast %cst_404 : f32 to vector<8x128xf32>
    %1255 = arith.addf %1254, %1253 : vector<8x128xf32>
    %1256 = arith.divf %1254, %1255 : vector<8x128xf32>
    %1257 = vector.extract_strided_slice %1244 {offsets = [0, 256], sizes = [8, 128], strides = [1, 1]} : vector<8x512xf32> to vector<8x128xf32>
    %1258 = math.tanh %1257 : vector<8x128xf32>
    %1259 = vector.extract_strided_slice %1244 {offsets = [0, 384], sizes = [8, 128], strides = [1, 1]} : vector<8x512xf32> to vector<8x128xf32>
    %1260 = arith.negf %1259 : vector<8x128xf32>
    %1261 = math.exp %1260 : vector<8x128xf32>
    %cst_405 = arith.constant 1.000000e+00 : f32
    %1262 = vector.broadcast %cst_405 : f32 to vector<8x128xf32>
    %1263 = arith.addf %1262, %1261 : vector<8x128xf32>
    %1264 = arith.divf %1262, %1263 : vector<8x128xf32>
    %1265 = arith.mulf %1256, %1087 : vector<8x128xf32>
    %1266 = arith.mulf %1250, %1258 : vector<8x128xf32>
    %1267 = arith.addf %1265, %1266 : vector<8x128xf32>
    %1268 = math.tanh %1267 : vector<8x128xf32>
    %1269 = arith.mulf %1264, %1268 : vector<8x128xf32>
    %1270 = tpu.concatenate %1157, %1123 in 1 : vector<8x128xf32>, vector<8x128xf32> -> vector<8x256xf32>
    %1271 = arith.truncf %1270 : vector<8x256xf32> to vector<8x256xbf16>
    %c1_406 = arith.constant 1 : index
    %c0_407 = arith.constant 0 : index
    %c0_408 = arith.constant 0 : index
    %1272 = vector.load %arg4[%c1_406, %c0_407, %c0_408] : memref<3x256x512xbf16, #tpu.memory_space<vmem>>, vector<1x256x512xbf16>
    %1273 = vector.shape_cast %1272 : vector<1x256x512xbf16> to vector<256x512xbf16>
    %cst_409 = arith.constant dense<0.000000e+00> : vector<8x512xf32>
    %1274 = tpu.matmul %1271, %1273, %cst_409 {dimension_numbers = #tpu.dot_dimension_numbers<[1], [0], [0], [1], [0, 0, 1, 1], [], []>} : vector<8x256xbf16>, vector<256x512xbf16>, vector<8x512xf32> -> vector<8x512xf32>
    %c2_410 = arith.constant 2 : index
    %c0_411 = arith.constant 0 : index
    %c0_412 = arith.constant 0 : index
    %1275 = vector.load %arg5[%c2_410, %c0_411, %c0_412] : memref<4x1x512xf32, #tpu.memory_space<vmem>>, vector<1x1x512xf32>
    %1276 = vector.shape_cast %1275 : vector<1x1x512xf32> to vector<1x512xf32>
    %1277 = vector.broadcast %1276 : vector<1x512xf32> to vector<8x512xf32>
    %1278 = arith.addf %1274, %1277 : vector<8x512xf32>
    %1279 = vector.extract_strided_slice %1278 {offsets = [0, 0], sizes = [8, 128], strides = [1, 1]} : vector<8x512xf32> to vector<8x128xf32>
    %1280 = arith.negf %1279 : vector<8x128xf32>
    %1281 = math.exp %1280 : vector<8x128xf32>
    %cst_413 = arith.constant 1.000000e+00 : f32
    %1282 = vector.broadcast %cst_413 : f32 to vector<8x128xf32>
    %1283 = arith.addf %1282, %1281 : vector<8x128xf32>
    %1284 = arith.divf %1282, %1283 : vector<8x128xf32>
    %1285 = vector.extract_strided_slice %1278 {offsets = [0, 128], sizes = [8, 128], strides = [1, 1]} : vector<8x512xf32> to vector<8x128xf32>
    %1286 = arith.negf %1285 : vector<8x128xf32>
    %1287 = math.exp %1286 : vector<8x128xf32>
    %cst_414 = arith.constant 1.000000e+00 : f32
    %1288 = vector.broadcast %cst_414 : f32 to vector<8x128xf32>
    %1289 = arith.addf %1288, %1287 : vector<8x128xf32>
    %1290 = arith.divf %1288, %1289 : vector<8x128xf32>
    %1291 = vector.extract_strided_slice %1278 {offsets = [0, 256], sizes = [8, 128], strides = [1, 1]} : vector<8x512xf32> to vector<8x128xf32>
    %1292 = math.tanh %1291 : vector<8x128xf32>
    %1293 = vector.extract_strided_slice %1278 {offsets = [0, 384], sizes = [8, 128], strides = [1, 1]} : vector<8x512xf32> to vector<8x128xf32>
    %1294 = arith.negf %1293 : vector<8x128xf32>
    %1295 = math.exp %1294 : vector<8x128xf32>
    %cst_415 = arith.constant 1.000000e+00 : f32
    %1296 = vector.broadcast %cst_415 : f32 to vector<8x128xf32>
    %1297 = arith.addf %1296, %1295 : vector<8x128xf32>
    %1298 = arith.divf %1296, %1297 : vector<8x128xf32>
    %1299 = arith.mulf %1290, %1121 : vector<8x128xf32>
    %1300 = arith.mulf %1284, %1292 : vector<8x128xf32>
    %1301 = arith.addf %1299, %1300 : vector<8x128xf32>
    %1302 = math.tanh %1301 : vector<8x128xf32>
    %1303 = arith.mulf %1298, %1302 : vector<8x128xf32>
    %1304 = tpu.concatenate %1187, %1157 in 1 : vector<8x128xf32>, vector<8x128xf32> -> vector<8x256xf32>
    %1305 = arith.truncf %1304 : vector<8x256xf32> to vector<8x256xbf16>
    %c0_416 = arith.constant 0 : index
    %c0_417 = arith.constant 0 : index
    %c0_418 = arith.constant 0 : index
    %1306 = vector.load %arg4[%c0_416, %c0_417, %c0_418] : memref<3x256x512xbf16, #tpu.memory_space<vmem>>, vector<1x256x512xbf16>
    %1307 = vector.shape_cast %1306 : vector<1x256x512xbf16> to vector<256x512xbf16>
    %cst_419 = arith.constant dense<0.000000e+00> : vector<8x512xf32>
    %1308 = tpu.matmul %1305, %1307, %cst_419 {dimension_numbers = #tpu.dot_dimension_numbers<[1], [0], [0], [1], [0, 0, 1, 1], [], []>} : vector<8x256xbf16>, vector<256x512xbf16>, vector<8x512xf32> -> vector<8x512xf32>
    %c1_420 = arith.constant 1 : index
    %c0_421 = arith.constant 0 : index
    %c0_422 = arith.constant 0 : index
    %1309 = vector.load %arg5[%c1_420, %c0_421, %c0_422] : memref<4x1x512xf32, #tpu.memory_space<vmem>>, vector<1x1x512xf32>
    %1310 = vector.shape_cast %1309 : vector<1x1x512xf32> to vector<1x512xf32>
    %1311 = vector.broadcast %1310 : vector<1x512xf32> to vector<8x512xf32>
    %1312 = arith.addf %1308, %1311 : vector<8x512xf32>
    %1313 = vector.extract_strided_slice %1312 {offsets = [0, 0], sizes = [8, 128], strides = [1, 1]} : vector<8x512xf32> to vector<8x128xf32>
    %1314 = arith.negf %1313 : vector<8x128xf32>
    %1315 = math.exp %1314 : vector<8x128xf32>
    %cst_423 = arith.constant 1.000000e+00 : f32
    %1316 = vector.broadcast %cst_423 : f32 to vector<8x128xf32>
    %1317 = arith.addf %1316, %1315 : vector<8x128xf32>
    %1318 = arith.divf %1316, %1317 : vector<8x128xf32>
    %1319 = vector.extract_strided_slice %1312 {offsets = [0, 128], sizes = [8, 128], strides = [1, 1]} : vector<8x512xf32> to vector<8x128xf32>
    %1320 = arith.negf %1319 : vector<8x128xf32>
    %1321 = math.exp %1320 : vector<8x128xf32>
    %cst_424 = arith.constant 1.000000e+00 : f32
    %1322 = vector.broadcast %cst_424 : f32 to vector<8x128xf32>
    %1323 = arith.addf %1322, %1321 : vector<8x128xf32>
    %1324 = arith.divf %1322, %1323 : vector<8x128xf32>
    %1325 = vector.extract_strided_slice %1312 {offsets = [0, 256], sizes = [8, 128], strides = [1, 1]} : vector<8x512xf32> to vector<8x128xf32>
    %1326 = math.tanh %1325 : vector<8x128xf32>
    %1327 = vector.extract_strided_slice %1312 {offsets = [0, 384], sizes = [8, 128], strides = [1, 1]} : vector<8x512xf32> to vector<8x128xf32>
    %1328 = arith.negf %1327 : vector<8x128xf32>
    %1329 = math.exp %1328 : vector<8x128xf32>
    %cst_425 = arith.constant 1.000000e+00 : f32
    %1330 = vector.broadcast %cst_425 : f32 to vector<8x128xf32>
    %1331 = arith.addf %1330, %1329 : vector<8x128xf32>
    %1332 = arith.divf %1330, %1331 : vector<8x128xf32>
    %1333 = arith.mulf %1324, %1155 : vector<8x128xf32>
    %1334 = arith.mulf %1318, %1326 : vector<8x128xf32>
    %1335 = arith.addf %1333, %1334 : vector<8x128xf32>
    %1336 = math.tanh %1335 : vector<8x128xf32>
    %1337 = arith.mulf %1332, %1336 : vector<8x128xf32>
    %1338 = arith.truncf %1235 : vector<8x32xf32> to vector<8x32xbf16>
    %c0_426 = arith.constant 0 : index
    %c0_427 = arith.constant 0 : index
    %c0_428 = arith.constant 0 : index
    %1339 = vector.load %arg8[%c0_426, %c0_427, %c0_428] : memref<1x64x128xbf16, #tpu.memory_space<vmem>>, vector<1x32x128xbf16>
    %1340 = vector.shape_cast %1339 : vector<1x32x128xbf16> to vector<32x128xbf16>
    %cst_429 = arith.constant dense<0.000000e+00> : vector<8x128xf32>
    %1341 = tpu.matmul %1338, %1340, %cst_429 {dimension_numbers = #tpu.dot_dimension_numbers<[1], [0], [0], [1], [0, 0, 1, 1], [], []>} : vector<8x32xbf16>, vector<32x128xbf16>, vector<8x128xf32> -> vector<8x128xf32>
    %1342 = arith.truncf %1215 : vector<8x32xf32> to vector<8x32xbf16>
    %c0_430 = arith.constant 0 : index
    %c32_431 = arith.constant 32 : index
    %c0_432 = arith.constant 0 : index
    %1343 = vector.load %arg8[%c0_430, %c32_431, %c0_432] : memref<1x64x128xbf16, #tpu.memory_space<vmem>>, vector<1x32x128xbf16>
    %1344 = vector.shape_cast %1343 : vector<1x32x128xbf16> to vector<32x128xbf16>
    %cst_433 = arith.constant dense<0.000000e+00> : vector<8x128xf32>
    %1345 = tpu.matmul %1342, %1344, %cst_433 {dimension_numbers = #tpu.dot_dimension_numbers<[1], [0], [0], [1], [0, 0, 1, 1], [], []>} : vector<8x32xbf16>, vector<32x128xbf16>, vector<8x128xf32> -> vector<8x128xf32>
    %1346 = arith.addf %1341, %1345 : vector<8x128xf32>
    %c1_434 = arith.constant 1 : index
    %c0_435 = arith.constant 0 : index
    %c0_436 = arith.constant 0 : index
    %1347 = vector.load %arg9[%c1_434, %c0_435, %c0_436] : memref<2x1x128xf32, #tpu.memory_space<vmem>>, vector<1x1x128xf32>
    %1348 = vector.shape_cast %1347 : vector<1x1x128xf32> to vector<1x128xf32>
    %1349 = vector.broadcast %1348 : vector<1x128xf32> to vector<8x128xf32>
    %1350 = arith.addf %1346, %1349 : vector<8x128xf32>
    %1351 = arith.negf %1350 : vector<8x128xf32>
    %1352 = math.exp %1351 : vector<8x128xf32>
    %cst_437 = arith.constant 1.000000e+00 : f32
    %1353 = vector.broadcast %cst_437 : f32 to vector<8x128xf32>
    %1354 = arith.addf %1353, %1352 : vector<8x128xf32>
    %1355 = arith.divf %1353, %1354 : vector<8x128xf32>
    %1356 = math.tanh %1350 : vector<8x128xf32>
    %1357 = vector.extract_strided_slice %1355 {offsets = [0, 0], sizes = [8, 32], strides = [1, 1]} : vector<8x128xf32> to vector<8x32xf32>
    %1358 = vector.extract_strided_slice %1355 {offsets = [0, 32], sizes = [8, 32], strides = [1, 1]} : vector<8x128xf32> to vector<8x32xf32>
    %1359 = vector.extract_strided_slice %1356 {offsets = [0, 64], sizes = [8, 32], strides = [1, 1]} : vector<8x128xf32> to vector<8x32xf32>
    %1360 = vector.extract_strided_slice %1355 {offsets = [0, 96], sizes = [8, 32], strides = [1, 1]} : vector<8x128xf32> to vector<8x32xf32>
    %1361 = arith.mulf %1358, %1213 : vector<8x32xf32>
    %1362 = arith.mulf %1357, %1359 : vector<8x32xf32>
    %1363 = arith.addf %1361, %1362 : vector<8x32xf32>
    %1364 = math.tanh %1363 : vector<8x32xf32>
    %1365 = arith.mulf %1360, %1364 : vector<8x32xf32>
    %1366 = tpu.concatenate %1303, %1269 in 1 : vector<8x128xf32>, vector<8x128xf32> -> vector<8x256xf32>
    %1367 = arith.truncf %1366 : vector<8x256xf32> to vector<8x256xbf16>
    %c2_438 = arith.constant 2 : index
    %c0_439 = arith.constant 0 : index
    %c0_440 = arith.constant 0 : index
    %1368 = vector.load %arg4[%c2_438, %c0_439, %c0_440] : memref<3x256x512xbf16, #tpu.memory_space<vmem>>, vector<1x256x512xbf16>
    %1369 = vector.shape_cast %1368 : vector<1x256x512xbf16> to vector<256x512xbf16>
    %cst_441 = arith.constant dense<0.000000e+00> : vector<8x512xf32>
    %1370 = tpu.matmul %1367, %1369, %cst_441 {dimension_numbers = #tpu.dot_dimension_numbers<[1], [0], [0], [1], [0, 0, 1, 1], [], []>} : vector<8x256xbf16>, vector<256x512xbf16>, vector<8x512xf32> -> vector<8x512xf32>
    %c3_442 = arith.constant 3 : index
    %c0_443 = arith.constant 0 : index
    %c0_444 = arith.constant 0 : index
    %1371 = vector.load %arg5[%c3_442, %c0_443, %c0_444] : memref<4x1x512xf32, #tpu.memory_space<vmem>>, vector<1x1x512xf32>
    %1372 = vector.shape_cast %1371 : vector<1x1x512xf32> to vector<1x512xf32>
    %1373 = vector.broadcast %1372 : vector<1x512xf32> to vector<8x512xf32>
    %1374 = arith.addf %1370, %1373 : vector<8x512xf32>
    %1375 = vector.extract_strided_slice %1374 {offsets = [0, 0], sizes = [8, 128], strides = [1, 1]} : vector<8x512xf32> to vector<8x128xf32>
    %1376 = arith.negf %1375 : vector<8x128xf32>
    %1377 = math.exp %1376 : vector<8x128xf32>
    %cst_445 = arith.constant 1.000000e+00 : f32
    %1378 = vector.broadcast %cst_445 : f32 to vector<8x128xf32>
    %1379 = arith.addf %1378, %1377 : vector<8x128xf32>
    %1380 = arith.divf %1378, %1379 : vector<8x128xf32>
    %1381 = vector.extract_strided_slice %1374 {offsets = [0, 128], sizes = [8, 128], strides = [1, 1]} : vector<8x512xf32> to vector<8x128xf32>
    %1382 = arith.negf %1381 : vector<8x128xf32>
    %1383 = math.exp %1382 : vector<8x128xf32>
    %cst_446 = arith.constant 1.000000e+00 : f32
    %1384 = vector.broadcast %cst_446 : f32 to vector<8x128xf32>
    %1385 = arith.addf %1384, %1383 : vector<8x128xf32>
    %1386 = arith.divf %1384, %1385 : vector<8x128xf32>
    %1387 = vector.extract_strided_slice %1374 {offsets = [0, 256], sizes = [8, 128], strides = [1, 1]} : vector<8x512xf32> to vector<8x128xf32>
    %1388 = math.tanh %1387 : vector<8x128xf32>
    %1389 = vector.extract_strided_slice %1374 {offsets = [0, 384], sizes = [8, 128], strides = [1, 1]} : vector<8x512xf32> to vector<8x128xf32>
    %1390 = arith.negf %1389 : vector<8x128xf32>
    %1391 = math.exp %1390 : vector<8x128xf32>
    %cst_447 = arith.constant 1.000000e+00 : f32
    %1392 = vector.broadcast %cst_447 : f32 to vector<8x128xf32>
    %1393 = arith.addf %1392, %1391 : vector<8x128xf32>
    %1394 = arith.divf %1392, %1393 : vector<8x128xf32>
    %1395 = arith.mulf %1386, %1267 : vector<8x128xf32>
    %1396 = arith.mulf %1380, %1388 : vector<8x128xf32>
    %1397 = arith.addf %1395, %1396 : vector<8x128xf32>
    %1398 = math.tanh %1397 : vector<8x128xf32>
    %1399 = arith.mulf %1394, %1398 : vector<8x128xf32>
    %1400 = tpu.concatenate %1337, %1303 in 1 : vector<8x128xf32>, vector<8x128xf32> -> vector<8x256xf32>
    %1401 = arith.truncf %1400 : vector<8x256xf32> to vector<8x256xbf16>
    %c1_448 = arith.constant 1 : index
    %c0_449 = arith.constant 0 : index
    %c0_450 = arith.constant 0 : index
    %1402 = vector.load %arg4[%c1_448, %c0_449, %c0_450] : memref<3x256x512xbf16, #tpu.memory_space<vmem>>, vector<1x256x512xbf16>
    %1403 = vector.shape_cast %1402 : vector<1x256x512xbf16> to vector<256x512xbf16>
    %cst_451 = arith.constant dense<0.000000e+00> : vector<8x512xf32>
    %1404 = tpu.matmul %1401, %1403, %cst_451 {dimension_numbers = #tpu.dot_dimension_numbers<[1], [0], [0], [1], [0, 0, 1, 1], [], []>} : vector<8x256xbf16>, vector<256x512xbf16>, vector<8x512xf32> -> vector<8x512xf32>
    %c2_452 = arith.constant 2 : index
    %c0_453 = arith.constant 0 : index
    %c0_454 = arith.constant 0 : index
    %1405 = vector.load %arg5[%c2_452, %c0_453, %c0_454] : memref<4x1x512xf32, #tpu.memory_space<vmem>>, vector<1x1x512xf32>
    %1406 = vector.shape_cast %1405 : vector<1x1x512xf32> to vector<1x512xf32>
    %1407 = vector.broadcast %1406 : vector<1x512xf32> to vector<8x512xf32>
    %1408 = arith.addf %1404, %1407 : vector<8x512xf32>
    %1409 = vector.extract_strided_slice %1408 {offsets = [0, 0], sizes = [8, 128], strides = [1, 1]} : vector<8x512xf32> to vector<8x128xf32>
    %1410 = arith.negf %1409 : vector<8x128xf32>
    %1411 = math.exp %1410 : vector<8x128xf32>
    %cst_455 = arith.constant 1.000000e+00 : f32
    %1412 = vector.broadcast %cst_455 : f32 to vector<8x128xf32>
    %1413 = arith.addf %1412, %1411 : vector<8x128xf32>
    %1414 = arith.divf %1412, %1413 : vector<8x128xf32>
    %1415 = vector.extract_strided_slice %1408 {offsets = [0, 128], sizes = [8, 128], strides = [1, 1]} : vector<8x512xf32> to vector<8x128xf32>
    %1416 = arith.negf %1415 : vector<8x128xf32>
    %1417 = math.exp %1416 : vector<8x128xf32>
    %cst_456 = arith.constant 1.000000e+00 : f32
    %1418 = vector.broadcast %cst_456 : f32 to vector<8x128xf32>
    %1419 = arith.addf %1418, %1417 : vector<8x128xf32>
    %1420 = arith.divf %1418, %1419 : vector<8x128xf32>
    %1421 = vector.extract_strided_slice %1408 {offsets = [0, 256], sizes = [8, 128], strides = [1, 1]} : vector<8x512xf32> to vector<8x128xf32>
    %1422 = math.tanh %1421 : vector<8x128xf32>
    %1423 = vector.extract_strided_slice %1408 {offsets = [0, 384], sizes = [8, 128], strides = [1, 1]} : vector<8x512xf32> to vector<8x128xf32>
    %1424 = arith.negf %1423 : vector<8x128xf32>
    %1425 = math.exp %1424 : vector<8x128xf32>
    %cst_457 = arith.constant 1.000000e+00 : f32
    %1426 = vector.broadcast %cst_457 : f32 to vector<8x128xf32>
    %1427 = arith.addf %1426, %1425 : vector<8x128xf32>
    %1428 = arith.divf %1426, %1427 : vector<8x128xf32>
    %1429 = arith.mulf %1420, %1301 : vector<8x128xf32>
    %1430 = arith.mulf %1414, %1422 : vector<8x128xf32>
    %1431 = arith.addf %1429, %1430 : vector<8x128xf32>
    %1432 = math.tanh %1431 : vector<8x128xf32>
    %1433 = arith.mulf %1428, %1432 : vector<8x128xf32>
    %1434 = tpu.concatenate %1433, %1399 in 1 : vector<8x128xf32>, vector<8x128xf32> -> vector<8x256xf32>
    %1435 = arith.truncf %1434 : vector<8x256xf32> to vector<8x256xbf16>
    %c2_458 = arith.constant 2 : index
    %c0_459 = arith.constant 0 : index
    %c0_460 = arith.constant 0 : index
    %1436 = vector.load %arg4[%c2_458, %c0_459, %c0_460] : memref<3x256x512xbf16, #tpu.memory_space<vmem>>, vector<1x256x512xbf16>
    %1437 = vector.shape_cast %1436 : vector<1x256x512xbf16> to vector<256x512xbf16>
    %cst_461 = arith.constant dense<0.000000e+00> : vector<8x512xf32>
    %1438 = tpu.matmul %1435, %1437, %cst_461 {dimension_numbers = #tpu.dot_dimension_numbers<[1], [0], [0], [1], [0, 0, 1, 1], [], []>} : vector<8x256xbf16>, vector<256x512xbf16>, vector<8x512xf32> -> vector<8x512xf32>
    %c3_462 = arith.constant 3 : index
    %c0_463 = arith.constant 0 : index
    %c0_464 = arith.constant 0 : index
    %1439 = vector.load %arg5[%c3_462, %c0_463, %c0_464] : memref<4x1x512xf32, #tpu.memory_space<vmem>>, vector<1x1x512xf32>
    %1440 = vector.shape_cast %1439 : vector<1x1x512xf32> to vector<1x512xf32>
    %1441 = vector.broadcast %1440 : vector<1x512xf32> to vector<8x512xf32>
    %1442 = arith.addf %1438, %1441 : vector<8x512xf32>
    %1443 = vector.extract_strided_slice %1442 {offsets = [0, 0], sizes = [8, 128], strides = [1, 1]} : vector<8x512xf32> to vector<8x128xf32>
    %1444 = arith.negf %1443 : vector<8x128xf32>
    %1445 = math.exp %1444 : vector<8x128xf32>
    %cst_465 = arith.constant 1.000000e+00 : f32
    %1446 = vector.broadcast %cst_465 : f32 to vector<8x128xf32>
    %1447 = arith.addf %1446, %1445 : vector<8x128xf32>
    %1448 = arith.divf %1446, %1447 : vector<8x128xf32>
    %1449 = vector.extract_strided_slice %1442 {offsets = [0, 128], sizes = [8, 128], strides = [1, 1]} : vector<8x512xf32> to vector<8x128xf32>
    %1450 = arith.negf %1449 : vector<8x128xf32>
    %1451 = math.exp %1450 : vector<8x128xf32>
    %cst_466 = arith.constant 1.000000e+00 : f32
    %1452 = vector.broadcast %cst_466 : f32 to vector<8x128xf32>
    %1453 = arith.addf %1452, %1451 : vector<8x128xf32>
    %1454 = arith.divf %1452, %1453 : vector<8x128xf32>
    %1455 = vector.extract_strided_slice %1442 {offsets = [0, 256], sizes = [8, 128], strides = [1, 1]} : vector<8x512xf32> to vector<8x128xf32>
    %1456 = math.tanh %1455 : vector<8x128xf32>
    %1457 = vector.extract_strided_slice %1442 {offsets = [0, 384], sizes = [8, 128], strides = [1, 1]} : vector<8x512xf32> to vector<8x128xf32>
    %1458 = arith.negf %1457 : vector<8x128xf32>
    %1459 = math.exp %1458 : vector<8x128xf32>
    %cst_467 = arith.constant 1.000000e+00 : f32
    %1460 = vector.broadcast %cst_467 : f32 to vector<8x128xf32>
    %1461 = arith.addf %1460, %1459 : vector<8x128xf32>
    %1462 = arith.divf %1460, %1461 : vector<8x128xf32>
    %1463 = arith.mulf %1454, %1397 : vector<8x128xf32>
    %1464 = arith.mulf %1448, %1456 : vector<8x128xf32>
    %1465 = arith.addf %1463, %1464 : vector<8x128xf32>
    %1466 = math.tanh %1465 : vector<8x128xf32>
    %1467 = arith.mulf %1462, %1466 : vector<8x128xf32>
    %1468 = arith.truncf %1467 : vector<8x128xf32> to vector<8x128xbf16>
    %c0_468 = arith.constant 0 : index
    %c0_469 = arith.constant 0 : index
    %1469 = vector.load %arg10[%c0_468, %c0_469] : memref<128x128xbf16, #tpu.memory_space<vmem>>, vector<128x128xbf16>
    %cst_470 = arith.constant dense<0.000000e+00> : vector<8x128xf32>
    %1470 = tpu.matmul %1468, %1469, %cst_470 {dimension_numbers = #tpu.dot_dimension_numbers<[1], [0], [0], [1], [0, 0, 1, 1], [], []>} : vector<8x128xbf16>, vector<128x128xbf16>, vector<8x128xf32> -> vector<8x128xf32>
    %1471 = arith.truncf %1365 : vector<8x32xf32> to vector<8x32xbf16>
    %c0_471 = arith.constant 0 : index
    %c0_472 = arith.constant 0 : index
    %1472 = vector.load %arg11[%c0_471, %c0_472] : memref<32x128xbf16, #tpu.memory_space<vmem>>, vector<32x128xbf16>
    %cst_473 = arith.constant dense<0.000000e+00> : vector<8x128xf32>
    %1473 = tpu.matmul %1471, %1472, %cst_473 {dimension_numbers = #tpu.dot_dimension_numbers<[1], [0], [0], [1], [0, 0, 1, 1], [], []>} : vector<8x32xbf16>, vector<32x128xbf16>, vector<8x128xf32> -> vector<8x128xf32>
    %1474 = arith.addf %1470, %1473 : vector<8x128xf32>
    %c0_474 = arith.constant 0 : index
    %c0_475 = arith.constant 0 : index
    %1475 = vector.load %arg12[%c0_474, %c0_475] : memref<1x128xf32, #tpu.memory_space<vmem>>, vector<1x128xf32>
    %1476 = vector.broadcast %1475 : vector<1x128xf32> to vector<8x128xf32>
    %1477 = arith.addf %1474, %1476 : vector<8x128xf32>
    %cst_476 = arith.constant 0.000000e+00 : f32
    %1478 = vector.broadcast %cst_476 : f32 to vector<8x128xf32>
    %1479 = arith.maximumf %1477, %1478 : vector<8x128xf32>
    %1480 = arith.truncf %1479 : vector<8x128xf32> to vector<8x128xbf16>
    %c0_477 = arith.constant 0 : index
    %c0_478 = arith.constant 0 : index
    %1481 = vector.load %arg13[%c0_477, %c0_478] : memref<128x64xbf16, #tpu.memory_space<vmem>>, vector<128x64xbf16>
    %cst_479 = arith.constant dense<0.000000e+00> : vector<8x64xf32>
    %1482 = tpu.matmul %1480, %1481, %cst_479 {dimension_numbers = #tpu.dot_dimension_numbers<[1], [0], [0], [1], [0, 0, 1, 1], [], []>} : vector<8x128xbf16>, vector<128x64xbf16>, vector<8x64xf32> -> vector<8x64xf32>
    %c0_480 = arith.constant 0 : index
    %c0_481 = arith.constant 0 : index
    %1483 = vector.load %arg14[%c0_480, %c0_481] : memref<1x64xf32, #tpu.memory_space<vmem>>, vector<1x64xf32>
    %1484 = vector.broadcast %1483 : vector<1x64xf32> to vector<8x64xf32>
    %1485 = arith.addf %1482, %1484 : vector<8x64xf32>
    %cst_482 = arith.constant 0.000000e+00 : f32
    %1486 = vector.broadcast %cst_482 : f32 to vector<8x64xf32>
    %1487 = arith.maximumf %1485, %1486 : vector<8x64xf32>
    %1488 = arith.truncf %1487 : vector<8x64xf32> to vector<8x64xbf16>
    %c0_483 = arith.constant 0 : index
    %c0_484 = arith.constant 0 : index
    %1489 = vector.load %arg15[%c0_483, %c0_484] : memref<64x32xbf16, #tpu.memory_space<vmem>>, vector<64x32xbf16>
    %cst_485 = arith.constant dense<0.000000e+00> : vector<8x32xf32>
    %1490 = tpu.matmul %1488, %1489, %cst_485 {dimension_numbers = #tpu.dot_dimension_numbers<[1], [0], [0], [1], [0, 0, 1, 1], [], []>} : vector<8x64xbf16>, vector<64x32xbf16>, vector<8x32xf32> -> vector<8x32xf32>
    %c0_486 = arith.constant 0 : index
    %c0_487 = arith.constant 0 : index
    %1491 = vector.load %arg16[%c0_486, %c0_487] : memref<1x32xf32, #tpu.memory_space<vmem>>, vector<1x32xf32>
    %1492 = vector.broadcast %1491 : vector<1x32xf32> to vector<8x32xf32>
    %1493 = arith.addf %1490, %1492 : vector<8x32xf32>
    %cst_488 = arith.constant 0.000000e+00 : f32
    %1494 = vector.broadcast %cst_488 : f32 to vector<8x32xf32>
    %1495 = arith.maximumf %1493, %1494 : vector<8x32xf32>
    %c0_489 = arith.constant 0 : index
    %c0_490 = arith.constant 0 : index
    %1496 = vector.load %arg17[%c0_489, %c0_490] : memref<1x32xf32, #tpu.memory_space<vmem>>, vector<1x32xf32>
    %1497 = vector.broadcast %1496 : vector<1x32xf32> to vector<8x32xf32>
    %1498 = arith.mulf %1495, %1497 : vector<8x32xf32>
    %cst_491 = arith.constant dense<0.000000e+00> : vector<8xf32>
    %1499 = vector.multi_reduction <add>, %1498, %cst_491 [1] : vector<8x32xf32> to vector<8xf32>
    %1500 = vector.shape_cast %1499 : vector<8xf32> to vector<8x1xf32>
    %c0_492 = arith.constant 0 : index
    %c0_493 = arith.constant 0 : index
    %1501 = vector.load %arg18[%c0_492, %c0_493] : memref<1x1xf32, #tpu.memory_space<vmem>>, vector<1x1xf32>
    %1502 = vector.broadcast %1501 : vector<1x1xf32> to vector<8x1xf32>
    %1503 = arith.addf %1500, %1502 : vector<8x1xf32>
    %c0_494 = arith.constant 0 : index
    %c0_495 = arith.constant 0 : index
    %1504 = vector.load %arg19[%c0_494, %c0_495] : memref<8x1xf32, #tpu.memory_space<vmem>>, vector<8x1xf32>
    tpu.vector_store %arg19[%c0_494, %c0_495], %1503 {strides = array<i32>} : memref<8x1xf32, #tpu.memory_space<vmem>>, vector<8x1xf32>,
    return
  }
}

</mosaic_0001>

<llo_original>
// kernel: simple_nn_forward.1
$region0: #{simple_nn_forward.1}
  #allocation0 [shape = 'u32[]', space=smem, size = 0x4, offset = 0x4, fixed_abs, tag = 'smem constant byte address 0x4 - core index']
  #allocation1 [shape = 'u32[72,128]{1,0:T(1,128)}', space=vmem, size = 0x9000, scoped, tag = 'internal scratch']
  #allocation2 [shape = 'f32[64,512]{1,0:T(8,128)}', space=vmem, size = 0x20000, scoped, tag = 'scratch operand']
  #allocation3 [shape = 'f32[64,128]{1,0:T(8,128)}', space=vmem, size = 0x8000, scoped, tag = 'scratch operand']
  #allocation4 [shape = 'f32[1,1]{1,0:T(1,128)S(1)}', space=vmem, size = 0x200, scoped, tag = 'scoped memory for simple_nn_forward.1']
  %s0 = inlined_call_operand.vmem [shape: f32[64,6], index: 0, kind: input, shape index: {}]
  %s1 = inlined_call_operand.vmem [shape: f32[64,5], index: 1, kind: input, shape index: {}]
  %s2 = inlined_call_operand.vmem [shape: f32[6,512], index: 2, kind: input, shape index: {}]
  %s3 = inlined_call_operand.hbm [shape: bf16[128,512], index: 3, kind: input, shape index: {}]
  %s4 = inlined_call_operand.hbm [shape: bf16[3,256,512], index: 4, kind: input, shape index: {}]
  %s5 = inlined_call_operand.vmem [shape: f32[4,1,512], index: 5, kind: input, shape index: {}]
  %s6 = inlined_call_operand.vmem [shape: f32[5,128], index: 6, kind: input, shape index: {}]
  %s7 = inlined_call_operand.vmem [shape: bf16[32,128], index: 7, kind: input, shape index: {}]
  %s8 = inlined_call_operand.vmem [shape: bf16[1,64,128], index: 8, kind: input, shape index: {}]
  %s9 = inlined_call_operand.vmem [shape: f32[2,1,128], index: 9, kind: input, shape index: {}]
  %s10 = inlined_call_operand.vmem [shape: bf16[128,128], index: 10, kind: input, shape index: {}]
  %s11 = inlined_call_operand.vmem [shape: bf16[32,128], index: 11, kind: input, shape index: {}]
  %s12 = inlined_call_operand.vmem [shape: f32[1,128], index: 12, kind: input, shape index: {}]
  %s13 = inlined_call_operand.vmem [shape: bf16[128,64], index: 13, kind: input, shape index: {}]
  %s14 = inlined_call_operand.vmem [shape: f32[1,64], index: 14, kind: input, shape index: {}]
  %s15 = inlined_call_operand.vmem [shape: bf16[64,32], index: 15, kind: input, shape index: {}]
  %s16 = inlined_call_operand.vmem [shape: f32[1,32], index: 16, kind: input, shape index: {}]
  %s17 = inlined_call_operand.vmem [shape: f32[1,32], index: 17, kind: input, shape index: {}]
  %s18 = inlined_call_operand.<no memory space> [shape: f32[1,1], index: 18, kind: input, shape index: {}]
  %s19 = inlined_call_operand.vmem [shape: f32[8,1], index: 19, kind: output, shape index: {}]
  %s20 = sld [smem:[#allocation0]]
  $region94: #{simple_nn_forward.1} parent=0
    _
  %s22 = ssub.s32 1, %s20
  %s23 = scalar_select 0, %s22, %s20
  %v24 = vstv %s18
  %25 = vst [vmem:[#allocation4] sm:$0x1] %v24
  $region1: #{simple_nn_forward.1} parent=0
    #allocation5 [shape = 'u8[131072]{0}', space=vmem, size = 0x20000, scoped, tag = 'input window, operand 3, single buffered']
    #allocation6 [shape = 's32[1]{0}', space=sflag, size = 0x4, scoped, tag = 'scoped memory for simple_nn_forward.1']
    #allocation7 [shape = 'u8[786432]{0}', space=vmem, size = 0xc0000, scoped, tag = 'input window, operand 4, single buffered']
    #allocation8 [shape = 's32[1]{0}', space=sflag, size = 0x4, scoped, tag = 'scoped memory for simple_nn_forward.1']
    %26 = vsyncpa [#allocation6], 0
    %27 = vsyncpa [#allocation8], 0
    // Predicated region
    $region2: #{simple_nn_forward.1} parent=1 // pred_check
      _
    $region3: #{simple_nn_forward.1} parent=1 // pred_check_branch
      %29 = sbr.rel (0) target = $region5
    $region4: #{simple_nn_forward.1} parent=1 // pred_region
      _
    $region5: #{simple_nn_forward.1} parent=1 // pred_fallthru
      _
    // Predicated region
    $region6: #{simple_nn_forward.1} parent=1 // pred_check
      _
    $region7: #{simple_nn_forward.1} parent=1 // pred_check_branch
      %31 = sbr.rel (0) target = $region9
    $region8: #{simple_nn_forward.1} parent=1 // pred_region
      _
    $region9: #{simple_nn_forward.1} parent=1 // pred_fallthru
      _
    // Predicated region
    $region10: #{simple_nn_forward.1} parent=1 // pred_check
      _
    $region11: #{simple_nn_forward.1} parent=1 // pred_check_branch
      %33 = sbr.rel (0) target = $region13
    $region12: #{simple_nn_forward.1} parent=1 // pred_region
      _
    $region13: #{simple_nn_forward.1} parent=1 // pred_fallthru
      _
    // Predicated region
    $region14: #{simple_nn_forward.1} parent=1 // pred_check
      _
    $region15: #{simple_nn_forward.1} parent=1 // pred_check_branch
      %35 = sbr.rel (0) target = $region17
    $region16: #{simple_nn_forward.1} parent=1 // pred_region
      %37 = vsyncadd [#allocation6], 0
      %s38 = sshll.u32 %s3, 4
      %s39 = int_to_ptr.hbm [resolvable:$true] %s38
      %s40 = sshll.u32 [#allocation5], 4
      %s41 = int_to_ptr.vmem [resolvable:$true] %s40
      %46 = dma.hbm_to_vmem [thread:$0]  %s39, 4096, %s41, [#allocation6], 256, 256, 16
    $region17: #{simple_nn_forward.1} parent=1 // pred_fallthru
      _
    // Predicated region
    $region18: #{simple_nn_forward.1} parent=1 // pred_check
      _
    $region19: #{simple_nn_forward.1} parent=1 // pred_check_branch
      %48 = sbr.rel (0) target = $region21
    $region20: #{simple_nn_forward.1} parent=1 // pred_region
      %50 = vsyncadd [#allocation8], 0
      %s51 = sshll.u32 %s4, 4
      %s52 = int_to_ptr.hbm [resolvable:$true] %s51
      %s53 = sshll.u32 [#allocation7], 4
      %s54 = int_to_ptr.vmem [resolvable:$true] %s53
      %59 = dma.hbm_to_vmem [thread:$0]  %s52, 24576, %s54, [#allocation8], 256, 256, 16
    $region21: #{simple_nn_forward.1} parent=1 // pred_fallthru
      _
    // Predicated region
    $region22: #{simple_nn_forward.1} parent=1 // pred_check
      _
    $region23: #{simple_nn_forward.1} parent=1 // pred_check_branch
      %61 = sbr.rel (0) target = $region25
    $region24: #{simple_nn_forward.1} parent=1 // pred_region
      _
    $region25: #{simple_nn_forward.1} parent=1 // pred_fallthru
      _
    // Predicated region
    $region26: #{simple_nn_forward.1} parent=1 // pred_check
      _
    $region27: #{simple_nn_forward.1} parent=1 // pred_check_branch
      %63 = sbr.rel (0) target = $region29
    $region28: #{simple_nn_forward.1} parent=1 // pred_region
      _
    $region29: #{simple_nn_forward.1} parent=1 // pred_fallthru
      _
    // Predicated region
    $region30: #{simple_nn_forward.1} parent=1 // pred_check
      _
    $region31: #{simple_nn_forward.1} parent=1 // pred_check_branch
      %65 = sbr.rel (0) target = $region33
    $region32: #{simple_nn_forward.1} parent=1 // pred_region
      _
    $region33: #{simple_nn_forward.1} parent=1 // pred_fallthru
      _
    // Predicated region
    $region34: #{simple_nn_forward.1} parent=1 // pred_check
      _
    $region35: #{simple_nn_forward.1} parent=1 // pred_check_branch
      %67 = sbr.rel (0) target = $region37
    $region36: #{simple_nn_forward.1} parent=1 // pred_region
      _
    $region37: #{simple_nn_forward.1} parent=1 // pred_fallthru
      _
    // Predicated region
    $region38: #{simple_nn_forward.1} parent=1 // pred_check
      _
    $region39: #{simple_nn_forward.1} parent=1 // pred_check_branch
      %69 = sbr.rel (0) target = $region41
    $region40: #{simple_nn_forward.1} parent=1 // pred_region
      _
    $region41: #{simple_nn_forward.1} parent=1 // pred_fallthru
      _
    // Predicated region
    $region42: #{simple_nn_forward.1} parent=1 // pred_check
      _
    $region43: #{simple_nn_forward.1} parent=1 // pred_check_branch
      %71 = sbr.rel (0) target = $region45
    $region44: #{simple_nn_forward.1} parent=1 // pred_region
      _
    $region45: #{simple_nn_forward.1} parent=1 // pred_fallthru
      _
    // Predicated region
    $region46: #{simple_nn_forward.1} parent=1 // pred_check
      _
    $region47: #{simple_nn_forward.1} parent=1 // pred_check_branch
      %73 = sbr.rel (0) target = $region49
    $region48: #{simple_nn_forward.1} parent=1 // pred_region
      _
    $region49: #{simple_nn_forward.1} parent=1 // pred_fallthru
      _
    // Predicated region
    $region50: #{simple_nn_forward.1} parent=1 // pred_check
      _
    $region51: #{simple_nn_forward.1} parent=1 // pred_check_branch
      %75 = sbr.rel (0) target = $region53
    $region52: #{simple_nn_forward.1} parent=1 // pred_region
      _
    $region53: #{simple_nn_forward.1} parent=1 // pred_fallthru
      _
    // Predicated region
    $region54: #{simple_nn_forward.1} parent=1 // pred_check
      _
    $region55: #{simple_nn_forward.1} parent=1 // pred_check_branch
      %77 = sbr.rel (0) target = $region57
    $region56: #{simple_nn_forward.1} parent=1 // pred_region
      _
    $region57: #{simple_nn_forward.1} parent=1 // pred_fallthru
      _
    // Predicated region
    $region58: #{simple_nn_forward.1} parent=1 // pred_check
      _
    $region59: #{simple_nn_forward.1} parent=1 // pred_check_branch
      %79 = sbr.rel (0) target = $region61
    $region60: #{simple_nn_forward.1} parent=1 // pred_region
      _
    $region61: #{simple_nn_forward.1} parent=1 // pred_fallthru
      _
    // Predicated region
    $region62: #{simple_nn_forward.1} parent=1 // pred_check
      _
    $region63: #{simple_nn_forward.1} parent=1 // pred_check_branch
      %81 = sbr.rel (0) target = $region65
    $region64: #{simple_nn_forward.1} parent=1 // pred_region
      _
    $region65: #{simple_nn_forward.1} parent=1 // pred_fallthru
      _
    // Predicated region
    $region66: #{simple_nn_forward.1} parent=1 // pred_check
      _
    $region67: #{simple_nn_forward.1} parent=1 // pred_check_branch
      %83 = sbr.rel (0) target = $region69
    $region68: #{simple_nn_forward.1} parent=1 // pred_region
      _
    $region69: #{simple_nn_forward.1} parent=1 // pred_fallthru
      _
    // Predicated region
    $region70: #{simple_nn_forward.1} parent=1 // pred_check
      _
    $region71: #{simple_nn_forward.1} parent=1 // pred_check_branch
      %85 = sbr.rel (0) target = $region73
    $region72: #{simple_nn_forward.1} parent=1 // pred_region
      _
    $region73: #{simple_nn_forward.1} parent=1 // pred_fallthru
      _
    // Predicated region
    $region74: #{simple_nn_forward.1} parent=1 // pred_check
      _
    $region75: #{simple_nn_forward.1} parent=1 // pred_check_branch
      %87 = sbr.rel (0) target = $region77
    $region76: #{simple_nn_forward.1} parent=1 // pred_region
      _
    $region77: #{simple_nn_forward.1} parent=1 // pred_fallthru
      _
    // Predicated region
    $region78: #{simple_nn_forward.1} parent=1 // pred_check
      _
    $region79: #{simple_nn_forward.1} parent=1 // pred_check_branch
      %89 = sbr.rel (0) target = $region81
    $region80: #{simple_nn_forward.1} parent=1 // pred_region
      %91 = dma.done [#allocation6], 4096
    $region81: #{simple_nn_forward.1} parent=1 // pred_fallthru
      _
    // Predicated region
    $region82: #{simple_nn_forward.1} parent=1 // pred_check
      _
    $region83: #{simple_nn_forward.1} parent=1 // pred_check_branch
      %93 = sbr.rel (0) target = $region85
    $region84: #{simple_nn_forward.1} parent=1 // pred_region
      %95 = dma.done [#allocation8], 24576
    $region85: #{simple_nn_forward.1} parent=1 // pred_fallthru
      _
    %v97 = vld [vmem:[%s0] sm:$0xff]
    %v98 = vld [vmem:[%s0 + $0x8] sm:$0xff]
    %v99 = vld [vmem:[%s0 + $0x10] sm:$0xff]
    %v100 = vld [vmem:[%s0 + $0x18] sm:$0xff]
    %v101 = vld [vmem:[%s0 + $0x20] sm:$0xff]
    %v102 = vld [vmem:[%s0 + $0x28] sm:$0xff]
    %v103 = vld [vmem:[%s0 + $0x30] sm:$0xff]
    %v104 = vld [vmem:[%s0 + $0x38] sm:$0xff]
    %v105 = vld [vmem:[%s2] sm:$0x3f]
    %v106 = vld [vmem:[%s2 + $0x8] sm:$0x3f]
    %v107 = vld [vmem:[%s2 + $0x10] sm:$0x3f]
    %v108 = vld [vmem:[%s2 + $0x18] sm:$0x3f]
    %v109 = vld [vmem:[%s5] sm:$0xf]
    %v111 = vperm.slane %v109, 0
    %v112 = vperm.slane %v109, 1
    %v113 = vperm.slane %v109, 2
    %v114 = vperm.slane %v109, 3
    %vm119 = vcmask 48128
    %v121 = vsel %vm119, %v97, 0
    %v124 = vsel %vm119, %v98, 0
    %v127 = vsel %vm119, %v99, 0
    %v130 = vsel %vm119, %v100, 0
    %v133 = vsel %vm119, %v101, 0
    %v136 = vsel %vm119, %v102, 0
    %v139 = vsel %vm119, %v103, 0
    %v142 = vsel %vm119, %v104, 0
    %vm144 = vcmask 1045504
    %v146 = vsel %vm144, %v105, 0
    %v149 = vsel %vm144, %v106, 0
    %v152 = vsel %vm144, %v107, 0
    %v155 = vsel %vm144, %v108, 0
    %157 = vmatpush.msra.mxu0 0.0
    %158 = vmatpush.msra.mxu0 0.0
    %159 = vmatpush.msra.mxu0 0.0
    %160 = vmatpush.msra.mxu0 0.0
    %161 = vmatpush.msra.mxu0 0.0
    %162 = vmatpush.msra.mxu0 0.0
    %163 = vmatpush.msra.mxu0 0.0
    %164 = vmatpush.msra.mxu0 0.0
    %165 = vmatpush.msra.mxu0 0.0
    %166 = vmatpush.msra.mxu0 0.0
    %167 = vmatpush.msra.mxu0 0.0
    %168 = vmatpush.msra.mxu0 0.0
    %169 = vmatpush.msra.mxu0 0.0
    %170 = vmatpush.msra.mxu0 0.0
    %171 = vmatpush.msra.mxu0 0.0
    %172 = vmatpush.msra.mxu0 %v146
    %173 = vmatmul.f32.gmra.mxu0 %v121
    %v174 = vpop.f32.mrf.mxu0
    %v175 = vadd.f32 %v111, %v174
    %176 = vmatmul.f32.gmra.mxu0 %v124
    %v177 = vpop.f32.mrf.mxu0
    %v178 = vadd.f32 %v111, %v177
    %179 = vmatmul.f32.gmra.mxu0 %v127
    %v180 = vpop.f32.mrf.mxu0
    %v181 = vadd.f32 %v111, %v180
    %182 = vmatmul.f32.gmra.mxu0 %v130
    %v183 = vpop.f32.mrf.mxu0
    %v184 = vadd.f32 %v111, %v183
    %185 = vmatmul.f32.gmra.mxu0 %v133
    %v186 = vpop.f32.mrf.mxu0
    %v187 = vadd.f32 %v111, %v186
    %188 = vmatmul.f32.gmra.mxu0 %v136
    %v189 = vpop.f32.mrf.mxu0
    %v190 = vadd.f32 %v111, %v189
    %191 = vmatmul.f32.gmra.mxu0 %v139
    %v192 = vpop.f32.mrf.mxu0
    %v193 = vadd.f32 %v111, %v192
    %194 = vmatmul.f32.gmra.mxu0 %v142
    %v195 = vpop.f32.mrf.mxu0
    %v196 = vadd.f32 %v111, %v195
    %197 = vdwg.mxu0
    %198 = vmatpush.msra.mxu0 0.0
    %199 = vmatpush.msra.mxu0 0.0
    %200 = vmatpush.msra.mxu0 0.0
    %201 = vmatpush.msra.mxu0 0.0
    %202 = vmatpush.msra.mxu0 0.0
    %203 = vmatpush.msra.mxu0 0.0
    %204 = vmatpush.msra.mxu0 0.0
    %205 = vmatpush.msra.mxu0 0.0
    %206 = vmatpush.msra.mxu0 0.0
    %207 = vmatpush.msra.mxu0 0.0
    %208 = vmatpush.msra.mxu0 0.0
    %209 = vmatpush.msra.mxu0 0.0
    %210 = vmatpush.msra.mxu0 0.0
    %211 = vmatpush.msra.mxu0 0.0
    %212 = vmatpush.msra.mxu0 0.0
    %213 = vmatpush.msra.mxu0 %v149
    %214 = vmatmul.f32.gmra.mxu0 %v121
    %v215 = vpop.f32.mrf.mxu0
    %v216 = vadd.f32 %v112, %v215
    %217 = vmatmul.f32.gmra.mxu0 %v124
    %v218 = vpop.f32.mrf.mxu0
    %v219 = vadd.f32 %v112, %v218
    %220 = vmatmul.f32.gmra.mxu0 %v127
    %v221 = vpop.f32.mrf.mxu0
    %v222 = vadd.f32 %v112, %v221
    %223 = vmatmul.f32.gmra.mxu0 %v130
    %v224 = vpop.f32.mrf.mxu0
    %v225 = vadd.f32 %v112, %v224
    %226 = vmatmul.f32.gmra.mxu0 %v133
    %v227 = vpop.f32.mrf.mxu0
    %v228 = vadd.f32 %v112, %v227
    %229 = vmatmul.f32.gmra.mxu0 %v136
    %v230 = vpop.f32.mrf.mxu0
    %v231 = vadd.f32 %v112, %v230
    %232 = vmatmul.f32.gmra.mxu0 %v139
    %v233 = vpop.f32.mrf.mxu0
    %v234 = vadd.f32 %v112, %v233
    %235 = vmatmul.f32.gmra.mxu0 %v142
    %v236 = vpop.f32.mrf.mxu0
    %v237 = vadd.f32 %v112, %v236
    %238 = vdwg.mxu0
    %239 = vmatpush.msra.mxu0 0.0
    %240 = vmatpush.msra.mxu0 0.0
    %241 = vmatpush.msra.mxu0 0.0
    %242 = vmatpush.msra.mxu0 0.0
    %243 = vmatpush.msra.mxu0 0.0
    %244 = vmatpush.msra.mxu0 0.0
    %245 = vmatpush.msra.mxu0 0.0
    %246 = vmatpush.msra.mxu0 0.0
    %247 = vmatpush.msra.mxu0 0.0
    %248 = vmatpush.msra.mxu0 0.0
    %249 = vmatpush.msra.mxu0 0.0
    %250 = vmatpush.msra.mxu0 0.0
    %251 = vmatpush.msra.mxu0 0.0
    %252 = vmatpush.msra.mxu0 0.0
    %253 = vmatpush.msra.mxu0 0.0
    %254 = vmatpush.msra.mxu0 %v152
    %255 = vmatmul.f32.gmra.mxu0 %v121
    %v256 = vpop.f32.mrf.mxu0
    %v257 = vadd.f32 %v113, %v256
    %258 = vmatmul.f32.gmra.mxu0 %v124
    %v259 = vpop.f32.mrf.mxu0
    %v260 = vadd.f32 %v113, %v259
    %261 = vmatmul.f32.gmra.mxu0 %v127
    %v262 = vpop.f32.mrf.mxu0
    %v263 = vadd.f32 %v113, %v262
    %264 = vmatmul.f32.gmra.mxu0 %v130
    %v265 = vpop.f32.mrf.mxu0
    %v266 = vadd.f32 %v113, %v265
    %267 = vmatmul.f32.gmra.mxu0 %v133
    %v268 = vpop.f32.mrf.mxu0
    %v269 = vadd.f32 %v113, %v268
    %270 = vmatmul.f32.gmra.mxu0 %v136
    %v271 = vpop.f32.mrf.mxu0
    %v272 = vadd.f32 %v113, %v271
    %273 = vmatmul.f32.gmra.mxu0 %v139
    %v274 = vpop.f32.mrf.mxu0
    %v275 = vadd.f32 %v113, %v274
    %276 = vmatmul.f32.gmra.mxu0 %v142
    %v277 = vpop.f32.mrf.mxu0
    %v278 = vadd.f32 %v113, %v277
    %279 = vdwg.mxu0
    %280 = vmatpush.msra.mxu0 0.0
    %281 = vmatpush.msra.mxu0 0.0
    %282 = vmatpush.msra.mxu0 0.0
    %283 = vmatpush.msra.mxu0 0.0
    %284 = vmatpush.msra.mxu0 0.0
    %285 = vmatpush.msra.mxu0 0.0
    %286 = vmatpush.msra.mxu0 0.0
    %287 = vmatpush.msra.mxu0 0.0
    %288 = vmatpush.msra.mxu0 0.0
    %289 = vmatpush.msra.mxu0 0.0
    %290 = vmatpush.msra.mxu0 0.0
    %291 = vmatpush.msra.mxu0 0.0
    %292 = vmatpush.msra.mxu0 0.0
    %293 = vmatpush.msra.mxu0 0.0
    %294 = vmatpush.msra.mxu0 0.0
    %295 = vmatpush.msra.mxu0 %v155
    %296 = vmatmul.f32.gmra.mxu0 %v121
    %v297 = vpop.f32.mrf.mxu0
    %v298 = vadd.f32 %v114, %v297
    %299 = vmatmul.f32.gmra.mxu0 %v124
    %v300 = vpop.f32.mrf.mxu0
    %v301 = vadd.f32 %v114, %v300
    %302 = vmatmul.f32.gmra.mxu0 %v127
    %v303 = vpop.f32.mrf.mxu0
    %v304 = vadd.f32 %v114, %v303
    %305 = vmatmul.f32.gmra.mxu0 %v130
    %v306 = vpop.f32.mrf.mxu0
    %v307 = vadd.f32 %v114, %v306
    %308 = vmatmul.f32.gmra.mxu0 %v133
    %v309 = vpop.f32.mrf.mxu0
    %v310 = vadd.f32 %v114, %v309
    %311 = vmatmul.f32.gmra.mxu0 %v136
    %v312 = vpop.f32.mrf.mxu0
    %v313 = vadd.f32 %v114, %v312
    %314 = vmatmul.f32.gmra.mxu0 %v139
    %v315 = vpop.f32.mrf.mxu0
    %v316 = vadd.f32 %v114, %v315
    %317 = vmatmul.f32.gmra.mxu0 %v142
    %v318 = vpop.f32.mrf.mxu0
    %v319 = vadd.f32 %v114, %v318
    %320 = vdwg.mxu0
    %321 = vst [vmem:[#allocation2] sm:$0xff] %v175
    %322 = vst [vmem:[#allocation2 + $0x8] sm:$0xff] %v216
    %323 = vst [vmem:[#allocation2 + $0x10] sm:$0xff] %v257
    %324 = vst [vmem:[#allocation2 + $0x18] sm:$0xff] %v298
    %325 = vst [vmem:[#allocation2 + $0x20] sm:$0xff] %v178
    %326 = vst [vmem:[#allocation2 + $0x28] sm:$0xff] %v219
    %327 = vst [vmem:[#allocation2 + $0x30] sm:$0xff] %v260
    %328 = vst [vmem:[#allocation2 + $0x38] sm:$0xff] %v301
    %329 = vst [vmem:[#allocation2 + $0x40] sm:$0xff] %v181
    %330 = vst [vmem:[#allocation2 + $0x48] sm:$0xff] %v222
    %331 = vst [vmem:[#allocation2 + $0x50] sm:$0xff] %v263
    %332 = vst [vmem:[#allocation2 + $0x58] sm:$0xff] %v304
    %333 = vst [vmem:[#allocation2 + $0x60] sm:$0xff] %v184
    %334 = vst [vmem:[#allocation2 + $0x68] sm:$0xff] %v225
    %335 = vst [vmem:[#allocation2 + $0x70] sm:$0xff] %v266
    %336 = vst [vmem:[#allocation2 + $0x78] sm:$0xff] %v307
    %337 = vst [vmem:[#allocation2 + $0x80] sm:$0xff] %v187
    %338 = vst [vmem:[#allocation2 + $0x88] sm:$0xff] %v228
    %339 = vst [vmem:[#allocation2 + $0x90] sm:$0xff] %v269
    %340 = vst [vmem:[#allocation2 + $0x98] sm:$0xff] %v310
    %341 = vst [vmem:[#allocation2 + $0xa0] sm:$0xff] %v190
    %342 = vst [vmem:[#allocation2 + $0xa8] sm:$0xff] %v231
    %343 = vst [vmem:[#allocation2 + $0xb0] sm:$0xff] %v272
    %344 = vst [vmem:[#allocation2 + $0xb8] sm:$0xff] %v313
    %345 = vst [vmem:[#allocation2 + $0xc0] sm:$0xff] %v193
    %346 = vst [vmem:[#allocation2 + $0xc8] sm:$0xff] %v234
    %347 = vst [vmem:[#allocation2 + $0xd0] sm:$0xff] %v275
    %348 = vst [vmem:[#allocation2 + $0xd8] sm:$0xff] %v316
    %349 = vst [vmem:[#allocation2 + $0xe0] sm:$0xff] %v196
    %350 = vst [vmem:[#allocation2 + $0xe8] sm:$0xff] %v237
    %351 = vst [vmem:[#allocation2 + $0xf0] sm:$0xff] %v278
    %352 = vst [vmem:[#allocation2 + $0xf8] sm:$0xff] %v319
    %v353 = vld [vmem:[%s1] sm:$0xff]
    %v354 = vld [vmem:[%s1 + $0x8] sm:$0xff]
    %v355 = vld [vmem:[%s1 + $0x10] sm:$0xff]
    %v356 = vld [vmem:[%s1 + $0x18] sm:$0xff]
    %v357 = vld [vmem:[%s1 + $0x20] sm:$0xff]
    %v358 = vld [vmem:[%s1 + $0x28] sm:$0xff]
    %v359 = vld [vmem:[%s1 + $0x30] sm:$0xff]
    %v360 = vld [vmem:[%s1 + $0x38] sm:$0xff]
    %v361 = vld [vmem:[%s6] sm:$0x1f]
    %v362 = vld [vmem:[%s9] sm:$0x1]
    %v364 = vperm.slane %v362, 0
    %vm366 = vcmask 39936
    %v368 = vsel %vm366, %v353, 0
    %v371 = vsel %vm366, %v354, 0
    %v374 = vsel %vm366, %v355, 0
    %v377 = vsel %vm366, %v356, 0
    %v380 = vsel %vm366, %v357, 0
    %v383 = vsel %vm366, %v358, 0
    %v386 = vsel %vm366, %v359, 0
    %v389 = vsel %vm366, %v360, 0
    %vm391 = vcmask 1044480
    %v393 = vsel %vm391, %v361, 0
    %395 = vmatpush.msra.mxu0 0.0
    %396 = vmatpush.msra.mxu0 0.0
    %397 = vmatpush.msra.mxu0 0.0
    %398 = vmatpush.msra.mxu0 0.0
    %399 = vmatpush.msra.mxu0 0.0
    %400 = vmatpush.msra.mxu0 0.0
    %401 = vmatpush.msra.mxu0 0.0
    %402 = vmatpush.msra.mxu0 0.0
    %403 = vmatpush.msra.mxu0 0.0
    %404 = vmatpush.msra.mxu0 0.0
    %405 = vmatpush.msra.mxu0 0.0
    %406 = vmatpush.msra.mxu0 0.0
    %407 = vmatpush.msra.mxu0 0.0
    %408 = vmatpush.msra.mxu0 0.0
    %409 = vmatpush.msra.mxu0 0.0
    %410 = vmatpush.msra.mxu0 %v393
    %411 = vmatmul.f32.gmra.mxu0 %v368
    %v412 = vpop.f32.mrf.mxu0
    %v413 = vadd.f32 %v364, %v412
    %414 = vmatmul.f32.gmra.mxu0 %v371
    %v415 = vpop.f32.mrf.mxu0
    %v416 = vadd.f32 %v364, %v415
    %417 = vmatmul.f32.gmra.mxu0 %v374
    %v418 = vpop.f32.mrf.mxu0
    %v419 = vadd.f32 %v364, %v418
    %420 = vmatmul.f32.gmra.mxu0 %v377
    %v421 = vpop.f32.mrf.mxu0
    %v422 = vadd.f32 %v364, %v421
    %423 = vmatmul.f32.gmra.mxu0 %v380
    %v424 = vpop.f32.mrf.mxu0
    %v425 = vadd.f32 %v364, %v424
    %426 = vmatmul.f32.gmra.mxu0 %v383
    %v427 = vpop.f32.mrf.mxu0
    %v428 = vadd.f32 %v364, %v427
    %429 = vmatmul.f32.gmra.mxu0 %v386
    %v430 = vpop.f32.mrf.mxu0
    %v431 = vadd.f32 %v364, %v430
    %432 = vmatmul.f32.gmra.mxu0 %v389
    %v433 = vpop.f32.mrf.mxu0
    %v434 = vadd.f32 %v364, %v433
    %435 = vdwg.mxu0
    %436 = vst [vmem:[#allocation3] sm:$0xff] %v413
    %437 = vst [vmem:[#allocation3 + $0x8] sm:$0xff] %v416
    %438 = vst [vmem:[#allocation3 + $0x10] sm:$0xff] %v419
    %439 = vst [vmem:[#allocation3 + $0x18] sm:$0xff] %v422
    %440 = vst [vmem:[#allocation3 + $0x20] sm:$0xff] %v425
    %441 = vst [vmem:[#allocation3 + $0x28] sm:$0xff] %v428
    %442 = vst [vmem:[#allocation3 + $0x30] sm:$0xff] %v431
    %443 = vst [vmem:[#allocation3 + $0x38] sm:$0xff] %v434
    %v444 = vld [vmem:[#allocation2] sm:$0xff]
    %v445 = vld [vmem:[#allocation2 + $0x8] sm:$0xff]
    %v446 = vld [vmem:[#allocation2 + $0x10] sm:$0xff]
    %v447 = vld [vmem:[#allocation2 + $0x18] sm:$0xff]
    %v448 = vld [vmem:[#allocation5] sm:$0xff]
    %v449 = vld [vmem:[#allocation5 + $0x8] sm:$0xff]
    %v450 = vld [vmem:[#allocation5 + $0x10] sm:$0xff]
    %v451 = vld [vmem:[#allocation5 + $0x18] sm:$0xff]
    %v452 = vld [vmem:[#allocation5 + $0x20] sm:$0xff]
    %v453 = vld [vmem:[#allocation5 + $0x28] sm:$0xff]
    %v454 = vld [vmem:[#allocation5 + $0x30] sm:$0xff]
    %v455 = vld [vmem:[#allocation5 + $0x38] sm:$0xff]
    %v456 = vld [vmem:[#allocation5 + $0x40] sm:$0xff]
    %v457 = vld [vmem:[#allocation5 + $0x48] sm:$0xff]
    %v458 = vld [vmem:[#allocation5 + $0x50] sm:$0xff]
    %v459 = vld [vmem:[#allocation5 + $0x58] sm:$0xff]
    %v460 = vld [vmem:[#allocation5 + $0x60] sm:$0xff]
    %v461 = vld [vmem:[#allocation5 + $0x68] sm:$0xff]
    %v462 = vld [vmem:[#allocation5 + $0x70] sm:$0xff]
    %v463 = vld [vmem:[#allocation5 + $0x78] sm:$0xff]
    %v464 = vld [vmem:[#allocation5 + $0x80] sm:$0xff]
    %v465 = vld [vmem:[#allocation5 + $0x88] sm:$0xff]
    %v466 = vld [vmem:[#allocation5 + $0x90] sm:$0xff]
    %v467 = vld [vmem:[#allocation5 + $0x98] sm:$0xff]
    %v468 = vld [vmem:[#allocation5 + $0xa0] sm:$0xff]
    %v469 = vld [vmem:[#allocation5 + $0xa8] sm:$0xff]
    %v470 = vld [vmem:[#allocation5 + $0xb0] sm:$0xff]
    %v471 = vld [vmem:[#allocation5 + $0xb8] sm:$0xff]
    %v472 = vld [vmem:[#allocation5 + $0xc0] sm:$0xff]
    %v473 = vld [vmem:[#allocation5 + $0xc8] sm:$0xff]
    %v474 = vld [vmem:[#allocation5 + $0xd0] sm:$0xff]
    %v475 = vld [vmem:[#allocation5 + $0xd8] sm:$0xff]
    %v476 = vld [vmem:[#allocation5 + $0xe0] sm:$0xff]
    %v477 = vld [vmem:[#allocation5 + $0xe8] sm:$0xff]
    %v478 = vld [vmem:[#allocation5 + $0xf0] sm:$0xff]
    %v479 = vld [vmem:[#allocation5 + $0xf8] sm:$0xff]
    %v512 = vunpack.c.l.b16 %v448
    %v513 = vunpack.c.h.b16 %v448
    %v514 = vunpack.c.l.b16 %v449
    %v515 = vunpack.c.h.b16 %v449
    %v516 = vunpack.c.l.b16 %v450
    %v517 = vunpack.c.h.b16 %v450
    %v518 = vunpack.c.l.b16 %v451
    %v519 = vunpack.c.h.b16 %v451
    %v520 = vunpack.c.l.b16 %v452
    %v521 = vunpack.c.h.b16 %v452
    %v522 = vunpack.c.l.b16 %v453
    %v523 = vunpack.c.h.b16 %v453
    %v524 = vunpack.c.l.b16 %v454
    %v525 = vunpack.c.h.b16 %v454
    %v526 = vunpack.c.l.b16 %v455
    %v527 = vunpack.c.h.b16 %v455
    %v528 = vunpack.c.l.b16 %v456
    %v529 = vunpack.c.h.b16 %v456
    %v530 = vunpack.c.l.b16 %v457
    %v531 = vunpack.c.h.b16 %v457
    %v532 = vunpack.c.l.b16 %v458
    %v533 = vunpack.c.h.b16 %v458
    %v534 = vunpack.c.l.b16 %v459
    %v535 = vunpack.c.h.b16 %v459
    %v536 = vunpack.c.l.b16 %v460
    %v537 = vunpack.c.h.b16 %v460
    %v538 = vunpack.c.l.b16 %v461
    %v539 = vunpack.c.h.b16 %v461
    %v540 = vunpack.c.l.b16 %v462
    %v541 = vunpack.c.h.b16 %v462
    %v542 = vunpack.c.l.b16 %v463
    %v543 = vunpack.c.h.b16 %v463
    %v544 = vunpack.c.l.b16 %v464
    %v545 = vunpack.c.h.b16 %v464
    %v546 = vunpack.c.l.b16 %v465
    %v547 = vunpack.c.h.b16 %v465
    %v548 = vunpack.c.l.b16 %v466
    %v549 = vunpack.c.h.b16 %v466
    %v550 = vunpack.c.l.b16 %v467
    %v551 = vunpack.c.h.b16 %v467
    %v552 = vunpack.c.l.b16 %v468
    %v553 = vunpack.c.h.b16 %v468
    %v554 = vunpack.c.l.b16 %v469
    %v555 = vunpack.c.h.b16 %v469
    %v556 = vunpack.c.l.b16 %v470
    %v557 = vunpack.c.h.b16 %v470
    %v558 = vunpack.c.l.b16 %v471
    %v559 = vunpack.c.h.b16 %v471
    %v560 = vunpack.c.l.b16 %v472
    %v561 = vunpack.c.h.b16 %v472
    %v562 = vunpack.c.l.b16 %v473
    %v563 = vunpack.c.h.b16 %v473
    %v564 = vunpack.c.l.b16 %v474
    %v565 = vunpack.c.h.b16 %v474
    %v566 = vunpack.c.l.b16 %v475
    %v567 = vunpack.c.h.b16 %v475
    %v568 = vunpack.c.l.b16 %v476
    %v569 = vunpack.c.h.b16 %v476
    %v570 = vunpack.c.l.b16 %v477
    %v571 = vunpack.c.h.b16 %v477
    %v572 = vunpack.c.l.b16 %v478
    %v573 = vunpack.c.h.b16 %v478
    %v574 = vunpack.c.l.b16 %v479
    %v575 = vunpack.c.h.b16 %v479
    %v576 = vpack.c.b16 %v516, %v512
    %v577 = vpack.c.b16 %v517, %v513
    %v578 = vpack.c.b16 %v518, %v514
    %v579 = vpack.c.b16 %v519, %v515
    %v580 = vpack.c.b16 %v524, %v520
    %v581 = vpack.c.b16 %v525, %v521
    %v582 = vpack.c.b16 %v526, %v522
    %v583 = vpack.c.b16 %v527, %v523
    %v584 = vpack.c.b16 %v532, %v528
    %v585 = vpack.c.b16 %v533, %v529
    %v586 = vpack.c.b16 %v534, %v530
    %v587 = vpack.c.b16 %v535, %v531
    %v588 = vpack.c.b16 %v540, %v536
    %v589 = vpack.c.b16 %v541, %v537
    %v590 = vpack.c.b16 %v542, %v538
    %v591 = vpack.c.b16 %v543, %v539
    %v592 = vpack.c.b16 %v548, %v544
    %v593 = vpack.c.b16 %v549, %v545
    %v594 = vpack.c.b16 %v550, %v546
    %v595 = vpack.c.b16 %v551, %v547
    %v596 = vpack.c.b16 %v556, %v552
    %v597 = vpack.c.b16 %v557, %v553
    %v598 = vpack.c.b16 %v558, %v554
    %v599 = vpack.c.b16 %v559, %v555
    %v600 = vpack.c.b16 %v564, %v560
    %v601 = vpack.c.b16 %v565, %v561
    %v602 = vpack.c.b16 %v566, %v562
    %v603 = vpack.c.b16 %v567, %v563
    %v604 = vpack.c.b16 %v572, %v568
    %v605 = vpack.c.b16 %v573, %v569
    %v606 = vpack.c.b16 %v574, %v570
    %v607 = vpack.c.b16 %v575, %v571
    %640 = vmatpush.bf16.msra.mxu0 %v604
    %641 = vmatpush.bf16.msra.mxu0 %v600
    %642 = vmatpush.bf16.msra.mxu0 %v596
    %643 = vmatpush.bf16.msra.mxu0 %v592
    %644 = vmatpush.bf16.msra.mxu0 %v588
    %645 = vmatpush.bf16.msra.mxu0 %v584
    %646 = vmatpush.bf16.msra.mxu0 %v580
    %647 = vmatpush.bf16.msra.mxu0 %v576
    %648 = vmatmul.bf16.gmra.mxu0 0
    %v649 = vpop.f32.mrf.mxu0
    %v650 = vadd.f32 0.0, %v649
    %v651 = vpop.f32.mrf.mxu0
    %652 = vdwg.mxu0
    %653 = vmatpush.bf16.msra.mxu0 %v605
    %654 = vmatpush.bf16.msra.mxu0 %v601
    %655 = vmatpush.bf16.msra.mxu0 %v597
    %656 = vmatpush.bf16.msra.mxu0 %v593
    %657 = vmatpush.bf16.msra.mxu0 %v589
    %658 = vmatpush.bf16.msra.mxu0 %v585
    %659 = vmatpush.bf16.msra.mxu0 %v581
    %660 = vmatpush.bf16.msra.mxu0 %v577
    %661 = vmatmul.bf16.gmra.mxu0 0
    %v662 = vpop.f32.mrf.mxu0
    %v663 = vadd.f32 0.0, %v662
    %v664 = vpop.f32.mrf.mxu0
    %665 = vdwg.mxu0
    %666 = vmatpush.bf16.msra.mxu0 %v606
    %667 = vmatpush.bf16.msra.mxu0 %v602
    %668 = vmatpush.bf16.msra.mxu0 %v598
    %669 = vmatpush.bf16.msra.mxu0 %v594
    %670 = vmatpush.bf16.msra.mxu0 %v590
    %671 = vmatpush.bf16.msra.mxu0 %v586
    %672 = vmatpush.bf16.msra.mxu0 %v582
    %673 = vmatpush.bf16.msra.mxu0 %v578
    %674 = vmatmul.bf16.gmra.mxu0 0
    %v675 = vpop.f32.mrf.mxu0
    %v676 = vadd.f32 0.0, %v675
    %v677 = vpop.f32.mrf.mxu0
    %678 = vdwg.mxu0
    %679 = vmatpush.bf16.msra.mxu0 %v607
    %680 = vmatpush.bf16.msra.mxu0 %v603
    %681 = vmatpush.bf16.msra.mxu0 %v599
    %682 = vmatpush.bf16.msra.mxu0 %v595
    %683 = vmatpush.bf16.msra.mxu0 %v591
    %684 = vmatpush.bf16.msra.mxu0 %v587
    %685 = vmatpush.bf16.msra.mxu0 %v583
    %686 = vmatpush.bf16.msra.mxu0 %v579
    %687 = vmatmul.bf16.gmra.mxu0 0
    %v688 = vpop.f32.mrf.mxu0
    %v689 = vadd.f32 0.0, %v688
    %v690 = vpop.f32.mrf.mxu0
    %691 = vdwg.mxu0
    %v692 = vadd.f32 %v444, %v650
    %v693 = vadd.f32 %v445, %v663
    %v694 = vadd.f32 %v446, %v676
    %v695 = vadd.f32 %v447, %v689
    %v696 = vxor.u32 %v692, 2147483648
    %v697 = vmul.f32 %v696, 1.442695
    %v698 = vpow.pop %v697
    %v699 = vadd.f32 %v698, 1.0
    %v700 = vrcp.pop %v699
    %v701 = vmul.f32 %v699, %v700
    %v702 = vsub.f32 1.0, %v701
    %v703 = vmul.f32 %v700, %v702
    %v704 = vadd.f32 %v700, %v703
    %vm705 = vweird.f32 %v699
    %vm706 = vweird.f32 %v700
    %vm707 = vmor %vm705, %vm706
    %v708 = vsel %vm707, %v700, %v704
    %v709 = vand.u32 2147483647, %v699
    %vm710 = vcmp.eq.f32.partialorder %v709, 8.507059e+37
    %v711 = vand.u32 %v699, 2147483648
    %v712 = vor.u32 1.1754944e-38, %v711
    %v713 = vsel %vm710, %v712, %v708
    %v714 = vmul.f32 1.0, %v713
    %v715 = vxor.u32 %v693, 2147483648
    %v716 = vmul.f32 %v715, 1.442695
    %v717 = vpow.pop %v716
    %v718 = vadd.f32 %v717, 1.0
    %v719 = vrcp.pop %v718
    %v720 = vmul.f32 %v718, %v719
    %v721 = vsub.f32 1.0, %v720
    %v722 = vmul.f32 %v719, %v721
    %v723 = vadd.f32 %v719, %v722
    %vm724 = vweird.f32 %v718
    %vm725 = vweird.f32 %v719
    %vm726 = vmor %vm724, %vm725
    %v727 = vsel %vm726, %v719, %v723
    %v728 = vand.u32 2147483647, %v718
    %vm729 = vcmp.eq.f32.partialorder %v728, 8.507059e+37
    %v730 = vand.u32 %v718, 2147483648
    %v731 = vor.u32 1.1754944e-38, %v730
    %v732 = vsel %vm729, %v731, %v727
    %v733 = vmul.f32 1.0, %v732
    %v734 = vtanh.pop %v694
    %v735 = vxor.u32 %v695, 2147483648
    %v736 = vmul.f32 %v735, 1.442695
    %v737 = vpow.pop %v736
    %v738 = vadd.f32 %v737, 1.0
    %v739 = vrcp.pop %v738
    %v740 = vmul.f32 %v738, %v739
    %v741 = vsub.f32 1.0, %v740
    %v742 = vmul.f32 %v739, %v741
    %v743 = vadd.f32 %v739, %v742
    %vm744 = vweird.f32 %v738
    %vm745 = vweird.f32 %v739
    %vm746 = vmor %vm744, %vm745
    %v747 = vsel %vm746, %v739, %v743
    %v748 = vand.u32 2147483647, %v738
    %vm749 = vcmp.eq.f32.partialorder %v748, 8.507059e+37
    %v750 = vand.u32 %v738, 2147483648
    %v751 = vor.u32 1.1754944e-38, %v750
    %v752 = vsel %vm749, %v751, %v747
    %v753 = vmul.f32 1.0, %v752
    %v754 = vmul.f32 %v733, 0.0
    %v755 = vmul.f32 %v714, %v734
    %v756 = vadd.f32 %v754, %v755
    %v757 = vtanh.pop %v756
    %v758 = vmul.f32 %v753, %v757
    %v759 = vld [vmem:[#allocation3] sm:$0xff]
    %v760 = vld [vmem:[%s7] sm:$0xf]
    %v761 = vld [vmem:[%s7 + $0x4] sm:$0xf]
    %v762 = vld [vmem:[%s7 + $0x8] sm:$0xf]
    %v763 = vld [vmem:[%s7 + $0xc] sm:$0xf]
    %v768 = vunpack.c.l.b16 %v760
    %v769 = vunpack.c.l.b16 %v761
    %v770 = vunpack.c.l.b16 %v762
    %v771 = vunpack.c.l.b16 %v763
    %v772 = vpack.c.b16 %v769, %v768
    %v773 = vpack.c.b16 %v771, %v770
    %vm776 = vcmask 261120
    %v778 = vsel %vm776, 0, 0
    %780 = vmatpush.bf16.msra.mxu0 0
    %781 = vmatpush.bf16.msra.mxu0 0
    %782 = vmatpush.bf16.msra.mxu0 0
    %783 = vmatpush.bf16.msra.mxu0 0
    %784 = vmatpush.bf16.msra.mxu0 0
    %785 = vmatpush.bf16.msra.mxu0 0
    %786 = vmatpush.bf16.msra.mxu0 %v773
    %787 = vmatpush.bf16.msra.mxu0 %v772
    %788 = vmatmul.bf16.gmra.mxu0 %v778
    %v789 = vpop.f32.mrf.mxu0
    %v790 = vadd.f32 0.0, %v789
    %v791 = vpop.f32.mrf.mxu0
    %792 = vdwg.mxu0
    %v793 = vadd.f32 %v759, %v790
    %v794 = vxor.u32 %v793, 2147483648
    %v795 = vmul.f32 %v794, 1.442695
    %v796 = vpow.pop %v795
    %v797 = vadd.f32 %v796, 1.0
    %v798 = vrcp.pop %v797
    %v799 = vmul.f32 %v797, %v798
    %v800 = vsub.f32 1.0, %v799
    %v801 = vmul.f32 %v798, %v800
    %v802 = vadd.f32 %v798, %v801
    %vm803 = vweird.f32 %v797
    %vm804 = vweird.f32 %v798
    %vm805 = vmor %vm803, %vm804
    %v806 = vsel %vm805, %v798, %v802
    %v807 = vand.u32 2147483647, %v797
    %vm808 = vcmp.eq.f32.partialorder %v807, 8.507059e+37
    %v809 = vand.u32 %v797, 2147483648
    %v810 = vor.u32 1.1754944e-38, %v809
    %v811 = vsel %vm808, %v810, %v806
    %v812 = vmul.f32 1.0, %v811
    %v813 = vtanh.pop %v793
    %v814 = vmul.f32 %v812, 0.0
    %816 = vrot.lane.b32.xlu0 %v813, 64
    %v817 = vpop.permute.xlu0 %816
    %v819 = vmul.f32 %v812, %v817
    %821 = vrot.lane.b32.xlu0 %v819, 32
    %v822 = vpop.permute.xlu0 %821
    %v824 = vadd.f32 %v814, %v822
    %v825 = vtanh.pop %v824
    %827 = vrot.lane.b32.xlu0 %v825, 64
    %v828 = vpop.permute.xlu0 %827
    %v830 = vmul.f32 %v812, %v828
    %v831 = vpack.c.bf16 %v758, %v758
    %v832 = vpack.c.bf16 0.0, 0.0
    %v833 = vld [vmem:[#allocation7] sm:$0xff]
    %v834 = vld [vmem:[#allocation7 + $0x8] sm:$0xff]
    %v835 = vld [vmem:[#allocation7 + $0x10] sm:$0xff]
    %v836 = vld [vmem:[#allocation7 + $0x18] sm:$0xff]
    %v837 = vld [vmem:[#allocation7 + $0x20] sm:$0xff]
    %v838 = vld [vmem:[#allocation7 + $0x28] sm:$0xff]
    %v839 = vld [vmem:[#allocation7 + $0x30] sm:$0xff]
    %v840 = vld [vmem:[#allocation7 + $0x38] sm:$0xff]
    %v841 = vld [vmem:[#allocation7 + $0x40] sm:$0xff]
    %v842 = vld [vmem:[#allocation7 + $0x48] sm:$0xff]
    %v843 = vld [vmem:[#allocation7 + $0x50] sm:$0xff]
    %v844 = vld [vmem:[#allocation7 + $0x58] sm:$0xff]
    %v845 = vld [vmem:[#allocation7 + $0x60] sm:$0xff]
    %v846 = vld [vmem:[#allocation7 + $0x68] sm:$0xff]
    %v847 = vld [vmem:[#allocation7 + $0x70] sm:$0xff]
    %v848 = vld [vmem:[#allocation7 + $0x78] sm:$0xff]
    %v849 = vld [vmem:[#allocation7 + $0x80] sm:$0xff]
    %v850 = vld [vmem:[#allocation7 + $0x88] sm:$0xff]
    %v851 = vld [vmem:[#allocation7 + $0x90] sm:$0xff]
    %v852 = vld [vmem:[#allocation7 + $0x98] sm:$0xff]
    %v853 = vld [vmem:[#allocation7 + $0xa0] sm:$0xff]
    %v854 = vld [vmem:[#allocation7 + $0xa8] sm:$0xff]
    %v855 = vld [vmem:[#allocation7 + $0xb0] sm:$0xff]
    %v856 = vld [vmem:[#allocation7 + $0xb8] sm:$0xff]
    %v857 = vld [vmem:[#allocation7 + $0xc0] sm:$0xff]
    %v858 = vld [vmem:[#allocation7 + $0xc8] sm:$0xff]
    %v859 = vld [vmem:[#allocation7 + $0xd0] sm:$0xff]
    %v860 = vld [vmem:[#allocation7 + $0xd8] sm:$0xff]
    %v861 = vld [vmem:[#allocation7 + $0xe0] sm:$0xff]
    %v862 = vld [vmem:[#allocation7 + $0xe8] sm:$0xff]
    %v863 = vld [vmem:[#allocation7 + $0xf0] sm:$0xff]
    %v864 = vld [vmem:[#allocation7 + $0xf8] sm:$0xff]
    %v865 = vld [vmem:[#allocation7 + $0x100] sm:$0xff]
    %v866 = vld [vmem:[#allocation7 + $0x108] sm:$0xff]
    %v867 = vld [vmem:[#allocation7 + $0x110] sm:$0xff]
    %v868 = vld [vmem:[#allocation7 + $0x118] sm:$0xff]
    %v869 = vld [vmem:[#allocation7 + $0x120] sm:$0xff]
    %v870 = vld [vmem:[#allocation7 + $0x128] sm:$0xff]
    %v871 = vld [vmem:[#allocation7 + $0x130] sm:$0xff]
    %v872 = vld [vmem:[#allocation7 + $0x138] sm:$0xff]
    %v873 = vld [vmem:[#allocation7 + $0x140] sm:$0xff]
    %v874 = vld [vmem:[#allocation7 + $0x148] sm:$0xff]
    %v875 = vld [vmem:[#allocation7 + $0x150] sm:$0xff]
    %v876 = vld [vmem:[#allocation7 + $0x158] sm:$0xff]
    %v877 = vld [vmem:[#allocation7 + $0x160] sm:$0xff]
    %v878 = vld [vmem:[#allocation7 + $0x168] sm:$0xff]
    %v879 = vld [vmem:[#allocation7 + $0x170] sm:$0xff]
    %v880 = vld [vmem:[#allocation7 + $0x178] sm:$0xff]
    %v881 = vld [vmem:[#allocation7 + $0x180] sm:$0xff]
    %v882 = vld [vmem:[#allocation7 + $0x188] sm:$0xff]
    %v883 = vld [vmem:[#allocation7 + $0x190] sm:$0xff]
    %v884 = vld [vmem:[#allocation7 + $0x198] sm:$0xff]
    %v885 = vld [vmem:[#allocation7 + $0x1a0] sm:$0xff]
    %v886 = vld [vmem:[#allocation7 + $0x1a8] sm:$0xff]
    %v887 = vld [vmem:[#allocation7 + $0x1b0] sm:$0xff]
    %v888 = vld [vmem:[#allocation7 + $0x1b8] sm:$0xff]
    %v889 = vld [vmem:[#allocation7 + $0x1c0] sm:$0xff]
    %v890 = vld [vmem:[#allocation7 + $0x1c8] sm:$0xff]
    %v891 = vld [vmem:[#allocation7 + $0x1d0] sm:$0xff]
    %v892 = vld [vmem:[#allocation7 + $0x1d8] sm:$0xff]
    %v893 = vld [vmem:[#allocation7 + $0x1e0] sm:$0xff]
    %v894 = vld [vmem:[#allocation7 + $0x1e8] sm:$0xff]
    %v895 = vld [vmem:[#allocation7 + $0x1f0] sm:$0xff]
    %v896 = vld [vmem:[#allocation7 + $0x1f8] sm:$0xff]
    %s897 = scalar_lea.vmem %s5, 4
    %v898 = vld [vmem:[%s897] sm:$0xf]
    %v900 = vperm.slane %v898, 0
    %v901 = vperm.slane %v898, 1
    %v902 = vperm.slane %v898, 2
    %v903 = vperm.slane %v898, 3
    %v972 = vunpack.c.l.b16 %v833
    %v973 = vunpack.c.h.b16 %v833
    %v974 = vunpack.c.l.b16 %v834
    %v975 = vunpack.c.h.b16 %v834
    %v976 = vunpack.c.l.b16 %v835
    %v977 = vunpack.c.h.b16 %v835
    %v978 = vunpack.c.l.b16 %v836
    %v979 = vunpack.c.h.b16 %v836
    %v980 = vunpack.c.l.b16 %v837
    %v981 = vunpack.c.h.b16 %v837
    %v982 = vunpack.c.l.b16 %v838
    %v983 = vunpack.c.h.b16 %v838
    %v984 = vunpack.c.l.b16 %v839
    %v985 = vunpack.c.h.b16 %v839
    %v986 = vunpack.c.l.b16 %v840
    %v987 = vunpack.c.h.b16 %v840
    %v988 = vunpack.c.l.b16 %v841
    %v989 = vunpack.c.h.b16 %v841
    %v990 = vunpack.c.l.b16 %v842
    %v991 = vunpack.c.h.b16 %v842
    %v992 = vunpack.c.l.b16 %v843
    %v993 = vunpack.c.h.b16 %v843
    %v994 = vunpack.c.l.b16 %v844
    %v995 = vunpack.c.h.b16 %v844
    %v996 = vunpack.c.l.b16 %v845
    %v997 = vunpack.c.h.b16 %v845
    %v998 = vunpack.c.l.b16 %v846
    %v999 = vunpack.c.h.b16 %v846
    %v1000 = vunpack.c.l.b16 %v847
    %v1001 = vunpack.c.h.b16 %v847
    %v1002 = vunpack.c.l.b16 %v848
    %v1003 = vunpack.c.h.b16 %v848
    %v1004 = vunpack.c.l.b16 %v849
    %v1005 = vunpack.c.h.b16 %v849
    %v1006 = vunpack.c.l.b16 %v850
    %v1007 = vunpack.c.h.b16 %v850
    %v1008 = vunpack.c.l.b16 %v851
    %v1009 = vunpack.c.h.b16 %v851
    %v1010 = vunpack.c.l.b16 %v852
    %v1011 = vunpack.c.h.b16 %v852
    %v1012 = vunpack.c.l.b16 %v853
    %v1013 = vunpack.c.h.b16 %v853
    %v1014 = vunpack.c.l.b16 %v854
    %v1015 = vunpack.c.h.b16 %v854
    %v1016 = vunpack.c.l.b16 %v855
    %v1017 = vunpack.c.h.b16 %v855
    %v1018 = vunpack.c.l.b16 %v856
    %v1019 = vunpack.c.h.b16 %v856
    %v1020 = vunpack.c.l.b16 %v857
    %v1021 = vunpack.c.h.b16 %v857
    %v1022 = vunpack.c.l.b16 %v858
    %v1023 = vunpack.c.h.b16 %v858
    %v1024 = vunpack.c.l.b16 %v859
    %v1025 = vunpack.c.h.b16 %v859
    %v1026 = vunpack.c.l.b16 %v860
    %v1027 = vunpack.c.h.b16 %v860
    %v1028 = vunpack.c.l.b16 %v861
    %v1029 = vunpack.c.h.b16 %v861
    %v1030 = vunpack.c.l.b16 %v862
    %v1031 = vunpack.c.h.b16 %v862
    %v1032 = vunpack.c.l.b16 %v863
    %v1033 = vunpack.c.h.b16 %v863
    %v1034 = vunpack.c.l.b16 %v864
    %v1035 = vunpack.c.h.b16 %v864
    %v1036 = vunpack.c.l.b16 %v865
    %v1037 = vunpack.c.h.b16 %v865
    %v1038 = vunpack.c.l.b16 %v866
    %v1039 = vunpack.c.h.b16 %v866
    %v1040 = vunpack.c.l.b16 %v867
    %v1041 = vunpack.c.h.b16 %v867
    %v1042 = vunpack.c.l.b16 %v868
    %v1043 = vunpack.c.h.b16 %v868
    %v1044 = vunpack.c.l.b16 %v869
    %v1045 = vunpack.c.h.b16 %v869
    %v1046 = vunpack.c.l.b16 %v870
    %v1047 = vunpack.c.h.b16 %v870
    %v1048 = vunpack.c.l.b16 %v871
    %v1049 = vunpack.c.h.b16 %v871
    %v1050 = vunpack.c.l.b16 %v872
    %v1051 = vunpack.c.h.b16 %v872
    %v1052 = vunpack.c.l.b16 %v873
    %v1053 = vunpack.c.h.b16 %v873
    %v1054 = vunpack.c.l.b16 %v874
    %v1055 = vunpack.c.h.b16 %v874
    %v1056 = vunpack.c.l.b16 %v875
    %v1057 = vunpack.c.h.b16 %v875
    %v1058 = vunpack.c.l.b16 %v876
    %v1059 = vunpack.c.h.b16 %v876
    %v1060 = vunpack.c.l.b16 %v877
    %v1061 = vunpack.c.h.b16 %v877
    %v1062 = vunpack.c.l.b16 %v878
    %v1063 = vunpack.c.h.b16 %v878
    %v1064 = vunpack.c.l.b16 %v879
    %v1065 = vunpack.c.h.b16 %v879
    %v1066 = vunpack.c.l.b16 %v880
    %v1067 = vunpack.c.h.b16 %v880
    %v1068 = vunpack.c.l.b16 %v881
    %v1069 = vunpack.c.h.b16 %v881
    %v1070 = vunpack.c.l.b16 %v882
    %v1071 = vunpack.c.h.b16 %v882
    %v1072 = vunpack.c.l.b16 %v883
    %v1073 = vunpack.c.h.b16 %v883
    %v1074 = vunpack.c.l.b16 %v884
    %v1075 = vunpack.c.h.b16 %v884
    %v1076 = vunpack.c.l.b16 %v885
    %v1077 = vunpack.c.h.b16 %v885
    %v1078 = vunpack.c.l.b16 %v886
    %v1079 = vunpack.c.h.b16 %v886
    %v1080 = vunpack.c.l.b16 %v887
    %v1081 = vunpack.c.h.b16 %v887
    %v1082 = vunpack.c.l.b16 %v888
    %v1083 = vunpack.c.h.b16 %v888
    %v1084 = vunpack.c.l.b16 %v889
    %v1085 = vunpack.c.h.b16 %v889
    %v1086 = vunpack.c.l.b16 %v890
    %v1087 = vunpack.c.h.b16 %v890
    %v1088 = vunpack.c.l.b16 %v891
    %v1089 = vunpack.c.h.b16 %v891
    %v1090 = vunpack.c.l.b16 %v892
    %v1091 = vunpack.c.h.b16 %v892
    %v1092 = vunpack.c.l.b16 %v893
    %v1093 = vunpack.c.h.b16 %v893
    %v1094 = vunpack.c.l.b16 %v894
    %v1095 = vunpack.c.h.b16 %v894
    %v1096 = vunpack.c.l.b16 %v895
    %v1097 = vunpack.c.h.b16 %v895
    %v1098 = vunpack.c.l.b16 %v896
    %v1099 = vunpack.c.h.b16 %v896
    %v1100 = vpack.c.b16 %v976, %v972
    %v1101 = vpack.c.b16 %v977, %v973
    %v1102 = vpack.c.b16 %v978, %v974
    %v1103 = vpack.c.b16 %v979, %v975
    %v1104 = vpack.c.b16 %v984, %v980
    %v1105 = vpack.c.b16 %v985, %v981
    %v1106 = vpack.c.b16 %v986, %v982
    %v1107 = vpack.c.b16 %v987, %v983
    %v1108 = vpack.c.b16 %v992, %v988
    %v1109 = vpack.c.b16 %v993, %v989
    %v1110 = vpack.c.b16 %v994, %v990
    %v1111 = vpack.c.b16 %v995, %v991
    %v1112 = vpack.c.b16 %v1000, %v996
    %v1113 = vpack.c.b16 %v1001, %v997
    %v1114 = vpack.c.b16 %v1002, %v998
    %v1115 = vpack.c.b16 %v1003, %v999
    %v1116 = vpack.c.b16 %v1008, %v1004
    %v1117 = vpack.c.b16 %v1009, %v1005
    %v1118 = vpack.c.b16 %v1010, %v1006
    %v1119 = vpack.c.b16 %v1011, %v1007
    %v1120 = vpack.c.b16 %v1016, %v1012
    %v1121 = vpack.c.b16 %v1017, %v1013
    %v1122 = vpack.c.b16 %v1018, %v1014
    %v1123 = vpack.c.b16 %v1019, %v1015
    %v1124 = vpack.c.b16 %v1024, %v1020
    %v1125 = vpack.c.b16 %v1025, %v1021
    %v1126 = vpack.c.b16 %v1026, %v1022
    %v1127 = vpack.c.b16 %v1027, %v1023
    %v1128 = vpack.c.b16 %v1032, %v1028
    %v1129 = vpack.c.b16 %v1033, %v1029
    %v1130 = vpack.c.b16 %v1034, %v1030
    %v1131 = vpack.c.b16 %v1035, %v1031
    %v1132 = vpack.c.b16 %v1040, %v1036
    %v1133 = vpack.c.b16 %v1041, %v1037
    %v1134 = vpack.c.b16 %v1042, %v1038
    %v1135 = vpack.c.b16 %v1043, %v1039
    %v1136 = vpack.c.b16 %v1048, %v1044
    %v1137 = vpack.c.b16 %v1049, %v1045
    %v1138 = vpack.c.b16 %v1050, %v1046
    %v1139 = vpack.c.b16 %v1051, %v1047
    %v1140 = vpack.c.b16 %v1056, %v1052
    %v1141 = vpack.c.b16 %v1057, %v1053
    %v1142 = vpack.c.b16 %v1058, %v1054
    %v1143 = vpack.c.b16 %v1059, %v1055
    %v1144 = vpack.c.b16 %v1064, %v1060
    %v1145 = vpack.c.b16 %v1065, %v1061
    %v1146 = vpack.c.b16 %v1066, %v1062
    %v1147 = vpack.c.b16 %v1067, %v1063
    %v1148 = vpack.c.b16 %v1072, %v1068
    %v1149 = vpack.c.b16 %v1073, %v1069
    %v1150 = vpack.c.b16 %v1074, %v1070
    %v1151 = vpack.c.b16 %v1075, %v1071
    %v1152 = vpack.c.b16 %v1080, %v1076
    %v1153 = vpack.c.b16 %v1081, %v1077
    %v1154 = vpack.c.b16 %v1082, %v1078
    %v1155 = vpack.c.b16 %v1083, %v1079
    %v1156 = vpack.c.b16 %v1088, %v1084
    %v1157 = vpack.c.b16 %v1089, %v1085
    %v1158 = vpack.c.b16 %v1090, %v1086
    %v1159 = vpack.c.b16 %v1091, %v1087
    %v1160 = vpack.c.b16 %v1096, %v1092
    %v1161 = vpack.c.b16 %v1097, %v1093
    %v1162 = vpack.c.b16 %v1098, %v1094
    %v1163 = vpack.c.b16 %v1099, %v1095
    %1228 = vmatpush.bf16.msra.mxu0 %v1128
    %1229 = vmatpush.bf16.msra.mxu0 %v1124
    %1230 = vmatpush.bf16.msra.mxu0 %v1120
    %1231 = vmatpush.bf16.msra.mxu0 %v1116
    %1232 = vmatpush.bf16.msra.mxu0 %v1112
    %1233 = vmatpush.bf16.msra.mxu0 %v1108
    %1234 = vmatpush.bf16.msra.mxu0 %v1104
    %1235 = vmatpush.bf16.msra.mxu0 %v1100
    %1236 = vmatmul.bf16.gmra.mxu0 %v831
    %v1237 = vpop.f32.mrf.mxu0
    %v1238 = vadd.f32 %v900, %v1237
    %v1239 = vpop.f32.mrf.mxu0
    %1240 = vdwg.mxu0
    %1241 = vmatpush.bf16.msra.mxu0 %v1160
    %1242 = vmatpush.bf16.msra.mxu0 %v1156
    %1243 = vmatpush.bf16.msra.mxu0 %v1152
    %1244 = vmatpush.bf16.msra.mxu0 %v1148
    %1245 = vmatpush.bf16.msra.mxu0 %v1144
    %1246 = vmatpush.bf16.msra.mxu0 %v1140
    %1247 = vmatpush.bf16.msra.mxu0 %v1136
    %1248 = vmatpush.bf16.msra.mxu0 %v1132
    %1249 = vmatmul.bf16.gmra.mxu0 %v832
    %v1250 = vpop.f32.mrf.mxu0
    %v1251 = vadd.f32 %v1238, %v1250
    %v1252 = vpop.f32.mrf.mxu0
    %1253 = vdwg.mxu0
    %1254 = vmatpush.bf16.msra.mxu0 %v1129
    %1255 = vmatpush.bf16.msra.mxu0 %v1125
    %1256 = vmatpush.bf16.msra.mxu0 %v1121
    %1257 = vmatpush.bf16.msra.mxu0 %v1117
    %1258 = vmatpush.bf16.msra.mxu0 %v1113
    %1259 = vmatpush.bf16.msra.mxu0 %v1109
    %1260 = vmatpush.bf16.msra.mxu0 %v1105
    %1261 = vmatpush.bf16.msra.mxu0 %v1101
    %1262 = vmatmul.bf16.gmra.mxu0 %v831
    %v1263 = vpop.f32.mrf.mxu0
    %v1264 = vadd.f32 %v901, %v1263
    %v1265 = vpop.f32.mrf.mxu0
    %1266 = vdwg.mxu0
    %1267 = vmatpush.bf16.msra.mxu0 %v1161
    %1268 = vmatpush.bf16.msra.mxu0 %v1157
    %1269 = vmatpush.bf16.msra.mxu0 %v1153
    %1270 = vmatpush.bf16.msra.mxu0 %v1149
    %1271 = vmatpush.bf16.msra.mxu0 %v1145
    %1272 = vmatpush.bf16.msra.mxu0 %v1141
    %1273 = vmatpush.bf16.msra.mxu0 %v1137
    %1274 = vmatpush.bf16.msra.mxu0 %v1133
    %1275 = vmatmul.bf16.gmra.mxu0 %v832
    %v1276 = vpop.f32.mrf.mxu0
    %v1277 = vadd.f32 %v1264, %v1276
    %v1278 = vpop.f32.mrf.mxu0
    %1279 = vdwg.mxu0
    %1280 = vmatpush.bf16.msra.mxu0 %v1130
    %1281 = vmatpush.bf16.msra.mxu0 %v1126
    %1282 = vmatpush.bf16.msra.mxu0 %v1122
    %1283 = vmatpush.bf16.msra.mxu0 %v1118
    %1284 = vmatpush.bf16.msra.mxu0 %v1114
    %1285 = vmatpush.bf16.msra.mxu0 %v1110
    %1286 = vmatpush.bf16.msra.mxu0 %v1106
    %1287 = vmatpush.bf16.msra.mxu0 %v1102
    %1288 = vmatmul.bf16.gmra.mxu0 %v831
    %v1289 = vpop.f32.mrf.mxu0
    %v1290 = vadd.f32 %v902, %v1289
    %v1291 = vpop.f32.mrf.mxu0
    %1292 = vdwg.mxu0
    %1293 = vmatpush.bf16.msra.mxu0 %v1162
    %1294 = vmatpush.bf16.msra.mxu0 %v1158
    %1295 = vmatpush.bf16.msra.mxu0 %v1154
    %1296 = vmatpush.bf16.msra.mxu0 %v1150
    %1297 = vmatpush.bf16.msra.mxu0 %v1146
    %1298 = vmatpush.bf16.msra.mxu0 %v1142
    %1299 = vmatpush.bf16.msra.mxu0 %v1138
    %1300 = vmatpush.bf16.msra.mxu0 %v1134
    %1301 = vmatmul.bf16.gmra.mxu0 %v832
    %v1302 = vpop.f32.mrf.mxu0
    %v1303 = vadd.f32 %v1290, %v1302
    %v1304 = vpop.f32.mrf.mxu0
    %1305 = vdwg.mxu0
    %1306 = vmatpush.bf16.msra.mxu0 %v1131
    %1307 = vmatpush.bf16.msra.mxu0 %v1127
    %1308 = vmatpush.bf16.msra.mxu0 %v1123
    %1309 = vmatpush.bf16.msra.mxu0 %v1119
    %1310 = vmatpush.bf16.msra.mxu0 %v1115
    %1311 = vmatpush.bf16.msra.mxu0 %v1111
    %1312 = vmatpush.bf16.msra.mxu0 %v1107
    %1313 = vmatpush.bf16.msra.mxu0 %v1103
    %1314 = vmatmul.bf16.gmra.mxu0 %v831
    %v1315 = vpop.f32.mrf.mxu0
    %v1316 = vadd.f32 %v903, %v1315
    %v1317 = vpop.f32.mrf.mxu0
    %1318 = vdwg.mxu0
    %1319 = vmatpush.bf16.msra.mxu0 %v1163
    %1320 = vmatpush.bf16.msra.mxu0 %v1159
    %1321 = vmatpush.bf16.msra.mxu0 %v1155
    %1322 = vmatpush.bf16.msra.mxu0 %v1151
    %1323 = vmatpush.bf16.msra.mxu0 %v1147
    %1324 = vmatpush.bf16.msra.mxu0 %v1143
    %1325 = vmatpush.bf16.msra.mxu0 %v1139
    %1326 = vmatpush.bf16.msra.mxu0 %v1135
    %1327 = vmatmul.bf16.gmra.mxu0 %v832
    %v1328 = vpop.f32.mrf.mxu0
    %v1329 = vadd.f32 %v1316, %v1328
    %v1330 = vpop.f32.mrf.mxu0
    %1331 = vdwg.mxu0
    %v1332 = vxor.u32 %v1251, 2147483648
    %v1333 = vmul.f32 %v1332, 1.442695
    %v1334 = vpow.pop %v1333
    %v1335 = vadd.f32 %v1334, 1.0
    %v1336 = vrcp.pop %v1335
    %v1337 = vmul.f32 %v1335, %v1336
    %v1338 = vsub.f32 1.0, %v1337
    %v1339 = vmul.f32 %v1336, %v1338
    %v1340 = vadd.f32 %v1336, %v1339
    %vm1341 = vweird.f32 %v1335
    %vm1342 = vweird.f32 %v1336
    %vm1343 = vmor %vm1341, %vm1342
    %v1344 = vsel %vm1343, %v1336, %v1340
    %v1345 = vand.u32 2147483647, %v1335
    %vm1346 = vcmp.eq.f32.partialorder %v1345, 8.507059e+37
    %v1347 = vand.u32 %v1335, 2147483648
    %v1348 = vor.u32 1.1754944e-38, %v1347
    %v1349 = vsel %vm1346, %v1348, %v1344
    %v1350 = vmul.f32 1.0, %v1349
    %v1351 = vxor.u32 %v1277, 2147483648
    %v1352 = vmul.f32 %v1351, 1.442695
    %v1353 = vpow.pop %v1352
    %v1354 = vadd.f32 %v1353, 1.0
    %v1355 = vrcp.pop %v1354
    %v1356 = vmul.f32 %v1354, %v1355
    %v1357 = vsub.f32 1.0, %v1356
    %v1358 = vmul.f32 %v1355, %v1357
    %v1359 = vadd.f32 %v1355, %v1358
    %vm1360 = vweird.f32 %v1354
    %vm1361 = vweird.f32 %v1355
    %vm1362 = vmor %vm1360, %vm1361
    %v1363 = vsel %vm1362, %v1355, %v1359
    %v1364 = vand.u32 2147483647, %v1354
    %vm1365 = vcmp.eq.f32.partialorder %v1364, 8.507059e+37
    %v1366 = vand.u32 %v1354, 2147483648
    %v1367 = vor.u32 1.1754944e-38, %v1366
    %v1368 = vsel %vm1365, %v1367, %v1363
    %v1369 = vmul.f32 1.0, %v1368
    %v1370 = vtanh.pop %v1303
    %v1371 = vxor.u32 %v1329, 2147483648
    %v1372 = vmul.f32 %v1371, 1.442695
    %v1373 = vpow.pop %v1372
    %v1374 = vadd.f32 %v1373, 1.0
    %v1375 = vrcp.pop %v1374
    %v1376 = vmul.f32 %v1374, %v1375
    %v1377 = vsub.f32 1.0, %v1376
    %v1378 = vmul.f32 %v1375, %v1377
    %v1379 = vadd.f32 %v1375, %v1378
    %vm1380 = vweird.f32 %v1374
    %vm1381 = vweird.f32 %v1375
    %vm1382 = vmor %vm1380, %vm1381
    %v1383 = vsel %vm1382, %v1375, %v1379
    %v1384 = vand.u32 2147483647, %v1374
    %vm1385 = vcmp.eq.f32.partialorder %v1384, 8.507059e+37
    %v1386 = vand.u32 %v1374, 2147483648
    %v1387 = vor.u32 1.1754944e-38, %v1386
    %v1388 = vsel %vm1385, %v1387, %v1383
    %v1389 = vmul.f32 1.0, %v1388
    %v1390 = vmul.f32 %v1369, 0.0
    %v1391 = vmul.f32 %v1350, %v1370
    %v1392 = vadd.f32 %v1390, %v1391
    %v1393 = vtanh.pop %v1392
    %v1394 = vmul.f32 %v1389, %v1393
    %v1395 = vld [vmem:[#allocation2 + $0x20] sm:$0xff]
    %v1396 = vld [vmem:[#allocation2 + $0x28] sm:$0xff]
    %v1397 = vld [vmem:[#allocation2 + $0x30] sm:$0xff]
    %v1398 = vld [vmem:[#allocation2 + $0x38] sm:$0xff]
    %1399 = vmatpush.bf16.msra.mxu0 %v604
    %1400 = vmatpush.bf16.msra.mxu0 %v600
    %1401 = vmatpush.bf16.msra.mxu0 %v596
    %1402 = vmatpush.bf16.msra.mxu0 %v592
    %1403 = vmatpush.bf16.msra.mxu0 %v588
    %1404 = vmatpush.bf16.msra.mxu0 %v584
    %1405 = vmatpush.bf16.msra.mxu0 %v580
    %1406 = vmatpush.bf16.msra.mxu0 %v576
    %1407 = vmatmul.bf16.gmra.mxu0 %v831
    %v1408 = vpop.f32.mrf.mxu0
    %v1409 = vadd.f32 0.0, %v1408
    %v1410 = vpop.f32.mrf.mxu0
    %1411 = vdwg.mxu0
    %1412 = vmatpush.bf16.msra.mxu0 %v605
    %1413 = vmatpush.bf16.msra.mxu0 %v601
    %1414 = vmatpush.bf16.msra.mxu0 %v597
    %1415 = vmatpush.bf16.msra.mxu0 %v593
    %1416 = vmatpush.bf16.msra.mxu0 %v589
    %1417 = vmatpush.bf16.msra.mxu0 %v585
    %1418 = vmatpush.bf16.msra.mxu0 %v581
    %1419 = vmatpush.bf16.msra.mxu0 %v577
    %1420 = vmatmul.bf16.gmra.mxu0 %v831
    %v1421 = vpop.f32.mrf.mxu0
    %v1422 = vadd.f32 0.0, %v1421
    %v1423 = vpop.f32.mrf.mxu0
    %1424 = vdwg.mxu0
    %1425 = vmatpush.bf16.msra.mxu0 %v606
    %1426 = vmatpush.bf16.msra.mxu0 %v602
    %1427 = vmatpush.bf16.msra.mxu0 %v598
    %1428 = vmatpush.bf16.msra.mxu0 %v594
    %1429 = vmatpush.bf16.msra.mxu0 %v590
    %1430 = vmatpush.bf16.msra.mxu0 %v586
    %1431 = vmatpush.bf16.msra.mxu0 %v582
    %1432 = vmatpush.bf16.msra.mxu0 %v578
    %1433 = vmatmul.bf16.gmra.mxu0 %v831
    %v1434 = vpop.f32.mrf.mxu0
    %v1435 = vadd.f32 0.0, %v1434
    %v1436 = vpop.f32.mrf.mxu0
    %1437 = vdwg.mxu0
    %1438 = vmatpush.bf16.msra.mxu0 %v607
    %1439 = vmatpush.bf16.msra.mxu0 %v603
    %1440 = vmatpush.bf16.msra.mxu0 %v599
    %1441 = vmatpush.bf16.msra.mxu0 %v595
    %1442 = vmatpush.bf16.msra.mxu0 %v591
    %1443 = vmatpush.bf16.msra.mxu0 %v587
    %1444 = vmatpush.bf16.msra.mxu0 %v583
    %1445 = vmatpush.bf16.msra.mxu0 %v579
    %1446 = vmatmul.bf16.gmra.mxu0 %v831
    %v1447 = vpop.f32.mrf.mxu0
    %v1448 = vadd.f32 0.0, %v1447
    %v1449 = vpop.f32.mrf.mxu0
    %1450 = vdwg.mxu0
    %v1451 = vadd.f32 %v1395, %v1409
    %v1452 = vadd.f32 %v1396, %v1422
    %v1453 = vadd.f32 %v1397, %v1435
    %v1454 = vadd.f32 %v1398, %v1448
    %v1455 = vxor.u32 %v1451, 2147483648
    %v1456 = vmul.f32 %v1455, 1.442695
    %v1457 = vpow.pop %v1456
    %v1458 = vadd.f32 %v1457, 1.0
    %v1459 = vrcp.pop %v1458
    %v1460 = vmul.f32 %v1458, %v1459
    %v1461 = vsub.f32 1.0, %v1460
    %v1462 = vmul.f32 %v1459, %v1461
    %v1463 = vadd.f32 %v1459, %v1462
    %vm1464 = vweird.f32 %v1458
    %vm1465 = vweird.f32 %v1459
    %vm1466 = vmor %vm1464, %vm1465
    %v1467 = vsel %vm1466, %v1459, %v1463
    %v1468 = vand.u32 2147483647, %v1458
    %vm1469 = vcmp.eq.f32.partialorder %v1468, 8.507059e+37
    %v1470 = vand.u32 %v1458, 2147483648
    %v1471 = vor.u32 1.1754944e-38, %v1470
    %v1472 = vsel %vm1469, %v1471, %v1467
    %v1473 = vmul.f32 1.0, %v1472
    %v1474 = vxor.u32 %v1452, 2147483648
    %v1475 = vmul.f32 %v1474, 1.442695
    %v1476 = vpow.pop %v1475
    %v1477 = vadd.f32 %v1476, 1.0
    %v1478 = vrcp.pop %v1477
    %v1479 = vmul.f32 %v1477, %v1478
    %v1480 = vsub.f32 1.0, %v1479
    %v1481 = vmul.f32 %v1478, %v1480
    %v1482 = vadd.f32 %v1478, %v1481
    %vm1483 = vweird.f32 %v1477
    %vm1484 = vweird.f32 %v1478
    %vm1485 = vmor %vm1483, %vm1484
    %v1486 = vsel %vm1485, %v1478, %v1482
    %v1487 = vand.u32 2147483647, %v1477
    %vm1488 = vcmp.eq.f32.partialorder %v1487, 8.507059e+37
    %v1489 = vand.u32 %v1477, 2147483648
    %v1490 = vor.u32 1.1754944e-38, %v1489
    %v1491 = vsel %vm1488, %v1490, %v1486
    %v1492 = vmul.f32 1.0, %v1491
    %v1493 = vtanh.pop %v1453
    %v1494 = vxor.u32 %v1454, 2147483648
    %v1495 = vmul.f32 %v1494, 1.442695
    %v1496 = vpow.pop %v1495
    %v1497 = vadd.f32 %v1496, 1.0
    %v1498 = vrcp.pop %v1497
    %v1499 = vmul.f32 %v1497, %v1498
    %v1500 = vsub.f32 1.0, %v1499
    %v1501 = vmul.f32 %v1498, %v1500
    %v1502 = vadd.f32 %v1498, %v1501
    %vm1503 = vweird.f32 %v1497
    %vm1504 = vweird.f32 %v1498
    %vm1505 = vmor %vm1503, %vm1504
    %v1506 = vsel %vm1505, %v1498, %v1502
    %v1507 = vand.u32 2147483647, %v1497
    %vm1508 = vcmp.eq.f32.partialorder %v1507, 8.507059e+37
    %v1509 = vand.u32 %v1497, 2147483648
    %v1510 = vor.u32 1.1754944e-38, %v1509
    %v1511 = vsel %vm1508, %v1510, %v1506
    %v1512 = vmul.f32 1.0, %v1511
    %v1513 = vmul.f32 %v1492, %v756
    %v1514 = vmul.f32 %v1473, %v1493
    %v1515 = vadd.f32 %v1513, %v1514
    %v1516 = vtanh.pop %v1515
    %v1517 = vmul.f32 %v1512, %v1516
    %v1518 = vpack.c.bf16 %v830, %v830
    %v1519 = vld [vmem:[%s8] sm:$0xf]
    %v1520 = vld [vmem:[%s8 + $0x4] sm:$0xf]
    %v1521 = vld [vmem:[%s8 + $0x8] sm:$0xf]
    %v1522 = vld [vmem:[%s8 + $0xc] sm:$0xf]
    %v1523 = vld [vmem:[%s8 + $0x10] sm:$0xf]
    %v1524 = vld [vmem:[%s8 + $0x14] sm:$0xf]
    %v1525 = vld [vmem:[%s8 + $0x18] sm:$0xf]
    %v1526 = vld [vmem:[%s8 + $0x1c] sm:$0xf]
    %v1531 = vunpack.c.l.b16 %v1523
    %v1532 = vunpack.c.l.b16 %v1524
    %v1533 = vunpack.c.l.b16 %v1525
    %v1534 = vunpack.c.l.b16 %v1526
    %v1535 = vpack.c.b16 %v1532, %v1531
    %v1536 = vpack.c.b16 %v1534, %v1533
    %1539 = vmatpush.bf16.msra.mxu0 0
    %1540 = vmatpush.bf16.msra.mxu0 0
    %1541 = vmatpush.bf16.msra.mxu0 0
    %1542 = vmatpush.bf16.msra.mxu0 0
    %1543 = vmatpush.bf16.msra.mxu0 0
    %1544 = vmatpush.bf16.msra.mxu0 0
    %1545 = vmatpush.bf16.msra.mxu0 %v1536
    %1546 = vmatpush.bf16.msra.mxu0 %v1535
    %1547 = vmatmul.bf16.gmra.mxu0 %v778
    %v1548 = vpop.f32.mrf.mxu0
    %v1549 = vadd.f32 0.0, %v1548
    %v1550 = vpop.f32.mrf.mxu0
    %1551 = vdwg.mxu0
    %1553 = vrot.lane.b32.xlu0 %v1518, 32
    %v1554 = vpop.permute.xlu0 %1553
    %v1559 = vunpack.c.l.b16 %v1519
    %v1560 = vunpack.c.l.b16 %v1520
    %v1561 = vunpack.c.l.b16 %v1521
    %v1562 = vunpack.c.l.b16 %v1522
    %v1563 = vpack.c.b16 %v1560, %v1559
    %v1564 = vpack.c.b16 %v1562, %v1561
    %v1568 = vsel %vm776, %v1554, 0
    %1570 = vmatpush.bf16.msra.mxu0 0
    %1571 = vmatpush.bf16.msra.mxu0 0
    %1572 = vmatpush.bf16.msra.mxu0 0
    %1573 = vmatpush.bf16.msra.mxu0 0
    %1574 = vmatpush.bf16.msra.mxu0 0
    %1575 = vmatpush.bf16.msra.mxu0 0
    %1576 = vmatpush.bf16.msra.mxu0 %v1564
    %1577 = vmatpush.bf16.msra.mxu0 %v1563
    %1578 = vmatmul.bf16.gmra.mxu0 %v1568
    %v1579 = vpop.f32.mrf.mxu0
    %v1580 = vadd.f32 %v1549, %v1579
    %v1581 = vpop.f32.mrf.mxu0
    %1582 = vdwg.mxu0
    %s1583 = scalar_lea.vmem %s9, 1
    %v1584 = vld [vmem:[%s1583] sm:$0x1]
    %v1586 = vperm.slane %v1584, 0
    %v1588 = vadd.f32 %v1580, %v1586
    %v1589 = vxor.u32 %v1588, 2147483648
    %v1590 = vmul.f32 %v1589, 1.442695
    %v1591 = vpow.pop %v1590
    %v1592 = vadd.f32 %v1591, 1.0
    %v1593 = vrcp.pop %v1592
    %v1594 = vmul.f32 %v1592, %v1593
    %v1595 = vsub.f32 1.0, %v1594
    %v1596 = vmul.f32 %v1593, %v1595
    %v1597 = vadd.f32 %v1593, %v1596
    %vm1598 = vweird.f32 %v1592
    %vm1599 = vweird.f32 %v1593
    %vm1600 = vmor %vm1598, %vm1599
    %v1601 = vsel %vm1600, %v1593, %v1597
    %v1602 = vand.u32 2147483647, %v1592
    %vm1603 = vcmp.eq.f32.partialorder %v1602, 8.507059e+37
    %v1604 = vand.u32 %v1592, 2147483648
    %v1605 = vor.u32 1.1754944e-38, %v1604
    %v1606 = vsel %vm1603, %v1605, %v1601
    %v1607 = vmul.f32 1.0, %v1606
    %v1608 = vtanh.pop %v1588
    %v1609 = vmul.f32 %v1607, 0.0
    %1611 = vrot.lane.b32.xlu0 %v1608, 64
    %v1612 = vpop.permute.xlu0 %1611
    %v1614 = vmul.f32 %v1607, %v1612
    %1616 = vrot.lane.b32.xlu0 %v1614, 32
    %v1617 = vpop.permute.xlu0 %1616
    %v1619 = vadd.f32 %v1609, %v1617
    %v1620 = vtanh.pop %v1619
    %1622 = vrot.lane.b32.xlu0 %v1620, 64
    %v1623 = vpop.permute.xlu0 %1622
    %v1625 = vmul.f32 %v1607, %v1623
    %v1626 = vld [vmem:[#allocation3 + $0x8] sm:$0xff]
    %1627 = vmatpush.bf16.msra.mxu0 0
    %1628 = vmatpush.bf16.msra.mxu0 0
    %1629 = vmatpush.bf16.msra.mxu0 0
    %1630 = vmatpush.bf16.msra.mxu0 0
    %1631 = vmatpush.bf16.msra.mxu0 0
    %1632 = vmatpush.bf16.msra.mxu0 0
    %1633 = vmatpush.bf16.msra.mxu0 %v773
    %1634 = vmatpush.bf16.msra.mxu0 %v772
    %1635 = vmatmul.bf16.gmra.mxu0 %v1568
    %v1636 = vpop.f32.mrf.mxu0
    %v1637 = vadd.f32 0.0, %v1636
    %v1638 = vpop.f32.mrf.mxu0
    %1639 = vdwg.mxu0
    %v1640 = vadd.f32 %v1626, %v1637
    %v1641 = vxor.u32 %v1640, 2147483648
    %v1642 = vmul.f32 %v1641, 1.442695
    %v1643 = vpow.pop %v1642
    %v1644 = vadd.f32 %v1643, 1.0
    %v1645 = vrcp.pop %v1644
    %v1646 = vmul.f32 %v1644, %v1645
    %v1647 = vsub.f32 1.0, %v1646
    %v1648 = vmul.f32 %v1645, %v1647
    %v1649 = vadd.f32 %v1645, %v1648
    %vm1650 = vweird.f32 %v1644
    %vm1651 = vweird.f32 %v1645
    %vm1652 = vmor %vm1650, %vm1651
    %v1653 = vsel %vm1652, %v1645, %v1649
    %v1654 = vand.u32 2147483647, %v1644
    %vm1655 = vcmp.eq.f32.partialorder %v1654, 8.507059e+37
    %v1656 = vand.u32 %v1644, 2147483648
    %v1657 = vor.u32 1.1754944e-38, %v1656
    %v1658 = vsel %vm1655, %v1657, %v1653
    %v1659 = vmul.f32 1.0, %v1658
    %v1660 = vtanh.pop %v1640
    %v1661 = vmul.f32 %v1659, %v824
    %1663 = vrot.lane.b32.xlu0 %v1660, 64
    %v1664 = vpop.permute.xlu0 %1663
    %v1666 = vmul.f32 %v1659, %v1664
    %1668 = vrot.lane.b32.xlu0 %v1666, 32
    %v1669 = vpop.permute.xlu0 %1668
    %v1671 = vadd.f32 %v1661, %v1669
    %v1672 = vtanh.pop %v1671
    %1674 = vrot.lane.b32.xlu0 %v1672, 64
    %v1675 = vpop.permute.xlu0 %1674
    %v1677 = vmul.f32 %v1659, %v1675
    %v1678 = vpack.c.bf16 %v1394, %v1394
    %s1679 = scalar_lea.vmem [#allocation7], 512
    %v1680 = vld [vmem:[%s1679] sm:$0xff]
    %v1681 = vld [vmem:[%s1679 + $0x8] sm:$0xff]
    %v1682 = vld [vmem:[%s1679 + $0x10] sm:$0xff]
    %v1683 = vld [vmem:[%s1679 + $0x18] sm:$0xff]
    %v1684 = vld [vmem:[%s1679 + $0x20] sm:$0xff]
    %v1685 = vld [vmem:[%s1679 + $0x28] sm:$0xff]
    %v1686 = vld [vmem:[%s1679 + $0x30] sm:$0xff]
    %v1687 = vld [vmem:[%s1679 + $0x38] sm:$0xff]
    %v1688 = vld [vmem:[%s1679 + $0x40] sm:$0xff]
    %v1689 = vld [vmem:[%s1679 + $0x48] sm:$0xff]
    %v1690 = vld [vmem:[%s1679 + $0x50] sm:$0xff]
    %v1691 = vld [vmem:[%s1679 + $0x58] sm:$0xff]
    %v1692 = vld [vmem:[%s1679 + $0x60] sm:$0xff]
    %v1693 = vld [vmem:[%s1679 + $0x68] sm:$0xff]
    %v1694 = vld [vmem:[%s1679 + $0x70] sm:$0xff]
    %v1695 = vld [vmem:[%s1679 + $0x78] sm:$0xff]
    %v1696 = vld [vmem:[%s1679 + $0x80] sm:$0xff]
    %v1697 = vld [vmem:[%s1679 + $0x88] sm:$0xff]
    %v1698 = vld [vmem:[%s1679 + $0x90] sm:$0xff]
    %v1699 = vld [vmem:[%s1679 + $0x98] sm:$0xff]
    %v1700 = vld [vmem:[%s1679 + $0xa0] sm:$0xff]
    %v1701 = vld [vmem:[%s1679 + $0xa8] sm:$0xff]
    %v1702 = vld [vmem:[%s1679 + $0xb0] sm:$0xff]
    %v1703 = vld [vmem:[%s1679 + $0xb8] sm:$0xff]
    %v1704 = vld [vmem:[%s1679 + $0xc0] sm:$0xff]
    %v1705 = vld [vmem:[%s1679 + $0xc8] sm:$0xff]
    %v1706 = vld [vmem:[%s1679 + $0xd0] sm:$0xff]
    %v1707 = vld [vmem:[%s1679 + $0xd8] sm:$0xff]
    %v1708 = vld [vmem:[%s1679 + $0xe0] sm:$0xff]
    %v1709 = vld [vmem:[%s1679 + $0xe8] sm:$0xff]
    %v1710 = vld [vmem:[%s1679 + $0xf0] sm:$0xff]
    %v1711 = vld [vmem:[%s1679 + $0xf8] sm:$0xff]
    %v1712 = vld [vmem:[%s1679 + $0x100] sm:$0xff]
    %v1713 = vld [vmem:[%s1679 + $0x108] sm:$0xff]
    %v1714 = vld [vmem:[%s1679 + $0x110] sm:$0xff]
    %v1715 = vld [vmem:[%s1679 + $0x118] sm:$0xff]
    %v1716 = vld [vmem:[%s1679 + $0x120] sm:$0xff]
    %v1717 = vld [vmem:[%s1679 + $0x128] sm:$0xff]
    %v1718 = vld [vmem:[%s1679 + $0x130] sm:$0xff]
    %v1719 = vld [vmem:[%s1679 + $0x138] sm:$0xff]
    %v1720 = vld [vmem:[%s1679 + $0x140] sm:$0xff]
    %v1721 = vld [vmem:[%s1679 + $0x148] sm:$0xff]
    %v1722 = vld [vmem:[%s1679 + $0x150] sm:$0xff]
    %v1723 = vld [vmem:[%s1679 + $0x158] sm:$0xff]
    %v1724 = vld [vmem:[%s1679 + $0x160] sm:$0xff]
    %v1725 = vld [vmem:[%s1679 + $0x168] sm:$0xff]
    %v1726 = vld [vmem:[%s1679 + $0x170] sm:$0xff]
    %v1727 = vld [vmem:[%s1679 + $0x178] sm:$0xff]
    %v1728 = vld [vmem:[%s1679 + $0x180] sm:$0xff]
    %v1729 = vld [vmem:[%s1679 + $0x188] sm:$0xff]
    %v1730 = vld [vmem:[%s1679 + $0x190] sm:$0xff]
    %v1731 = vld [vmem:[%s1679 + $0x198] sm:$0xff]
    %v1732 = vld [vmem:[%s1679 + $0x1a0] sm:$0xff]
    %v1733 = vld [vmem:[%s1679 + $0x1a8] sm:$0xff]
    %v1734 = vld [vmem:[%s1679 + $0x1b0] sm:$0xff]
    %v1735 = vld [vmem:[%s1679 + $0x1b8] sm:$0xff]
    %v1736 = vld [vmem:[%s1679 + $0x1c0] sm:$0xff]
    %v1737 = vld [vmem:[%s1679 + $0x1c8] sm:$0xff]
    %v1738 = vld [vmem:[%s1679 + $0x1d0] sm:$0xff]
    %v1739 = vld [vmem:[%s1679 + $0x1d8] sm:$0xff]
    %v1740 = vld [vmem:[%s1679 + $0x1e0] sm:$0xff]
    %v1741 = vld [vmem:[%s1679 + $0x1e8] sm:$0xff]
    %v1742 = vld [vmem:[%s1679 + $0x1f0] sm:$0xff]
    %v1743 = vld [vmem:[%s1679 + $0x1f8] sm:$0xff]
    %s1744 = scalar_lea.vmem %s5, 8
    %v1745 = vld [vmem:[%s1744] sm:$0xf]
    %v1747 = vperm.slane %v1745, 0
    %v1748 = vperm.slane %v1745, 1
    %v1749 = vperm.slane %v1745, 2
    %v1750 = vperm.slane %v1745, 3
    %v1819 = vunpack.c.l.b16 %v1680
    %v1820 = vunpack.c.h.b16 %v1680
    %v1821 = vunpack.c.l.b16 %v1681
    %v1822 = vunpack.c.h.b16 %v1681
    %v1823 = vunpack.c.l.b16 %v1682
    %v1824 = vunpack.c.h.b16 %v1682
    %v1825 = vunpack.c.l.b16 %v1683
    %v1826 = vunpack.c.h.b16 %v1683
    %v1827 = vunpack.c.l.b16 %v1684
    %v1828 = vunpack.c.h.b16 %v1684
    %v1829 = vunpack.c.l.b16 %v1685
    %v1830 = vunpack.c.h.b16 %v1685
    %v1831 = vunpack.c.l.b16 %v1686
    %v1832 = vunpack.c.h.b16 %v1686
    %v1833 = vunpack.c.l.b16 %v1687
    %v1834 = vunpack.c.h.b16 %v1687
    %v1835 = vunpack.c.l.b16 %v1688
    %v1836 = vunpack.c.h.b16 %v1688
    %v1837 = vunpack.c.l.b16 %v1689
    %v1838 = vunpack.c.h.b16 %v1689
    %v1839 = vunpack.c.l.b16 %v1690
    %v1840 = vunpack.c.h.b16 %v1690
    %v1841 = vunpack.c.l.b16 %v1691
    %v1842 = vunpack.c.h.b16 %v1691
    %v1843 = vunpack.c.l.b16 %v1692
    %v1844 = vunpack.c.h.b16 %v1692
    %v1845 = vunpack.c.l.b16 %v1693
    %v1846 = vunpack.c.h.b16 %v1693
    %v1847 = vunpack.c.l.b16 %v1694
    %v1848 = vunpack.c.h.b16 %v1694
    %v1849 = vunpack.c.l.b16 %v1695
    %v1850 = vunpack.c.h.b16 %v1695
    %v1851 = vunpack.c.l.b16 %v1696
    %v1852 = vunpack.c.h.b16 %v1696
    %v1853 = vunpack.c.l.b16 %v1697
    %v1854 = vunpack.c.h.b16 %v1697
    %v1855 = vunpack.c.l.b16 %v1698
    %v1856 = vunpack.c.h.b16 %v1698
    %v1857 = vunpack.c.l.b16 %v1699
    %v1858 = vunpack.c.h.b16 %v1699
    %v1859 = vunpack.c.l.b16 %v1700
    %v1860 = vunpack.c.h.b16 %v1700
    %v1861 = vunpack.c.l.b16 %v1701
    %v1862 = vunpack.c.h.b16 %v1701
    %v1863 = vunpack.c.l.b16 %v1702
    %v1864 = vunpack.c.h.b16 %v1702
    %v1865 = vunpack.c.l.b16 %v1703
    %v1866 = vunpack.c.h.b16 %v1703
    %v1867 = vunpack.c.l.b16 %v1704
    %v1868 = vunpack.c.h.b16 %v1704
    %v1869 = vunpack.c.l.b16 %v1705
    %v1870 = vunpack.c.h.b16 %v1705
    %v1871 = vunpack.c.l.b16 %v1706
    %v1872 = vunpack.c.h.b16 %v1706
    %v1873 = vunpack.c.l.b16 %v1707
    %v1874 = vunpack.c.h.b16 %v1707
    %v1875 = vunpack.c.l.b16 %v1708
    %v1876 = vunpack.c.h.b16 %v1708
    %v1877 = vunpack.c.l.b16 %v1709
    %v1878 = vunpack.c.h.b16 %v1709
    %v1879 = vunpack.c.l.b16 %v1710
    %v1880 = vunpack.c.h.b16 %v1710
    %v1881 = vunpack.c.l.b16 %v1711
    %v1882 = vunpack.c.h.b16 %v1711
    %v1883 = vunpack.c.l.b16 %v1712
    %v1884 = vunpack.c.h.b16 %v1712
    %v1885 = vunpack.c.l.b16 %v1713
    %v1886 = vunpack.c.h.b16 %v1713
    %v1887 = vunpack.c.l.b16 %v1714
    %v1888 = vunpack.c.h.b16 %v1714
    %v1889 = vunpack.c.l.b16 %v1715
    %v1890 = vunpack.c.h.b16 %v1715
    %v1891 = vunpack.c.l.b16 %v1716
    %v1892 = vunpack.c.h.b16 %v1716
    %v1893 = vunpack.c.l.b16 %v1717
    %v1894 = vunpack.c.h.b16 %v1717
    %v1895 = vunpack.c.l.b16 %v1718
    %v1896 = vunpack.c.h.b16 %v1718
    %v1897 = vunpack.c.l.b16 %v1719
    %v1898 = vunpack.c.h.b16 %v1719
    %v1899 = vunpack.c.l.b16 %v1720
    %v1900 = vunpack.c.h.b16 %v1720
    %v1901 = vunpack.c.l.b16 %v1721
    %v1902 = vunpack.c.h.b16 %v1721
    %v1903 = vunpack.c.l.b16 %v1722
    %v1904 = vunpack.c.h.b16 %v1722
    %v1905 = vunpack.c.l.b16 %v1723
    %v1906 = vunpack.c.h.b16 %v1723
    %v1907 = vunpack.c.l.b16 %v1724
    %v1908 = vunpack.c.h.b16 %v1724
    %v1909 = vunpack.c.l.b16 %v1725
    %v1910 = vunpack.c.h.b16 %v1725
    %v1911 = vunpack.c.l.b16 %v1726
    %v1912 = vunpack.c.h.b16 %v1726
    %v1913 = vunpack.c.l.b16 %v1727
    %v1914 = vunpack.c.h.b16 %v1727
    %v1915 = vunpack.c.l.b16 %v1728
    %v1916 = vunpack.c.h.b16 %v1728
    %v1917 = vunpack.c.l.b16 %v1729
    %v1918 = vunpack.c.h.b16 %v1729
    %v1919 = vunpack.c.l.b16 %v1730
    %v1920 = vunpack.c.h.b16 %v1730
    %v1921 = vunpack.c.l.b16 %v1731
    %v1922 = vunpack.c.h.b16 %v1731
    %v1923 = vunpack.c.l.b16 %v1732
    %v1924 = vunpack.c.h.b16 %v1732
    %v1925 = vunpack.c.l.b16 %v1733
    %v1926 = vunpack.c.h.b16 %v1733
    %v1927 = vunpack.c.l.b16 %v1734
    %v1928 = vunpack.c.h.b16 %v1734
    %v1929 = vunpack.c.l.b16 %v1735
    %v1930 = vunpack.c.h.b16 %v1735
    %v1931 = vunpack.c.l.b16 %v1736
    %v1932 = vunpack.c.h.b16 %v1736
    %v1933 = vunpack.c.l.b16 %v1737
    %v1934 = vunpack.c.h.b16 %v1737
    %v1935 = vunpack.c.l.b16 %v1738
    %v1936 = vunpack.c.h.b16 %v1738
    %v1937 = vunpack.c.l.b16 %v1739
    %v1938 = vunpack.c.h.b16 %v1739
    %v1939 = vunpack.c.l.b16 %v1740
    %v1940 = vunpack.c.h.b16 %v1740
    %v1941 = vunpack.c.l.b16 %v1741
    %v1942 = vunpack.c.h.b16 %v1741
    %v1943 = vunpack.c.l.b16 %v1742
    %v1944 = vunpack.c.h.b16 %v1742
    %v1945 = vunpack.c.l.b16 %v1743
    %v1946 = vunpack.c.h.b16 %v1743
    %v1947 = vpack.c.b16 %v1823, %v1819
    %v1948 = vpack.c.b16 %v1824, %v1820
    %v1949 = vpack.c.b16 %v1825, %v1821
    %v1950 = vpack.c.b16 %v1826, %v1822
    %v1951 = vpack.c.b16 %v1831, %v1827
    %v1952 = vpack.c.b16 %v1832, %v1828
    %v1953 = vpack.c.b16 %v1833, %v1829
    %v1954 = vpack.c.b16 %v1834, %v1830
    %v1955 = vpack.c.b16 %v1839, %v1835
    %v1956 = vpack.c.b16 %v1840, %v1836
    %v1957 = vpack.c.b16 %v1841, %v1837
    %v1958 = vpack.c.b16 %v1842, %v1838
    %v1959 = vpack.c.b16 %v1847, %v1843
    %v1960 = vpack.c.b16 %v1848, %v1844
    %v1961 = vpack.c.b16 %v1849, %v1845
    %v1962 = vpack.c.b16 %v1850, %v1846
    %v1963 = vpack.c.b16 %v1855, %v1851
    %v1964 = vpack.c.b16 %v1856, %v1852
    %v1965 = vpack.c.b16 %v1857, %v1853
    %v1966 = vpack.c.b16 %v1858, %v1854
    %v1967 = vpack.c.b16 %v1863, %v1859
    %v1968 = vpack.c.b16 %v1864, %v1860
    %v1969 = vpack.c.b16 %v1865, %v1861
    %v1970 = vpack.c.b16 %v1866, %v1862
    %v1971 = vpack.c.b16 %v1871, %v1867
    %v1972 = vpack.c.b16 %v1872, %v1868
    %v1973 = vpack.c.b16 %v1873, %v1869
    %v1974 = vpack.c.b16 %v1874, %v1870
    %v1975 = vpack.c.b16 %v1879, %v1875
    %v1976 = vpack.c.b16 %v1880, %v1876
    %v1977 = vpack.c.b16 %v1881, %v1877
    %v1978 = vpack.c.b16 %v1882, %v1878
    %v1979 = vpack.c.b16 %v1887, %v1883
    %v1980 = vpack.c.b16 %v1888, %v1884
    %v1981 = vpack.c.b16 %v1889, %v1885
    %v1982 = vpack.c.b16 %v1890, %v1886
    %v1983 = vpack.c.b16 %v1895, %v1891
    %v1984 = vpack.c.b16 %v1896, %v1892
    %v1985 = vpack.c.b16 %v1897, %v1893
    %v1986 = vpack.c.b16 %v1898, %v1894
    %v1987 = vpack.c.b16 %v1903, %v1899
    %v1988 = vpack.c.b16 %v1904, %v1900
    %v1989 = vpack.c.b16 %v1905, %v1901
    %v1990 = vpack.c.b16 %v1906, %v1902
    %v1991 = vpack.c.b16 %v1911, %v1907
    %v1992 = vpack.c.b16 %v1912, %v1908
    %v1993 = vpack.c.b16 %v1913, %v1909
    %v1994 = vpack.c.b16 %v1914, %v1910
    %v1995 = vpack.c.b16 %v1919, %v1915
    %v1996 = vpack.c.b16 %v1920, %v1916
    %v1997 = vpack.c.b16 %v1921, %v1917
    %v1998 = vpack.c.b16 %v1922, %v1918
    %v1999 = vpack.c.b16 %v1927, %v1923
    %v2000 = vpack.c.b16 %v1928, %v1924
    %v2001 = vpack.c.b16 %v1929, %v1925
    %v2002 = vpack.c.b16 %v1930, %v1926
    %v2003 = vpack.c.b16 %v1935, %v1931
    %v2004 = vpack.c.b16 %v1936, %v1932
    %v2005 = vpack.c.b16 %v1937, %v1933
    %v2006 = vpack.c.b16 %v1938, %v1934
    %v2007 = vpack.c.b16 %v1943, %v1939
    %v2008 = vpack.c.b16 %v1944, %v1940
    %v2009 = vpack.c.b16 %v1945, %v1941
    %v2010 = vpack.c.b16 %v1946, %v1942
    %2075 = vmatpush.bf16.msra.mxu0 %v1975
    %2076 = vmatpush.bf16.msra.mxu0 %v1971
    %2077 = vmatpush.bf16.msra.mxu0 %v1967
    %2078 = vmatpush.bf16.msra.mxu0 %v1963
    %2079 = vmatpush.bf16.msra.mxu0 %v1959
    %2080 = vmatpush.bf16.msra.mxu0 %v1955
    %2081 = vmatpush.bf16.msra.mxu0 %v1951
    %2082 = vmatpush.bf16.msra.mxu0 %v1947
    %2083 = vmatmul.bf16.gmra.mxu0 %v1678
    %v2084 = vpop.f32.mrf.mxu0
    %v2085 = vadd.f32 %v1747, %v2084
    %v2086 = vpop.f32.mrf.mxu0
    %2087 = vdwg.mxu0
    %2088 = vmatpush.bf16.msra.mxu0 %v2007
    %2089 = vmatpush.bf16.msra.mxu0 %v2003
    %2090 = vmatpush.bf16.msra.mxu0 %v1999
    %2091 = vmatpush.bf16.msra.mxu0 %v1995
    %2092 = vmatpush.bf16.msra.mxu0 %v1991
    %2093 = vmatpush.bf16.msra.mxu0 %v1987
    %2094 = vmatpush.bf16.msra.mxu0 %v1983
    %2095 = vmatpush.bf16.msra.mxu0 %v1979
    %2096 = vmatmul.bf16.gmra.mxu0 %v832
    %v2097 = vpop.f32.mrf.mxu0
    %v2098 = vadd.f32 %v2085, %v2097
    %v2099 = vpop.f32.mrf.mxu0
    %2100 = vdwg.mxu0
    %2101 = vmatpush.bf16.msra.mxu0 %v1976
    %2102 = vmatpush.bf16.msra.mxu0 %v1972
    %2103 = vmatpush.bf16.msra.mxu0 %v1968
    %2104 = vmatpush.bf16.msra.mxu0 %v1964
    %2105 = vmatpush.bf16.msra.mxu0 %v1960
    %2106 = vmatpush.bf16.msra.mxu0 %v1956
    %2107 = vmatpush.bf16.msra.mxu0 %v1952
    %2108 = vmatpush.bf16.msra.mxu0 %v1948
    %2109 = vmatmul.bf16.gmra.mxu0 %v1678
    %v2110 = vpop.f32.mrf.mxu0
    %v2111 = vadd.f32 %v1748, %v2110
    %v2112 = vpop.f32.mrf.mxu0
    %2113 = vdwg.mxu0
    %2114 = vmatpush.bf16.msra.mxu0 %v2008
    %2115 = vmatpush.bf16.msra.mxu0 %v2004
    %2116 = vmatpush.bf16.msra.mxu0 %v2000
    %2117 = vmatpush.bf16.msra.mxu0 %v1996
    %2118 = vmatpush.bf16.msra.mxu0 %v1992
    %2119 = vmatpush.bf16.msra.mxu0 %v1988
    %2120 = vmatpush.bf16.msra.mxu0 %v1984
    %2121 = vmatpush.bf16.msra.mxu0 %v1980
    %2122 = vmatmul.bf16.gmra.mxu0 %v832
    %v2123 = vpop.f32.mrf.mxu0
    %v2124 = vadd.f32 %v2111, %v2123
    %v2125 = vpop.f32.mrf.mxu0
    %2126 = vdwg.mxu0
    %2127 = vmatpush.bf16.msra.mxu0 %v1977
    %2128 = vmatpush.bf16.msra.mxu0 %v1973
    %2129 = vmatpush.bf16.msra.mxu0 %v1969
    %2130 = vmatpush.bf16.msra.mxu0 %v1965
    %2131 = vmatpush.bf16.msra.mxu0 %v1961
    %2132 = vmatpush.bf16.msra.mxu0 %v1957
    %2133 = vmatpush.bf16.msra.mxu0 %v1953
    %2134 = vmatpush.bf16.msra.mxu0 %v1949
    %2135 = vmatmul.bf16.gmra.mxu0 %v1678
    %v2136 = vpop.f32.mrf.mxu0
    %v2137 = vadd.f32 %v1749, %v2136
    %v2138 = vpop.f32.mrf.mxu0
    %2139 = vdwg.mxu0
    %2140 = vmatpush.bf16.msra.mxu0 %v2009
    %2141 = vmatpush.bf16.msra.mxu0 %v2005
    %2142 = vmatpush.bf16.msra.mxu0 %v2001
    %2143 = vmatpush.bf16.msra.mxu0 %v1997
    %2144 = vmatpush.bf16.msra.mxu0 %v1993
    %2145 = vmatpush.bf16.msra.mxu0 %v1989
    %2146 = vmatpush.bf16.msra.mxu0 %v1985
    %2147 = vmatpush.bf16.msra.mxu0 %v1981
    %2148 = vmatmul.bf16.gmra.mxu0 %v832
    %v2149 = vpop.f32.mrf.mxu0
    %v2150 = vadd.f32 %v2137, %v2149
    %v2151 = vpop.f32.mrf.mxu0
    %2152 = vdwg.mxu0
    %2153 = vmatpush.bf16.msra.mxu0 %v1978
    %2154 = vmatpush.bf16.msra.mxu0 %v1974
    %2155 = vmatpush.bf16.msra.mxu0 %v1970
    %2156 = vmatpush.bf16.msra.mxu0 %v1966
    %2157 = vmatpush.bf16.msra.mxu0 %v1962
    %2158 = vmatpush.bf16.msra.mxu0 %v1958
    %2159 = vmatpush.bf16.msra.mxu0 %v1954
    %2160 = vmatpush.bf16.msra.mxu0 %v1950
    %2161 = vmatmul.bf16.gmra.mxu0 %v1678
    %v2162 = vpop.f32.mrf.mxu0
    %v2163 = vadd.f32 %v1750, %v2162
    %v2164 = vpop.f32.mrf.mxu0
    %2165 = vdwg.mxu0
    %2166 = vmatpush.bf16.msra.mxu0 %v2010
    %2167 = vmatpush.bf16.msra.mxu0 %v2006
    %2168 = vmatpush.bf16.msra.mxu0 %v2002
    %2169 = vmatpush.bf16.msra.mxu0 %v1998
    %2170 = vmatpush.bf16.msra.mxu0 %v1994
    %2171 = vmatpush.bf16.msra.mxu0 %v1990
    %2172 = vmatpush.bf16.msra.mxu0 %v1986
    %2173 = vmatpush.bf16.msra.mxu0 %v1982
    %2174 = vmatmul.bf16.gmra.mxu0 %v832
    %v2175 = vpop.f32.mrf.mxu0
    %v2176 = vadd.f32 %v2163, %v2175
    %v2177 = vpop.f32.mrf.mxu0
    %2178 = vdwg.mxu0
    %v2179 = vxor.u32 %v2098, 2147483648
    %v2180 = vmul.f32 %v2179, 1.442695
    %v2181 = vpow.pop %v2180
    %v2182 = vadd.f32 %v2181, 1.0
    %v2183 = vrcp.pop %v2182
    %v2184 = vmul.f32 %v2182, %v2183
    %v2185 = vsub.f32 1.0, %v2184
    %v2186 = vmul.f32 %v2183, %v2185
    %v2187 = vadd.f32 %v2183, %v2186
    %vm2188 = vweird.f32 %v2182
    %vm2189 = vweird.f32 %v2183
    %vm2190 = vmor %vm2188, %vm2189
    %v2191 = vsel %vm2190, %v2183, %v2187
    %v2192 = vand.u32 2147483647, %v2182
    %vm2193 = vcmp.eq.f32.partialorder %v2192, 8.507059e+37
    %v2194 = vand.u32 %v2182, 2147483648
    %v2195 = vor.u32 1.1754944e-38, %v2194
    %v2196 = vsel %vm2193, %v2195, %v2191
    %v2197 = vmul.f32 1.0, %v2196
    %v2198 = vxor.u32 %v2124, 2147483648
    %v2199 = vmul.f32 %v2198, 1.442695
    %v2200 = vpow.pop %v2199
    %v2201 = vadd.f32 %v2200, 1.0
    %v2202 = vrcp.pop %v2201
    %v2203 = vmul.f32 %v2201, %v2202
    %v2204 = vsub.f32 1.0, %v2203
    %v2205 = vmul.f32 %v2202, %v2204
    %v2206 = vadd.f32 %v2202, %v2205
    %vm2207 = vweird.f32 %v2201
    %vm2208 = vweird.f32 %v2202
    %vm2209 = vmor %vm2207, %vm2208
    %v2210 = vsel %vm2209, %v2202, %v2206
    %v2211 = vand.u32 2147483647, %v2201
    %vm2212 = vcmp.eq.f32.partialorder %v2211, 8.507059e+37
    %v2213 = vand.u32 %v2201, 2147483648
    %v2214 = vor.u32 1.1754944e-38, %v2213
    %v2215 = vsel %vm2212, %v2214, %v2210
    %v2216 = vmul.f32 1.0, %v2215
    %v2217 = vtanh.pop %v2150
    %v2218 = vxor.u32 %v2176, 2147483648
    %v2219 = vmul.f32 %v2218, 1.442695
    %v2220 = vpow.pop %v2219
    %v2221 = vadd.f32 %v2220, 1.0
    %v2222 = vrcp.pop %v2221
    %v2223 = vmul.f32 %v2221, %v2222
    %v2224 = vsub.f32 1.0, %v2223
    %v2225 = vmul.f32 %v2222, %v2224
    %v2226 = vadd.f32 %v2222, %v2225
    %vm2227 = vweird.f32 %v2221
    %vm2228 = vweird.f32 %v2222
    %vm2229 = vmor %vm2227, %vm2228
    %v2230 = vsel %vm2229, %v2222, %v2226
    %v2231 = vand.u32 2147483647, %v2221
    %vm2232 = vcmp.eq.f32.partialorder %v2231, 8.507059e+37
    %v2233 = vand.u32 %v2221, 2147483648
    %v2234 = vor.u32 1.1754944e-38, %v2233
    %v2235 = vsel %vm2232, %v2234, %v2230
    %v2236 = vmul.f32 1.0, %v2235
    %v2237 = vmul.f32 %v2216, 0.0
    %v2238 = vmul.f32 %v2197, %v2217
    %v2239 = vadd.f32 %v2237, %v2238
    %v2240 = vtanh.pop %v2239
    %v2241 = vmul.f32 %v2236, %v2240
    %v2242 = vpack.c.bf16 %v1517, %v1517
    %2243 = vmatpush.bf16.msra.mxu0 %v1128
    %2244 = vmatpush.bf16.msra.mxu0 %v1124
    %2245 = vmatpush.bf16.msra.mxu0 %v1120
    %2246 = vmatpush.bf16.msra.mxu0 %v1116
    %2247 = vmatpush.bf16.msra.mxu0 %v1112
    %2248 = vmatpush.bf16.msra.mxu0 %v1108
    %2249 = vmatpush.bf16.msra.mxu0 %v1104
    %2250 = vmatpush.bf16.msra.mxu0 %v1100
    %2251 = vmatmul.bf16.gmra.mxu0 %v2242
    %v2252 = vpop.f32.mrf.mxu0
    %v2253 = vadd.f32 %v900, %v2252
    %v2254 = vpop.f32.mrf.mxu0
    %2255 = vdwg.mxu0
    %2256 = vmatpush.bf16.msra.mxu0 %v1160
    %2257 = vmatpush.bf16.msra.mxu0 %v1156
    %2258 = vmatpush.bf16.msra.mxu0 %v1152
    %2259 = vmatpush.bf16.msra.mxu0 %v1148
    %2260 = vmatpush.bf16.msra.mxu0 %v1144
    %2261 = vmatpush.bf16.msra.mxu0 %v1140
    %2262 = vmatpush.bf16.msra.mxu0 %v1136
    %2263 = vmatpush.bf16.msra.mxu0 %v1132
    %2264 = vmatmul.bf16.gmra.mxu0 %v1678
    %v2265 = vpop.f32.mrf.mxu0
    %v2266 = vadd.f32 %v2253, %v2265
    %v2267 = vpop.f32.mrf.mxu0
    %2268 = vdwg.mxu0
    %2269 = vmatpush.bf16.msra.mxu0 %v1129
    %2270 = vmatpush.bf16.msra.mxu0 %v1125
    %2271 = vmatpush.bf16.msra.mxu0 %v1121
    %2272 = vmatpush.bf16.msra.mxu0 %v1117
    %2273 = vmatpush.bf16.msra.mxu0 %v1113
    %2274 = vmatpush.bf16.msra.mxu0 %v1109
    %2275 = vmatpush.bf16.msra.mxu0 %v1105
    %2276 = vmatpush.bf16.msra.mxu0 %v1101
    %2277 = vmatmul.bf16.gmra.mxu0 %v2242
    %v2278 = vpop.f32.mrf.mxu0
    %v2279 = vadd.f32 %v901, %v2278
    %v2280 = vpop.f32.mrf.mxu0
    %2281 = vdwg.mxu0
    %2282 = vmatpush.bf16.msra.mxu0 %v1161
    %2283 = vmatpush.bf16.msra.mxu0 %v1157
    %2284 = vmatpush.bf16.msra.mxu0 %v1153
    %2285 = vmatpush.bf16.msra.mxu0 %v1149
    %2286 = vmatpush.bf16.msra.mxu0 %v1145
    %2287 = vmatpush.bf16.msra.mxu0 %v1141
    %2288 = vmatpush.bf16.msra.mxu0 %v1137
    %2289 = vmatpush.bf16.msra.mxu0 %v1133
    %2290 = vmatmul.bf16.gmra.mxu0 %v1678
    %v2291 = vpop.f32.mrf.mxu0
    %v2292 = vadd.f32 %v2279, %v2291
    %v2293 = vpop.f32.mrf.mxu0
    %2294 = vdwg.mxu0
    %2295 = vmatpush.bf16.msra.mxu0 %v1130
    %2296 = vmatpush.bf16.msra.mxu0 %v1126
    %2297 = vmatpush.bf16.msra.mxu0 %v1122
    %2298 = vmatpush.bf16.msra.mxu0 %v1118
    %2299 = vmatpush.bf16.msra.mxu0 %v1114
    %2300 = vmatpush.bf16.msra.mxu0 %v1110
    %2301 = vmatpush.bf16.msra.mxu0 %v1106
    %2302 = vmatpush.bf16.msra.mxu0 %v1102
    %2303 = vmatmul.bf16.gmra.mxu0 %v2242
    %v2304 = vpop.f32.mrf.mxu0
    %v2305 = vadd.f32 %v902, %v2304
    %v2306 = vpop.f32.mrf.mxu0
    %2307 = vdwg.mxu0
    %2308 = vmatpush.bf16.msra.mxu0 %v1162
    %2309 = vmatpush.bf16.msra.mxu0 %v1158
    %2310 = vmatpush.bf16.msra.mxu0 %v1154
    %2311 = vmatpush.bf16.msra.mxu0 %v1150
    %2312 = vmatpush.bf16.msra.mxu0 %v1146
    %2313 = vmatpush.bf16.msra.mxu0 %v1142
    %2314 = vmatpush.bf16.msra.mxu0 %v1138
    %2315 = vmatpush.bf16.msra.mxu0 %v1134
    %2316 = vmatmul.bf16.gmra.mxu0 %v1678
    %v2317 = vpop.f32.mrf.mxu0
    %v2318 = vadd.f32 %v2305, %v2317
    %v2319 = vpop.f32.mrf.mxu0
    %2320 = vdwg.mxu0
    %2321 = vmatpush.bf16.msra.mxu0 %v1131
    %2322 = vmatpush.bf16.msra.mxu0 %v1127
    %2323 = vmatpush.bf16.msra.mxu0 %v1123
    %2324 = vmatpush.bf16.msra.mxu0 %v1119
    %2325 = vmatpush.bf16.msra.mxu0 %v1115
    %2326 = vmatpush.bf16.msra.mxu0 %v1111
    %2327 = vmatpush.bf16.msra.mxu0 %v1107
    %2328 = vmatpush.bf16.msra.mxu0 %v1103
    %2329 = vmatmul.bf16.gmra.mxu0 %v2242
    %v2330 = vpop.f32.mrf.mxu0
    %v2331 = vadd.f32 %v903, %v2330
    %v2332 = vpop.f32.mrf.mxu0
    %2333 = vdwg.mxu0
    %2334 = vmatpush.bf16.msra.mxu0 %v1163
    %2335 = vmatpush.bf16.msra.mxu0 %v1159
    %2336 = vmatpush.bf16.msra.mxu0 %v1155
    %2337 = vmatpush.bf16.msra.mxu0 %v1151
    %2338 = vmatpush.bf16.msra.mxu0 %v1147
    %2339 = vmatpush.bf16.msra.mxu0 %v1143
    %2340 = vmatpush.bf16.msra.mxu0 %v1139
    %2341 = vmatpush.bf16.msra.mxu0 %v1135
    %2342 = vmatmul.bf16.gmra.mxu0 %v1678
    %v2343 = vpop.f32.mrf.mxu0
    %v2344 = vadd.f32 %v2331, %v2343
    %v2345 = vpop.f32.mrf.mxu0
    %2346 = vdwg.mxu0
    %v2347 = vxor.u32 %v2266, 2147483648
    %v2348 = vmul.f32 %v2347, 1.442695
    %v2349 = vpow.pop %v2348
    %v2350 = vadd.f32 %v2349, 1.0
    %v2351 = vrcp.pop %v2350
    %v2352 = vmul.f32 %v2350, %v2351
    %v2353 = vsub.f32 1.0, %v2352
    %v2354 = vmul.f32 %v2351, %v2353
    %v2355 = vadd.f32 %v2351, %v2354
    %vm2356 = vweird.f32 %v2350
    %vm2357 = vweird.f32 %v2351
    %vm2358 = vmor %vm2356, %vm2357
    %v2359 = vsel %vm2358, %v2351, %v2355
    %v2360 = vand.u32 2147483647, %v2350
    %vm2361 = vcmp.eq.f32.partialorder %v2360, 8.507059e+37
    %v2362 = vand.u32 %v2350, 2147483648
    %v2363 = vor.u32 1.1754944e-38, %v2362
    %v2364 = vsel %vm2361, %v2363, %v2359
    %v2365 = vmul.f32 1.0, %v2364
    %v2366 = vxor.u32 %v2292, 2147483648
    %v2367 = vmul.f32 %v2366, 1.442695
    %v2368 = vpow.pop %v2367
    %v2369 = vadd.f32 %v2368, 1.0
    %v2370 = vrcp.pop %v2369
    %v2371 = vmul.f32 %v2369, %v2370
    %v2372 = vsub.f32 1.0, %v2371
    %v2373 = vmul.f32 %v2370, %v2372
    %v2374 = vadd.f32 %v2370, %v2373
    %vm2375 = vweird.f32 %v2369
    %vm2376 = vweird.f32 %v2370
    %vm2377 = vmor %vm2375, %vm2376
    %v2378 = vsel %vm2377, %v2370, %v2374
    %v2379 = vand.u32 2147483647, %v2369
    %vm2380 = vcmp.eq.f32.partialorder %v2379, 8.507059e+37
    %v2381 = vand.u32 %v2369, 2147483648
    %v2382 = vor.u32 1.1754944e-38, %v2381
    %v2383 = vsel %vm2380, %v2382, %v2378
    %v2384 = vmul.f32 1.0, %v2383
    %v2385 = vtanh.pop %v2318
    %v2386 = vxor.u32 %v2344, 2147483648
    %v2387 = vmul.f32 %v2386, 1.442695
    %v2388 = vpow.pop %v2387
    %v2389 = vadd.f32 %v2388, 1.0
    %v2390 = vrcp.pop %v2389
    %v2391 = vmul.f32 %v2389, %v2390
    %v2392 = vsub.f32 1.0, %v2391
    %v2393 = vmul.f32 %v2390, %v2392
    %v2394 = vadd.f32 %v2390, %v2393
    %vm2395 = vweird.f32 %v2389
    %vm2396 = vweird.f32 %v2390
    %vm2397 = vmor %vm2395, %vm2396
    %v2398 = vsel %vm2397, %v2390, %v2394
    %v2399 = vand.u32 2147483647, %v2389
    %vm2400 = vcmp.eq.f32.partialorder %v2399, 8.507059e+37
    %v2401 = vand.u32 %v2389, 2147483648
    %v2402 = vor.u32 1.1754944e-38, %v2401
    %v2403 = vsel %vm2400, %v2402, %v2398
    %v2404 = vmul.f32 1.0, %v2403
    %v2405 = vmul.f32 %v2384, %v1392
    %v2406 = vmul.f32 %v2365, %v2385
    %v2407 = vadd.f32 %v2405, %v2406
    %v2408 = vtanh.pop %v2407
    %v2409 = vmul.f32 %v2404, %v2408
    %v2410 = vld [vmem:[#allocation2 + $0x40] sm:$0xff]
    %v2411 = vld [vmem:[#allocation2 + $0x48] sm:$0xff]
    %v2412 = vld [vmem:[#allocation2 + $0x50] sm:$0xff]
    %v2413 = vld [vmem:[#allocation2 + $0x58] sm:$0xff]
    %2414 = vmatpush.bf16.msra.mxu0 %v604
    %2415 = vmatpush.bf16.msra.mxu0 %v600
    %2416 = vmatpush.bf16.msra.mxu0 %v596
    %2417 = vmatpush.bf16.msra.mxu0 %v592
    %2418 = vmatpush.bf16.msra.mxu0 %v588
    %2419 = vmatpush.bf16.msra.mxu0 %v584
    %2420 = vmatpush.bf16.msra.mxu0 %v580
    %2421 = vmatpush.bf16.msra.mxu0 %v576
    %2422 = vmatmul.bf16.gmra.mxu0 %v2242
    %v2423 = vpop.f32.mrf.mxu0
    %v2424 = vadd.f32 0.0, %v2423
    %v2425 = vpop.f32.mrf.mxu0
    %2426 = vdwg.mxu0
    %2427 = vmatpush.bf16.msra.mxu0 %v605
    %2428 = vmatpush.bf16.msra.mxu0 %v601
    %2429 = vmatpush.bf16.msra.mxu0 %v597
    %2430 = vmatpush.bf16.msra.mxu0 %v593
    %2431 = vmatpush.bf16.msra.mxu0 %v589
    %2432 = vmatpush.bf16.msra.mxu0 %v585
    %2433 = vmatpush.bf16.msra.mxu0 %v581
    %2434 = vmatpush.bf16.msra.mxu0 %v577
    %2435 = vmatmul.bf16.gmra.mxu0 %v2242
    %v2436 = vpop.f32.mrf.mxu0
    %v2437 = vadd.f32 0.0, %v2436
    %v2438 = vpop.f32.mrf.mxu0
    %2439 = vdwg.mxu0
    %2440 = vmatpush.bf16.msra.mxu0 %v606
    %2441 = vmatpush.bf16.msra.mxu0 %v602
    %2442 = vmatpush.bf16.msra.mxu0 %v598
    %2443 = vmatpush.bf16.msra.mxu0 %v594
    %2444 = vmatpush.bf16.msra.mxu0 %v590
    %2445 = vmatpush.bf16.msra.mxu0 %v586
    %2446 = vmatpush.bf16.msra.mxu0 %v582
    %2447 = vmatpush.bf16.msra.mxu0 %v578
    %2448 = vmatmul.bf16.gmra.mxu0 %v2242
    %v2449 = vpop.f32.mrf.mxu0
    %v2450 = vadd.f32 0.0, %v2449
    %v2451 = vpop.f32.mrf.mxu0
    %2452 = vdwg.mxu0
    %2453 = vmatpush.bf16.msra.mxu0 %v607
    %2454 = vmatpush.bf16.msra.mxu0 %v603
    %2455 = vmatpush.bf16.msra.mxu0 %v599
    %2456 = vmatpush.bf16.msra.mxu0 %v595
    %2457 = vmatpush.bf16.msra.mxu0 %v591
    %2458 = vmatpush.bf16.msra.mxu0 %v587
    %2459 = vmatpush.bf16.msra.mxu0 %v583
    %2460 = vmatpush.bf16.msra.mxu0 %v579
    %2461 = vmatmul.bf16.gmra.mxu0 %v2242
    %v2462 = vpop.f32.mrf.mxu0
    %v2463 = vadd.f32 0.0, %v2462
    %v2464 = vpop.f32.mrf.mxu0
    %2465 = vdwg.mxu0
    %v2466 = vadd.f32 %v2410, %v2424
    %v2467 = vadd.f32 %v2411, %v2437
    %v2468 = vadd.f32 %v2412, %v2450
    %v2469 = vadd.f32 %v2413, %v2463
    %v2470 = vxor.u32 %v2466, 2147483648
    %v2471 = vmul.f32 %v2470, 1.442695
    %v2472 = vpow.pop %v2471
    %v2473 = vadd.f32 %v2472, 1.0
    %v2474 = vrcp.pop %v2473
    %v2475 = vmul.f32 %v2473, %v2474
    %v2476 = vsub.f32 1.0, %v2475
    %v2477 = vmul.f32 %v2474, %v2476
    %v2478 = vadd.f32 %v2474, %v2477
    %vm2479 = vweird.f32 %v2473
    %vm2480 = vweird.f32 %v2474
    %vm2481 = vmor %vm2479, %vm2480
    %v2482 = vsel %vm2481, %v2474, %v2478
    %v2483 = vand.u32 2147483647, %v2473
    %vm2484 = vcmp.eq.f32.partialorder %v2483, 8.507059e+37
    %v2485 = vand.u32 %v2473, 2147483648
    %v2486 = vor.u32 1.1754944e-38, %v2485
    %v2487 = vsel %vm2484, %v2486, %v2482
    %v2488 = vmul.f32 1.0, %v2487
    %v2489 = vxor.u32 %v2467, 2147483648
    %v2490 = vmul.f32 %v2489, 1.442695
    %v2491 = vpow.pop %v2490
    %v2492 = vadd.f32 %v2491, 1.0
    %v2493 = vrcp.pop %v2492
    %v2494 = vmul.f32 %v2492, %v2493
    %v2495 = vsub.f32 1.0, %v2494
    %v2496 = vmul.f32 %v2493, %v2495
    %v2497 = vadd.f32 %v2493, %v2496
    %vm2498 = vweird.f32 %v2492
    %vm2499 = vweird.f32 %v2493
    %vm2500 = vmor %vm2498, %vm2499
    %v2501 = vsel %vm2500, %v2493, %v2497
    %v2502 = vand.u32 2147483647, %v2492
    %vm2503 = vcmp.eq.f32.partialorder %v2502, 8.507059e+37
    %v2504 = vand.u32 %v2492, 2147483648
    %v2505 = vor.u32 1.1754944e-38, %v2504
    %v2506 = vsel %vm2503, %v2505, %v2501
    %v2507 = vmul.f32 1.0, %v2506
    %v2508 = vtanh.pop %v2468
    %v2509 = vxor.u32 %v2469, 2147483648
    %v2510 = vmul.f32 %v2509, 1.442695
    %v2511 = vpow.pop %v2510
    %v2512 = vadd.f32 %v2511, 1.0
    %v2513 = vrcp.pop %v2512
    %v2514 = vmul.f32 %v2512, %v2513
    %v2515 = vsub.f32 1.0, %v2514
    %v2516 = vmul.f32 %v2513, %v2515
    %v2517 = vadd.f32 %v2513, %v2516
    %vm2518 = vweird.f32 %v2512
    %vm2519 = vweird.f32 %v2513
    %vm2520 = vmor %vm2518, %vm2519
    %v2521 = vsel %vm2520, %v2513, %v2517
    %v2522 = vand.u32 2147483647, %v2512
    %vm2523 = vcmp.eq.f32.partialorder %v2522, 8.507059e+37
    %v2524 = vand.u32 %v2512, 2147483648
    %v2525 = vor.u32 1.1754944e-38, %v2524
    %v2526 = vsel %vm2523, %v2525, %v2521
    %v2527 = vmul.f32 1.0, %v2526
    %v2528 = vmul.f32 %v2507, %v1515
    %v2529 = vmul.f32 %v2488, %v2508
    %v2530 = vadd.f32 %v2528, %v2529
    %v2531 = vtanh.pop %v2530
    %v2532 = vmul.f32 %v2527, %v2531
    %v2533 = vpack.c.bf16 %v1677, %v1677
    %v2534 = vpack.c.bf16 %v1625, %v1625
    %2536 = vrot.lane.b32.xlu0 %v2534, 32
    %v2537 = vpop.permute.xlu0 %2536
    %v2539 = vsel %vm776, %v2537, 0
    %2541 = vmatpush.bf16.msra.mxu0 0
    %2542 = vmatpush.bf16.msra.mxu0 0
    %2543 = vmatpush.bf16.msra.mxu0 0
    %2544 = vmatpush.bf16.msra.mxu0 0
    %2545 = vmatpush.bf16.msra.mxu0 0
    %2546 = vmatpush.bf16.msra.mxu0 0
    %2547 = vmatpush.bf16.msra.mxu0 %v1536
    %2548 = vmatpush.bf16.msra.mxu0 %v1535
    %2549 = vmatmul.bf16.gmra.mxu0 %v2539
    %v2550 = vpop.f32.mrf.mxu0
    %v2551 = vadd.f32 0.0, %v2550
    %v2552 = vpop.f32.mrf.mxu0
    %2553 = vdwg.mxu0
    %2555 = vrot.lane.b32.xlu0 %v2533, 32
    %v2556 = vpop.permute.xlu0 %2555
    %v2558 = vsel %vm776, %v2556, 0
    %2560 = vmatpush.bf16.msra.mxu0 0
    %2561 = vmatpush.bf16.msra.mxu0 0
    %2562 = vmatpush.bf16.msra.mxu0 0
    %2563 = vmatpush.bf16.msra.mxu0 0
    %2564 = vmatpush.bf16.msra.mxu0 0
    %2565 = vmatpush.bf16.msra.mxu0 0
    %2566 = vmatpush.bf16.msra.mxu0 %v1564
    %2567 = vmatpush.bf16.msra.mxu0 %v1563
    %2568 = vmatmul.bf16.gmra.mxu0 %v2558
    %v2569 = vpop.f32.mrf.mxu0
    %v2570 = vadd.f32 %v2551, %v2569
    %v2571 = vpop.f32.mrf.mxu0
    %2572 = vdwg.mxu0
    %v2573 = vadd.f32 %v2570, %v1586
    %v2574 = vxor.u32 %v2573, 2147483648
    %v2575 = vmul.f32 %v2574, 1.442695
    %v2576 = vpow.pop %v2575
    %v2577 = vadd.f32 %v2576, 1.0
    %v2578 = vrcp.pop %v2577
    %v2579 = vmul.f32 %v2577, %v2578
    %v2580 = vsub.f32 1.0, %v2579
    %v2581 = vmul.f32 %v2578, %v2580
    %v2582 = vadd.f32 %v2578, %v2581
    %vm2583 = vweird.f32 %v2577
    %vm2584 = vweird.f32 %v2578
    %vm2585 = vmor %vm2583, %vm2584
    %v2586 = vsel %vm2585, %v2578, %v2582
    %v2587 = vand.u32 2147483647, %v2577
    %vm2588 = vcmp.eq.f32.partialorder %v2587, 8.507059e+37
    %v2589 = vand.u32 %v2577, 2147483648
    %v2590 = vor.u32 1.1754944e-38, %v2589
    %v2591 = vsel %vm2588, %v2590, %v2586
    %v2592 = vmul.f32 1.0, %v2591
    %v2593 = vtanh.pop %v2573
    %v2594 = vmul.f32 %v2592, %v1619
    %2596 = vrot.lane.b32.xlu0 %v2593, 64
    %v2597 = vpop.permute.xlu0 %2596
    %v2599 = vmul.f32 %v2592, %v2597
    %2601 = vrot.lane.b32.xlu0 %v2599, 32
    %v2602 = vpop.permute.xlu0 %2601
    %v2604 = vadd.f32 %v2594, %v2602
    %v2605 = vtanh.pop %v2604
    %2607 = vrot.lane.b32.xlu0 %v2605, 64
    %v2608 = vpop.permute.xlu0 %2607
    %v2610 = vmul.f32 %v2592, %v2608
    %v2611 = vld [vmem:[#allocation3 + $0x10] sm:$0xff]
    %2612 = vmatpush.bf16.msra.mxu0 0
    %2613 = vmatpush.bf16.msra.mxu0 0
    %2614 = vmatpush.bf16.msra.mxu0 0
    %2615 = vmatpush.bf16.msra.mxu0 0
    %2616 = vmatpush.bf16.msra.mxu0 0
    %2617 = vmatpush.bf16.msra.mxu0 0
    %2618 = vmatpush.bf16.msra.mxu0 %v773
    %2619 = vmatpush.bf16.msra.mxu0 %v772
    %2620 = vmatmul.bf16.gmra.mxu0 %v2558
    %v2621 = vpop.f32.mrf.mxu0
    %v2622 = vadd.f32 0.0, %v2621
    %v2623 = vpop.f32.mrf.mxu0
    %2624 = vdwg.mxu0
    %v2625 = vadd.f32 %v2611, %v2622
    %v2626 = vxor.u32 %v2625, 2147483648
    %v2627 = vmul.f32 %v2626, 1.442695
    %v2628 = vpow.pop %v2627
    %v2629 = vadd.f32 %v2628, 1.0
    %v2630 = vrcp.pop %v2629
    %v2631 = vmul.f32 %v2629, %v2630
    %v2632 = vsub.f32 1.0, %v2631
    %v2633 = vmul.f32 %v2630, %v2632
    %v2634 = vadd.f32 %v2630, %v2633
    %vm2635 = vweird.f32 %v2629
    %vm2636 = vweird.f32 %v2630
    %vm2637 = vmor %vm2635, %vm2636
    %v2638 = vsel %vm2637, %v2630, %v2634
    %v2639 = vand.u32 2147483647, %v2629
    %vm2640 = vcmp.eq.f32.partialorder %v2639, 8.507059e+37
    %v2641 = vand.u32 %v2629, 2147483648
    %v2642 = vor.u32 1.1754944e-38, %v2641
    %v2643 = vsel %vm2640, %v2642, %v2638
    %v2644 = vmul.f32 1.0, %v2643
    %v2645 = vtanh.pop %v2625
    %v2646 = vmul.f32 %v2644, %v1671
    %2648 = vrot.lane.b32.xlu0 %v2645, 64
    %v2649 = vpop.permute.xlu0 %2648
    %v2651 = vmul.f32 %v2644, %v2649
    %2653 = vrot.lane.b32.xlu0 %v2651, 32
    %v2654 = vpop.permute.xlu0 %2653
    %v2656 = vadd.f32 %v2646, %v2654
    %v2657 = vtanh.pop %v2656
    %2659 = vrot.lane.b32.xlu0 %v2657, 64
    %v2660 = vpop.permute.xlu0 %2659
    %v2662 = vmul.f32 %v2644, %v2660
    %v2663 = vpack.c.bf16 %v2241, %v2241
    %s2664 = scalar_lea.vmem [#allocation7], 1024
    %v2665 = vld [vmem:[%s2664] sm:$0xff]
    %v2666 = vld [vmem:[%s2664 + $0x8] sm:$0xff]
    %v2667 = vld [vmem:[%s2664 + $0x10] sm:$0xff]
    %v2668 = vld [vmem:[%s2664 + $0x18] sm:$0xff]
    %v2669 = vld [vmem:[%s2664 + $0x20] sm:$0xff]
    %v2670 = vld [vmem:[%s2664 + $0x28] sm:$0xff]
    %v2671 = vld [vmem:[%s2664 + $0x30] sm:$0xff]
    %v2672 = vld [vmem:[%s2664 + $0x38] sm:$0xff]
    %v2673 = vld [vmem:[%s2664 + $0x40] sm:$0xff]
    %v2674 = vld [vmem:[%s2664 + $0x48] sm:$0xff]
    %v2675 = vld [vmem:[%s2664 + $0x50] sm:$0xff]
    %v2676 = vld [vmem:[%s2664 + $0x58] sm:$0xff]
    %v2677 = vld [vmem:[%s2664 + $0x60] sm:$0xff]
    %v2678 = vld [vmem:[%s2664 + $0x68] sm:$0xff]
    %v2679 = vld [vmem:[%s2664 + $0x70] sm:$0xff]
    %v2680 = vld [vmem:[%s2664 + $0x78] sm:$0xff]
    %v2681 = vld [vmem:[%s2664 + $0x80] sm:$0xff]
    %v2682 = vld [vmem:[%s2664 + $0x88] sm:$0xff]
    %v2683 = vld [vmem:[%s2664 + $0x90] sm:$0xff]
    %v2684 = vld [vmem:[%s2664 + $0x98] sm:$0xff]
    %v2685 = vld [vmem:[%s2664 + $0xa0] sm:$0xff]
    %v2686 = vld [vmem:[%s2664 + $0xa8] sm:$0xff]
    %v2687 = vld [vmem:[%s2664 + $0xb0] sm:$0xff]
    %v2688 = vld [vmem:[%s2664 + $0xb8] sm:$0xff]
    %v2689 = vld [vmem:[%s2664 + $0xc0] sm:$0xff]
    %v2690 = vld [vmem:[%s2664 + $0xc8] sm:$0xff]
    %v2691 = vld [vmem:[%s2664 + $0xd0] sm:$0xff]
    %v2692 = vld [vmem:[%s2664 + $0xd8] sm:$0xff]
    %v2693 = vld [vmem:[%s2664 + $0xe0] sm:$0xff]
    %v2694 = vld [vmem:[%s2664 + $0xe8] sm:$0xff]
    %v2695 = vld [vmem:[%s2664 + $0xf0] sm:$0xff]
    %v2696 = vld [vmem:[%s2664 + $0xf8] sm:$0xff]
    %v2697 = vld [vmem:[%s2664 + $0x100] sm:$0xff]
    %v2698 = vld [vmem:[%s2664 + $0x108] sm:$0xff]
    %v2699 = vld [vmem:[%s2664 + $0x110] sm:$0xff]
    %v2700 = vld [vmem:[%s2664 + $0x118] sm:$0xff]
    %v2701 = vld [vmem:[%s2664 + $0x120] sm:$0xff]
    %v2702 = vld [vmem:[%s2664 + $0x128] sm:$0xff]
    %v2703 = vld [vmem:[%s2664 + $0x130] sm:$0xff]
    %v2704 = vld [vmem:[%s2664 + $0x138] sm:$0xff]
    %v2705 = vld [vmem:[%s2664 + $0x140] sm:$0xff]
    %v2706 = vld [vmem:[%s2664 + $0x148] sm:$0xff]
    %v2707 = vld [vmem:[%s2664 + $0x150] sm:$0xff]
    %v2708 = vld [vmem:[%s2664 + $0x158] sm:$0xff]
    %v2709 = vld [vmem:[%s2664 + $0x160] sm:$0xff]
    %v2710 = vld [vmem:[%s2664 + $0x168] sm:$0xff]
    %v2711 = vld [vmem:[%s2664 + $0x170] sm:$0xff]
    %v2712 = vld [vmem:[%s2664 + $0x178] sm:$0xff]
    %v2713 = vld [vmem:[%s2664 + $0x180] sm:$0xff]
    %v2714 = vld [vmem:[%s2664 + $0x188] sm:$0xff]
    %v2715 = vld [vmem:[%s2664 + $0x190] sm:$0xff]
    %v2716 = vld [vmem:[%s2664 + $0x198] sm:$0xff]
    %v2717 = vld [vmem:[%s2664 + $0x1a0] sm:$0xff]
    %v2718 = vld [vmem:[%s2664 + $0x1a8] sm:$0xff]
    %v2719 = vld [vmem:[%s2664 + $0x1b0] sm:$0xff]
    %v2720 = vld [vmem:[%s2664 + $0x1b8] sm:$0xff]
    %v2721 = vld [vmem:[%s2664 + $0x1c0] sm:$0xff]
    %v2722 = vld [vmem:[%s2664 + $0x1c8] sm:$0xff]
    %v2723 = vld [vmem:[%s2664 + $0x1d0] sm:$0xff]
    %v2724 = vld [vmem:[%s2664 + $0x1d8] sm:$0xff]
    %v2725 = vld [vmem:[%s2664 + $0x1e0] sm:$0xff]
    %v2726 = vld [vmem:[%s2664 + $0x1e8] sm:$0xff]
    %v2727 = vld [vmem:[%s2664 + $0x1f0] sm:$0xff]
    %v2728 = vld [vmem:[%s2664 + $0x1f8] sm:$0xff]
    %s2729 = scalar_lea.vmem %s5, 12
    %v2730 = vld [vmem:[%s2729] sm:$0xf]
    %v2732 = vperm.slane %v2730, 0
    %v2733 = vperm.slane %v2730, 1
    %v2734 = vperm.slane %v2730, 2
    %v2735 = vperm.slane %v2730, 3
    %v2804 = vunpack.c.l.b16 %v2665
    %v2805 = vunpack.c.h.b16 %v2665
    %v2806 = vunpack.c.l.b16 %v2666
    %v2807 = vunpack.c.h.b16 %v2666
    %v2808 = vunpack.c.l.b16 %v2667
    %v2809 = vunpack.c.h.b16 %v2667
    %v2810 = vunpack.c.l.b16 %v2668
    %v2811 = vunpack.c.h.b16 %v2668
    %v2812 = vunpack.c.l.b16 %v2669
    %v2813 = vunpack.c.h.b16 %v2669
    %v2814 = vunpack.c.l.b16 %v2670
    %v2815 = vunpack.c.h.b16 %v2670
    %v2816 = vunpack.c.l.b16 %v2671
    %v2817 = vunpack.c.h.b16 %v2671
    %v2818 = vunpack.c.l.b16 %v2672
    %v2819 = vunpack.c.h.b16 %v2672
    %v2820 = vunpack.c.l.b16 %v2673
    %v2821 = vunpack.c.h.b16 %v2673
    %v2822 = vunpack.c.l.b16 %v2674
    %v2823 = vunpack.c.h.b16 %v2674
    %v2824 = vunpack.c.l.b16 %v2675
    %v2825 = vunpack.c.h.b16 %v2675
    %v2826 = vunpack.c.l.b16 %v2676
    %v2827 = vunpack.c.h.b16 %v2676
    %v2828 = vunpack.c.l.b16 %v2677
    %v2829 = vunpack.c.h.b16 %v2677
    %v2830 = vunpack.c.l.b16 %v2678
    %v2831 = vunpack.c.h.b16 %v2678
    %v2832 = vunpack.c.l.b16 %v2679
    %v2833 = vunpack.c.h.b16 %v2679
    %v2834 = vunpack.c.l.b16 %v2680
    %v2835 = vunpack.c.h.b16 %v2680
    %v2836 = vunpack.c.l.b16 %v2681
    %v2837 = vunpack.c.h.b16 %v2681
    %v2838 = vunpack.c.l.b16 %v2682
    %v2839 = vunpack.c.h.b16 %v2682
    %v2840 = vunpack.c.l.b16 %v2683
    %v2841 = vunpack.c.h.b16 %v2683
    %v2842 = vunpack.c.l.b16 %v2684
    %v2843 = vunpack.c.h.b16 %v2684
    %v2844 = vunpack.c.l.b16 %v2685
    %v2845 = vunpack.c.h.b16 %v2685
    %v2846 = vunpack.c.l.b16 %v2686
    %v2847 = vunpack.c.h.b16 %v2686
    %v2848 = vunpack.c.l.b16 %v2687
    %v2849 = vunpack.c.h.b16 %v2687
    %v2850 = vunpack.c.l.b16 %v2688
    %v2851 = vunpack.c.h.b16 %v2688
    %v2852 = vunpack.c.l.b16 %v2689
    %v2853 = vunpack.c.h.b16 %v2689
    %v2854 = vunpack.c.l.b16 %v2690
    %v2855 = vunpack.c.h.b16 %v2690
    %v2856 = vunpack.c.l.b16 %v2691
    %v2857 = vunpack.c.h.b16 %v2691
    %v2858 = vunpack.c.l.b16 %v2692
    %v2859 = vunpack.c.h.b16 %v2692
    %v2860 = vunpack.c.l.b16 %v2693
    %v2861 = vunpack.c.h.b16 %v2693
    %v2862 = vunpack.c.l.b16 %v2694
    %v2863 = vunpack.c.h.b16 %v2694
    %v2864 = vunpack.c.l.b16 %v2695
    %v2865 = vunpack.c.h.b16 %v2695
    %v2866 = vunpack.c.l.b16 %v2696
    %v2867 = vunpack.c.h.b16 %v2696
    %v2868 = vunpack.c.l.b16 %v2697
    %v2869 = vunpack.c.h.b16 %v2697
    %v2870 = vunpack.c.l.b16 %v2698
    %v2871 = vunpack.c.h.b16 %v2698
    %v2872 = vunpack.c.l.b16 %v2699
    %v2873 = vunpack.c.h.b16 %v2699
    %v2874 = vunpack.c.l.b16 %v2700
    %v2875 = vunpack.c.h.b16 %v2700
    %v2876 = vunpack.c.l.b16 %v2701
    %v2877 = vunpack.c.h.b16 %v2701
    %v2878 = vunpack.c.l.b16 %v2702
    %v2879 = vunpack.c.h.b16 %v2702
    %v2880 = vunpack.c.l.b16 %v2703
    %v2881 = vunpack.c.h.b16 %v2703
    %v2882 = vunpack.c.l.b16 %v2704
    %v2883 = vunpack.c.h.b16 %v2704
    %v2884 = vunpack.c.l.b16 %v2705
    %v2885 = vunpack.c.h.b16 %v2705
    %v2886 = vunpack.c.l.b16 %v2706
    %v2887 = vunpack.c.h.b16 %v2706
    %v2888 = vunpack.c.l.b16 %v2707
    %v2889 = vunpack.c.h.b16 %v2707
    %v2890 = vunpack.c.l.b16 %v2708
    %v2891 = vunpack.c.h.b16 %v2708
    %v2892 = vunpack.c.l.b16 %v2709
    %v2893 = vunpack.c.h.b16 %v2709
    %v2894 = vunpack.c.l.b16 %v2710
    %v2895 = vunpack.c.h.b16 %v2710
    %v2896 = vunpack.c.l.b16 %v2711
    %v2897 = vunpack.c.h.b16 %v2711
    %v2898 = vunpack.c.l.b16 %v2712
    %v2899 = vunpack.c.h.b16 %v2712
    %v2900 = vunpack.c.l.b16 %v2713
    %v2901 = vunpack.c.h.b16 %v2713
    %v2902 = vunpack.c.l.b16 %v2714
    %v2903 = vunpack.c.h.b16 %v2714
    %v2904 = vunpack.c.l.b16 %v2715
    %v2905 = vunpack.c.h.b16 %v2715
    %v2906 = vunpack.c.l.b16 %v2716
    %v2907 = vunpack.c.h.b16 %v2716
    %v2908 = vunpack.c.l.b16 %v2717
    %v2909 = vunpack.c.h.b16 %v2717
    %v2910 = vunpack.c.l.b16 %v2718
    %v2911 = vunpack.c.h.b16 %v2718
    %v2912 = vunpack.c.l.b16 %v2719
    %v2913 = vunpack.c.h.b16 %v2719
    %v2914 = vunpack.c.l.b16 %v2720
    %v2915 = vunpack.c.h.b16 %v2720
    %v2916 = vunpack.c.l.b16 %v2721
    %v2917 = vunpack.c.h.b16 %v2721
    %v2918 = vunpack.c.l.b16 %v2722
    %v2919 = vunpack.c.h.b16 %v2722
    %v2920 = vunpack.c.l.b16 %v2723
    %v2921 = vunpack.c.h.b16 %v2723
    %v2922 = vunpack.c.l.b16 %v2724
    %v2923 = vunpack.c.h.b16 %v2724
    %v2924 = vunpack.c.l.b16 %v2725
    %v2925 = vunpack.c.h.b16 %v2725
    %v2926 = vunpack.c.l.b16 %v2726
    %v2927 = vunpack.c.h.b16 %v2726
    %v2928 = vunpack.c.l.b16 %v2727
    %v2929 = vunpack.c.h.b16 %v2727
    %v2930 = vunpack.c.l.b16 %v2728
    %v2931 = vunpack.c.h.b16 %v2728
    %v2932 = vpack.c.b16 %v2808, %v2804
    %v2933 = vpack.c.b16 %v2809, %v2805
    %v2934 = vpack.c.b16 %v2810, %v2806
    %v2935 = vpack.c.b16 %v2811, %v2807
    %v2936 = vpack.c.b16 %v2816, %v2812
    %v2937 = vpack.c.b16 %v2817, %v2813
    %v2938 = vpack.c.b16 %v2818, %v2814
    %v2939 = vpack.c.b16 %v2819, %v2815
    %v2940 = vpack.c.b16 %v2824, %v2820
    %v2941 = vpack.c.b16 %v2825, %v2821
    %v2942 = vpack.c.b16 %v2826, %v2822
    %v2943 = vpack.c.b16 %v2827, %v2823
    %v2944 = vpack.c.b16 %v2832, %v2828
    %v2945 = vpack.c.b16 %v2833, %v2829
    %v2946 = vpack.c.b16 %v2834, %v2830
    %v2947 = vpack.c.b16 %v2835, %v2831
    %v2948 = vpack.c.b16 %v2840, %v2836
    %v2949 = vpack.c.b16 %v2841, %v2837
    %v2950 = vpack.c.b16 %v2842, %v2838
    %v2951 = vpack.c.b16 %v2843, %v2839
    %v2952 = vpack.c.b16 %v2848, %v2844
    %v2953 = vpack.c.b16 %v2849, %v2845
    %v2954 = vpack.c.b16 %v2850, %v2846
    %v2955 = vpack.c.b16 %v2851, %v2847
    %v2956 = vpack.c.b16 %v2856, %v2852
    %v2957 = vpack.c.b16 %v2857, %v2853
    %v2958 = vpack.c.b16 %v2858, %v2854
    %v2959 = vpack.c.b16 %v2859, %v2855
    %v2960 = vpack.c.b16 %v2864, %v2860
    %v2961 = vpack.c.b16 %v2865, %v2861
    %v2962 = vpack.c.b16 %v2866, %v2862
    %v2963 = vpack.c.b16 %v2867, %v2863
    %v2964 = vpack.c.b16 %v2872, %v2868
    %v2965 = vpack.c.b16 %v2873, %v2869
    %v2966 = vpack.c.b16 %v2874, %v2870
    %v2967 = vpack.c.b16 %v2875, %v2871
    %v2968 = vpack.c.b16 %v2880, %v2876
    %v2969 = vpack.c.b16 %v2881, %v2877
    %v2970 = vpack.c.b16 %v2882, %v2878
    %v2971 = vpack.c.b16 %v2883, %v2879
    %v2972 = vpack.c.b16 %v2888, %v2884
    %v2973 = vpack.c.b16 %v2889, %v2885
    %v2974 = vpack.c.b16 %v2890, %v2886
    %v2975 = vpack.c.b16 %v2891, %v2887
    %v2976 = vpack.c.b16 %v2896, %v2892
    %v2977 = vpack.c.b16 %v2897, %v2893
    %v2978 = vpack.c.b16 %v2898, %v2894
    %v2979 = vpack.c.b16 %v2899, %v2895
    %v2980 = vpack.c.b16 %v2904, %v2900
    %v2981 = vpack.c.b16 %v2905, %v2901
    %v2982 = vpack.c.b16 %v2906, %v2902
    %v2983 = vpack.c.b16 %v2907, %v2903
    %v2984 = vpack.c.b16 %v2912, %v2908
    %v2985 = vpack.c.b16 %v2913, %v2909
    %v2986 = vpack.c.b16 %v2914, %v2910
    %v2987 = vpack.c.b16 %v2915, %v2911
    %v2988 = vpack.c.b16 %v2920, %v2916
    %v2989 = vpack.c.b16 %v2921, %v2917
    %v2990 = vpack.c.b16 %v2922, %v2918
    %v2991 = vpack.c.b16 %v2923, %v2919
    %v2992 = vpack.c.b16 %v2928, %v2924
    %v2993 = vpack.c.b16 %v2929, %v2925
    %v2994 = vpack.c.b16 %v2930, %v2926
    %v2995 = vpack.c.b16 %v2931, %v2927
    %3060 = vmatpush.bf16.msra.mxu0 %v2960
    %3061 = vmatpush.bf16.msra.mxu0 %v2956
    %3062 = vmatpush.bf16.msra.mxu0 %v2952
    %3063 = vmatpush.bf16.msra.mxu0 %v2948
    %3064 = vmatpush.bf16.msra.mxu0 %v2944
    %3065 = vmatpush.bf16.msra.mxu0 %v2940
    %3066 = vmatpush.bf16.msra.mxu0 %v2936
    %3067 = vmatpush.bf16.msra.mxu0 %v2932
    %3068 = vmatmul.bf16.gmra.mxu0 %v2663
    %v3069 = vpop.f32.mrf.mxu0
    %v3070 = vadd.f32 %v2732, %v3069
    %v3071 = vpop.f32.mrf.mxu0
    %3072 = vdwg.mxu0
    %3073 = vmatpush.bf16.msra.mxu0 %v2992
    %3074 = vmatpush.bf16.msra.mxu0 %v2988
    %3075 = vmatpush.bf16.msra.mxu0 %v2984
    %3076 = vmatpush.bf16.msra.mxu0 %v2980
    %3077 = vmatpush.bf16.msra.mxu0 %v2976
    %3078 = vmatpush.bf16.msra.mxu0 %v2972
    %3079 = vmatpush.bf16.msra.mxu0 %v2968
    %3080 = vmatpush.bf16.msra.mxu0 %v2964
    %3081 = vmatmul.bf16.gmra.mxu0 %v832
    %v3082 = vpop.f32.mrf.mxu0
    %v3083 = vadd.f32 %v3070, %v3082
    %v3084 = vpop.f32.mrf.mxu0
    %3085 = vdwg.mxu0
    %3086 = vmatpush.bf16.msra.mxu0 %v2961
    %3087 = vmatpush.bf16.msra.mxu0 %v2957
    %3088 = vmatpush.bf16.msra.mxu0 %v2953
    %3089 = vmatpush.bf16.msra.mxu0 %v2949
    %3090 = vmatpush.bf16.msra.mxu0 %v2945
    %3091 = vmatpush.bf16.msra.mxu0 %v2941
    %3092 = vmatpush.bf16.msra.mxu0 %v2937
    %3093 = vmatpush.bf16.msra.mxu0 %v2933
    %3094 = vmatmul.bf16.gmra.mxu0 %v2663
    %v3095 = vpop.f32.mrf.mxu0
    %v3096 = vadd.f32 %v2733, %v3095
    %v3097 = vpop.f32.mrf.mxu0
    %3098 = vdwg.mxu0
    %3099 = vmatpush.bf16.msra.mxu0 %v2993
    %3100 = vmatpush.bf16.msra.mxu0 %v2989
    %3101 = vmatpush.bf16.msra.mxu0 %v2985
    %3102 = vmatpush.bf16.msra.mxu0 %v2981
    %3103 = vmatpush.bf16.msra.mxu0 %v2977
    %3104 = vmatpush.bf16.msra.mxu0 %v2973
    %3105 = vmatpush.bf16.msra.mxu0 %v2969
    %3106 = vmatpush.bf16.msra.mxu0 %v2965
    %3107 = vmatmul.bf16.gmra.mxu0 %v832
    %v3108 = vpop.f32.mrf.mxu0
    %v3109 = vadd.f32 %v3096, %v3108
    %v3110 = vpop.f32.mrf.mxu0
    %3111 = vdwg.mxu0
    %3112 = vmatpush.bf16.msra.mxu0 %v2962
    %3113 = vmatpush.bf16.msra.mxu0 %v2958
    %3114 = vmatpush.bf16.msra.mxu0 %v2954
    %3115 = vmatpush.bf16.msra.mxu0 %v2950
    %3116 = vmatpush.bf16.msra.mxu0 %v2946
    %3117 = vmatpush.bf16.msra.mxu0 %v2942
    %3118 = vmatpush.bf16.msra.mxu0 %v2938
    %3119 = vmatpush.bf16.msra.mxu0 %v2934
    %3120 = vmatmul.bf16.gmra.mxu0 %v2663
    %v3121 = vpop.f32.mrf.mxu0
    %v3122 = vadd.f32 %v2734, %v3121
    %v3123 = vpop.f32.mrf.mxu0
    %3124 = vdwg.mxu0
    %3125 = vmatpush.bf16.msra.mxu0 %v2994
    %3126 = vmatpush.bf16.msra.mxu0 %v2990
    %3127 = vmatpush.bf16.msra.mxu0 %v2986
    %3128 = vmatpush.bf16.msra.mxu0 %v2982
    %3129 = vmatpush.bf16.msra.mxu0 %v2978
    %3130 = vmatpush.bf16.msra.mxu0 %v2974
    %3131 = vmatpush.bf16.msra.mxu0 %v2970
    %3132 = vmatpush.bf16.msra.mxu0 %v2966
    %3133 = vmatmul.bf16.gmra.mxu0 %v832
    %v3134 = vpop.f32.mrf.mxu0
    %v3135 = vadd.f32 %v3122, %v3134
    %v3136 = vpop.f32.mrf.mxu0
    %3137 = vdwg.mxu0
    %3138 = vmatpush.bf16.msra.mxu0 %v2963
    %3139 = vmatpush.bf16.msra.mxu0 %v2959
    %3140 = vmatpush.bf16.msra.mxu0 %v2955
    %3141 = vmatpush.bf16.msra.mxu0 %v2951
    %3142 = vmatpush.bf16.msra.mxu0 %v2947
    %3143 = vmatpush.bf16.msra.mxu0 %v2943
    %3144 = vmatpush.bf16.msra.mxu0 %v2939
    %3145 = vmatpush.bf16.msra.mxu0 %v2935
    %3146 = vmatmul.bf16.gmra.mxu0 %v2663
    %v3147 = vpop.f32.mrf.mxu0
    %v3148 = vadd.f32 %v2735, %v3147
    %v3149 = vpop.f32.mrf.mxu0
    %3150 = vdwg.mxu0
    %3151 = vmatpush.bf16.msra.mxu0 %v2995
    %3152 = vmatpush.bf16.msra.mxu0 %v2991
    %3153 = vmatpush.bf16.msra.mxu0 %v2987
    %3154 = vmatpush.bf16.msra.mxu0 %v2983
    %3155 = vmatpush.bf16.msra.mxu0 %v2979
    %3156 = vmatpush.bf16.msra.mxu0 %v2975
    %3157 = vmatpush.bf16.msra.mxu0 %v2971
    %3158 = vmatpush.bf16.msra.mxu0 %v2967
    %3159 = vmatmul.bf16.gmra.mxu0 %v832
    %v3160 = vpop.f32.mrf.mxu0
    %v3161 = vadd.f32 %v3148, %v3160
    %v3162 = vpop.f32.mrf.mxu0
    %3163 = vdwg.mxu0
    %v3164 = vxor.u32 %v3083, 2147483648
    %v3165 = vmul.f32 %v3164, 1.442695
    %v3166 = vpow.pop %v3165
    %v3167 = vadd.f32 %v3166, 1.0
    %v3168 = vrcp.pop %v3167
    %v3169 = vmul.f32 %v3167, %v3168
    %v3170 = vsub.f32 1.0, %v3169
    %v3171 = vmul.f32 %v3168, %v3170
    %v3172 = vadd.f32 %v3168, %v3171
    %vm3173 = vweird.f32 %v3167
    %vm3174 = vweird.f32 %v3168
    %vm3175 = vmor %vm3173, %vm3174
    %v3176 = vsel %vm3175, %v3168, %v3172
    %v3177 = vand.u32 2147483647, %v3167
    %vm3178 = vcmp.eq.f32.partialorder %v3177, 8.507059e+37
    %v3179 = vand.u32 %v3167, 2147483648
    %v3180 = vor.u32 1.1754944e-38, %v3179
    %v3181 = vsel %vm3178, %v3180, %v3176
    %v3182 = vmul.f32 1.0, %v3181
    %v3183 = vxor.u32 %v3109, 2147483648
    %v3184 = vmul.f32 %v3183, 1.442695
    %v3185 = vpow.pop %v3184
    %v3186 = vadd.f32 %v3185, 1.0
    %v3187 = vrcp.pop %v3186
    %v3188 = vmul.f32 %v3186, %v3187
    %v3189 = vsub.f32 1.0, %v3188
    %v3190 = vmul.f32 %v3187, %v3189
    %v3191 = vadd.f32 %v3187, %v3190
    %vm3192 = vweird.f32 %v3186
    %vm3193 = vweird.f32 %v3187
    %vm3194 = vmor %vm3192, %vm3193
    %v3195 = vsel %vm3194, %v3187, %v3191
    %v3196 = vand.u32 2147483647, %v3186
    %vm3197 = vcmp.eq.f32.partialorder %v3196, 8.507059e+37
    %v3198 = vand.u32 %v3186, 2147483648
    %v3199 = vor.u32 1.1754944e-38, %v3198
    %v3200 = vsel %vm3197, %v3199, %v3195
    %v3201 = vmul.f32 1.0, %v3200
    %v3202 = vtanh.pop %v3135
    %v3203 = vxor.u32 %v3161, 2147483648
    %v3204 = vmul.f32 %v3203, 1.442695
    %v3205 = vpow.pop %v3204
    %v3206 = vadd.f32 %v3205, 1.0
    %v3207 = vrcp.pop %v3206
    %v3208 = vmul.f32 %v3206, %v3207
    %v3209 = vsub.f32 1.0, %v3208
    %v3210 = vmul.f32 %v3207, %v3209
    %v3211 = vadd.f32 %v3207, %v3210
    %vm3212 = vweird.f32 %v3206
    %vm3213 = vweird.f32 %v3207
    %vm3214 = vmor %vm3212, %vm3213
    %v3215 = vsel %vm3214, %v3207, %v3211
    %v3216 = vand.u32 2147483647, %v3206
    %vm3217 = vcmp.eq.f32.partialorder %v3216, 8.507059e+37
    %v3218 = vand.u32 %v3206, 2147483648
    %v3219 = vor.u32 1.1754944e-38, %v3218
    %v3220 = vsel %vm3217, %v3219, %v3215
    %v3221 = vmul.f32 1.0, %v3220
    %v3222 = vmul.f32 %v3201, 0.0
    %v3223 = vmul.f32 %v3182, %v3202
    %v3224 = vadd.f32 %v3222, %v3223
    %v3225 = vtanh.pop %v3224
    %v3226 = vmul.f32 %v3221, %v3225
    %v3227 = vpack.c.bf16 %v2409, %v2409
    %3228 = vmatpush.bf16.msra.mxu0 %v1975
    %3229 = vmatpush.bf16.msra.mxu0 %v1971
    %3230 = vmatpush.bf16.msra.mxu0 %v1967
    %3231 = vmatpush.bf16.msra.mxu0 %v1963
    %3232 = vmatpush.bf16.msra.mxu0 %v1959
    %3233 = vmatpush.bf16.msra.mxu0 %v1955
    %3234 = vmatpush.bf16.msra.mxu0 %v1951
    %3235 = vmatpush.bf16.msra.mxu0 %v1947
    %3236 = vmatmul.bf16.gmra.mxu0 %v3227
    %v3237 = vpop.f32.mrf.mxu0
    %v3238 = vadd.f32 %v1747, %v3237
    %v3239 = vpop.f32.mrf.mxu0
    %3240 = vdwg.mxu0
    %3241 = vmatpush.bf16.msra.mxu0 %v2007
    %3242 = vmatpush.bf16.msra.mxu0 %v2003
    %3243 = vmatpush.bf16.msra.mxu0 %v1999
    %3244 = vmatpush.bf16.msra.mxu0 %v1995
    %3245 = vmatpush.bf16.msra.mxu0 %v1991
    %3246 = vmatpush.bf16.msra.mxu0 %v1987
    %3247 = vmatpush.bf16.msra.mxu0 %v1983
    %3248 = vmatpush.bf16.msra.mxu0 %v1979
    %3249 = vmatmul.bf16.gmra.mxu0 %v2663
    %v3250 = vpop.f32.mrf.mxu0
    %v3251 = vadd.f32 %v3238, %v3250
    %v3252 = vpop.f32.mrf.mxu0
    %3253 = vdwg.mxu0
    %3254 = vmatpush.bf16.msra.mxu0 %v1976
    %3255 = vmatpush.bf16.msra.mxu0 %v1972
    %3256 = vmatpush.bf16.msra.mxu0 %v1968
    %3257 = vmatpush.bf16.msra.mxu0 %v1964
    %3258 = vmatpush.bf16.msra.mxu0 %v1960
    %3259 = vmatpush.bf16.msra.mxu0 %v1956
    %3260 = vmatpush.bf16.msra.mxu0 %v1952
    %3261 = vmatpush.bf16.msra.mxu0 %v1948
    %3262 = vmatmul.bf16.gmra.mxu0 %v3227
    %v3263 = vpop.f32.mrf.mxu0
    %v3264 = vadd.f32 %v1748, %v3263
    %v3265 = vpop.f32.mrf.mxu0
    %3266 = vdwg.mxu0
    %3267 = vmatpush.bf16.msra.mxu0 %v2008
    %3268 = vmatpush.bf16.msra.mxu0 %v2004
    %3269 = vmatpush.bf16.msra.mxu0 %v2000
    %3270 = vmatpush.bf16.msra.mxu0 %v1996
    %3271 = vmatpush.bf16.msra.mxu0 %v1992
    %3272 = vmatpush.bf16.msra.mxu0 %v1988
    %3273 = vmatpush.bf16.msra.mxu0 %v1984
    %3274 = vmatpush.bf16.msra.mxu0 %v1980
    %3275 = vmatmul.bf16.gmra.mxu0 %v2663
    %v3276 = vpop.f32.mrf.mxu0
    %v3277 = vadd.f32 %v3264, %v3276
    %v3278 = vpop.f32.mrf.mxu0
    %3279 = vdwg.mxu0
    %3280 = vmatpush.bf16.msra.mxu0 %v1977
    %3281 = vmatpush.bf16.msra.mxu0 %v1973
    %3282 = vmatpush.bf16.msra.mxu0 %v1969
    %3283 = vmatpush.bf16.msra.mxu0 %v1965
    %3284 = vmatpush.bf16.msra.mxu0 %v1961
    %3285 = vmatpush.bf16.msra.mxu0 %v1957
    %3286 = vmatpush.bf16.msra.mxu0 %v1953
    %3287 = vmatpush.bf16.msra.mxu0 %v1949
    %3288 = vmatmul.bf16.gmra.mxu0 %v3227
    %v3289 = vpop.f32.mrf.mxu0
    %v3290 = vadd.f32 %v1749, %v3289
    %v3291 = vpop.f32.mrf.mxu0
    %3292 = vdwg.mxu0
    %3293 = vmatpush.bf16.msra.mxu0 %v2009
    %3294 = vmatpush.bf16.msra.mxu0 %v2005
    %3295 = vmatpush.bf16.msra.mxu0 %v2001
    %3296 = vmatpush.bf16.msra.mxu0 %v1997
    %3297 = vmatpush.bf16.msra.mxu0 %v1993
    %3298 = vmatpush.bf16.msra.mxu0 %v1989
    %3299 = vmatpush.bf16.msra.mxu0 %v1985
    %3300 = vmatpush.bf16.msra.mxu0 %v1981
    %3301 = vmatmul.bf16.gmra.mxu0 %v2663
    %v3302 = vpop.f32.mrf.mxu0
    %v3303 = vadd.f32 %v3290, %v3302
    %v3304 = vpop.f32.mrf.mxu0
    %3305 = vdwg.mxu0
    %3306 = vmatpush.bf16.msra.mxu0 %v1978
    %3307 = vmatpush.bf16.msra.mxu0 %v1974
    %3308 = vmatpush.bf16.msra.mxu0 %v1970
    %3309 = vmatpush.bf16.msra.mxu0 %v1966
    %3310 = vmatpush.bf16.msra.mxu0 %v1962
    %3311 = vmatpush.bf16.msra.mxu0 %v1958
    %3312 = vmatpush.bf16.msra.mxu0 %v1954
    %3313 = vmatpush.bf16.msra.mxu0 %v1950
    %3314 = vmatmul.bf16.gmra.mxu0 %v3227
    %v3315 = vpop.f32.mrf.mxu0
    %v3316 = vadd.f32 %v1750, %v3315
    %v3317 = vpop.f32.mrf.mxu0
    %3318 = vdwg.mxu0
    %3319 = vmatpush.bf16.msra.mxu0 %v2010
    %3320 = vmatpush.bf16.msra.mxu0 %v2006
    %3321 = vmatpush.bf16.msra.mxu0 %v2002
    %3322 = vmatpush.bf16.msra.mxu0 %v1998
    %3323 = vmatpush.bf16.msra.mxu0 %v1994
    %3324 = vmatpush.bf16.msra.mxu0 %v1990
    %3325 = vmatpush.bf16.msra.mxu0 %v1986
    %3326 = vmatpush.bf16.msra.mxu0 %v1982
    %3327 = vmatmul.bf16.gmra.mxu0 %v2663
    %v3328 = vpop.f32.mrf.mxu0
    %v3329 = vadd.f32 %v3316, %v3328
    %v3330 = vpop.f32.mrf.mxu0
    %3331 = vdwg.mxu0
    %v3332 = vxor.u32 %v3251, 2147483648
    %v3333 = vmul.f32 %v3332, 1.442695
    %v3334 = vpow.pop %v3333
    %v3335 = vadd.f32 %v3334, 1.0
    %v3336 = vrcp.pop %v3335
    %v3337 = vmul.f32 %v3335, %v3336
    %v3338 = vsub.f32 1.0, %v3337
    %v3339 = vmul.f32 %v3336, %v3338
    %v3340 = vadd.f32 %v3336, %v3339
    %vm3341 = vweird.f32 %v3335
    %vm3342 = vweird.f32 %v3336
    %vm3343 = vmor %vm3341, %vm3342
    %v3344 = vsel %vm3343, %v3336, %v3340
    %v3345 = vand.u32 2147483647, %v3335
    %vm3346 = vcmp.eq.f32.partialorder %v3345, 8.507059e+37
    %v3347 = vand.u32 %v3335, 2147483648
    %v3348 = vor.u32 1.1754944e-38, %v3347
    %v3349 = vsel %vm3346, %v3348, %v3344
    %v3350 = vmul.f32 1.0, %v3349
    %v3351 = vxor.u32 %v3277, 2147483648
    %v3352 = vmul.f32 %v3351, 1.442695
    %v3353 = vpow.pop %v3352
    %v3354 = vadd.f32 %v3353, 1.0
    %v3355 = vrcp.pop %v3354
    %v3356 = vmul.f32 %v3354, %v3355
    %v3357 = vsub.f32 1.0, %v3356
    %v3358 = vmul.f32 %v3355, %v3357
    %v3359 = vadd.f32 %v3355, %v3358
    %vm3360 = vweird.f32 %v3354
    %vm3361 = vweird.f32 %v3355
    %vm3362 = vmor %vm3360, %vm3361
    %v3363 = vsel %vm3362, %v3355, %v3359
    %v3364 = vand.u32 2147483647, %v3354
    %vm3365 = vcmp.eq.f32.partialorder %v3364, 8.507059e+37
    %v3366 = vand.u32 %v3354, 2147483648
    %v3367 = vor.u32 1.1754944e-38, %v3366
    %v3368 = vsel %vm3365, %v3367, %v3363
    %v3369 = vmul.f32 1.0, %v3368
    %v3370 = vtanh.pop %v3303
    %v3371 = vxor.u32 %v3329, 2147483648
    %v3372 = vmul.f32 %v3371, 1.442695
    %v3373 = vpow.pop %v3372
    %v3374 = vadd.f32 %v3373, 1.0
    %v3375 = vrcp.pop %v3374
    %v3376 = vmul.f32 %v3374, %v3375
    %v3377 = vsub.f32 1.0, %v3376
    %v3378 = vmul.f32 %v3375, %v3377
    %v3379 = vadd.f32 %v3375, %v3378
    %vm3380 = vweird.f32 %v3374
    %vm3381 = vweird.f32 %v3375
    %vm3382 = vmor %vm3380, %vm3381
    %v3383 = vsel %vm3382, %v3375, %v3379
    %v3384 = vand.u32 2147483647, %v3374
    %vm3385 = vcmp.eq.f32.partialorder %v3384, 8.507059e+37
    %v3386 = vand.u32 %v3374, 2147483648
    %v3387 = vor.u32 1.1754944e-38, %v3386
    %v3388 = vsel %vm3385, %v3387, %v3383
    %v3389 = vmul.f32 1.0, %v3388
    %v3390 = vmul.f32 %v3369, %v2239
    %v3391 = vmul.f32 %v3350, %v3370
    %v3392 = vadd.f32 %v3390, %v3391
    %v3393 = vtanh.pop %v3392
    %v3394 = vmul.f32 %v3389, %v3393
    %v3395 = vpack.c.bf16 %v2532, %v2532
    %3396 = vmatpush.bf16.msra.mxu0 %v1128
    %3397 = vmatpush.bf16.msra.mxu0 %v1124
    %3398 = vmatpush.bf16.msra.mxu0 %v1120
    %3399 = vmatpush.bf16.msra.mxu0 %v1116
    %3400 = vmatpush.bf16.msra.mxu0 %v1112
    %3401 = vmatpush.bf16.msra.mxu0 %v1108
    %3402 = vmatpush.bf16.msra.mxu0 %v1104
    %3403 = vmatpush.bf16.msra.mxu0 %v1100
    %3404 = vmatmul.bf16.gmra.mxu0 %v3395
    %v3405 = vpop.f32.mrf.mxu0
    %v3406 = vadd.f32 %v900, %v3405
    %v3407 = vpop.f32.mrf.mxu0
    %3408 = vdwg.mxu0
    %3409 = vmatpush.bf16.msra.mxu0 %v1160
    %3410 = vmatpush.bf16.msra.mxu0 %v1156
    %3411 = vmatpush.bf16.msra.mxu0 %v1152
    %3412 = vmatpush.bf16.msra.mxu0 %v1148
    %3413 = vmatpush.bf16.msra.mxu0 %v1144
    %3414 = vmatpush.bf16.msra.mxu0 %v1140
    %3415 = vmatpush.bf16.msra.mxu0 %v1136
    %3416 = vmatpush.bf16.msra.mxu0 %v1132
    %3417 = vmatmul.bf16.gmra.mxu0 %v3227
    %v3418 = vpop.f32.mrf.mxu0
    %v3419 = vadd.f32 %v3406, %v3418
    %v3420 = vpop.f32.mrf.mxu0
    %3421 = vdwg.mxu0
    %3422 = vmatpush.bf16.msra.mxu0 %v1129
    %3423 = vmatpush.bf16.msra.mxu0 %v1125
    %3424 = vmatpush.bf16.msra.mxu0 %v1121
    %3425 = vmatpush.bf16.msra.mxu0 %v1117
    %3426 = vmatpush.bf16.msra.mxu0 %v1113
    %3427 = vmatpush.bf16.msra.mxu0 %v1109
    %3428 = vmatpush.bf16.msra.mxu0 %v1105
    %3429 = vmatpush.bf16.msra.mxu0 %v1101
    %3430 = vmatmul.bf16.gmra.mxu0 %v3395
    %v3431 = vpop.f32.mrf.mxu0
    %v3432 = vadd.f32 %v901, %v3431
    %v3433 = vpop.f32.mrf.mxu0
    %3434 = vdwg.mxu0
    %3435 = vmatpush.bf16.msra.mxu0 %v1161
    %3436 = vmatpush.bf16.msra.mxu0 %v1157
    %3437 = vmatpush.bf16.msra.mxu0 %v1153
    %3438 = vmatpush.bf16.msra.mxu0 %v1149
    %3439 = vmatpush.bf16.msra.mxu0 %v1145
    %3440 = vmatpush.bf16.msra.mxu0 %v1141
    %3441 = vmatpush.bf16.msra.mxu0 %v1137
    %3442 = vmatpush.bf16.msra.mxu0 %v1133
    %3443 = vmatmul.bf16.gmra.mxu0 %v3227
    %v3444 = vpop.f32.mrf.mxu0
    %v3445 = vadd.f32 %v3432, %v3444
    %v3446 = vpop.f32.mrf.mxu0
    %3447 = vdwg.mxu0
    %3448 = vmatpush.bf16.msra.mxu0 %v1130
    %3449 = vmatpush.bf16.msra.mxu0 %v1126
    %3450 = vmatpush.bf16.msra.mxu0 %v1122
    %3451 = vmatpush.bf16.msra.mxu0 %v1118
    %3452 = vmatpush.bf16.msra.mxu0 %v1114
    %3453 = vmatpush.bf16.msra.mxu0 %v1110
    %3454 = vmatpush.bf16.msra.mxu0 %v1106
    %3455 = vmatpush.bf16.msra.mxu0 %v1102
    %3456 = vmatmul.bf16.gmra.mxu0 %v3395
    %v3457 = vpop.f32.mrf.mxu0
    %v3458 = vadd.f32 %v902, %v3457
    %v3459 = vpop.f32.mrf.mxu0
    %3460 = vdwg.mxu0
    %3461 = vmatpush.bf16.msra.mxu0 %v1162
    %3462 = vmatpush.bf16.msra.mxu0 %v1158
    %3463 = vmatpush.bf16.msra.mxu0 %v1154
    %3464 = vmatpush.bf16.msra.mxu0 %v1150
    %3465 = vmatpush.bf16.msra.mxu0 %v1146
    %3466 = vmatpush.bf16.msra.mxu0 %v1142
    %3467 = vmatpush.bf16.msra.mxu0 %v1138
    %3468 = vmatpush.bf16.msra.mxu0 %v1134
    %3469 = vmatmul.bf16.gmra.mxu0 %v3227
    %v3470 = vpop.f32.mrf.mxu0
    %v3471 = vadd.f32 %v3458, %v3470
    %v3472 = vpop.f32.mrf.mxu0
    %3473 = vdwg.mxu0
    %3474 = vmatpush.bf16.msra.mxu0 %v1131
    %3475 = vmatpush.bf16.msra.mxu0 %v1127
    %3476 = vmatpush.bf16.msra.mxu0 %v1123
    %3477 = vmatpush.bf16.msra.mxu0 %v1119
    %3478 = vmatpush.bf16.msra.mxu0 %v1115
    %3479 = vmatpush.bf16.msra.mxu0 %v1111
    %3480 = vmatpush.bf16.msra.mxu0 %v1107
    %3481 = vmatpush.bf16.msra.mxu0 %v1103
    %3482 = vmatmul.bf16.gmra.mxu0 %v3395
    %v3483 = vpop.f32.mrf.mxu0
    %v3484 = vadd.f32 %v903, %v3483
    %v3485 = vpop.f32.mrf.mxu0
    %3486 = vdwg.mxu0
    %3487 = vmatpush.bf16.msra.mxu0 %v1163
    %3488 = vmatpush.bf16.msra.mxu0 %v1159
    %3489 = vmatpush.bf16.msra.mxu0 %v1155
    %3490 = vmatpush.bf16.msra.mxu0 %v1151
    %3491 = vmatpush.bf16.msra.mxu0 %v1147
    %3492 = vmatpush.bf16.msra.mxu0 %v1143
    %3493 = vmatpush.bf16.msra.mxu0 %v1139
    %3494 = vmatpush.bf16.msra.mxu0 %v1135
    %3495 = vmatmul.bf16.gmra.mxu0 %v3227
    %v3496 = vpop.f32.mrf.mxu0
    %v3497 = vadd.f32 %v3484, %v3496
    %v3498 = vpop.f32.mrf.mxu0
    %3499 = vdwg.mxu0
    %v3500 = vxor.u32 %v3419, 2147483648
    %v3501 = vmul.f32 %v3500, 1.442695
    %v3502 = vpow.pop %v3501
    %v3503 = vadd.f32 %v3502, 1.0
    %v3504 = vrcp.pop %v3503
    %v3505 = vmul.f32 %v3503, %v3504
    %v3506 = vsub.f32 1.0, %v3505
    %v3507 = vmul.f32 %v3504, %v3506
    %v3508 = vadd.f32 %v3504, %v3507
    %vm3509 = vweird.f32 %v3503
    %vm3510 = vweird.f32 %v3504
    %vm3511 = vmor %vm3509, %vm3510
    %v3512 = vsel %vm3511, %v3504, %v3508
    %v3513 = vand.u32 2147483647, %v3503
    %vm3514 = vcmp.eq.f32.partialorder %v3513, 8.507059e+37
    %v3515 = vand.u32 %v3503, 2147483648
    %v3516 = vor.u32 1.1754944e-38, %v3515
    %v3517 = vsel %vm3514, %v3516, %v3512
    %v3518 = vmul.f32 1.0, %v3517
    %v3519 = vxor.u32 %v3445, 2147483648
    %v3520 = vmul.f32 %v3519, 1.442695
    %v3521 = vpow.pop %v3520
    %v3522 = vadd.f32 %v3521, 1.0
    %v3523 = vrcp.pop %v3522
    %v3524 = vmul.f32 %v3522, %v3523
    %v3525 = vsub.f32 1.0, %v3524
    %v3526 = vmul.f32 %v3523, %v3525
    %v3527 = vadd.f32 %v3523, %v3526
    %vm3528 = vweird.f32 %v3522
    %vm3529 = vweird.f32 %v3523
    %vm3530 = vmor %vm3528, %vm3529
    %v3531 = vsel %vm3530, %v3523, %v3527
    %v3532 = vand.u32 2147483647, %v3522
    %vm3533 = vcmp.eq.f32.partialorder %v3532, 8.507059e+37
    %v3534 = vand.u32 %v3522, 2147483648
    %v3535 = vor.u32 1.1754944e-38, %v3534
    %v3536 = vsel %vm3533, %v3535, %v3531
    %v3537 = vmul.f32 1.0, %v3536
    %v3538 = vtanh.pop %v3471
    %v3539 = vxor.u32 %v3497, 2147483648
    %v3540 = vmul.f32 %v3539, 1.442695
    %v3541 = vpow.pop %v3540
    %v3542 = vadd.f32 %v3541, 1.0
    %v3543 = vrcp.pop %v3542
    %v3544 = vmul.f32 %v3542, %v3543
    %v3545 = vsub.f32 1.0, %v3544
    %v3546 = vmul.f32 %v3543, %v3545
    %v3547 = vadd.f32 %v3543, %v3546
    %vm3548 = vweird.f32 %v3542
    %vm3549 = vweird.f32 %v3543
    %vm3550 = vmor %vm3548, %vm3549
    %v3551 = vsel %vm3550, %v3543, %v3547
    %v3552 = vand.u32 2147483647, %v3542
    %vm3553 = vcmp.eq.f32.partialorder %v3552, 8.507059e+37
    %v3554 = vand.u32 %v3542, 2147483648
    %v3555 = vor.u32 1.1754944e-38, %v3554
    %v3556 = vsel %vm3553, %v3555, %v3551
    %v3557 = vmul.f32 1.0, %v3556
    %v3558 = vmul.f32 %v3537, %v2407
    %v3559 = vmul.f32 %v3518, %v3538
    %v3560 = vadd.f32 %v3558, %v3559
    %v3561 = vtanh.pop %v3560
    %v3562 = vmul.f32 %v3557, %v3561
    %v3563 = vld [vmem:[#allocation2 + $0x60] sm:$0xff]
    %v3564 = vld [vmem:[#allocation2 + $0x68] sm:$0xff]
    %v3565 = vld [vmem:[#allocation2 + $0x70] sm:$0xff]
    %v3566 = vld [vmem:[#allocation2 + $0x78] sm:$0xff]
    %3567 = vmatpush.bf16.msra.mxu0 %v604
    %3568 = vmatpush.bf16.msra.mxu0 %v600
    %3569 = vmatpush.bf16.msra.mxu0 %v596
    %3570 = vmatpush.bf16.msra.mxu0 %v592
    %3571 = vmatpush.bf16.msra.mxu0 %v588
    %3572 = vmatpush.bf16.msra.mxu0 %v584
    %3573 = vmatpush.bf16.msra.mxu0 %v580
    %3574 = vmatpush.bf16.msra.mxu0 %v576
    %3575 = vmatmul.bf16.gmra.mxu0 %v3395
    %v3576 = vpop.f32.mrf.mxu0
    %v3577 = vadd.f32 0.0, %v3576
    %v3578 = vpop.f32.mrf.mxu0
    %3579 = vdwg.mxu0
    %3580 = vmatpush.bf16.msra.mxu0 %v605
    %3581 = vmatpush.bf16.msra.mxu0 %v601
    %3582 = vmatpush.bf16.msra.mxu0 %v597
    %3583 = vmatpush.bf16.msra.mxu0 %v593
    %3584 = vmatpush.bf16.msra.mxu0 %v589
    %3585 = vmatpush.bf16.msra.mxu0 %v585
    %3586 = vmatpush.bf16.msra.mxu0 %v581
    %3587 = vmatpush.bf16.msra.mxu0 %v577
    %3588 = vmatmul.bf16.gmra.mxu0 %v3395
    %v3589 = vpop.f32.mrf.mxu0
    %v3590 = vadd.f32 0.0, %v3589
    %v3591 = vpop.f32.mrf.mxu0
    %3592 = vdwg.mxu0
    %3593 = vmatpush.bf16.msra.mxu0 %v606
    %3594 = vmatpush.bf16.msra.mxu0 %v602
    %3595 = vmatpush.bf16.msra.mxu0 %v598
    %3596 = vmatpush.bf16.msra.mxu0 %v594
    %3597 = vmatpush.bf16.msra.mxu0 %v590
    %3598 = vmatpush.bf16.msra.mxu0 %v586
    %3599 = vmatpush.bf16.msra.mxu0 %v582
    %3600 = vmatpush.bf16.msra.mxu0 %v578
    %3601 = vmatmul.bf16.gmra.mxu0 %v3395
    %v3602 = vpop.f32.mrf.mxu0
    %v3603 = vadd.f32 0.0, %v3602
    %v3604 = vpop.f32.mrf.mxu0
    %3605 = vdwg.mxu0
    %3606 = vmatpush.bf16.msra.mxu0 %v607
    %3607 = vmatpush.bf16.msra.mxu0 %v603
    %3608 = vmatpush.bf16.msra.mxu0 %v599
    %3609 = vmatpush.bf16.msra.mxu0 %v595
    %3610 = vmatpush.bf16.msra.mxu0 %v591
    %3611 = vmatpush.bf16.msra.mxu0 %v587
    %3612 = vmatpush.bf16.msra.mxu0 %v583
    %3613 = vmatpush.bf16.msra.mxu0 %v579
    %3614 = vmatmul.bf16.gmra.mxu0 %v3395
    %v3615 = vpop.f32.mrf.mxu0
    %v3616 = vadd.f32 0.0, %v3615
    %v3617 = vpop.f32.mrf.mxu0
    %3618 = vdwg.mxu0
    %v3619 = vadd.f32 %v3563, %v3577
    %v3620 = vadd.f32 %v3564, %v3590
    %v3621 = vadd.f32 %v3565, %v3603
    %v3622 = vadd.f32 %v3566, %v3616
    %v3623 = vxor.u32 %v3619, 2147483648
    %v3624 = vmul.f32 %v3623, 1.442695
    %v3625 = vpow.pop %v3624
    %v3626 = vadd.f32 %v3625, 1.0
    %v3627 = vrcp.pop %v3626
    %v3628 = vmul.f32 %v3626, %v3627
    %v3629 = vsub.f32 1.0, %v3628
    %v3630 = vmul.f32 %v3627, %v3629
    %v3631 = vadd.f32 %v3627, %v3630
    %vm3632 = vweird.f32 %v3626
    %vm3633 = vweird.f32 %v3627
    %vm3634 = vmor %vm3632, %vm3633
    %v3635 = vsel %vm3634, %v3627, %v3631
    %v3636 = vand.u32 2147483647, %v3626
    %vm3637 = vcmp.eq.f32.partialorder %v3636, 8.507059e+37
    %v3638 = vand.u32 %v3626, 2147483648
    %v3639 = vor.u32 1.1754944e-38, %v3638
    %v3640 = vsel %vm3637, %v3639, %v3635
    %v3641 = vmul.f32 1.0, %v3640
    %v3642 = vxor.u32 %v3620, 2147483648
    %v3643 = vmul.f32 %v3642, 1.442695
    %v3644 = vpow.pop %v3643
    %v3645 = vadd.f32 %v3644, 1.0
    %v3646 = vrcp.pop %v3645
    %v3647 = vmul.f32 %v3645, %v3646
    %v3648 = vsub.f32 1.0, %v3647
    %v3649 = vmul.f32 %v3646, %v3648
    %v3650 = vadd.f32 %v3646, %v3649
    %vm3651 = vweird.f32 %v3645
    %vm3652 = vweird.f32 %v3646
    %vm3653 = vmor %vm3651, %vm3652
    %v3654 = vsel %vm3653, %v3646, %v3650
    %v3655 = vand.u32 2147483647, %v3645
    %vm3656 = vcmp.eq.f32.partialorder %v3655, 8.507059e+37
    %v3657 = vand.u32 %v3645, 2147483648
    %v3658 = vor.u32 1.1754944e-38, %v3657
    %v3659 = vsel %vm3656, %v3658, %v3654
    %v3660 = vmul.f32 1.0, %v3659
    %v3661 = vtanh.pop %v3621
    %v3662 = vxor.u32 %v3622, 2147483648
    %v3663 = vmul.f32 %v3662, 1.442695
    %v3664 = vpow.pop %v3663
    %v3665 = vadd.f32 %v3664, 1.0
    %v3666 = vrcp.pop %v3665
    %v3667 = vmul.f32 %v3665, %v3666
    %v3668 = vsub.f32 1.0, %v3667
    %v3669 = vmul.f32 %v3666, %v3668
    %v3670 = vadd.f32 %v3666, %v3669
    %vm3671 = vweird.f32 %v3665
    %vm3672 = vweird.f32 %v3666
    %vm3673 = vmor %vm3671, %vm3672
    %v3674 = vsel %vm3673, %v3666, %v3670
    %v3675 = vand.u32 2147483647, %v3665
    %vm3676 = vcmp.eq.f32.partialorder %v3675, 8.507059e+37
    %v3677 = vand.u32 %v3665, 2147483648
    %v3678 = vor.u32 1.1754944e-38, %v3677
    %v3679 = vsel %vm3676, %v3678, %v3674
    %v3680 = vmul.f32 1.0, %v3679
    %v3681 = vmul.f32 %v3660, %v2530
    %v3682 = vmul.f32 %v3641, %v3661
    %v3683 = vadd.f32 %v3681, %v3682
    %v3684 = vtanh.pop %v3683
    %v3685 = vmul.f32 %v3680, %v3684
    %v3686 = vpack.c.bf16 %v2662, %v2662
    %v3687 = vpack.c.bf16 %v2610, %v2610
    %3689 = vrot.lane.b32.xlu0 %v3687, 32
    %v3690 = vpop.permute.xlu0 %3689
    %v3692 = vsel %vm776, %v3690, 0
    %3694 = vmatpush.bf16.msra.mxu0 0
    %3695 = vmatpush.bf16.msra.mxu0 0
    %3696 = vmatpush.bf16.msra.mxu0 0
    %3697 = vmatpush.bf16.msra.mxu0 0
    %3698 = vmatpush.bf16.msra.mxu0 0
    %3699 = vmatpush.bf16.msra.mxu0 0
    %3700 = vmatpush.bf16.msra.mxu0 %v1536
    %3701 = vmatpush.bf16.msra.mxu0 %v1535
    %3702 = vmatmul.bf16.gmra.mxu0 %v3692
    %v3703 = vpop.f32.mrf.mxu0
    %v3704 = vadd.f32 0.0, %v3703
    %v3705 = vpop.f32.mrf.mxu0
    %3706 = vdwg.mxu0
    %3708 = vrot.lane.b32.xlu0 %v3686, 32
    %v3709 = vpop.permute.xlu0 %3708
    %v3711 = vsel %vm776, %v3709, 0
    %3713 = vmatpush.bf16.msra.mxu0 0
    %3714 = vmatpush.bf16.msra.mxu0 0
    %3715 = vmatpush.bf16.msra.mxu0 0
    %3716 = vmatpush.bf16.msra.mxu0 0
    %3717 = vmatpush.bf16.msra.mxu0 0
    %3718 = vmatpush.bf16.msra.mxu0 0
    %3719 = vmatpush.bf16.msra.mxu0 %v1564
    %3720 = vmatpush.bf16.msra.mxu0 %v1563
    %3721 = vmatmul.bf16.gmra.mxu0 %v3711
    %v3722 = vpop.f32.mrf.mxu0
    %v3723 = vadd.f32 %v3704, %v3722
    %v3724 = vpop.f32.mrf.mxu0
    %3725 = vdwg.mxu0
    %v3726 = vadd.f32 %v3723, %v1586
    %v3727 = vxor.u32 %v3726, 2147483648
    %v3728 = vmul.f32 %v3727, 1.442695
    %v3729 = vpow.pop %v3728
    %v3730 = vadd.f32 %v3729, 1.0
    %v3731 = vrcp.pop %v3730
    %v3732 = vmul.f32 %v3730, %v3731
    %v3733 = vsub.f32 1.0, %v3732
    %v3734 = vmul.f32 %v3731, %v3733
    %v3735 = vadd.f32 %v3731, %v3734
    %vm3736 = vweird.f32 %v3730
    %vm3737 = vweird.f32 %v3731
    %vm3738 = vmor %vm3736, %vm3737
    %v3739 = vsel %vm3738, %v3731, %v3735
    %v3740 = vand.u32 2147483647, %v3730
    %vm3741 = vcmp.eq.f32.partialorder %v3740, 8.507059e+37
    %v3742 = vand.u32 %v3730, 2147483648
    %v3743 = vor.u32 1.1754944e-38, %v3742
    %v3744 = vsel %vm3741, %v3743, %v3739
    %v3745 = vmul.f32 1.0, %v3744
    %v3746 = vtanh.pop %v3726
    %v3747 = vmul.f32 %v3745, %v2604
    %3749 = vrot.lane.b32.xlu0 %v3746, 64
    %v3750 = vpop.permute.xlu0 %3749
    %v3752 = vmul.f32 %v3745, %v3750
    %3754 = vrot.lane.b32.xlu0 %v3752, 32
    %v3755 = vpop.permute.xlu0 %3754
    %v3757 = vadd.f32 %v3747, %v3755
    %v3758 = vtanh.pop %v3757
    %3760 = vrot.lane.b32.xlu0 %v3758, 64
    %v3761 = vpop.permute.xlu0 %3760
    %v3763 = vmul.f32 %v3745, %v3761
    %v3764 = vld [vmem:[#allocation3 + $0x18] sm:$0xff]
    %3765 = vmatpush.bf16.msra.mxu0 0
    %3766 = vmatpush.bf16.msra.mxu0 0
    %3767 = vmatpush.bf16.msra.mxu0 0
    %3768 = vmatpush.bf16.msra.mxu0 0
    %3769 = vmatpush.bf16.msra.mxu0 0
    %3770 = vmatpush.bf16.msra.mxu0 0
    %3771 = vmatpush.bf16.msra.mxu0 %v773
    %3772 = vmatpush.bf16.msra.mxu0 %v772
    %3773 = vmatmul.bf16.gmra.mxu0 %v3711
    %v3774 = vpop.f32.mrf.mxu0
    %v3775 = vadd.f32 0.0, %v3774
    %v3776 = vpop.f32.mrf.mxu0
    %3777 = vdwg.mxu0
    %v3778 = vadd.f32 %v3764, %v3775
    %v3779 = vxor.u32 %v3778, 2147483648
    %v3780 = vmul.f32 %v3779, 1.442695
    %v3781 = vpow.pop %v3780
    %v3782 = vadd.f32 %v3781, 1.0
    %v3783 = vrcp.pop %v3782
    %v3784 = vmul.f32 %v3782, %v3783
    %v3785 = vsub.f32 1.0, %v3784
    %v3786 = vmul.f32 %v3783, %v3785
    %v3787 = vadd.f32 %v3783, %v3786
    %vm3788 = vweird.f32 %v3782
    %vm3789 = vweird.f32 %v3783
    %vm3790 = vmor %vm3788, %vm3789
    %v3791 = vsel %vm3790, %v3783, %v3787
    %v3792 = vand.u32 2147483647, %v3782
    %vm3793 = vcmp.eq.f32.partialorder %v3792, 8.507059e+37
    %v3794 = vand.u32 %v3782, 2147483648
    %v3795 = vor.u32 1.1754944e-38, %v3794
    %v3796 = vsel %vm3793, %v3795, %v3791
    %v3797 = vmul.f32 1.0, %v3796
    %v3798 = vtanh.pop %v3778
    %v3799 = vmul.f32 %v3797, %v2656
    %3801 = vrot.lane.b32.xlu0 %v3798, 64
    %v3802 = vpop.permute.xlu0 %3801
    %v3804 = vmul.f32 %v3797, %v3802
    %3806 = vrot.lane.b32.xlu0 %v3804, 32
    %v3807 = vpop.permute.xlu0 %3806
    %v3809 = vadd.f32 %v3799, %v3807
    %v3810 = vtanh.pop %v3809
    %3812 = vrot.lane.b32.xlu0 %v3810, 64
    %v3813 = vpop.permute.xlu0 %3812
    %v3815 = vmul.f32 %v3797, %v3813
    %v3816 = vpack.c.bf16 %v3394, %v3394
    %v3817 = vpack.c.bf16 %v3226, %v3226
    %3818 = vmatpush.bf16.msra.mxu0 %v2960
    %3819 = vmatpush.bf16.msra.mxu0 %v2956
    %3820 = vmatpush.bf16.msra.mxu0 %v2952
    %3821 = vmatpush.bf16.msra.mxu0 %v2948
    %3822 = vmatpush.bf16.msra.mxu0 %v2944
    %3823 = vmatpush.bf16.msra.mxu0 %v2940
    %3824 = vmatpush.bf16.msra.mxu0 %v2936
    %3825 = vmatpush.bf16.msra.mxu0 %v2932
    %3826 = vmatmul.bf16.gmra.mxu0 %v3816
    %v3827 = vpop.f32.mrf.mxu0
    %v3828 = vadd.f32 %v2732, %v3827
    %v3829 = vpop.f32.mrf.mxu0
    %3830 = vdwg.mxu0
    %3831 = vmatpush.bf16.msra.mxu0 %v2992
    %3832 = vmatpush.bf16.msra.mxu0 %v2988
    %3833 = vmatpush.bf16.msra.mxu0 %v2984
    %3834 = vmatpush.bf16.msra.mxu0 %v2980
    %3835 = vmatpush.bf16.msra.mxu0 %v2976
    %3836 = vmatpush.bf16.msra.mxu0 %v2972
    %3837 = vmatpush.bf16.msra.mxu0 %v2968
    %3838 = vmatpush.bf16.msra.mxu0 %v2964
    %3839 = vmatmul.bf16.gmra.mxu0 %v3817
    %v3840 = vpop.f32.mrf.mxu0
    %v3841 = vadd.f32 %v3828, %v3840
    %v3842 = vpop.f32.mrf.mxu0
    %3843 = vdwg.mxu0
    %3844 = vmatpush.bf16.msra.mxu0 %v2961
    %3845 = vmatpush.bf16.msra.mxu0 %v2957
    %3846 = vmatpush.bf16.msra.mxu0 %v2953
    %3847 = vmatpush.bf16.msra.mxu0 %v2949
    %3848 = vmatpush.bf16.msra.mxu0 %v2945
    %3849 = vmatpush.bf16.msra.mxu0 %v2941
    %3850 = vmatpush.bf16.msra.mxu0 %v2937
    %3851 = vmatpush.bf16.msra.mxu0 %v2933
    %3852 = vmatmul.bf16.gmra.mxu0 %v3816
    %v3853 = vpop.f32.mrf.mxu0
    %v3854 = vadd.f32 %v2733, %v3853
    %v3855 = vpop.f32.mrf.mxu0
    %3856 = vdwg.mxu0
    %3857 = vmatpush.bf16.msra.mxu0 %v2993
    %3858 = vmatpush.bf16.msra.mxu0 %v2989
    %3859 = vmatpush.bf16.msra.mxu0 %v2985
    %3860 = vmatpush.bf16.msra.mxu0 %v2981
    %3861 = vmatpush.bf16.msra.mxu0 %v2977
    %3862 = vmatpush.bf16.msra.mxu0 %v2973
    %3863 = vmatpush.bf16.msra.mxu0 %v2969
    %3864 = vmatpush.bf16.msra.mxu0 %v2965
    %3865 = vmatmul.bf16.gmra.mxu0 %v3817
    %v3866 = vpop.f32.mrf.mxu0
    %v3867 = vadd.f32 %v3854, %v3866
    %v3868 = vpop.f32.mrf.mxu0
    %3869 = vdwg.mxu0
    %3870 = vmatpush.bf16.msra.mxu0 %v2962
    %3871 = vmatpush.bf16.msra.mxu0 %v2958
    %3872 = vmatpush.bf16.msra.mxu0 %v2954
    %3873 = vmatpush.bf16.msra.mxu0 %v2950
    %3874 = vmatpush.bf16.msra.mxu0 %v2946
    %3875 = vmatpush.bf16.msra.mxu0 %v2942
    %3876 = vmatpush.bf16.msra.mxu0 %v2938
    %3877 = vmatpush.bf16.msra.mxu0 %v2934
    %3878 = vmatmul.bf16.gmra.mxu0 %v3816
    %v3879 = vpop.f32.mrf.mxu0
    %v3880 = vadd.f32 %v2734, %v3879
    %v3881 = vpop.f32.mrf.mxu0
    %3882 = vdwg.mxu0
    %3883 = vmatpush.bf16.msra.mxu0 %v2994
    %3884 = vmatpush.bf16.msra.mxu0 %v2990
    %3885 = vmatpush.bf16.msra.mxu0 %v2986
    %3886 = vmatpush.bf16.msra.mxu0 %v2982
    %3887 = vmatpush.bf16.msra.mxu0 %v2978
    %3888 = vmatpush.bf16.msra.mxu0 %v2974
    %3889 = vmatpush.bf16.msra.mxu0 %v2970
    %3890 = vmatpush.bf16.msra.mxu0 %v2966
    %3891 = vmatmul.bf16.gmra.mxu0 %v3817
    %v3892 = vpop.f32.mrf.mxu0
    %v3893 = vadd.f32 %v3880, %v3892
    %v3894 = vpop.f32.mrf.mxu0
    %3895 = vdwg.mxu0
    %3896 = vmatpush.bf16.msra.mxu0 %v2963
    %3897 = vmatpush.bf16.msra.mxu0 %v2959
    %3898 = vmatpush.bf16.msra.mxu0 %v2955
    %3899 = vmatpush.bf16.msra.mxu0 %v2951
    %3900 = vmatpush.bf16.msra.mxu0 %v2947
    %3901 = vmatpush.bf16.msra.mxu0 %v2943
    %3902 = vmatpush.bf16.msra.mxu0 %v2939
    %3903 = vmatpush.bf16.msra.mxu0 %v2935
    %3904 = vmatmul.bf16.gmra.mxu0 %v3816
    %v3905 = vpop.f32.mrf.mxu0
    %v3906 = vadd.f32 %v2735, %v3905
    %v3907 = vpop.f32.mrf.mxu0
    %3908 = vdwg.mxu0
    %3909 = vmatpush.bf16.msra.mxu0 %v2995
    %3910 = vmatpush.bf16.msra.mxu0 %v2991
    %3911 = vmatpush.bf16.msra.mxu0 %v2987
    %3912 = vmatpush.bf16.msra.mxu0 %v2983
    %3913 = vmatpush.bf16.msra.mxu0 %v2979
    %3914 = vmatpush.bf16.msra.mxu0 %v2975
    %3915 = vmatpush.bf16.msra.mxu0 %v2971
    %3916 = vmatpush.bf16.msra.mxu0 %v2967
    %3917 = vmatmul.bf16.gmra.mxu0 %v3817
    %v3918 = vpop.f32.mrf.mxu0
    %v3919 = vadd.f32 %v3906, %v3918
    %v3920 = vpop.f32.mrf.mxu0
    %3921 = vdwg.mxu0
    %v3922 = vxor.u32 %v3841, 2147483648
    %v3923 = vmul.f32 %v3922, 1.442695
    %v3924 = vpow.pop %v3923
    %v3925 = vadd.f32 %v3924, 1.0
    %v3926 = vrcp.pop %v3925
    %v3927 = vmul.f32 %v3925, %v3926
    %v3928 = vsub.f32 1.0, %v3927
    %v3929 = vmul.f32 %v3926, %v3928
    %v3930 = vadd.f32 %v3926, %v3929
    %vm3931 = vweird.f32 %v3925
    %vm3932 = vweird.f32 %v3926
    %vm3933 = vmor %vm3931, %vm3932
    %v3934 = vsel %vm3933, %v3926, %v3930
    %v3935 = vand.u32 2147483647, %v3925
    %vm3936 = vcmp.eq.f32.partialorder %v3935, 8.507059e+37
    %v3937 = vand.u32 %v3925, 2147483648
    %v3938 = vor.u32 1.1754944e-38, %v3937
    %v3939 = vsel %vm3936, %v3938, %v3934
    %v3940 = vmul.f32 1.0, %v3939
    %v3941 = vxor.u32 %v3867, 2147483648
    %v3942 = vmul.f32 %v3941, 1.442695
    %v3943 = vpow.pop %v3942
    %v3944 = vadd.f32 %v3943, 1.0
    %v3945 = vrcp.pop %v3944
    %v3946 = vmul.f32 %v3944, %v3945
    %v3947 = vsub.f32 1.0, %v3946
    %v3948 = vmul.f32 %v3945, %v3947
    %v3949 = vadd.f32 %v3945, %v3948
    %vm3950 = vweird.f32 %v3944
    %vm3951 = vweird.f32 %v3945
    %vm3952 = vmor %vm3950, %vm3951
    %v3953 = vsel %vm3952, %v3945, %v3949
    %v3954 = vand.u32 2147483647, %v3944
    %vm3955 = vcmp.eq.f32.partialorder %v3954, 8.507059e+37
    %v3956 = vand.u32 %v3944, 2147483648
    %v3957 = vor.u32 1.1754944e-38, %v3956
    %v3958 = vsel %vm3955, %v3957, %v3953
    %v3959 = vmul.f32 1.0, %v3958
    %v3960 = vtanh.pop %v3893
    %v3961 = vxor.u32 %v3919, 2147483648
    %v3962 = vmul.f32 %v3961, 1.442695
    %v3963 = vpow.pop %v3962
    %v3964 = vadd.f32 %v3963, 1.0
    %v3965 = vrcp.pop %v3964
    %v3966 = vmul.f32 %v3964, %v3965
    %v3967 = vsub.f32 1.0, %v3966
    %v3968 = vmul.f32 %v3965, %v3967
    %v3969 = vadd.f32 %v3965, %v3968
    %vm3970 = vweird.f32 %v3964
    %vm3971 = vweird.f32 %v3965
    %vm3972 = vmor %vm3970, %vm3971
    %v3973 = vsel %vm3972, %v3965, %v3969
    %v3974 = vand.u32 2147483647, %v3964
    %vm3975 = vcmp.eq.f32.partialorder %v3974, 8.507059e+37
    %v3976 = vand.u32 %v3964, 2147483648
    %v3977 = vor.u32 1.1754944e-38, %v3976
    %v3978 = vsel %vm3975, %v3977, %v3973
    %v3979 = vmul.f32 1.0, %v3978
    %v3980 = vmul.f32 %v3959, %v3224
    %v3981 = vmul.f32 %v3940, %v3960
    %v3982 = vadd.f32 %v3980, %v3981
    %v3983 = vtanh.pop %v3982
    %v3984 = vmul.f32 %v3979, %v3983
    %v3985 = vpack.c.bf16 %v3562, %v3562
    %3986 = vmatpush.bf16.msra.mxu0 %v1975
    %3987 = vmatpush.bf16.msra.mxu0 %v1971
    %3988 = vmatpush.bf16.msra.mxu0 %v1967
    %3989 = vmatpush.bf16.msra.mxu0 %v1963
    %3990 = vmatpush.bf16.msra.mxu0 %v1959
    %3991 = vmatpush.bf16.msra.mxu0 %v1955
    %3992 = vmatpush.bf16.msra.mxu0 %v1951
    %3993 = vmatpush.bf16.msra.mxu0 %v1947
    %3994 = vmatmul.bf16.gmra.mxu0 %v3985
    %v3995 = vpop.f32.mrf.mxu0
    %v3996 = vadd.f32 %v1747, %v3995
    %v3997 = vpop.f32.mrf.mxu0
    %3998 = vdwg.mxu0
    %3999 = vmatpush.bf16.msra.mxu0 %v2007
    %4000 = vmatpush.bf16.msra.mxu0 %v2003
    %4001 = vmatpush.bf16.msra.mxu0 %v1999
    %4002 = vmatpush.bf16.msra.mxu0 %v1995
    %4003 = vmatpush.bf16.msra.mxu0 %v1991
    %4004 = vmatpush.bf16.msra.mxu0 %v1987
    %4005 = vmatpush.bf16.msra.mxu0 %v1983
    %4006 = vmatpush.bf16.msra.mxu0 %v1979
    %4007 = vmatmul.bf16.gmra.mxu0 %v3816
    %v4008 = vpop.f32.mrf.mxu0
    %v4009 = vadd.f32 %v3996, %v4008
    %v4010 = vpop.f32.mrf.mxu0
    %4011 = vdwg.mxu0
    %4012 = vmatpush.bf16.msra.mxu0 %v1976
    %4013 = vmatpush.bf16.msra.mxu0 %v1972
    %4014 = vmatpush.bf16.msra.mxu0 %v1968
    %4015 = vmatpush.bf16.msra.mxu0 %v1964
    %4016 = vmatpush.bf16.msra.mxu0 %v1960
    %4017 = vmatpush.bf16.msra.mxu0 %v1956
    %4018 = vmatpush.bf16.msra.mxu0 %v1952
    %4019 = vmatpush.bf16.msra.mxu0 %v1948
    %4020 = vmatmul.bf16.gmra.mxu0 %v3985
    %v4021 = vpop.f32.mrf.mxu0
    %v4022 = vadd.f32 %v1748, %v4021
    %v4023 = vpop.f32.mrf.mxu0
    %4024 = vdwg.mxu0
    %4025 = vmatpush.bf16.msra.mxu0 %v2008
    %4026 = vmatpush.bf16.msra.mxu0 %v2004
    %4027 = vmatpush.bf16.msra.mxu0 %v2000
    %4028 = vmatpush.bf16.msra.mxu0 %v1996
    %4029 = vmatpush.bf16.msra.mxu0 %v1992
    %4030 = vmatpush.bf16.msra.mxu0 %v1988
    %4031 = vmatpush.bf16.msra.mxu0 %v1984
    %4032 = vmatpush.bf16.msra.mxu0 %v1980
    %4033 = vmatmul.bf16.gmra.mxu0 %v3816
    %v4034 = vpop.f32.mrf.mxu0
    %v4035 = vadd.f32 %v4022, %v4034
    %v4036 = vpop.f32.mrf.mxu0
    %4037 = vdwg.mxu0
    %4038 = vmatpush.bf16.msra.mxu0 %v1977
    %4039 = vmatpush.bf16.msra.mxu0 %v1973
    %4040 = vmatpush.bf16.msra.mxu0 %v1969
    %4041 = vmatpush.bf16.msra.mxu0 %v1965
    %4042 = vmatpush.bf16.msra.mxu0 %v1961
    %4043 = vmatpush.bf16.msra.mxu0 %v1957
    %4044 = vmatpush.bf16.msra.mxu0 %v1953
    %4045 = vmatpush.bf16.msra.mxu0 %v1949
    %4046 = vmatmul.bf16.gmra.mxu0 %v3985
    %v4047 = vpop.f32.mrf.mxu0
    %v4048 = vadd.f32 %v1749, %v4047
    %v4049 = vpop.f32.mrf.mxu0
    %4050 = vdwg.mxu0
    %4051 = vmatpush.bf16.msra.mxu0 %v2009
    %4052 = vmatpush.bf16.msra.mxu0 %v2005
    %4053 = vmatpush.bf16.msra.mxu0 %v2001
    %4054 = vmatpush.bf16.msra.mxu0 %v1997
    %4055 = vmatpush.bf16.msra.mxu0 %v1993
    %4056 = vmatpush.bf16.msra.mxu0 %v1989
    %4057 = vmatpush.bf16.msra.mxu0 %v1985
    %4058 = vmatpush.bf16.msra.mxu0 %v1981
    %4059 = vmatmul.bf16.gmra.mxu0 %v3816
    %v4060 = vpop.f32.mrf.mxu0
    %v4061 = vadd.f32 %v4048, %v4060
    %v4062 = vpop.f32.mrf.mxu0
    %4063 = vdwg.mxu0
    %4064 = vmatpush.bf16.msra.mxu0 %v1978
    %4065 = vmatpush.bf16.msra.mxu0 %v1974
    %4066 = vmatpush.bf16.msra.mxu0 %v1970
    %4067 = vmatpush.bf16.msra.mxu0 %v1966
    %4068 = vmatpush.bf16.msra.mxu0 %v1962
    %4069 = vmatpush.bf16.msra.mxu0 %v1958
    %4070 = vmatpush.bf16.msra.mxu0 %v1954
    %4071 = vmatpush.bf16.msra.mxu0 %v1950
    %4072 = vmatmul.bf16.gmra.mxu0 %v3985
    %v4073 = vpop.f32.mrf.mxu0
    %v4074 = vadd.f32 %v1750, %v4073
    %v4075 = vpop.f32.mrf.mxu0
    %4076 = vdwg.mxu0
    %4077 = vmatpush.bf16.msra.mxu0 %v2010
    %4078 = vmatpush.bf16.msra.mxu0 %v2006
    %4079 = vmatpush.bf16.msra.mxu0 %v2002
    %4080 = vmatpush.bf16.msra.mxu0 %v1998
    %4081 = vmatpush.bf16.msra.mxu0 %v1994
    %4082 = vmatpush.bf16.msra.mxu0 %v1990
    %4083 = vmatpush.bf16.msra.mxu0 %v1986
    %4084 = vmatpush.bf16.msra.mxu0 %v1982
    %4085 = vmatmul.bf16.gmra.mxu0 %v3816
    %v4086 = vpop.f32.mrf.mxu0
    %v4087 = vadd.f32 %v4074, %v4086
    %v4088 = vpop.f32.mrf.mxu0
    %4089 = vdwg.mxu0
    %v4090 = vxor.u32 %v4009, 2147483648
    %v4091 = vmul.f32 %v4090, 1.442695
    %v4092 = vpow.pop %v4091
    %v4093 = vadd.f32 %v4092, 1.0
    %v4094 = vrcp.pop %v4093
    %v4095 = vmul.f32 %v4093, %v4094
    %v4096 = vsub.f32 1.0, %v4095
    %v4097 = vmul.f32 %v4094, %v4096
    %v4098 = vadd.f32 %v4094, %v4097
    %vm4099 = vweird.f32 %v4093
    %vm4100 = vweird.f32 %v4094
    %vm4101 = vmor %vm4099, %vm4100
    %v4102 = vsel %vm4101, %v4094, %v4098
    %v4103 = vand.u32 2147483647, %v4093
    %vm4104 = vcmp.eq.f32.partialorder %v4103, 8.507059e+37
    %v4105 = vand.u32 %v4093, 2147483648
    %v4106 = vor.u32 1.1754944e-38, %v4105
    %v4107 = vsel %vm4104, %v4106, %v4102
    %v4108 = vmul.f32 1.0, %v4107
    %v4109 = vxor.u32 %v4035, 2147483648
    %v4110 = vmul.f32 %v4109, 1.442695
    %v4111 = vpow.pop %v4110
    %v4112 = vadd.f32 %v4111, 1.0
    %v4113 = vrcp.pop %v4112
    %v4114 = vmul.f32 %v4112, %v4113
    %v4115 = vsub.f32 1.0, %v4114
    %v4116 = vmul.f32 %v4113, %v4115
    %v4117 = vadd.f32 %v4113, %v4116
    %vm4118 = vweird.f32 %v4112
    %vm4119 = vweird.f32 %v4113
    %vm4120 = vmor %vm4118, %vm4119
    %v4121 = vsel %vm4120, %v4113, %v4117
    %v4122 = vand.u32 2147483647, %v4112
    %vm4123 = vcmp.eq.f32.partialorder %v4122, 8.507059e+37
    %v4124 = vand.u32 %v4112, 2147483648
    %v4125 = vor.u32 1.1754944e-38, %v4124
    %v4126 = vsel %vm4123, %v4125, %v4121
    %v4127 = vmul.f32 1.0, %v4126
    %v4128 = vtanh.pop %v4061
    %v4129 = vxor.u32 %v4087, 2147483648
    %v4130 = vmul.f32 %v4129, 1.442695
    %v4131 = vpow.pop %v4130
    %v4132 = vadd.f32 %v4131, 1.0
    %v4133 = vrcp.pop %v4132
    %v4134 = vmul.f32 %v4132, %v4133
    %v4135 = vsub.f32 1.0, %v4134
    %v4136 = vmul.f32 %v4133, %v4135
    %v4137 = vadd.f32 %v4133, %v4136
    %vm4138 = vweird.f32 %v4132
    %vm4139 = vweird.f32 %v4133
    %vm4140 = vmor %vm4138, %vm4139
    %v4141 = vsel %vm4140, %v4133, %v4137
    %v4142 = vand.u32 2147483647, %v4132
    %vm4143 = vcmp.eq.f32.partialorder %v4142, 8.507059e+37
    %v4144 = vand.u32 %v4132, 2147483648
    %v4145 = vor.u32 1.1754944e-38, %v4144
    %v4146 = vsel %vm4143, %v4145, %v4141
    %v4147 = vmul.f32 1.0, %v4146
    %v4148 = vmul.f32 %v4127, %v3392
    %v4149 = vmul.f32 %v4108, %v4128
    %v4150 = vadd.f32 %v4148, %v4149
    %v4151 = vtanh.pop %v4150
    %v4152 = vmul.f32 %v4147, %v4151
    %v4153 = vpack.c.bf16 %v3685, %v3685
    %4154 = vmatpush.bf16.msra.mxu0 %v1128
    %4155 = vmatpush.bf16.msra.mxu0 %v1124
    %4156 = vmatpush.bf16.msra.mxu0 %v1120
    %4157 = vmatpush.bf16.msra.mxu0 %v1116
    %4158 = vmatpush.bf16.msra.mxu0 %v1112
    %4159 = vmatpush.bf16.msra.mxu0 %v1108
    %4160 = vmatpush.bf16.msra.mxu0 %v1104
    %4161 = vmatpush.bf16.msra.mxu0 %v1100
    %4162 = vmatmul.bf16.gmra.mxu0 %v4153
    %v4163 = vpop.f32.mrf.mxu0
    %v4164 = vadd.f32 %v900, %v4163
    %v4165 = vpop.f32.mrf.mxu0
    %4166 = vdwg.mxu0
    %4167 = vmatpush.bf16.msra.mxu0 %v1160
    %4168 = vmatpush.bf16.msra.mxu0 %v1156
    %4169 = vmatpush.bf16.msra.mxu0 %v1152
    %4170 = vmatpush.bf16.msra.mxu0 %v1148
    %4171 = vmatpush.bf16.msra.mxu0 %v1144
    %4172 = vmatpush.bf16.msra.mxu0 %v1140
    %4173 = vmatpush.bf16.msra.mxu0 %v1136
    %4174 = vmatpush.bf16.msra.mxu0 %v1132
    %4175 = vmatmul.bf16.gmra.mxu0 %v3985
    %v4176 = vpop.f32.mrf.mxu0
    %v4177 = vadd.f32 %v4164, %v4176
    %v4178 = vpop.f32.mrf.mxu0
    %4179 = vdwg.mxu0
    %4180 = vmatpush.bf16.msra.mxu0 %v1129
    %4181 = vmatpush.bf16.msra.mxu0 %v1125
    %4182 = vmatpush.bf16.msra.mxu0 %v1121
    %4183 = vmatpush.bf16.msra.mxu0 %v1117
    %4184 = vmatpush.bf16.msra.mxu0 %v1113
    %4185 = vmatpush.bf16.msra.mxu0 %v1109
    %4186 = vmatpush.bf16.msra.mxu0 %v1105
    %4187 = vmatpush.bf16.msra.mxu0 %v1101
    %4188 = vmatmul.bf16.gmra.mxu0 %v4153
    %v4189 = vpop.f32.mrf.mxu0
    %v4190 = vadd.f32 %v901, %v4189
    %v4191 = vpop.f32.mrf.mxu0
    %4192 = vdwg.mxu0
    %4193 = vmatpush.bf16.msra.mxu0 %v1161
    %4194 = vmatpush.bf16.msra.mxu0 %v1157
    %4195 = vmatpush.bf16.msra.mxu0 %v1153
    %4196 = vmatpush.bf16.msra.mxu0 %v1149
    %4197 = vmatpush.bf16.msra.mxu0 %v1145
    %4198 = vmatpush.bf16.msra.mxu0 %v1141
    %4199 = vmatpush.bf16.msra.mxu0 %v1137
    %4200 = vmatpush.bf16.msra.mxu0 %v1133
    %4201 = vmatmul.bf16.gmra.mxu0 %v3985
    %v4202 = vpop.f32.mrf.mxu0
    %v4203 = vadd.f32 %v4190, %v4202
    %v4204 = vpop.f32.mrf.mxu0
    %4205 = vdwg.mxu0
    %4206 = vmatpush.bf16.msra.mxu0 %v1130
    %4207 = vmatpush.bf16.msra.mxu0 %v1126
    %4208 = vmatpush.bf16.msra.mxu0 %v1122
    %4209 = vmatpush.bf16.msra.mxu0 %v1118
    %4210 = vmatpush.bf16.msra.mxu0 %v1114
    %4211 = vmatpush.bf16.msra.mxu0 %v1110
    %4212 = vmatpush.bf16.msra.mxu0 %v1106
    %4213 = vmatpush.bf16.msra.mxu0 %v1102
    %4214 = vmatmul.bf16.gmra.mxu0 %v4153
    %v4215 = vpop.f32.mrf.mxu0
    %v4216 = vadd.f32 %v902, %v4215
    %v4217 = vpop.f32.mrf.mxu0
    %4218 = vdwg.mxu0
    %4219 = vmatpush.bf16.msra.mxu0 %v1162
    %4220 = vmatpush.bf16.msra.mxu0 %v1158
    %4221 = vmatpush.bf16.msra.mxu0 %v1154
    %4222 = vmatpush.bf16.msra.mxu0 %v1150
    %4223 = vmatpush.bf16.msra.mxu0 %v1146
    %4224 = vmatpush.bf16.msra.mxu0 %v1142
    %4225 = vmatpush.bf16.msra.mxu0 %v1138
    %4226 = vmatpush.bf16.msra.mxu0 %v1134
    %4227 = vmatmul.bf16.gmra.mxu0 %v3985
    %v4228 = vpop.f32.mrf.mxu0
    %v4229 = vadd.f32 %v4216, %v4228
    %v4230 = vpop.f32.mrf.mxu0
    %4231 = vdwg.mxu0
    %4232 = vmatpush.bf16.msra.mxu0 %v1131
    %4233 = vmatpush.bf16.msra.mxu0 %v1127
    %4234 = vmatpush.bf16.msra.mxu0 %v1123
    %4235 = vmatpush.bf16.msra.mxu0 %v1119
    %4236 = vmatpush.bf16.msra.mxu0 %v1115
    %4237 = vmatpush.bf16.msra.mxu0 %v1111
    %4238 = vmatpush.bf16.msra.mxu0 %v1107
    %4239 = vmatpush.bf16.msra.mxu0 %v1103
    %4240 = vmatmul.bf16.gmra.mxu0 %v4153
    %v4241 = vpop.f32.mrf.mxu0
    %v4242 = vadd.f32 %v903, %v4241
    %v4243 = vpop.f32.mrf.mxu0
    %4244 = vdwg.mxu0
    %4245 = vmatpush.bf16.msra.mxu0 %v1163
    %4246 = vmatpush.bf16.msra.mxu0 %v1159
    %4247 = vmatpush.bf16.msra.mxu0 %v1155
    %4248 = vmatpush.bf16.msra.mxu0 %v1151
    %4249 = vmatpush.bf16.msra.mxu0 %v1147
    %4250 = vmatpush.bf16.msra.mxu0 %v1143
    %4251 = vmatpush.bf16.msra.mxu0 %v1139
    %4252 = vmatpush.bf16.msra.mxu0 %v1135
    %4253 = vmatmul.bf16.gmra.mxu0 %v3985
    %v4254 = vpop.f32.mrf.mxu0
    %v4255 = vadd.f32 %v4242, %v4254
    %v4256 = vpop.f32.mrf.mxu0
    %4257 = vdwg.mxu0
    %v4258 = vxor.u32 %v4177, 2147483648
    %v4259 = vmul.f32 %v4258, 1.442695
    %v4260 = vpow.pop %v4259
    %v4261 = vadd.f32 %v4260, 1.0
    %v4262 = vrcp.pop %v4261
    %v4263 = vmul.f32 %v4261, %v4262
    %v4264 = vsub.f32 1.0, %v4263
    %v4265 = vmul.f32 %v4262, %v4264
    %v4266 = vadd.f32 %v4262, %v4265
    %vm4267 = vweird.f32 %v4261
    %vm4268 = vweird.f32 %v4262
    %vm4269 = vmor %vm4267, %vm4268
    %v4270 = vsel %vm4269, %v4262, %v4266
    %v4271 = vand.u32 2147483647, %v4261
    %vm4272 = vcmp.eq.f32.partialorder %v4271, 8.507059e+37
    %v4273 = vand.u32 %v4261, 2147483648
    %v4274 = vor.u32 1.1754944e-38, %v4273
    %v4275 = vsel %vm4272, %v4274, %v4270
    %v4276 = vmul.f32 1.0, %v4275
    %v4277 = vxor.u32 %v4203, 2147483648
    %v4278 = vmul.f32 %v4277, 1.442695
    %v4279 = vpow.pop %v4278
    %v4280 = vadd.f32 %v4279, 1.0
    %v4281 = vrcp.pop %v4280
    %v4282 = vmul.f32 %v4280, %v4281
    %v4283 = vsub.f32 1.0, %v4282
    %v4284 = vmul.f32 %v4281, %v4283
    %v4285 = vadd.f32 %v4281, %v4284
    %vm4286 = vweird.f32 %v4280
    %vm4287 = vweird.f32 %v4281
    %vm4288 = vmor %vm4286, %vm4287
    %v4289 = vsel %vm4288, %v4281, %v4285
    %v4290 = vand.u32 2147483647, %v4280
    %vm4291 = vcmp.eq.f32.partialorder %v4290, 8.507059e+37
    %v4292 = vand.u32 %v4280, 2147483648
    %v4293 = vor.u32 1.1754944e-38, %v4292
    %v4294 = vsel %vm4291, %v4293, %v4289
    %v4295 = vmul.f32 1.0, %v4294
    %v4296 = vtanh.pop %v4229
    %v4297 = vxor.u32 %v4255, 2147483648
    %v4298 = vmul.f32 %v4297, 1.442695
    %v4299 = vpow.pop %v4298
    %v4300 = vadd.f32 %v4299, 1.0
    %v4301 = vrcp.pop %v4300
    %v4302 = vmul.f32 %v4300, %v4301
    %v4303 = vsub.f32 1.0, %v4302
    %v4304 = vmul.f32 %v4301, %v4303
    %v4305 = vadd.f32 %v4301, %v4304
    %vm4306 = vweird.f32 %v4300
    %vm4307 = vweird.f32 %v4301
    %vm4308 = vmor %vm4306, %vm4307
    %v4309 = vsel %vm4308, %v4301, %v4305
    %v4310 = vand.u32 2147483647, %v4300
    %vm4311 = vcmp.eq.f32.partialorder %v4310, 8.507059e+37
    %v4312 = vand.u32 %v4300, 2147483648
    %v4313 = vor.u32 1.1754944e-38, %v4312
    %v4314 = vsel %vm4311, %v4313, %v4309
    %v4315 = vmul.f32 1.0, %v4314
    %v4316 = vmul.f32 %v4295, %v3560
    %v4317 = vmul.f32 %v4276, %v4296
    %v4318 = vadd.f32 %v4316, %v4317
    %v4319 = vtanh.pop %v4318
    %v4320 = vmul.f32 %v4315, %v4319
    %v4321 = vld [vmem:[#allocation2 + $0x80] sm:$0xff]
    %v4322 = vld [vmem:[#allocation2 + $0x88] sm:$0xff]
    %v4323 = vld [vmem:[#allocation2 + $0x90] sm:$0xff]
    %v4324 = vld [vmem:[#allocation2 + $0x98] sm:$0xff]
    %4325 = vmatpush.bf16.msra.mxu0 %v604
    %4326 = vmatpush.bf16.msra.mxu0 %v600
    %4327 = vmatpush.bf16.msra.mxu0 %v596
    %4328 = vmatpush.bf16.msra.mxu0 %v592
    %4329 = vmatpush.bf16.msra.mxu0 %v588
    %4330 = vmatpush.bf16.msra.mxu0 %v584
    %4331 = vmatpush.bf16.msra.mxu0 %v580
    %4332 = vmatpush.bf16.msra.mxu0 %v576
    %4333 = vmatmul.bf16.gmra.mxu0 %v4153
    %v4334 = vpop.f32.mrf.mxu0
    %v4335 = vadd.f32 0.0, %v4334
    %v4336 = vpop.f32.mrf.mxu0
    %4337 = vdwg.mxu0
    %4338 = vmatpush.bf16.msra.mxu0 %v605
    %4339 = vmatpush.bf16.msra.mxu0 %v601
    %4340 = vmatpush.bf16.msra.mxu0 %v597
    %4341 = vmatpush.bf16.msra.mxu0 %v593
    %4342 = vmatpush.bf16.msra.mxu0 %v589
    %4343 = vmatpush.bf16.msra.mxu0 %v585
    %4344 = vmatpush.bf16.msra.mxu0 %v581
    %4345 = vmatpush.bf16.msra.mxu0 %v577
    %4346 = vmatmul.bf16.gmra.mxu0 %v4153
    %v4347 = vpop.f32.mrf.mxu0
    %v4348 = vadd.f32 0.0, %v4347
    %v4349 = vpop.f32.mrf.mxu0
    %4350 = vdwg.mxu0
    %4351 = vmatpush.bf16.msra.mxu0 %v606
    %4352 = vmatpush.bf16.msra.mxu0 %v602
    %4353 = vmatpush.bf16.msra.mxu0 %v598
    %4354 = vmatpush.bf16.msra.mxu0 %v594
    %4355 = vmatpush.bf16.msra.mxu0 %v590
    %4356 = vmatpush.bf16.msra.mxu0 %v586
    %4357 = vmatpush.bf16.msra.mxu0 %v582
    %4358 = vmatpush.bf16.msra.mxu0 %v578
    %4359 = vmatmul.bf16.gmra.mxu0 %v4153
    %v4360 = vpop.f32.mrf.mxu0
    %v4361 = vadd.f32 0.0, %v4360
    %v4362 = vpop.f32.mrf.mxu0
    %4363 = vdwg.mxu0
    %4364 = vmatpush.bf16.msra.mxu0 %v607
    %4365 = vmatpush.bf16.msra.mxu0 %v603
    %4366 = vmatpush.bf16.msra.mxu0 %v599
    %4367 = vmatpush.bf16.msra.mxu0 %v595
    %4368 = vmatpush.bf16.msra.mxu0 %v591
    %4369 = vmatpush.bf16.msra.mxu0 %v587
    %4370 = vmatpush.bf16.msra.mxu0 %v583
    %4371 = vmatpush.bf16.msra.mxu0 %v579
    %4372 = vmatmul.bf16.gmra.mxu0 %v4153
    %v4373 = vpop.f32.mrf.mxu0
    %v4374 = vadd.f32 0.0, %v4373
    %v4375 = vpop.f32.mrf.mxu0
    %4376 = vdwg.mxu0
    %v4377 = vadd.f32 %v4321, %v4335
    %v4378 = vadd.f32 %v4322, %v4348
    %v4379 = vadd.f32 %v4323, %v4361
    %v4380 = vadd.f32 %v4324, %v4374
    %v4381 = vxor.u32 %v4377, 2147483648
    %v4382 = vmul.f32 %v4381, 1.442695
    %v4383 = vpow.pop %v4382
    %v4384 = vadd.f32 %v4383, 1.0
    %v4385 = vrcp.pop %v4384
    %v4386 = vmul.f32 %v4384, %v4385
    %v4387 = vsub.f32 1.0, %v4386
    %v4388 = vmul.f32 %v4385, %v4387
    %v4389 = vadd.f32 %v4385, %v4388
    %vm4390 = vweird.f32 %v4384
    %vm4391 = vweird.f32 %v4385
    %vm4392 = vmor %vm4390, %vm4391
    %v4393 = vsel %vm4392, %v4385, %v4389
    %v4394 = vand.u32 2147483647, %v4384
    %vm4395 = vcmp.eq.f32.partialorder %v4394, 8.507059e+37
    %v4396 = vand.u32 %v4384, 2147483648
    %v4397 = vor.u32 1.1754944e-38, %v4396
    %v4398 = vsel %vm4395, %v4397, %v4393
    %v4399 = vmul.f32 1.0, %v4398
    %v4400 = vxor.u32 %v4378, 2147483648
    %v4401 = vmul.f32 %v4400, 1.442695
    %v4402 = vpow.pop %v4401
    %v4403 = vadd.f32 %v4402, 1.0
    %v4404 = vrcp.pop %v4403
    %v4405 = vmul.f32 %v4403, %v4404
    %v4406 = vsub.f32 1.0, %v4405
    %v4407 = vmul.f32 %v4404, %v4406
    %v4408 = vadd.f32 %v4404, %v4407
    %vm4409 = vweird.f32 %v4403
    %vm4410 = vweird.f32 %v4404
    %vm4411 = vmor %vm4409, %vm4410
    %v4412 = vsel %vm4411, %v4404, %v4408
    %v4413 = vand.u32 2147483647, %v4403
    %vm4414 = vcmp.eq.f32.partialorder %v4413, 8.507059e+37
    %v4415 = vand.u32 %v4403, 2147483648
    %v4416 = vor.u32 1.1754944e-38, %v4415
    %v4417 = vsel %vm4414, %v4416, %v4412
    %v4418 = vmul.f32 1.0, %v4417
    %v4419 = vtanh.pop %v4379
    %v4420 = vxor.u32 %v4380, 2147483648
    %v4421 = vmul.f32 %v4420, 1.442695
    %v4422 = vpow.pop %v4421
    %v4423 = vadd.f32 %v4422, 1.0
    %v4424 = vrcp.pop %v4423
    %v4425 = vmul.f32 %v4423, %v4424
    %v4426 = vsub.f32 1.0, %v4425
    %v4427 = vmul.f32 %v4424, %v4426
    %v4428 = vadd.f32 %v4424, %v4427
    %vm4429 = vweird.f32 %v4423
    %vm4430 = vweird.f32 %v4424
    %vm4431 = vmor %vm4429, %vm4430
    %v4432 = vsel %vm4431, %v4424, %v4428
    %v4433 = vand.u32 2147483647, %v4423
    %vm4434 = vcmp.eq.f32.partialorder %v4433, 8.507059e+37
    %v4435 = vand.u32 %v4423, 2147483648
    %v4436 = vor.u32 1.1754944e-38, %v4435
    %v4437 = vsel %vm4434, %v4436, %v4432
    %v4438 = vmul.f32 1.0, %v4437
    %v4439 = vmul.f32 %v4418, %v3683
    %v4440 = vmul.f32 %v4399, %v4419
    %v4441 = vadd.f32 %v4439, %v4440
    %v4442 = vtanh.pop %v4441
    %v4443 = vmul.f32 %v4438, %v4442
    %v4444 = vpack.c.bf16 %v3815, %v3815
    %v4445 = vpack.c.bf16 %v3763, %v3763
    %4447 = vrot.lane.b32.xlu0 %v4445, 32
    %v4448 = vpop.permute.xlu0 %4447
    %v4450 = vsel %vm776, %v4448, 0
    %4452 = vmatpush.bf16.msra.mxu0 0
    %4453 = vmatpush.bf16.msra.mxu0 0
    %4454 = vmatpush.bf16.msra.mxu0 0
    %4455 = vmatpush.bf16.msra.mxu0 0
    %4456 = vmatpush.bf16.msra.mxu0 0
    %4457 = vmatpush.bf16.msra.mxu0 0
    %4458 = vmatpush.bf16.msra.mxu0 %v1536
    %4459 = vmatpush.bf16.msra.mxu0 %v1535
    %4460 = vmatmul.bf16.gmra.mxu0 %v4450
    %v4461 = vpop.f32.mrf.mxu0
    %v4462 = vadd.f32 0.0, %v4461
    %v4463 = vpop.f32.mrf.mxu0
    %4464 = vdwg.mxu0
    %4466 = vrot.lane.b32.xlu0 %v4444, 32
    %v4467 = vpop.permute.xlu0 %4466
    %v4469 = vsel %vm776, %v4467, 0
    %4471 = vmatpush.bf16.msra.mxu0 0
    %4472 = vmatpush.bf16.msra.mxu0 0
    %4473 = vmatpush.bf16.msra.mxu0 0
    %4474 = vmatpush.bf16.msra.mxu0 0
    %4475 = vmatpush.bf16.msra.mxu0 0
    %4476 = vmatpush.bf16.msra.mxu0 0
    %4477 = vmatpush.bf16.msra.mxu0 %v1564
    %4478 = vmatpush.bf16.msra.mxu0 %v1563
    %4479 = vmatmul.bf16.gmra.mxu0 %v4469
    %v4480 = vpop.f32.mrf.mxu0
    %v4481 = vadd.f32 %v4462, %v4480
    %v4482 = vpop.f32.mrf.mxu0
    %4483 = vdwg.mxu0
    %v4484 = vadd.f32 %v4481, %v1586
    %v4485 = vxor.u32 %v4484, 2147483648
    %v4486 = vmul.f32 %v4485, 1.442695
    %v4487 = vpow.pop %v4486
    %v4488 = vadd.f32 %v4487, 1.0
    %v4489 = vrcp.pop %v4488
    %v4490 = vmul.f32 %v4488, %v4489
    %v4491 = vsub.f32 1.0, %v4490
    %v4492 = vmul.f32 %v4489, %v4491
    %v4493 = vadd.f32 %v4489, %v4492
    %vm4494 = vweird.f32 %v4488
    %vm4495 = vweird.f32 %v4489
    %vm4496 = vmor %vm4494, %vm4495
    %v4497 = vsel %vm4496, %v4489, %v4493
    %v4498 = vand.u32 2147483647, %v4488
    %vm4499 = vcmp.eq.f32.partialorder %v4498, 8.507059e+37
    %v4500 = vand.u32 %v4488, 2147483648
    %v4501 = vor.u32 1.1754944e-38, %v4500
    %v4502 = vsel %vm4499, %v4501, %v4497
    %v4503 = vmul.f32 1.0, %v4502
    %v4504 = vtanh.pop %v4484
    %v4505 = vmul.f32 %v4503, %v3757
    %4507 = vrot.lane.b32.xlu0 %v4504, 64
    %v4508 = vpop.permute.xlu0 %4507
    %v4510 = vmul.f32 %v4503, %v4508
    %4512 = vrot.lane.b32.xlu0 %v4510, 32
    %v4513 = vpop.permute.xlu0 %4512
    %v4515 = vadd.f32 %v4505, %v4513
    %v4516 = vtanh.pop %v4515
    %4518 = vrot.lane.b32.xlu0 %v4516, 64
    %v4519 = vpop.permute.xlu0 %4518
    %v4521 = vmul.f32 %v4503, %v4519
    %v4522 = vld [vmem:[#allocation3 + $0x20] sm:$0xff]
    %4523 = vmatpush.bf16.msra.mxu0 0
    %4524 = vmatpush.bf16.msra.mxu0 0
    %4525 = vmatpush.bf16.msra.mxu0 0
    %4526 = vmatpush.bf16.msra.mxu0 0
    %4527 = vmatpush.bf16.msra.mxu0 0
    %4528 = vmatpush.bf16.msra.mxu0 0
    %4529 = vmatpush.bf16.msra.mxu0 %v773
    %4530 = vmatpush.bf16.msra.mxu0 %v772
    %4531 = vmatmul.bf16.gmra.mxu0 %v4469
    %v4532 = vpop.f32.mrf.mxu0
    %v4533 = vadd.f32 0.0, %v4532
    %v4534 = vpop.f32.mrf.mxu0
    %4535 = vdwg.mxu0
    %v4536 = vadd.f32 %v4522, %v4533
    %v4537 = vxor.u32 %v4536, 2147483648
    %v4538 = vmul.f32 %v4537, 1.442695
    %v4539 = vpow.pop %v4538
    %v4540 = vadd.f32 %v4539, 1.0
    %v4541 = vrcp.pop %v4540
    %v4542 = vmul.f32 %v4540, %v4541
    %v4543 = vsub.f32 1.0, %v4542
    %v4544 = vmul.f32 %v4541, %v4543
    %v4545 = vadd.f32 %v4541, %v4544
    %vm4546 = vweird.f32 %v4540
    %vm4547 = vweird.f32 %v4541
    %vm4548 = vmor %vm4546, %vm4547
    %v4549 = vsel %vm4548, %v4541, %v4545
    %v4550 = vand.u32 2147483647, %v4540
    %vm4551 = vcmp.eq.f32.partialorder %v4550, 8.507059e+37
    %v4552 = vand.u32 %v4540, 2147483648
    %v4553 = vor.u32 1.1754944e-38, %v4552
    %v4554 = vsel %vm4551, %v4553, %v4549
    %v4555 = vmul.f32 1.0, %v4554
    %v4556 = vtanh.pop %v4536
    %v4557 = vmul.f32 %v4555, %v3809
    %4559 = vrot.lane.b32.xlu0 %v4556, 64
    %v4560 = vpop.permute.xlu0 %4559
    %v4562 = vmul.f32 %v4555, %v4560
    %4564 = vrot.lane.b32.xlu0 %v4562, 32
    %v4565 = vpop.permute.xlu0 %4564
    %v4567 = vadd.f32 %v4557, %v4565
    %v4568 = vtanh.pop %v4567
    %4570 = vrot.lane.b32.xlu0 %v4568, 64
    %v4571 = vpop.permute.xlu0 %4570
    %v4573 = vmul.f32 %v4555, %v4571
    %v4574 = vpack.c.bf16 %v4152, %v4152
    %v4575 = vpack.c.bf16 %v3984, %v3984
    %4576 = vmatpush.bf16.msra.mxu0 %v2960
    %4577 = vmatpush.bf16.msra.mxu0 %v2956
    %4578 = vmatpush.bf16.msra.mxu0 %v2952
    %4579 = vmatpush.bf16.msra.mxu0 %v2948
    %4580 = vmatpush.bf16.msra.mxu0 %v2944
    %4581 = vmatpush.bf16.msra.mxu0 %v2940
    %4582 = vmatpush.bf16.msra.mxu0 %v2936
    %4583 = vmatpush.bf16.msra.mxu0 %v2932
    %4584 = vmatmul.bf16.gmra.mxu0 %v4574
    %v4585 = vpop.f32.mrf.mxu0
    %v4586 = vadd.f32 %v2732, %v4585
    %v4587 = vpop.f32.mrf.mxu0
    %4588 = vdwg.mxu0
    %4589 = vmatpush.bf16.msra.mxu0 %v2992
    %4590 = vmatpush.bf16.msra.mxu0 %v2988
    %4591 = vmatpush.bf16.msra.mxu0 %v2984
    %4592 = vmatpush.bf16.msra.mxu0 %v2980
    %4593 = vmatpush.bf16.msra.mxu0 %v2976
    %4594 = vmatpush.bf16.msra.mxu0 %v2972
    %4595 = vmatpush.bf16.msra.mxu0 %v2968
    %4596 = vmatpush.bf16.msra.mxu0 %v2964
    %4597 = vmatmul.bf16.gmra.mxu0 %v4575
    %v4598 = vpop.f32.mrf.mxu0
    %v4599 = vadd.f32 %v4586, %v4598
    %v4600 = vpop.f32.mrf.mxu0
    %4601 = vdwg.mxu0
    %4602 = vmatpush.bf16.msra.mxu0 %v2961
    %4603 = vmatpush.bf16.msra.mxu0 %v2957
    %4604 = vmatpush.bf16.msra.mxu0 %v2953
    %4605 = vmatpush.bf16.msra.mxu0 %v2949
    %4606 = vmatpush.bf16.msra.mxu0 %v2945
    %4607 = vmatpush.bf16.msra.mxu0 %v2941
    %4608 = vmatpush.bf16.msra.mxu0 %v2937
    %4609 = vmatpush.bf16.msra.mxu0 %v2933
    %4610 = vmatmul.bf16.gmra.mxu0 %v4574
    %v4611 = vpop.f32.mrf.mxu0
    %v4612 = vadd.f32 %v2733, %v4611
    %v4613 = vpop.f32.mrf.mxu0
    %4614 = vdwg.mxu0
    %4615 = vmatpush.bf16.msra.mxu0 %v2993
    %4616 = vmatpush.bf16.msra.mxu0 %v2989
    %4617 = vmatpush.bf16.msra.mxu0 %v2985
    %4618 = vmatpush.bf16.msra.mxu0 %v2981
    %4619 = vmatpush.bf16.msra.mxu0 %v2977
    %4620 = vmatpush.bf16.msra.mxu0 %v2973
    %4621 = vmatpush.bf16.msra.mxu0 %v2969
    %4622 = vmatpush.bf16.msra.mxu0 %v2965
    %4623 = vmatmul.bf16.gmra.mxu0 %v4575
    %v4624 = vpop.f32.mrf.mxu0
    %v4625 = vadd.f32 %v4612, %v4624
    %v4626 = vpop.f32.mrf.mxu0
    %4627 = vdwg.mxu0
    %4628 = vmatpush.bf16.msra.mxu0 %v2962
    %4629 = vmatpush.bf16.msra.mxu0 %v2958
    %4630 = vmatpush.bf16.msra.mxu0 %v2954
    %4631 = vmatpush.bf16.msra.mxu0 %v2950
    %4632 = vmatpush.bf16.msra.mxu0 %v2946
    %4633 = vmatpush.bf16.msra.mxu0 %v2942
    %4634 = vmatpush.bf16.msra.mxu0 %v2938
    %4635 = vmatpush.bf16.msra.mxu0 %v2934
    %4636 = vmatmul.bf16.gmra.mxu0 %v4574
    %v4637 = vpop.f32.mrf.mxu0
    %v4638 = vadd.f32 %v2734, %v4637
    %v4639 = vpop.f32.mrf.mxu0
    %4640 = vdwg.mxu0
    %4641 = vmatpush.bf16.msra.mxu0 %v2994
    %4642 = vmatpush.bf16.msra.mxu0 %v2990
    %4643 = vmatpush.bf16.msra.mxu0 %v2986
    %4644 = vmatpush.bf16.msra.mxu0 %v2982
    %4645 = vmatpush.bf16.msra.mxu0 %v2978
    %4646 = vmatpush.bf16.msra.mxu0 %v2974
    %4647 = vmatpush.bf16.msra.mxu0 %v2970
    %4648 = vmatpush.bf16.msra.mxu0 %v2966
    %4649 = vmatmul.bf16.gmra.mxu0 %v4575
    %v4650 = vpop.f32.mrf.mxu0
    %v4651 = vadd.f32 %v4638, %v4650
    %v4652 = vpop.f32.mrf.mxu0
    %4653 = vdwg.mxu0
    %4654 = vmatpush.bf16.msra.mxu0 %v2963
    %4655 = vmatpush.bf16.msra.mxu0 %v2959
    %4656 = vmatpush.bf16.msra.mxu0 %v2955
    %4657 = vmatpush.bf16.msra.mxu0 %v2951
    %4658 = vmatpush.bf16.msra.mxu0 %v2947
    %4659 = vmatpush.bf16.msra.mxu0 %v2943
    %4660 = vmatpush.bf16.msra.mxu0 %v2939
    %4661 = vmatpush.bf16.msra.mxu0 %v2935
    %4662 = vmatmul.bf16.gmra.mxu0 %v4574
    %v4663 = vpop.f32.mrf.mxu0
    %v4664 = vadd.f32 %v2735, %v4663
    %v4665 = vpop.f32.mrf.mxu0
    %4666 = vdwg.mxu0
    %4667 = vmatpush.bf16.msra.mxu0 %v2995
    %4668 = vmatpush.bf16.msra.mxu0 %v2991
    %4669 = vmatpush.bf16.msra.mxu0 %v2987
    %4670 = vmatpush.bf16.msra.mxu0 %v2983
    %4671 = vmatpush.bf16.msra.mxu0 %v2979
    %4672 = vmatpush.bf16.msra.mxu0 %v2975
    %4673 = vmatpush.bf16.msra.mxu0 %v2971
    %4674 = vmatpush.bf16.msra.mxu0 %v2967
    %4675 = vmatmul.bf16.gmra.mxu0 %v4575
    %v4676 = vpop.f32.mrf.mxu0
    %v4677 = vadd.f32 %v4664, %v4676
    %v4678 = vpop.f32.mrf.mxu0
    %4679 = vdwg.mxu0
    %v4680 = vxor.u32 %v4599, 2147483648
    %v4681 = vmul.f32 %v4680, 1.442695
    %v4682 = vpow.pop %v4681
    %v4683 = vadd.f32 %v4682, 1.0
    %v4684 = vrcp.pop %v4683
    %v4685 = vmul.f32 %v4683, %v4684
    %v4686 = vsub.f32 1.0, %v4685
    %v4687 = vmul.f32 %v4684, %v4686
    %v4688 = vadd.f32 %v4684, %v4687
    %vm4689 = vweird.f32 %v4683
    %vm4690 = vweird.f32 %v4684
    %vm4691 = vmor %vm4689, %vm4690
    %v4692 = vsel %vm4691, %v4684, %v4688
    %v4693 = vand.u32 2147483647, %v4683
    %vm4694 = vcmp.eq.f32.partialorder %v4693, 8.507059e+37
    %v4695 = vand.u32 %v4683, 2147483648
    %v4696 = vor.u32 1.1754944e-38, %v4695
    %v4697 = vsel %vm4694, %v4696, %v4692
    %v4698 = vmul.f32 1.0, %v4697
    %v4699 = vxor.u32 %v4625, 2147483648
    %v4700 = vmul.f32 %v4699, 1.442695
    %v4701 = vpow.pop %v4700
    %v4702 = vadd.f32 %v4701, 1.0
    %v4703 = vrcp.pop %v4702
    %v4704 = vmul.f32 %v4702, %v4703
    %v4705 = vsub.f32 1.0, %v4704
    %v4706 = vmul.f32 %v4703, %v4705
    %v4707 = vadd.f32 %v4703, %v4706
    %vm4708 = vweird.f32 %v4702
    %vm4709 = vweird.f32 %v4703
    %vm4710 = vmor %vm4708, %vm4709
    %v4711 = vsel %vm4710, %v4703, %v4707
    %v4712 = vand.u32 2147483647, %v4702
    %vm4713 = vcmp.eq.f32.partialorder %v4712, 8.507059e+37
    %v4714 = vand.u32 %v4702, 2147483648
    %v4715 = vor.u32 1.1754944e-38, %v4714
    %v4716 = vsel %vm4713, %v4715, %v4711
    %v4717 = vmul.f32 1.0, %v4716
    %v4718 = vtanh.pop %v4651
    %v4719 = vxor.u32 %v4677, 2147483648
    %v4720 = vmul.f32 %v4719, 1.442695
    %v4721 = vpow.pop %v4720
    %v4722 = vadd.f32 %v4721, 1.0
    %v4723 = vrcp.pop %v4722
    %v4724 = vmul.f32 %v4722, %v4723
    %v4725 = vsub.f32 1.0, %v4724
    %v4726 = vmul.f32 %v4723, %v4725
    %v4727 = vadd.f32 %v4723, %v4726
    %vm4728 = vweird.f32 %v4722
    %vm4729 = vweird.f32 %v4723
    %vm4730 = vmor %vm4728, %vm4729
    %v4731 = vsel %vm4730, %v4723, %v4727
    %v4732 = vand.u32 2147483647, %v4722
    %vm4733 = vcmp.eq.f32.partialorder %v4732, 8.507059e+37
    %v4734 = vand.u32 %v4722, 2147483648
    %v4735 = vor.u32 1.1754944e-38, %v4734
    %v4736 = vsel %vm4733, %v4735, %v4731
    %v4737 = vmul.f32 1.0, %v4736
    %v4738 = vmul.f32 %v4717, %v3982
    %v4739 = vmul.f32 %v4698, %v4718
    %v4740 = vadd.f32 %v4738, %v4739
    %v4741 = vtanh.pop %v4740
    %v4742 = vmul.f32 %v4737, %v4741
    %v4743 = vpack.c.bf16 %v4320, %v4320
    %4744 = vmatpush.bf16.msra.mxu0 %v1975
    %4745 = vmatpush.bf16.msra.mxu0 %v1971
    %4746 = vmatpush.bf16.msra.mxu0 %v1967
    %4747 = vmatpush.bf16.msra.mxu0 %v1963
    %4748 = vmatpush.bf16.msra.mxu0 %v1959
    %4749 = vmatpush.bf16.msra.mxu0 %v1955
    %4750 = vmatpush.bf16.msra.mxu0 %v1951
    %4751 = vmatpush.bf16.msra.mxu0 %v1947
    %4752 = vmatmul.bf16.gmra.mxu0 %v4743
    %v4753 = vpop.f32.mrf.mxu0
    %v4754 = vadd.f32 %v1747, %v4753
    %v4755 = vpop.f32.mrf.mxu0
    %4756 = vdwg.mxu0
    %4757 = vmatpush.bf16.msra.mxu0 %v2007
    %4758 = vmatpush.bf16.msra.mxu0 %v2003
    %4759 = vmatpush.bf16.msra.mxu0 %v1999
    %4760 = vmatpush.bf16.msra.mxu0 %v1995
    %4761 = vmatpush.bf16.msra.mxu0 %v1991
    %4762 = vmatpush.bf16.msra.mxu0 %v1987
    %4763 = vmatpush.bf16.msra.mxu0 %v1983
    %4764 = vmatpush.bf16.msra.mxu0 %v1979
    %4765 = vmatmul.bf16.gmra.mxu0 %v4574
    %v4766 = vpop.f32.mrf.mxu0
    %v4767 = vadd.f32 %v4754, %v4766
    %v4768 = vpop.f32.mrf.mxu0
    %4769 = vdwg.mxu0
    %4770 = vmatpush.bf16.msra.mxu0 %v1976
    %4771 = vmatpush.bf16.msra.mxu0 %v1972
    %4772 = vmatpush.bf16.msra.mxu0 %v1968
    %4773 = vmatpush.bf16.msra.mxu0 %v1964
    %4774 = vmatpush.bf16.msra.mxu0 %v1960
    %4775 = vmatpush.bf16.msra.mxu0 %v1956
    %4776 = vmatpush.bf16.msra.mxu0 %v1952
    %4777 = vmatpush.bf16.msra.mxu0 %v1948
    %4778 = vmatmul.bf16.gmra.mxu0 %v4743
    %v4779 = vpop.f32.mrf.mxu0
    %v4780 = vadd.f32 %v1748, %v4779
    %v4781 = vpop.f32.mrf.mxu0
    %4782 = vdwg.mxu0
    %4783 = vmatpush.bf16.msra.mxu0 %v2008
    %4784 = vmatpush.bf16.msra.mxu0 %v2004
    %4785 = vmatpush.bf16.msra.mxu0 %v2000
    %4786 = vmatpush.bf16.msra.mxu0 %v1996
    %4787 = vmatpush.bf16.msra.mxu0 %v1992
    %4788 = vmatpush.bf16.msra.mxu0 %v1988
    %4789 = vmatpush.bf16.msra.mxu0 %v1984
    %4790 = vmatpush.bf16.msra.mxu0 %v1980
    %4791 = vmatmul.bf16.gmra.mxu0 %v4574
    %v4792 = vpop.f32.mrf.mxu0
    %v4793 = vadd.f32 %v4780, %v4792
    %v4794 = vpop.f32.mrf.mxu0
    %4795 = vdwg.mxu0
    %4796 = vmatpush.bf16.msra.mxu0 %v1977
    %4797 = vmatpush.bf16.msra.mxu0 %v1973
    %4798 = vmatpush.bf16.msra.mxu0 %v1969
    %4799 = vmatpush.bf16.msra.mxu0 %v1965
    %4800 = vmatpush.bf16.msra.mxu0 %v1961
    %4801 = vmatpush.bf16.msra.mxu0 %v1957
    %4802 = vmatpush.bf16.msra.mxu0 %v1953
    %4803 = vmatpush.bf16.msra.mxu0 %v1949
    %4804 = vmatmul.bf16.gmra.mxu0 %v4743
    %v4805 = vpop.f32.mrf.mxu0
    %v4806 = vadd.f32 %v1749, %v4805
    %v4807 = vpop.f32.mrf.mxu0
    %4808 = vdwg.mxu0
    %4809 = vmatpush.bf16.msra.mxu0 %v2009
    %4810 = vmatpush.bf16.msra.mxu0 %v2005
    %4811 = vmatpush.bf16.msra.mxu0 %v2001
    %4812 = vmatpush.bf16.msra.mxu0 %v1997
    %4813 = vmatpush.bf16.msra.mxu0 %v1993
    %4814 = vmatpush.bf16.msra.mxu0 %v1989
    %4815 = vmatpush.bf16.msra.mxu0 %v1985
    %4816 = vmatpush.bf16.msra.mxu0 %v1981
    %4817 = vmatmul.bf16.gmra.mxu0 %v4574
    %v4818 = vpop.f32.mrf.mxu0
    %v4819 = vadd.f32 %v4806, %v4818
    %v4820 = vpop.f32.mrf.mxu0
    %4821 = vdwg.mxu0
    %4822 = vmatpush.bf16.msra.mxu0 %v1978
    %4823 = vmatpush.bf16.msra.mxu0 %v1974
    %4824 = vmatpush.bf16.msra.mxu0 %v1970
    %4825 = vmatpush.bf16.msra.mxu0 %v1966
    %4826 = vmatpush.bf16.msra.mxu0 %v1962
    %4827 = vmatpush.bf16.msra.mxu0 %v1958
    %4828 = vmatpush.bf16.msra.mxu0 %v1954
    %4829 = vmatpush.bf16.msra.mxu0 %v1950
    %4830 = vmatmul.bf16.gmra.mxu0 %v4743
    %v4831 = vpop.f32.mrf.mxu0
    %v4832 = vadd.f32 %v1750, %v4831
    %v4833 = vpop.f32.mrf.mxu0
    %4834 = vdwg.mxu0
    %4835 = vmatpush.bf16.msra.mxu0 %v2010
    %4836 = vmatpush.bf16.msra.mxu0 %v2006
    %4837 = vmatpush.bf16.msra.mxu0 %v2002
    %4838 = vmatpush.bf16.msra.mxu0 %v1998
    %4839 = vmatpush.bf16.msra.mxu0 %v1994
    %4840 = vmatpush.bf16.msra.mxu0 %v1990
    %4841 = vmatpush.bf16.msra.mxu0 %v1986
    %4842 = vmatpush.bf16.msra.mxu0 %v1982
    %4843 = vmatmul.bf16.gmra.mxu0 %v4574
    %v4844 = vpop.f32.mrf.mxu0
    %v4845 = vadd.f32 %v4832, %v4844
    %v4846 = vpop.f32.mrf.mxu0
    %4847 = vdwg.mxu0
    %v4848 = vxor.u32 %v4767, 2147483648
    %v4849 = vmul.f32 %v4848, 1.442695
    %v4850 = vpow.pop %v4849
    %v4851 = vadd.f32 %v4850, 1.0
    %v4852 = vrcp.pop %v4851
    %v4853 = vmul.f32 %v4851, %v4852
    %v4854 = vsub.f32 1.0, %v4853
    %v4855 = vmul.f32 %v4852, %v4854
    %v4856 = vadd.f32 %v4852, %v4855
    %vm4857 = vweird.f32 %v4851
    %vm4858 = vweird.f32 %v4852
    %vm4859 = vmor %vm4857, %vm4858
    %v4860 = vsel %vm4859, %v4852, %v4856
    %v4861 = vand.u32 2147483647, %v4851
    %vm4862 = vcmp.eq.f32.partialorder %v4861, 8.507059e+37
    %v4863 = vand.u32 %v4851, 2147483648
    %v4864 = vor.u32 1.1754944e-38, %v4863
    %v4865 = vsel %vm4862, %v4864, %v4860
    %v4866 = vmul.f32 1.0, %v4865
    %v4867 = vxor.u32 %v4793, 2147483648
    %v4868 = vmul.f32 %v4867, 1.442695
    %v4869 = vpow.pop %v4868
    %v4870 = vadd.f32 %v4869, 1.0
    %v4871 = vrcp.pop %v4870
    %v4872 = vmul.f32 %v4870, %v4871
    %v4873 = vsub.f32 1.0, %v4872
    %v4874 = vmul.f32 %v4871, %v4873
    %v4875 = vadd.f32 %v4871, %v4874
    %vm4876 = vweird.f32 %v4870
    %vm4877 = vweird.f32 %v4871
    %vm4878 = vmor %vm4876, %vm4877
    %v4879 = vsel %vm4878, %v4871, %v4875
    %v4880 = vand.u32 2147483647, %v4870
    %vm4881 = vcmp.eq.f32.partialorder %v4880, 8.507059e+37
    %v4882 = vand.u32 %v4870, 2147483648
    %v4883 = vor.u32 1.1754944e-38, %v4882
    %v4884 = vsel %vm4881, %v4883, %v4879
    %v4885 = vmul.f32 1.0, %v4884
    %v4886 = vtanh.pop %v4819
    %v4887 = vxor.u32 %v4845, 2147483648
    %v4888 = vmul.f32 %v4887, 1.442695
    %v4889 = vpow.pop %v4888
    %v4890 = vadd.f32 %v4889, 1.0
    %v4891 = vrcp.pop %v4890
    %v4892 = vmul.f32 %v4890, %v4891
    %v4893 = vsub.f32 1.0, %v4892
    %v4894 = vmul.f32 %v4891, %v4893
    %v4895 = vadd.f32 %v4891, %v4894
    %vm4896 = vweird.f32 %v4890
    %vm4897 = vweird.f32 %v4891
    %vm4898 = vmor %vm4896, %vm4897
    %v4899 = vsel %vm4898, %v4891, %v4895
    %v4900 = vand.u32 2147483647, %v4890
    %vm4901 = vcmp.eq.f32.partialorder %v4900, 8.507059e+37
    %v4902 = vand.u32 %v4890, 2147483648
    %v4903 = vor.u32 1.1754944e-38, %v4902
    %v4904 = vsel %vm4901, %v4903, %v4899
    %v4905 = vmul.f32 1.0, %v4904
    %v4906 = vmul.f32 %v4885, %v4150
    %v4907 = vmul.f32 %v4866, %v4886
    %v4908 = vadd.f32 %v4906, %v4907
    %v4909 = vtanh.pop %v4908
    %v4910 = vmul.f32 %v4905, %v4909
    %v4911 = vpack.c.bf16 %v4443, %v4443
    %4912 = vmatpush.bf16.msra.mxu0 %v1128
    %4913 = vmatpush.bf16.msra.mxu0 %v1124
    %4914 = vmatpush.bf16.msra.mxu0 %v1120
    %4915 = vmatpush.bf16.msra.mxu0 %v1116
    %4916 = vmatpush.bf16.msra.mxu0 %v1112
    %4917 = vmatpush.bf16.msra.mxu0 %v1108
    %4918 = vmatpush.bf16.msra.mxu0 %v1104
    %4919 = vmatpush.bf16.msra.mxu0 %v1100
    %4920 = vmatmul.bf16.gmra.mxu0 %v4911
    %v4921 = vpop.f32.mrf.mxu0
    %v4922 = vadd.f32 %v900, %v4921
    %v4923 = vpop.f32.mrf.mxu0
    %4924 = vdwg.mxu0
    %4925 = vmatpush.bf16.msra.mxu0 %v1160
    %4926 = vmatpush.bf16.msra.mxu0 %v1156
    %4927 = vmatpush.bf16.msra.mxu0 %v1152
    %4928 = vmatpush.bf16.msra.mxu0 %v1148
    %4929 = vmatpush.bf16.msra.mxu0 %v1144
    %4930 = vmatpush.bf16.msra.mxu0 %v1140
    %4931 = vmatpush.bf16.msra.mxu0 %v1136
    %4932 = vmatpush.bf16.msra.mxu0 %v1132
    %4933 = vmatmul.bf16.gmra.mxu0 %v4743
    %v4934 = vpop.f32.mrf.mxu0
    %v4935 = vadd.f32 %v4922, %v4934
    %v4936 = vpop.f32.mrf.mxu0
    %4937 = vdwg.mxu0
    %4938 = vmatpush.bf16.msra.mxu0 %v1129
    %4939 = vmatpush.bf16.msra.mxu0 %v1125
    %4940 = vmatpush.bf16.msra.mxu0 %v1121
    %4941 = vmatpush.bf16.msra.mxu0 %v1117
    %4942 = vmatpush.bf16.msra.mxu0 %v1113
    %4943 = vmatpush.bf16.msra.mxu0 %v1109
    %4944 = vmatpush.bf16.msra.mxu0 %v1105
    %4945 = vmatpush.bf16.msra.mxu0 %v1101
    %4946 = vmatmul.bf16.gmra.mxu0 %v4911
    %v4947 = vpop.f32.mrf.mxu0
    %v4948 = vadd.f32 %v901, %v4947
    %v4949 = vpop.f32.mrf.mxu0
    %4950 = vdwg.mxu0
    %4951 = vmatpush.bf16.msra.mxu0 %v1161
    %4952 = vmatpush.bf16.msra.mxu0 %v1157
    %4953 = vmatpush.bf16.msra.mxu0 %v1153
    %4954 = vmatpush.bf16.msra.mxu0 %v1149
    %4955 = vmatpush.bf16.msra.mxu0 %v1145
    %4956 = vmatpush.bf16.msra.mxu0 %v1141
    %4957 = vmatpush.bf16.msra.mxu0 %v1137
    %4958 = vmatpush.bf16.msra.mxu0 %v1133
    %4959 = vmatmul.bf16.gmra.mxu0 %v4743
    %v4960 = vpop.f32.mrf.mxu0
    %v4961 = vadd.f32 %v4948, %v4960
    %v4962 = vpop.f32.mrf.mxu0
    %4963 = vdwg.mxu0
    %4964 = vmatpush.bf16.msra.mxu0 %v1130
    %4965 = vmatpush.bf16.msra.mxu0 %v1126
    %4966 = vmatpush.bf16.msra.mxu0 %v1122
    %4967 = vmatpush.bf16.msra.mxu0 %v1118
    %4968 = vmatpush.bf16.msra.mxu0 %v1114
    %4969 = vmatpush.bf16.msra.mxu0 %v1110
    %4970 = vmatpush.bf16.msra.mxu0 %v1106
    %4971 = vmatpush.bf16.msra.mxu0 %v1102
    %4972 = vmatmul.bf16.gmra.mxu0 %v4911
    %v4973 = vpop.f32.mrf.mxu0
    %v4974 = vadd.f32 %v902, %v4973
    %v4975 = vpop.f32.mrf.mxu0
    %4976 = vdwg.mxu0
    %4977 = vmatpush.bf16.msra.mxu0 %v1162
    %4978 = vmatpush.bf16.msra.mxu0 %v1158
    %4979 = vmatpush.bf16.msra.mxu0 %v1154
    %4980 = vmatpush.bf16.msra.mxu0 %v1150
    %4981 = vmatpush.bf16.msra.mxu0 %v1146
    %4982 = vmatpush.bf16.msra.mxu0 %v1142
    %4983 = vmatpush.bf16.msra.mxu0 %v1138
    %4984 = vmatpush.bf16.msra.mxu0 %v1134
    %4985 = vmatmul.bf16.gmra.mxu0 %v4743
    %v4986 = vpop.f32.mrf.mxu0
    %v4987 = vadd.f32 %v4974, %v4986
    %v4988 = vpop.f32.mrf.mxu0
    %4989 = vdwg.mxu0
    %4990 = vmatpush.bf16.msra.mxu0 %v1131
    %4991 = vmatpush.bf16.msra.mxu0 %v1127
    %4992 = vmatpush.bf16.msra.mxu0 %v1123
    %4993 = vmatpush.bf16.msra.mxu0 %v1119
    %4994 = vmatpush.bf16.msra.mxu0 %v1115
    %4995 = vmatpush.bf16.msra.mxu0 %v1111
    %4996 = vmatpush.bf16.msra.mxu0 %v1107
    %4997 = vmatpush.bf16.msra.mxu0 %v1103
    %4998 = vmatmul.bf16.gmra.mxu0 %v4911
    %v4999 = vpop.f32.mrf.mxu0
    %v5000 = vadd.f32 %v903, %v4999
    %v5001 = vpop.f32.mrf.mxu0
    %5002 = vdwg.mxu0
    %5003 = vmatpush.bf16.msra.mxu0 %v1163
    %5004 = vmatpush.bf16.msra.mxu0 %v1159
    %5005 = vmatpush.bf16.msra.mxu0 %v1155
    %5006 = vmatpush.bf16.msra.mxu0 %v1151
    %5007 = vmatpush.bf16.msra.mxu0 %v1147
    %5008 = vmatpush.bf16.msra.mxu0 %v1143
    %5009 = vmatpush.bf16.msra.mxu0 %v1139
    %5010 = vmatpush.bf16.msra.mxu0 %v1135
    %5011 = vmatmul.bf16.gmra.mxu0 %v4743
    %v5012 = vpop.f32.mrf.mxu0
    %v5013 = vadd.f32 %v5000, %v5012
    %v5014 = vpop.f32.mrf.mxu0
    %5015 = vdwg.mxu0
    %v5016 = vxor.u32 %v4935, 2147483648
    %v5017 = vmul.f32 %v5016, 1.442695
    %v5018 = vpow.pop %v5017
    %v5019 = vadd.f32 %v5018, 1.0
    %v5020 = vrcp.pop %v5019
    %v5021 = vmul.f32 %v5019, %v5020
    %v5022 = vsub.f32 1.0, %v5021
    %v5023 = vmul.f32 %v5020, %v5022
    %v5024 = vadd.f32 %v5020, %v5023
    %vm5025 = vweird.f32 %v5019
    %vm5026 = vweird.f32 %v5020
    %vm5027 = vmor %vm5025, %vm5026
    %v5028 = vsel %vm5027, %v5020, %v5024
    %v5029 = vand.u32 2147483647, %v5019
    %vm5030 = vcmp.eq.f32.partialorder %v5029, 8.507059e+37
    %v5031 = vand.u32 %v5019, 2147483648
    %v5032 = vor.u32 1.1754944e-38, %v5031
    %v5033 = vsel %vm5030, %v5032, %v5028
    %v5034 = vmul.f32 1.0, %v5033
    %v5035 = vxor.u32 %v4961, 2147483648
    %v5036 = vmul.f32 %v5035, 1.442695
    %v5037 = vpow.pop %v5036
    %v5038 = vadd.f32 %v5037, 1.0
    %v5039 = vrcp.pop %v5038
    %v5040 = vmul.f32 %v5038, %v5039
    %v5041 = vsub.f32 1.0, %v5040
    %v5042 = vmul.f32 %v5039, %v5041
    %v5043 = vadd.f32 %v5039, %v5042
    %vm5044 = vweird.f32 %v5038
    %vm5045 = vweird.f32 %v5039
    %vm5046 = vmor %vm5044, %vm5045
    %v5047 = vsel %vm5046, %v5039, %v5043
    %v5048 = vand.u32 2147483647, %v5038
    %vm5049 = vcmp.eq.f32.partialorder %v5048, 8.507059e+37
    %v5050 = vand.u32 %v5038, 2147483648
    %v5051 = vor.u32 1.1754944e-38, %v5050
    %v5052 = vsel %vm5049, %v5051, %v5047
    %v5053 = vmul.f32 1.0, %v5052
    %v5054 = vtanh.pop %v4987
    %v5055 = vxor.u32 %v5013, 2147483648
    %v5056 = vmul.f32 %v5055, 1.442695
    %v5057 = vpow.pop %v5056
    %v5058 = vadd.f32 %v5057, 1.0
    %v5059 = vrcp.pop %v5058
    %v5060 = vmul.f32 %v5058, %v5059
    %v5061 = vsub.f32 1.0, %v5060
    %v5062 = vmul.f32 %v5059, %v5061
    %v5063 = vadd.f32 %v5059, %v5062
    %vm5064 = vweird.f32 %v5058
    %vm5065 = vweird.f32 %v5059
    %vm5066 = vmor %vm5064, %vm5065
    %v5067 = vsel %vm5066, %v5059, %v5063
    %v5068 = vand.u32 2147483647, %v5058
    %vm5069 = vcmp.eq.f32.partialorder %v5068, 8.507059e+37
    %v5070 = vand.u32 %v5058, 2147483648
    %v5071 = vor.u32 1.1754944e-38, %v5070
    %v5072 = vsel %vm5069, %v5071, %v5067
    %v5073 = vmul.f32 1.0, %v5072
    %v5074 = vmul.f32 %v5053, %v4318
    %v5075 = vmul.f32 %v5034, %v5054
    %v5076 = vadd.f32 %v5074, %v5075
    %v5077 = vtanh.pop %v5076
    %v5078 = vmul.f32 %v5073, %v5077
    %v5079 = vld [vmem:[#allocation2 + $0xa0] sm:$0xff]
    %v5080 = vld [vmem:[#allocation2 + $0xa8] sm:$0xff]
    %v5081 = vld [vmem:[#allocation2 + $0xb0] sm:$0xff]
    %v5082 = vld [vmem:[#allocation2 + $0xb8] sm:$0xff]
    %5083 = vmatpush.bf16.msra.mxu0 %v604
    %5084 = vmatpush.bf16.msra.mxu0 %v600
    %5085 = vmatpush.bf16.msra.mxu0 %v596
    %5086 = vmatpush.bf16.msra.mxu0 %v592
    %5087 = vmatpush.bf16.msra.mxu0 %v588
    %5088 = vmatpush.bf16.msra.mxu0 %v584
    %5089 = vmatpush.bf16.msra.mxu0 %v580
    %5090 = vmatpush.bf16.msra.mxu0 %v576
    %5091 = vmatmul.bf16.gmra.mxu0 %v4911
    %v5092 = vpop.f32.mrf.mxu0
    %v5093 = vadd.f32 0.0, %v5092
    %v5094 = vpop.f32.mrf.mxu0
    %5095 = vdwg.mxu0
    %5096 = vmatpush.bf16.msra.mxu0 %v605
    %5097 = vmatpush.bf16.msra.mxu0 %v601
    %5098 = vmatpush.bf16.msra.mxu0 %v597
    %5099 = vmatpush.bf16.msra.mxu0 %v593
    %5100 = vmatpush.bf16.msra.mxu0 %v589
    %5101 = vmatpush.bf16.msra.mxu0 %v585
    %5102 = vmatpush.bf16.msra.mxu0 %v581
    %5103 = vmatpush.bf16.msra.mxu0 %v577
    %5104 = vmatmul.bf16.gmra.mxu0 %v4911
    %v5105 = vpop.f32.mrf.mxu0
    %v5106 = vadd.f32 0.0, %v5105
    %v5107 = vpop.f32.mrf.mxu0
    %5108 = vdwg.mxu0
    %5109 = vmatpush.bf16.msra.mxu0 %v606
    %5110 = vmatpush.bf16.msra.mxu0 %v602
    %5111 = vmatpush.bf16.msra.mxu0 %v598
    %5112 = vmatpush.bf16.msra.mxu0 %v594
    %5113 = vmatpush.bf16.msra.mxu0 %v590
    %5114 = vmatpush.bf16.msra.mxu0 %v586
    %5115 = vmatpush.bf16.msra.mxu0 %v582
    %5116 = vmatpush.bf16.msra.mxu0 %v578
    %5117 = vmatmul.bf16.gmra.mxu0 %v4911
    %v5118 = vpop.f32.mrf.mxu0
    %v5119 = vadd.f32 0.0, %v5118
    %v5120 = vpop.f32.mrf.mxu0
    %5121 = vdwg.mxu0
    %5122 = vmatpush.bf16.msra.mxu0 %v607
    %5123 = vmatpush.bf16.msra.mxu0 %v603
    %5124 = vmatpush.bf16.msra.mxu0 %v599
    %5125 = vmatpush.bf16.msra.mxu0 %v595
    %5126 = vmatpush.bf16.msra.mxu0 %v591
    %5127 = vmatpush.bf16.msra.mxu0 %v587
    %5128 = vmatpush.bf16.msra.mxu0 %v583
    %5129 = vmatpush.bf16.msra.mxu0 %v579
    %5130 = vmatmul.bf16.gmra.mxu0 %v4911
    %v5131 = vpop.f32.mrf.mxu0
    %v5132 = vadd.f32 0.0, %v5131
    %v5133 = vpop.f32.mrf.mxu0
    %5134 = vdwg.mxu0
    %v5135 = vadd.f32 %v5079, %v5093
    %v5136 = vadd.f32 %v5080, %v5106
    %v5137 = vadd.f32 %v5081, %v5119
    %v5138 = vadd.f32 %v5082, %v5132
    %v5139 = vxor.u32 %v5135, 2147483648
    %v5140 = vmul.f32 %v5139, 1.442695
    %v5141 = vpow.pop %v5140
    %v5142 = vadd.f32 %v5141, 1.0
    %v5143 = vrcp.pop %v5142
    %v5144 = vmul.f32 %v5142, %v5143
    %v5145 = vsub.f32 1.0, %v5144
    %v5146 = vmul.f32 %v5143, %v5145
    %v5147 = vadd.f32 %v5143, %v5146
    %vm5148 = vweird.f32 %v5142
    %vm5149 = vweird.f32 %v5143
    %vm5150 = vmor %vm5148, %vm5149
    %v5151 = vsel %vm5150, %v5143, %v5147
    %v5152 = vand.u32 2147483647, %v5142
    %vm5153 = vcmp.eq.f32.partialorder %v5152, 8.507059e+37
    %v5154 = vand.u32 %v5142, 2147483648
    %v5155 = vor.u32 1.1754944e-38, %v5154
    %v5156 = vsel %vm5153, %v5155, %v5151
    %v5157 = vmul.f32 1.0, %v5156
    %v5158 = vxor.u32 %v5136, 2147483648
    %v5159 = vmul.f32 %v5158, 1.442695
    %v5160 = vpow.pop %v5159
    %v5161 = vadd.f32 %v5160, 1.0
    %v5162 = vrcp.pop %v5161
    %v5163 = vmul.f32 %v5161, %v5162
    %v5164 = vsub.f32 1.0, %v5163
    %v5165 = vmul.f32 %v5162, %v5164
    %v5166 = vadd.f32 %v5162, %v5165
    %vm5167 = vweird.f32 %v5161
    %vm5168 = vweird.f32 %v5162
    %vm5169 = vmor %vm5167, %vm5168
    %v5170 = vsel %vm5169, %v5162, %v5166
    %v5171 = vand.u32 2147483647, %v5161
    %vm5172 = vcmp.eq.f32.partialorder %v5171, 8.507059e+37
    %v5173 = vand.u32 %v5161, 2147483648
    %v5174 = vor.u32 1.1754944e-38, %v5173
    %v5175 = vsel %vm5172, %v5174, %v5170
    %v5176 = vmul.f32 1.0, %v5175
    %v5177 = vtanh.pop %v5137
    %v5178 = vxor.u32 %v5138, 2147483648
    %v5179 = vmul.f32 %v5178, 1.442695
    %v5180 = vpow.pop %v5179
    %v5181 = vadd.f32 %v5180, 1.0
    %v5182 = vrcp.pop %v5181
    %v5183 = vmul.f32 %v5181, %v5182
    %v5184 = vsub.f32 1.0, %v5183
    %v5185 = vmul.f32 %v5182, %v5184
    %v5186 = vadd.f32 %v5182, %v5185
    %vm5187 = vweird.f32 %v5181
    %vm5188 = vweird.f32 %v5182
    %vm5189 = vmor %vm5187, %vm5188
    %v5190 = vsel %vm5189, %v5182, %v5186
    %v5191 = vand.u32 2147483647, %v5181
    %vm5192 = vcmp.eq.f32.partialorder %v5191, 8.507059e+37
    %v5193 = vand.u32 %v5181, 2147483648
    %v5194 = vor.u32 1.1754944e-38, %v5193
    %v5195 = vsel %vm5192, %v5194, %v5190
    %v5196 = vmul.f32 1.0, %v5195
    %v5197 = vmul.f32 %v5176, %v4441
    %v5198 = vmul.f32 %v5157, %v5177
    %v5199 = vadd.f32 %v5197, %v5198
    %v5200 = vtanh.pop %v5199
    %v5201 = vmul.f32 %v5196, %v5200
    %v5202 = vpack.c.bf16 %v4573, %v4573
    %v5203 = vpack.c.bf16 %v4521, %v4521
    %5205 = vrot.lane.b32.xlu0 %v5203, 32
    %v5206 = vpop.permute.xlu0 %5205
    %v5208 = vsel %vm776, %v5206, 0
    %5210 = vmatpush.bf16.msra.mxu0 0
    %5211 = vmatpush.bf16.msra.mxu0 0
    %5212 = vmatpush.bf16.msra.mxu0 0
    %5213 = vmatpush.bf16.msra.mxu0 0
    %5214 = vmatpush.bf16.msra.mxu0 0
    %5215 = vmatpush.bf16.msra.mxu0 0
    %5216 = vmatpush.bf16.msra.mxu0 %v1536
    %5217 = vmatpush.bf16.msra.mxu0 %v1535
    %5218 = vmatmul.bf16.gmra.mxu0 %v5208
    %v5219 = vpop.f32.mrf.mxu0
    %v5220 = vadd.f32 0.0, %v5219
    %v5221 = vpop.f32.mrf.mxu0
    %5222 = vdwg.mxu0
    %5224 = vrot.lane.b32.xlu0 %v5202, 32
    %v5225 = vpop.permute.xlu0 %5224
    %v5227 = vsel %vm776, %v5225, 0
    %5229 = vmatpush.bf16.msra.mxu0 0
    %5230 = vmatpush.bf16.msra.mxu0 0
    %5231 = vmatpush.bf16.msra.mxu0 0
    %5232 = vmatpush.bf16.msra.mxu0 0
    %5233 = vmatpush.bf16.msra.mxu0 0
    %5234 = vmatpush.bf16.msra.mxu0 0
    %5235 = vmatpush.bf16.msra.mxu0 %v1564
    %5236 = vmatpush.bf16.msra.mxu0 %v1563
    %5237 = vmatmul.bf16.gmra.mxu0 %v5227
    %v5238 = vpop.f32.mrf.mxu0
    %v5239 = vadd.f32 %v5220, %v5238
    %v5240 = vpop.f32.mrf.mxu0
    %5241 = vdwg.mxu0
    %v5242 = vadd.f32 %v5239, %v1586
    %v5243 = vxor.u32 %v5242, 2147483648
    %v5244 = vmul.f32 %v5243, 1.442695
    %v5245 = vpow.pop %v5244
    %v5246 = vadd.f32 %v5245, 1.0
    %v5247 = vrcp.pop %v5246
    %v5248 = vmul.f32 %v5246, %v5247
    %v5249 = vsub.f32 1.0, %v5248
    %v5250 = vmul.f32 %v5247, %v5249
    %v5251 = vadd.f32 %v5247, %v5250
    %vm5252 = vweird.f32 %v5246
    %vm5253 = vweird.f32 %v5247
    %vm5254 = vmor %vm5252, %vm5253
    %v5255 = vsel %vm5254, %v5247, %v5251
    %v5256 = vand.u32 2147483647, %v5246
    %vm5257 = vcmp.eq.f32.partialorder %v5256, 8.507059e+37
    %v5258 = vand.u32 %v5246, 2147483648
    %v5259 = vor.u32 1.1754944e-38, %v5258
    %v5260 = vsel %vm5257, %v5259, %v5255
    %v5261 = vmul.f32 1.0, %v5260
    %v5262 = vtanh.pop %v5242
    %v5263 = vmul.f32 %v5261, %v4515
    %5265 = vrot.lane.b32.xlu0 %v5262, 64
    %v5266 = vpop.permute.xlu0 %5265
    %v5268 = vmul.f32 %v5261, %v5266
    %5270 = vrot.lane.b32.xlu0 %v5268, 32
    %v5271 = vpop.permute.xlu0 %5270
    %v5273 = vadd.f32 %v5263, %v5271
    %v5274 = vtanh.pop %v5273
    %5276 = vrot.lane.b32.xlu0 %v5274, 64
    %v5277 = vpop.permute.xlu0 %5276
    %v5279 = vmul.f32 %v5261, %v5277
    %v5280 = vld [vmem:[#allocation3 + $0x28] sm:$0xff]
    %5281 = vmatpush.bf16.msra.mxu0 0
    %5282 = vmatpush.bf16.msra.mxu0 0
    %5283 = vmatpush.bf16.msra.mxu0 0
    %5284 = vmatpush.bf16.msra.mxu0 0
    %5285 = vmatpush.bf16.msra.mxu0 0
    %5286 = vmatpush.bf16.msra.mxu0 0
    %5287 = vmatpush.bf16.msra.mxu0 %v773
    %5288 = vmatpush.bf16.msra.mxu0 %v772
    %5289 = vmatmul.bf16.gmra.mxu0 %v5227
    %v5290 = vpop.f32.mrf.mxu0
    %v5291 = vadd.f32 0.0, %v5290
    %v5292 = vpop.f32.mrf.mxu0
    %5293 = vdwg.mxu0
    %v5294 = vadd.f32 %v5280, %v5291
    %v5295 = vxor.u32 %v5294, 2147483648
    %v5296 = vmul.f32 %v5295, 1.442695
    %v5297 = vpow.pop %v5296
    %v5298 = vadd.f32 %v5297, 1.0
    %v5299 = vrcp.pop %v5298
    %v5300 = vmul.f32 %v5298, %v5299
    %v5301 = vsub.f32 1.0, %v5300
    %v5302 = vmul.f32 %v5299, %v5301
    %v5303 = vadd.f32 %v5299, %v5302
    %vm5304 = vweird.f32 %v5298
    %vm5305 = vweird.f32 %v5299
    %vm5306 = vmor %vm5304, %vm5305
    %v5307 = vsel %vm5306, %v5299, %v5303
    %v5308 = vand.u32 2147483647, %v5298
    %vm5309 = vcmp.eq.f32.partialorder %v5308, 8.507059e+37
    %v5310 = vand.u32 %v5298, 2147483648
    %v5311 = vor.u32 1.1754944e-38, %v5310
    %v5312 = vsel %vm5309, %v5311, %v5307
    %v5313 = vmul.f32 1.0, %v5312
    %v5314 = vtanh.pop %v5294
    %v5315 = vmul.f32 %v5313, %v4567
    %5317 = vrot.lane.b32.xlu0 %v5314, 64
    %v5318 = vpop.permute.xlu0 %5317
    %v5320 = vmul.f32 %v5313, %v5318
    %5322 = vrot.lane.b32.xlu0 %v5320, 32
    %v5323 = vpop.permute.xlu0 %5322
    %v5325 = vadd.f32 %v5315, %v5323
    %v5326 = vtanh.pop %v5325
    %5328 = vrot.lane.b32.xlu0 %v5326, 64
    %v5329 = vpop.permute.xlu0 %5328
    %v5331 = vmul.f32 %v5313, %v5329
    %v5332 = vpack.c.bf16 %v4910, %v4910
    %v5333 = vpack.c.bf16 %v4742, %v4742
    %5334 = vmatpush.bf16.msra.mxu0 %v2960
    %5335 = vmatpush.bf16.msra.mxu0 %v2956
    %5336 = vmatpush.bf16.msra.mxu0 %v2952
    %5337 = vmatpush.bf16.msra.mxu0 %v2948
    %5338 = vmatpush.bf16.msra.mxu0 %v2944
    %5339 = vmatpush.bf16.msra.mxu0 %v2940
    %5340 = vmatpush.bf16.msra.mxu0 %v2936
    %5341 = vmatpush.bf16.msra.mxu0 %v2932
    %5342 = vmatmul.bf16.gmra.mxu0 %v5332
    %v5343 = vpop.f32.mrf.mxu0
    %v5344 = vadd.f32 %v2732, %v5343
    %v5345 = vpop.f32.mrf.mxu0
    %5346 = vdwg.mxu0
    %5347 = vmatpush.bf16.msra.mxu0 %v2992
    %5348 = vmatpush.bf16.msra.mxu0 %v2988
    %5349 = vmatpush.bf16.msra.mxu0 %v2984
    %5350 = vmatpush.bf16.msra.mxu0 %v2980
    %5351 = vmatpush.bf16.msra.mxu0 %v2976
    %5352 = vmatpush.bf16.msra.mxu0 %v2972
    %5353 = vmatpush.bf16.msra.mxu0 %v2968
    %5354 = vmatpush.bf16.msra.mxu0 %v2964
    %5355 = vmatmul.bf16.gmra.mxu0 %v5333
    %v5356 = vpop.f32.mrf.mxu0
    %v5357 = vadd.f32 %v5344, %v5356
    %v5358 = vpop.f32.mrf.mxu0
    %5359 = vdwg.mxu0
    %5360 = vmatpush.bf16.msra.mxu0 %v2961
    %5361 = vmatpush.bf16.msra.mxu0 %v2957
    %5362 = vmatpush.bf16.msra.mxu0 %v2953
    %5363 = vmatpush.bf16.msra.mxu0 %v2949
    %5364 = vmatpush.bf16.msra.mxu0 %v2945
    %5365 = vmatpush.bf16.msra.mxu0 %v2941
    %5366 = vmatpush.bf16.msra.mxu0 %v2937
    %5367 = vmatpush.bf16.msra.mxu0 %v2933
    %5368 = vmatmul.bf16.gmra.mxu0 %v5332
    %v5369 = vpop.f32.mrf.mxu0
    %v5370 = vadd.f32 %v2733, %v5369
    %v5371 = vpop.f32.mrf.mxu0
    %5372 = vdwg.mxu0
    %5373 = vmatpush.bf16.msra.mxu0 %v2993
    %5374 = vmatpush.bf16.msra.mxu0 %v2989
    %5375 = vmatpush.bf16.msra.mxu0 %v2985
    %5376 = vmatpush.bf16.msra.mxu0 %v2981
    %5377 = vmatpush.bf16.msra.mxu0 %v2977
    %5378 = vmatpush.bf16.msra.mxu0 %v2973
    %5379 = vmatpush.bf16.msra.mxu0 %v2969
    %5380 = vmatpush.bf16.msra.mxu0 %v2965
    %5381 = vmatmul.bf16.gmra.mxu0 %v5333
    %v5382 = vpop.f32.mrf.mxu0
    %v5383 = vadd.f32 %v5370, %v5382
    %v5384 = vpop.f32.mrf.mxu0
    %5385 = vdwg.mxu0
    %5386 = vmatpush.bf16.msra.mxu0 %v2962
    %5387 = vmatpush.bf16.msra.mxu0 %v2958
    %5388 = vmatpush.bf16.msra.mxu0 %v2954
    %5389 = vmatpush.bf16.msra.mxu0 %v2950
    %5390 = vmatpush.bf16.msra.mxu0 %v2946
    %5391 = vmatpush.bf16.msra.mxu0 %v2942
    %5392 = vmatpush.bf16.msra.mxu0 %v2938
    %5393 = vmatpush.bf16.msra.mxu0 %v2934
    %5394 = vmatmul.bf16.gmra.mxu0 %v5332
    %v5395 = vpop.f32.mrf.mxu0
    %v5396 = vadd.f32 %v2734, %v5395
    %v5397 = vpop.f32.mrf.mxu0
    %5398 = vdwg.mxu0
    %5399 = vmatpush.bf16.msra.mxu0 %v2994
    %5400 = vmatpush.bf16.msra.mxu0 %v2990
    %5401 = vmatpush.bf16.msra.mxu0 %v2986
    %5402 = vmatpush.bf16.msra.mxu0 %v2982
    %5403 = vmatpush.bf16.msra.mxu0 %v2978
    %5404 = vmatpush.bf16.msra.mxu0 %v2974
    %5405 = vmatpush.bf16.msra.mxu0 %v2970
    %5406 = vmatpush.bf16.msra.mxu0 %v2966
    %5407 = vmatmul.bf16.gmra.mxu0 %v5333
    %v5408 = vpop.f32.mrf.mxu0
    %v5409 = vadd.f32 %v5396, %v5408
    %v5410 = vpop.f32.mrf.mxu0
    %5411 = vdwg.mxu0
    %5412 = vmatpush.bf16.msra.mxu0 %v2963
    %5413 = vmatpush.bf16.msra.mxu0 %v2959
    %5414 = vmatpush.bf16.msra.mxu0 %v2955
    %5415 = vmatpush.bf16.msra.mxu0 %v2951
    %5416 = vmatpush.bf16.msra.mxu0 %v2947
    %5417 = vmatpush.bf16.msra.mxu0 %v2943
    %5418 = vmatpush.bf16.msra.mxu0 %v2939
    %5419 = vmatpush.bf16.msra.mxu0 %v2935
    %5420 = vmatmul.bf16.gmra.mxu0 %v5332
    %v5421 = vpop.f32.mrf.mxu0
    %v5422 = vadd.f32 %v2735, %v5421
    %v5423 = vpop.f32.mrf.mxu0
    %5424 = vdwg.mxu0
    %5425 = vmatpush.bf16.msra.mxu0 %v2995
    %5426 = vmatpush.bf16.msra.mxu0 %v2991
    %5427 = vmatpush.bf16.msra.mxu0 %v2987
    %5428 = vmatpush.bf16.msra.mxu0 %v2983
    %5429 = vmatpush.bf16.msra.mxu0 %v2979
    %5430 = vmatpush.bf16.msra.mxu0 %v2975
    %5431 = vmatpush.bf16.msra.mxu0 %v2971
    %5432 = vmatpush.bf16.msra.mxu0 %v2967
    %5433 = vmatmul.bf16.gmra.mxu0 %v5333
    %v5434 = vpop.f32.mrf.mxu0
    %v5435 = vadd.f32 %v5422, %v5434
    %v5436 = vpop.f32.mrf.mxu0
    %5437 = vdwg.mxu0
    %v5438 = vxor.u32 %v5357, 2147483648
    %v5439 = vmul.f32 %v5438, 1.442695
    %v5440 = vpow.pop %v5439
    %v5441 = vadd.f32 %v5440, 1.0
    %v5442 = vrcp.pop %v5441
    %v5443 = vmul.f32 %v5441, %v5442
    %v5444 = vsub.f32 1.0, %v5443
    %v5445 = vmul.f32 %v5442, %v5444
    %v5446 = vadd.f32 %v5442, %v5445
    %vm5447 = vweird.f32 %v5441
    %vm5448 = vweird.f32 %v5442
    %vm5449 = vmor %vm5447, %vm5448
    %v5450 = vsel %vm5449, %v5442, %v5446
    %v5451 = vand.u32 2147483647, %v5441
    %vm5452 = vcmp.eq.f32.partialorder %v5451, 8.507059e+37
    %v5453 = vand.u32 %v5441, 2147483648
    %v5454 = vor.u32 1.1754944e-38, %v5453
    %v5455 = vsel %vm5452, %v5454, %v5450
    %v5456 = vmul.f32 1.0, %v5455
    %v5457 = vxor.u32 %v5383, 2147483648
    %v5458 = vmul.f32 %v5457, 1.442695
    %v5459 = vpow.pop %v5458
    %v5460 = vadd.f32 %v5459, 1.0
    %v5461 = vrcp.pop %v5460
    %v5462 = vmul.f32 %v5460, %v5461
    %v5463 = vsub.f32 1.0, %v5462
    %v5464 = vmul.f32 %v5461, %v5463
    %v5465 = vadd.f32 %v5461, %v5464
    %vm5466 = vweird.f32 %v5460
    %vm5467 = vweird.f32 %v5461
    %vm5468 = vmor %vm5466, %vm5467
    %v5469 = vsel %vm5468, %v5461, %v5465
    %v5470 = vand.u32 2147483647, %v5460
    %vm5471 = vcmp.eq.f32.partialorder %v5470, 8.507059e+37
    %v5472 = vand.u32 %v5460, 2147483648
    %v5473 = vor.u32 1.1754944e-38, %v5472
    %v5474 = vsel %vm5471, %v5473, %v5469
    %v5475 = vmul.f32 1.0, %v5474
    %v5476 = vtanh.pop %v5409
    %v5477 = vxor.u32 %v5435, 2147483648
    %v5478 = vmul.f32 %v5477, 1.442695
    %v5479 = vpow.pop %v5478
    %v5480 = vadd.f32 %v5479, 1.0
    %v5481 = vrcp.pop %v5480
    %v5482 = vmul.f32 %v5480, %v5481
    %v5483 = vsub.f32 1.0, %v5482
    %v5484 = vmul.f32 %v5481, %v5483
    %v5485 = vadd.f32 %v5481, %v5484
    %vm5486 = vweird.f32 %v5480
    %vm5487 = vweird.f32 %v5481
    %vm5488 = vmor %vm5486, %vm5487
    %v5489 = vsel %vm5488, %v5481, %v5485
    %v5490 = vand.u32 2147483647, %v5480
    %vm5491 = vcmp.eq.f32.partialorder %v5490, 8.507059e+37
    %v5492 = vand.u32 %v5480, 2147483648
    %v5493 = vor.u32 1.1754944e-38, %v5492
    %v5494 = vsel %vm5491, %v5493, %v5489
    %v5495 = vmul.f32 1.0, %v5494
    %v5496 = vmul.f32 %v5475, %v4740
    %v5497 = vmul.f32 %v5456, %v5476
    %v5498 = vadd.f32 %v5496, %v5497
    %v5499 = vtanh.pop %v5498
    %v5500 = vmul.f32 %v5495, %v5499
    %v5501 = vpack.c.bf16 %v5078, %v5078
    %5502 = vmatpush.bf16.msra.mxu0 %v1975
    %5503 = vmatpush.bf16.msra.mxu0 %v1971
    %5504 = vmatpush.bf16.msra.mxu0 %v1967
    %5505 = vmatpush.bf16.msra.mxu0 %v1963
    %5506 = vmatpush.bf16.msra.mxu0 %v1959
    %5507 = vmatpush.bf16.msra.mxu0 %v1955
    %5508 = vmatpush.bf16.msra.mxu0 %v1951
    %5509 = vmatpush.bf16.msra.mxu0 %v1947
    %5510 = vmatmul.bf16.gmra.mxu0 %v5501
    %v5511 = vpop.f32.mrf.mxu0
    %v5512 = vadd.f32 %v1747, %v5511
    %v5513 = vpop.f32.mrf.mxu0
    %5514 = vdwg.mxu0
    %5515 = vmatpush.bf16.msra.mxu0 %v2007
    %5516 = vmatpush.bf16.msra.mxu0 %v2003
    %5517 = vmatpush.bf16.msra.mxu0 %v1999
    %5518 = vmatpush.bf16.msra.mxu0 %v1995
    %5519 = vmatpush.bf16.msra.mxu0 %v1991
    %5520 = vmatpush.bf16.msra.mxu0 %v1987
    %5521 = vmatpush.bf16.msra.mxu0 %v1983
    %5522 = vmatpush.bf16.msra.mxu0 %v1979
    %5523 = vmatmul.bf16.gmra.mxu0 %v5332
    %v5524 = vpop.f32.mrf.mxu0
    %v5525 = vadd.f32 %v5512, %v5524
    %v5526 = vpop.f32.mrf.mxu0
    %5527 = vdwg.mxu0
    %5528 = vmatpush.bf16.msra.mxu0 %v1976
    %5529 = vmatpush.bf16.msra.mxu0 %v1972
    %5530 = vmatpush.bf16.msra.mxu0 %v1968
    %5531 = vmatpush.bf16.msra.mxu0 %v1964
    %5532 = vmatpush.bf16.msra.mxu0 %v1960
    %5533 = vmatpush.bf16.msra.mxu0 %v1956
    %5534 = vmatpush.bf16.msra.mxu0 %v1952
    %5535 = vmatpush.bf16.msra.mxu0 %v1948
    %5536 = vmatmul.bf16.gmra.mxu0 %v5501
    %v5537 = vpop.f32.mrf.mxu0
    %v5538 = vadd.f32 %v1748, %v5537
    %v5539 = vpop.f32.mrf.mxu0
    %5540 = vdwg.mxu0
    %5541 = vmatpush.bf16.msra.mxu0 %v2008
    %5542 = vmatpush.bf16.msra.mxu0 %v2004
    %5543 = vmatpush.bf16.msra.mxu0 %v2000
    %5544 = vmatpush.bf16.msra.mxu0 %v1996
    %5545 = vmatpush.bf16.msra.mxu0 %v1992
    %5546 = vmatpush.bf16.msra.mxu0 %v1988
    %5547 = vmatpush.bf16.msra.mxu0 %v1984
    %5548 = vmatpush.bf16.msra.mxu0 %v1980
    %5549 = vmatmul.bf16.gmra.mxu0 %v5332
    %v5550 = vpop.f32.mrf.mxu0
    %v5551 = vadd.f32 %v5538, %v5550
    %v5552 = vpop.f32.mrf.mxu0
    %5553 = vdwg.mxu0
    %5554 = vmatpush.bf16.msra.mxu0 %v1977
    %5555 = vmatpush.bf16.msra.mxu0 %v1973
    %5556 = vmatpush.bf16.msra.mxu0 %v1969
    %5557 = vmatpush.bf16.msra.mxu0 %v1965
    %5558 = vmatpush.bf16.msra.mxu0 %v1961
    %5559 = vmatpush.bf16.msra.mxu0 %v1957
    %5560 = vmatpush.bf16.msra.mxu0 %v1953
    %5561 = vmatpush.bf16.msra.mxu0 %v1949
    %5562 = vmatmul.bf16.gmra.mxu0 %v5501
    %v5563 = vpop.f32.mrf.mxu0
    %v5564 = vadd.f32 %v1749, %v5563
    %v5565 = vpop.f32.mrf.mxu0
    %5566 = vdwg.mxu0
    %5567 = vmatpush.bf16.msra.mxu0 %v2009
    %5568 = vmatpush.bf16.msra.mxu0 %v2005
    %5569 = vmatpush.bf16.msra.mxu0 %v2001
    %5570 = vmatpush.bf16.msra.mxu0 %v1997
    %5571 = vmatpush.bf16.msra.mxu0 %v1993
    %5572 = vmatpush.bf16.msra.mxu0 %v1989
    %5573 = vmatpush.bf16.msra.mxu0 %v1985
    %5574 = vmatpush.bf16.msra.mxu0 %v1981
    %5575 = vmatmul.bf16.gmra.mxu0 %v5332
    %v5576 = vpop.f32.mrf.mxu0
    %v5577 = vadd.f32 %v5564, %v5576
    %v5578 = vpop.f32.mrf.mxu0
    %5579 = vdwg.mxu0
    %5580 = vmatpush.bf16.msra.mxu0 %v1978
    %5581 = vmatpush.bf16.msra.mxu0 %v1974
    %5582 = vmatpush.bf16.msra.mxu0 %v1970
    %5583 = vmatpush.bf16.msra.mxu0 %v1966
    %5584 = vmatpush.bf16.msra.mxu0 %v1962
    %5585 = vmatpush.bf16.msra.mxu0 %v1958
    %5586 = vmatpush.bf16.msra.mxu0 %v1954
    %5587 = vmatpush.bf16.msra.mxu0 %v1950
    %5588 = vmatmul.bf16.gmra.mxu0 %v5501
    %v5589 = vpop.f32.mrf.mxu0
    %v5590 = vadd.f32 %v1750, %v5589
    %v5591 = vpop.f32.mrf.mxu0
    %5592 = vdwg.mxu0
    %5593 = vmatpush.bf16.msra.mxu0 %v2010
    %5594 = vmatpush.bf16.msra.mxu0 %v2006
    %5595 = vmatpush.bf16.msra.mxu0 %v2002
    %5596 = vmatpush.bf16.msra.mxu0 %v1998
    %5597 = vmatpush.bf16.msra.mxu0 %v1994
    %5598 = vmatpush.bf16.msra.mxu0 %v1990
    %5599 = vmatpush.bf16.msra.mxu0 %v1986
    %5600 = vmatpush.bf16.msra.mxu0 %v1982
    %5601 = vmatmul.bf16.gmra.mxu0 %v5332
    %v5602 = vpop.f32.mrf.mxu0
    %v5603 = vadd.f32 %v5590, %v5602
    %v5604 = vpop.f32.mrf.mxu0
    %5605 = vdwg.mxu0
    %v5606 = vxor.u32 %v5525, 2147483648
    %v5607 = vmul.f32 %v5606, 1.442695
    %v5608 = vpow.pop %v5607
    %v5609 = vadd.f32 %v5608, 1.0
    %v5610 = vrcp.pop %v5609
    %v5611 = vmul.f32 %v5609, %v5610
    %v5612 = vsub.f32 1.0, %v5611
    %v5613 = vmul.f32 %v5610, %v5612
    %v5614 = vadd.f32 %v5610, %v5613
    %vm5615 = vweird.f32 %v5609
    %vm5616 = vweird.f32 %v5610
    %vm5617 = vmor %vm5615, %vm5616
    %v5618 = vsel %vm5617, %v5610, %v5614
    %v5619 = vand.u32 2147483647, %v5609
    %vm5620 = vcmp.eq.f32.partialorder %v5619, 8.507059e+37
    %v5621 = vand.u32 %v5609, 2147483648
    %v5622 = vor.u32 1.1754944e-38, %v5621
    %v5623 = vsel %vm5620, %v5622, %v5618
    %v5624 = vmul.f32 1.0, %v5623
    %v5625 = vxor.u32 %v5551, 2147483648
    %v5626 = vmul.f32 %v5625, 1.442695
    %v5627 = vpow.pop %v5626
    %v5628 = vadd.f32 %v5627, 1.0
    %v5629 = vrcp.pop %v5628
    %v5630 = vmul.f32 %v5628, %v5629
    %v5631 = vsub.f32 1.0, %v5630
    %v5632 = vmul.f32 %v5629, %v5631
    %v5633 = vadd.f32 %v5629, %v5632
    %vm5634 = vweird.f32 %v5628
    %vm5635 = vweird.f32 %v5629
    %vm5636 = vmor %vm5634, %vm5635
    %v5637 = vsel %vm5636, %v5629, %v5633
    %v5638 = vand.u32 2147483647, %v5628
    %vm5639 = vcmp.eq.f32.partialorder %v5638, 8.507059e+37
    %v5640 = vand.u32 %v5628, 2147483648
    %v5641 = vor.u32 1.1754944e-38, %v5640
    %v5642 = vsel %vm5639, %v5641, %v5637
    %v5643 = vmul.f32 1.0, %v5642
    %v5644 = vtanh.pop %v5577
    %v5645 = vxor.u32 %v5603, 2147483648
    %v5646 = vmul.f32 %v5645, 1.442695
    %v5647 = vpow.pop %v5646
    %v5648 = vadd.f32 %v5647, 1.0
    %v5649 = vrcp.pop %v5648
    %v5650 = vmul.f32 %v5648, %v5649
    %v5651 = vsub.f32 1.0, %v5650
    %v5652 = vmul.f32 %v5649, %v5651
    %v5653 = vadd.f32 %v5649, %v5652
    %vm5654 = vweird.f32 %v5648
    %vm5655 = vweird.f32 %v5649
    %vm5656 = vmor %vm5654, %vm5655
    %v5657 = vsel %vm5656, %v5649, %v5653
    %v5658 = vand.u32 2147483647, %v5648
    %vm5659 = vcmp.eq.f32.partialorder %v5658, 8.507059e+37
    %v5660 = vand.u32 %v5648, 2147483648
    %v5661 = vor.u32 1.1754944e-38, %v5660
    %v5662 = vsel %vm5659, %v5661, %v5657
    %v5663 = vmul.f32 1.0, %v5662
    %v5664 = vmul.f32 %v5643, %v4908
    %v5665 = vmul.f32 %v5624, %v5644
    %v5666 = vadd.f32 %v5664, %v5665
    %v5667 = vtanh.pop %v5666
    %v5668 = vmul.f32 %v5663, %v5667
    %v5669 = vpack.c.bf16 %v5201, %v5201
    %5670 = vmatpush.bf16.msra.mxu0 %v1128
    %5671 = vmatpush.bf16.msra.mxu0 %v1124
    %5672 = vmatpush.bf16.msra.mxu0 %v1120
    %5673 = vmatpush.bf16.msra.mxu0 %v1116
    %5674 = vmatpush.bf16.msra.mxu0 %v1112
    %5675 = vmatpush.bf16.msra.mxu0 %v1108
    %5676 = vmatpush.bf16.msra.mxu0 %v1104
    %5677 = vmatpush.bf16.msra.mxu0 %v1100
    %5678 = vmatmul.bf16.gmra.mxu0 %v5669
    %v5679 = vpop.f32.mrf.mxu0
    %v5680 = vadd.f32 %v900, %v5679
    %v5681 = vpop.f32.mrf.mxu0
    %5682 = vdwg.mxu0
    %5683 = vmatpush.bf16.msra.mxu0 %v1160
    %5684 = vmatpush.bf16.msra.mxu0 %v1156
    %5685 = vmatpush.bf16.msra.mxu0 %v1152
    %5686 = vmatpush.bf16.msra.mxu0 %v1148
    %5687 = vmatpush.bf16.msra.mxu0 %v1144
    %5688 = vmatpush.bf16.msra.mxu0 %v1140
    %5689 = vmatpush.bf16.msra.mxu0 %v1136
    %5690 = vmatpush.bf16.msra.mxu0 %v1132
    %5691 = vmatmul.bf16.gmra.mxu0 %v5501
    %v5692 = vpop.f32.mrf.mxu0
    %v5693 = vadd.f32 %v5680, %v5692
    %v5694 = vpop.f32.mrf.mxu0
    %5695 = vdwg.mxu0
    %5696 = vmatpush.bf16.msra.mxu0 %v1129
    %5697 = vmatpush.bf16.msra.mxu0 %v1125
    %5698 = vmatpush.bf16.msra.mxu0 %v1121
    %5699 = vmatpush.bf16.msra.mxu0 %v1117
    %5700 = vmatpush.bf16.msra.mxu0 %v1113
    %5701 = vmatpush.bf16.msra.mxu0 %v1109
    %5702 = vmatpush.bf16.msra.mxu0 %v1105
    %5703 = vmatpush.bf16.msra.mxu0 %v1101
    %5704 = vmatmul.bf16.gmra.mxu0 %v5669
    %v5705 = vpop.f32.mrf.mxu0
    %v5706 = vadd.f32 %v901, %v5705
    %v5707 = vpop.f32.mrf.mxu0
    %5708 = vdwg.mxu0
    %5709 = vmatpush.bf16.msra.mxu0 %v1161
    %5710 = vmatpush.bf16.msra.mxu0 %v1157
    %5711 = vmatpush.bf16.msra.mxu0 %v1153
    %5712 = vmatpush.bf16.msra.mxu0 %v1149
    %5713 = vmatpush.bf16.msra.mxu0 %v1145
    %5714 = vmatpush.bf16.msra.mxu0 %v1141
    %5715 = vmatpush.bf16.msra.mxu0 %v1137
    %5716 = vmatpush.bf16.msra.mxu0 %v1133
    %5717 = vmatmul.bf16.gmra.mxu0 %v5501
    %v5718 = vpop.f32.mrf.mxu0
    %v5719 = vadd.f32 %v5706, %v5718
    %v5720 = vpop.f32.mrf.mxu0
    %5721 = vdwg.mxu0
    %5722 = vmatpush.bf16.msra.mxu0 %v1130
    %5723 = vmatpush.bf16.msra.mxu0 %v1126
    %5724 = vmatpush.bf16.msra.mxu0 %v1122
    %5725 = vmatpush.bf16.msra.mxu0 %v1118
    %5726 = vmatpush.bf16.msra.mxu0 %v1114
    %5727 = vmatpush.bf16.msra.mxu0 %v1110
    %5728 = vmatpush.bf16.msra.mxu0 %v1106
    %5729 = vmatpush.bf16.msra.mxu0 %v1102
    %5730 = vmatmul.bf16.gmra.mxu0 %v5669
    %v5731 = vpop.f32.mrf.mxu0
    %v5732 = vadd.f32 %v902, %v5731
    %v5733 = vpop.f32.mrf.mxu0
    %5734 = vdwg.mxu0
    %5735 = vmatpush.bf16.msra.mxu0 %v1162
    %5736 = vmatpush.bf16.msra.mxu0 %v1158
    %5737 = vmatpush.bf16.msra.mxu0 %v1154
    %5738 = vmatpush.bf16.msra.mxu0 %v1150
    %5739 = vmatpush.bf16.msra.mxu0 %v1146
    %5740 = vmatpush.bf16.msra.mxu0 %v1142
    %5741 = vmatpush.bf16.msra.mxu0 %v1138
    %5742 = vmatpush.bf16.msra.mxu0 %v1134
    %5743 = vmatmul.bf16.gmra.mxu0 %v5501
    %v5744 = vpop.f32.mrf.mxu0
    %v5745 = vadd.f32 %v5732, %v5744
    %v5746 = vpop.f32.mrf.mxu0
    %5747 = vdwg.mxu0
    %5748 = vmatpush.bf16.msra.mxu0 %v1131
    %5749 = vmatpush.bf16.msra.mxu0 %v1127
    %5750 = vmatpush.bf16.msra.mxu0 %v1123
    %5751 = vmatpush.bf16.msra.mxu0 %v1119
    %5752 = vmatpush.bf16.msra.mxu0 %v1115
    %5753 = vmatpush.bf16.msra.mxu0 %v1111
    %5754 = vmatpush.bf16.msra.mxu0 %v1107
    %5755 = vmatpush.bf16.msra.mxu0 %v1103
    %5756 = vmatmul.bf16.gmra.mxu0 %v5669
    %v5757 = vpop.f32.mrf.mxu0
    %v5758 = vadd.f32 %v903, %v5757
    %v5759 = vpop.f32.mrf.mxu0
    %5760 = vdwg.mxu0
    %5761 = vmatpush.bf16.msra.mxu0 %v1163
    %5762 = vmatpush.bf16.msra.mxu0 %v1159
    %5763 = vmatpush.bf16.msra.mxu0 %v1155
    %5764 = vmatpush.bf16.msra.mxu0 %v1151
    %5765 = vmatpush.bf16.msra.mxu0 %v1147
    %5766 = vmatpush.bf16.msra.mxu0 %v1143
    %5767 = vmatpush.bf16.msra.mxu0 %v1139
    %5768 = vmatpush.bf16.msra.mxu0 %v1135
    %5769 = vmatmul.bf16.gmra.mxu0 %v5501
    %v5770 = vpop.f32.mrf.mxu0
    %v5771 = vadd.f32 %v5758, %v5770
    %v5772 = vpop.f32.mrf.mxu0
    %5773 = vdwg.mxu0
    %v5774 = vxor.u32 %v5693, 2147483648
    %v5775 = vmul.f32 %v5774, 1.442695
    %v5776 = vpow.pop %v5775
    %v5777 = vadd.f32 %v5776, 1.0
    %v5778 = vrcp.pop %v5777
    %v5779 = vmul.f32 %v5777, %v5778
    %v5780 = vsub.f32 1.0, %v5779
    %v5781 = vmul.f32 %v5778, %v5780
    %v5782 = vadd.f32 %v5778, %v5781
    %vm5783 = vweird.f32 %v5777
    %vm5784 = vweird.f32 %v5778
    %vm5785 = vmor %vm5783, %vm5784
    %v5786 = vsel %vm5785, %v5778, %v5782
    %v5787 = vand.u32 2147483647, %v5777
    %vm5788 = vcmp.eq.f32.partialorder %v5787, 8.507059e+37
    %v5789 = vand.u32 %v5777, 2147483648
    %v5790 = vor.u32 1.1754944e-38, %v5789
    %v5791 = vsel %vm5788, %v5790, %v5786
    %v5792 = vmul.f32 1.0, %v5791
    %v5793 = vxor.u32 %v5719, 2147483648
    %v5794 = vmul.f32 %v5793, 1.442695
    %v5795 = vpow.pop %v5794
    %v5796 = vadd.f32 %v5795, 1.0
    %v5797 = vrcp.pop %v5796
    %v5798 = vmul.f32 %v5796, %v5797
    %v5799 = vsub.f32 1.0, %v5798
    %v5800 = vmul.f32 %v5797, %v5799
    %v5801 = vadd.f32 %v5797, %v5800
    %vm5802 = vweird.f32 %v5796
    %vm5803 = vweird.f32 %v5797
    %vm5804 = vmor %vm5802, %vm5803
    %v5805 = vsel %vm5804, %v5797, %v5801
    %v5806 = vand.u32 2147483647, %v5796
    %vm5807 = vcmp.eq.f32.partialorder %v5806, 8.507059e+37
    %v5808 = vand.u32 %v5796, 2147483648
    %v5809 = vor.u32 1.1754944e-38, %v5808
    %v5810 = vsel %vm5807, %v5809, %v5805
    %v5811 = vmul.f32 1.0, %v5810
    %v5812 = vtanh.pop %v5745
    %v5813 = vxor.u32 %v5771, 2147483648
    %v5814 = vmul.f32 %v5813, 1.442695
    %v5815 = vpow.pop %v5814
    %v5816 = vadd.f32 %v5815, 1.0
    %v5817 = vrcp.pop %v5816
    %v5818 = vmul.f32 %v5816, %v5817
    %v5819 = vsub.f32 1.0, %v5818
    %v5820 = vmul.f32 %v5817, %v5819
    %v5821 = vadd.f32 %v5817, %v5820
    %vm5822 = vweird.f32 %v5816
    %vm5823 = vweird.f32 %v5817
    %vm5824 = vmor %vm5822, %vm5823
    %v5825 = vsel %vm5824, %v5817, %v5821
    %v5826 = vand.u32 2147483647, %v5816
    %vm5827 = vcmp.eq.f32.partialorder %v5826, 8.507059e+37
    %v5828 = vand.u32 %v5816, 2147483648
    %v5829 = vor.u32 1.1754944e-38, %v5828
    %v5830 = vsel %vm5827, %v5829, %v5825
    %v5831 = vmul.f32 1.0, %v5830
    %v5832 = vmul.f32 %v5811, %v5076
    %v5833 = vmul.f32 %v5792, %v5812
    %v5834 = vadd.f32 %v5832, %v5833
    %v5835 = vtanh.pop %v5834
    %v5836 = vmul.f32 %v5831, %v5835
    %v5837 = vld [vmem:[#allocation2 + $0xc0] sm:$0xff]
    %v5838 = vld [vmem:[#allocation2 + $0xc8] sm:$0xff]
    %v5839 = vld [vmem:[#allocation2 + $0xd0] sm:$0xff]
    %v5840 = vld [vmem:[#allocation2 + $0xd8] sm:$0xff]
    %5841 = vmatpush.bf16.msra.mxu0 %v604
    %5842 = vmatpush.bf16.msra.mxu0 %v600
    %5843 = vmatpush.bf16.msra.mxu0 %v596
    %5844 = vmatpush.bf16.msra.mxu0 %v592
    %5845 = vmatpush.bf16.msra.mxu0 %v588
    %5846 = vmatpush.bf16.msra.mxu0 %v584
    %5847 = vmatpush.bf16.msra.mxu0 %v580
    %5848 = vmatpush.bf16.msra.mxu0 %v576
    %5849 = vmatmul.bf16.gmra.mxu0 %v5669
    %v5850 = vpop.f32.mrf.mxu0
    %v5851 = vadd.f32 0.0, %v5850
    %v5852 = vpop.f32.mrf.mxu0
    %5853 = vdwg.mxu0
    %5854 = vmatpush.bf16.msra.mxu0 %v605
    %5855 = vmatpush.bf16.msra.mxu0 %v601
    %5856 = vmatpush.bf16.msra.mxu0 %v597
    %5857 = vmatpush.bf16.msra.mxu0 %v593
    %5858 = vmatpush.bf16.msra.mxu0 %v589
    %5859 = vmatpush.bf16.msra.mxu0 %v585
    %5860 = vmatpush.bf16.msra.mxu0 %v581
    %5861 = vmatpush.bf16.msra.mxu0 %v577
    %5862 = vmatmul.bf16.gmra.mxu0 %v5669
    %v5863 = vpop.f32.mrf.mxu0
    %v5864 = vadd.f32 0.0, %v5863
    %v5865 = vpop.f32.mrf.mxu0
    %5866 = vdwg.mxu0
    %5867 = vmatpush.bf16.msra.mxu0 %v606
    %5868 = vmatpush.bf16.msra.mxu0 %v602
    %5869 = vmatpush.bf16.msra.mxu0 %v598
    %5870 = vmatpush.bf16.msra.mxu0 %v594
    %5871 = vmatpush.bf16.msra.mxu0 %v590
    %5872 = vmatpush.bf16.msra.mxu0 %v586
    %5873 = vmatpush.bf16.msra.mxu0 %v582
    %5874 = vmatpush.bf16.msra.mxu0 %v578
    %5875 = vmatmul.bf16.gmra.mxu0 %v5669
    %v5876 = vpop.f32.mrf.mxu0
    %v5877 = vadd.f32 0.0, %v5876
    %v5878 = vpop.f32.mrf.mxu0
    %5879 = vdwg.mxu0
    %5880 = vmatpush.bf16.msra.mxu0 %v607
    %5881 = vmatpush.bf16.msra.mxu0 %v603
    %5882 = vmatpush.bf16.msra.mxu0 %v599
    %5883 = vmatpush.bf16.msra.mxu0 %v595
    %5884 = vmatpush.bf16.msra.mxu0 %v591
    %5885 = vmatpush.bf16.msra.mxu0 %v587
    %5886 = vmatpush.bf16.msra.mxu0 %v583
    %5887 = vmatpush.bf16.msra.mxu0 %v579
    %5888 = vmatmul.bf16.gmra.mxu0 %v5669
    %v5889 = vpop.f32.mrf.mxu0
    %v5890 = vadd.f32 0.0, %v5889
    %v5891 = vpop.f32.mrf.mxu0
    %5892 = vdwg.mxu0
    %v5893 = vadd.f32 %v5837, %v5851
    %v5894 = vadd.f32 %v5838, %v5864
    %v5895 = vadd.f32 %v5839, %v5877
    %v5896 = vadd.f32 %v5840, %v5890
    %v5897 = vxor.u32 %v5893, 2147483648
    %v5898 = vmul.f32 %v5897, 1.442695
    %v5899 = vpow.pop %v5898
    %v5900 = vadd.f32 %v5899, 1.0
    %v5901 = vrcp.pop %v5900
    %v5902 = vmul.f32 %v5900, %v5901
    %v5903 = vsub.f32 1.0, %v5902
    %v5904 = vmul.f32 %v5901, %v5903
    %v5905 = vadd.f32 %v5901, %v5904
    %vm5906 = vweird.f32 %v5900
    %vm5907 = vweird.f32 %v5901
    %vm5908 = vmor %vm5906, %vm5907
    %v5909 = vsel %vm5908, %v5901, %v5905
    %v5910 = vand.u32 2147483647, %v5900
    %vm5911 = vcmp.eq.f32.partialorder %v5910, 8.507059e+37
    %v5912 = vand.u32 %v5900, 2147483648
    %v5913 = vor.u32 1.1754944e-38, %v5912
    %v5914 = vsel %vm5911, %v5913, %v5909
    %v5915 = vmul.f32 1.0, %v5914
    %v5916 = vxor.u32 %v5894, 2147483648
    %v5917 = vmul.f32 %v5916, 1.442695
    %v5918 = vpow.pop %v5917
    %v5919 = vadd.f32 %v5918, 1.0
    %v5920 = vrcp.pop %v5919
    %v5921 = vmul.f32 %v5919, %v5920
    %v5922 = vsub.f32 1.0, %v5921
    %v5923 = vmul.f32 %v5920, %v5922
    %v5924 = vadd.f32 %v5920, %v5923
    %vm5925 = vweird.f32 %v5919
    %vm5926 = vweird.f32 %v5920
    %vm5927 = vmor %vm5925, %vm5926
    %v5928 = vsel %vm5927, %v5920, %v5924
    %v5929 = vand.u32 2147483647, %v5919
    %vm5930 = vcmp.eq.f32.partialorder %v5929, 8.507059e+37
    %v5931 = vand.u32 %v5919, 2147483648
    %v5932 = vor.u32 1.1754944e-38, %v5931
    %v5933 = vsel %vm5930, %v5932, %v5928
    %v5934 = vmul.f32 1.0, %v5933
    %v5935 = vtanh.pop %v5895
    %v5936 = vxor.u32 %v5896, 2147483648
    %v5937 = vmul.f32 %v5936, 1.442695
    %v5938 = vpow.pop %v5937
    %v5939 = vadd.f32 %v5938, 1.0
    %v5940 = vrcp.pop %v5939
    %v5941 = vmul.f32 %v5939, %v5940
    %v5942 = vsub.f32 1.0, %v5941
    %v5943 = vmul.f32 %v5940, %v5942
    %v5944 = vadd.f32 %v5940, %v5943
    %vm5945 = vweird.f32 %v5939
    %vm5946 = vweird.f32 %v5940
    %vm5947 = vmor %vm5945, %vm5946
    %v5948 = vsel %vm5947, %v5940, %v5944
    %v5949 = vand.u32 2147483647, %v5939
    %vm5950 = vcmp.eq.f32.partialorder %v5949, 8.507059e+37
    %v5951 = vand.u32 %v5939, 2147483648
    %v5952 = vor.u32 1.1754944e-38, %v5951
    %v5953 = vsel %vm5950, %v5952, %v5948
    %v5954 = vmul.f32 1.0, %v5953
    %v5955 = vmul.f32 %v5934, %v5199
    %v5956 = vmul.f32 %v5915, %v5935
    %v5957 = vadd.f32 %v5955, %v5956
    %v5958 = vtanh.pop %v5957
    %v5959 = vmul.f32 %v5954, %v5958
    %v5960 = vpack.c.bf16 %v5331, %v5331
    %v5961 = vpack.c.bf16 %v5279, %v5279
    %5963 = vrot.lane.b32.xlu0 %v5961, 32
    %v5964 = vpop.permute.xlu0 %5963
    %v5966 = vsel %vm776, %v5964, 0
    %5968 = vmatpush.bf16.msra.mxu0 0
    %5969 = vmatpush.bf16.msra.mxu0 0
    %5970 = vmatpush.bf16.msra.mxu0 0
    %5971 = vmatpush.bf16.msra.mxu0 0
    %5972 = vmatpush.bf16.msra.mxu0 0
    %5973 = vmatpush.bf16.msra.mxu0 0
    %5974 = vmatpush.bf16.msra.mxu0 %v1536
    %5975 = vmatpush.bf16.msra.mxu0 %v1535
    %5976 = vmatmul.bf16.gmra.mxu0 %v5966
    %v5977 = vpop.f32.mrf.mxu0
    %v5978 = vadd.f32 0.0, %v5977
    %v5979 = vpop.f32.mrf.mxu0
    %5980 = vdwg.mxu0
    %5982 = vrot.lane.b32.xlu0 %v5960, 32
    %v5983 = vpop.permute.xlu0 %5982
    %v5985 = vsel %vm776, %v5983, 0
    %5987 = vmatpush.bf16.msra.mxu0 0
    %5988 = vmatpush.bf16.msra.mxu0 0
    %5989 = vmatpush.bf16.msra.mxu0 0
    %5990 = vmatpush.bf16.msra.mxu0 0
    %5991 = vmatpush.bf16.msra.mxu0 0
    %5992 = vmatpush.bf16.msra.mxu0 0
    %5993 = vmatpush.bf16.msra.mxu0 %v1564
    %5994 = vmatpush.bf16.msra.mxu0 %v1563
    %5995 = vmatmul.bf16.gmra.mxu0 %v5985
    %v5996 = vpop.f32.mrf.mxu0
    %v5997 = vadd.f32 %v5978, %v5996
    %v5998 = vpop.f32.mrf.mxu0
    %5999 = vdwg.mxu0
    %v6000 = vadd.f32 %v5997, %v1586
    %v6001 = vxor.u32 %v6000, 2147483648
    %v6002 = vmul.f32 %v6001, 1.442695
    %v6003 = vpow.pop %v6002
    %v6004 = vadd.f32 %v6003, 1.0
    %v6005 = vrcp.pop %v6004
    %v6006 = vmul.f32 %v6004, %v6005
    %v6007 = vsub.f32 1.0, %v6006
    %v6008 = vmul.f32 %v6005, %v6007
    %v6009 = vadd.f32 %v6005, %v6008
    %vm6010 = vweird.f32 %v6004
    %vm6011 = vweird.f32 %v6005
    %vm6012 = vmor %vm6010, %vm6011
    %v6013 = vsel %vm6012, %v6005, %v6009
    %v6014 = vand.u32 2147483647, %v6004
    %vm6015 = vcmp.eq.f32.partialorder %v6014, 8.507059e+37
    %v6016 = vand.u32 %v6004, 2147483648
    %v6017 = vor.u32 1.1754944e-38, %v6016
    %v6018 = vsel %vm6015, %v6017, %v6013
    %v6019 = vmul.f32 1.0, %v6018
    %v6020 = vtanh.pop %v6000
    %v6021 = vmul.f32 %v6019, %v5273
    %6023 = vrot.lane.b32.xlu0 %v6020, 64
    %v6024 = vpop.permute.xlu0 %6023
    %v6026 = vmul.f32 %v6019, %v6024
    %6028 = vrot.lane.b32.xlu0 %v6026, 32
    %v6029 = vpop.permute.xlu0 %6028
    %v6031 = vadd.f32 %v6021, %v6029
    %v6032 = vtanh.pop %v6031
    %6034 = vrot.lane.b32.xlu0 %v6032, 64
    %v6035 = vpop.permute.xlu0 %6034
    %v6037 = vmul.f32 %v6019, %v6035
    %v6038 = vld [vmem:[#allocation3 + $0x30] sm:$0xff]
    %6039 = vmatpush.bf16.msra.mxu0 0
    %6040 = vmatpush.bf16.msra.mxu0 0
    %6041 = vmatpush.bf16.msra.mxu0 0
    %6042 = vmatpush.bf16.msra.mxu0 0
    %6043 = vmatpush.bf16.msra.mxu0 0
    %6044 = vmatpush.bf16.msra.mxu0 0
    %6045 = vmatpush.bf16.msra.mxu0 %v773
    %6046 = vmatpush.bf16.msra.mxu0 %v772
    %6047 = vmatmul.bf16.gmra.mxu0 %v5985
    %v6048 = vpop.f32.mrf.mxu0
    %v6049 = vadd.f32 0.0, %v6048
    %v6050 = vpop.f32.mrf.mxu0
    %6051 = vdwg.mxu0
    %v6052 = vadd.f32 %v6038, %v6049
    %v6053 = vxor.u32 %v6052, 2147483648
    %v6054 = vmul.f32 %v6053, 1.442695
    %v6055 = vpow.pop %v6054
    %v6056 = vadd.f32 %v6055, 1.0
    %v6057 = vrcp.pop %v6056
    %v6058 = vmul.f32 %v6056, %v6057
    %v6059 = vsub.f32 1.0, %v6058
    %v6060 = vmul.f32 %v6057, %v6059
    %v6061 = vadd.f32 %v6057, %v6060
    %vm6062 = vweird.f32 %v6056
    %vm6063 = vweird.f32 %v6057
    %vm6064 = vmor %vm6062, %vm6063
    %v6065 = vsel %vm6064, %v6057, %v6061
    %v6066 = vand.u32 2147483647, %v6056
    %vm6067 = vcmp.eq.f32.partialorder %v6066, 8.507059e+37
    %v6068 = vand.u32 %v6056, 2147483648
    %v6069 = vor.u32 1.1754944e-38, %v6068
    %v6070 = vsel %vm6067, %v6069, %v6065
    %v6071 = vmul.f32 1.0, %v6070
    %v6072 = vtanh.pop %v6052
    %v6073 = vmul.f32 %v6071, %v5325
    %6075 = vrot.lane.b32.xlu0 %v6072, 64
    %v6076 = vpop.permute.xlu0 %6075
    %v6078 = vmul.f32 %v6071, %v6076
    %6080 = vrot.lane.b32.xlu0 %v6078, 32
    %v6081 = vpop.permute.xlu0 %6080
    %v6083 = vadd.f32 %v6073, %v6081
    %v6084 = vtanh.pop %v6083
    %6086 = vrot.lane.b32.xlu0 %v6084, 64
    %v6087 = vpop.permute.xlu0 %6086
    %v6089 = vmul.f32 %v6071, %v6087
    %v6090 = vpack.c.bf16 %v5668, %v5668
    %v6091 = vpack.c.bf16 %v5500, %v5500
    %6092 = vmatpush.bf16.msra.mxu0 %v2960
    %6093 = vmatpush.bf16.msra.mxu0 %v2956
    %6094 = vmatpush.bf16.msra.mxu0 %v2952
    %6095 = vmatpush.bf16.msra.mxu0 %v2948
    %6096 = vmatpush.bf16.msra.mxu0 %v2944
    %6097 = vmatpush.bf16.msra.mxu0 %v2940
    %6098 = vmatpush.bf16.msra.mxu0 %v2936
    %6099 = vmatpush.bf16.msra.mxu0 %v2932
    %6100 = vmatmul.bf16.gmra.mxu0 %v6090
    %v6101 = vpop.f32.mrf.mxu0
    %v6102 = vadd.f32 %v2732, %v6101
    %v6103 = vpop.f32.mrf.mxu0
    %6104 = vdwg.mxu0
    %6105 = vmatpush.bf16.msra.mxu0 %v2992
    %6106 = vmatpush.bf16.msra.mxu0 %v2988
    %6107 = vmatpush.bf16.msra.mxu0 %v2984
    %6108 = vmatpush.bf16.msra.mxu0 %v2980
    %6109 = vmatpush.bf16.msra.mxu0 %v2976
    %6110 = vmatpush.bf16.msra.mxu0 %v2972
    %6111 = vmatpush.bf16.msra.mxu0 %v2968
    %6112 = vmatpush.bf16.msra.mxu0 %v2964
    %6113 = vmatmul.bf16.gmra.mxu0 %v6091
    %v6114 = vpop.f32.mrf.mxu0
    %v6115 = vadd.f32 %v6102, %v6114
    %v6116 = vpop.f32.mrf.mxu0
    %6117 = vdwg.mxu0
    %6118 = vmatpush.bf16.msra.mxu0 %v2961
    %6119 = vmatpush.bf16.msra.mxu0 %v2957
    %6120 = vmatpush.bf16.msra.mxu0 %v2953
    %6121 = vmatpush.bf16.msra.mxu0 %v2949
    %6122 = vmatpush.bf16.msra.mxu0 %v2945
    %6123 = vmatpush.bf16.msra.mxu0 %v2941
    %6124 = vmatpush.bf16.msra.mxu0 %v2937
    %6125 = vmatpush.bf16.msra.mxu0 %v2933
    %6126 = vmatmul.bf16.gmra.mxu0 %v6090
    %v6127 = vpop.f32.mrf.mxu0
    %v6128 = vadd.f32 %v2733, %v6127
    %v6129 = vpop.f32.mrf.mxu0
    %6130 = vdwg.mxu0
    %6131 = vmatpush.bf16.msra.mxu0 %v2993
    %6132 = vmatpush.bf16.msra.mxu0 %v2989
    %6133 = vmatpush.bf16.msra.mxu0 %v2985
    %6134 = vmatpush.bf16.msra.mxu0 %v2981
    %6135 = vmatpush.bf16.msra.mxu0 %v2977
    %6136 = vmatpush.bf16.msra.mxu0 %v2973
    %6137 = vmatpush.bf16.msra.mxu0 %v2969
    %6138 = vmatpush.bf16.msra.mxu0 %v2965
    %6139 = vmatmul.bf16.gmra.mxu0 %v6091
    %v6140 = vpop.f32.mrf.mxu0
    %v6141 = vadd.f32 %v6128, %v6140
    %v6142 = vpop.f32.mrf.mxu0
    %6143 = vdwg.mxu0
    %6144 = vmatpush.bf16.msra.mxu0 %v2962
    %6145 = vmatpush.bf16.msra.mxu0 %v2958
    %6146 = vmatpush.bf16.msra.mxu0 %v2954
    %6147 = vmatpush.bf16.msra.mxu0 %v2950
    %6148 = vmatpush.bf16.msra.mxu0 %v2946
    %6149 = vmatpush.bf16.msra.mxu0 %v2942
    %6150 = vmatpush.bf16.msra.mxu0 %v2938
    %6151 = vmatpush.bf16.msra.mxu0 %v2934
    %6152 = vmatmul.bf16.gmra.mxu0 %v6090
    %v6153 = vpop.f32.mrf.mxu0
    %v6154 = vadd.f32 %v2734, %v6153
    %v6155 = vpop.f32.mrf.mxu0
    %6156 = vdwg.mxu0
    %6157 = vmatpush.bf16.msra.mxu0 %v2994
    %6158 = vmatpush.bf16.msra.mxu0 %v2990
    %6159 = vmatpush.bf16.msra.mxu0 %v2986
    %6160 = vmatpush.bf16.msra.mxu0 %v2982
    %6161 = vmatpush.bf16.msra.mxu0 %v2978
    %6162 = vmatpush.bf16.msra.mxu0 %v2974
    %6163 = vmatpush.bf16.msra.mxu0 %v2970
    %6164 = vmatpush.bf16.msra.mxu0 %v2966
    %6165 = vmatmul.bf16.gmra.mxu0 %v6091
    %v6166 = vpop.f32.mrf.mxu0
    %v6167 = vadd.f32 %v6154, %v6166
    %v6168 = vpop.f32.mrf.mxu0
    %6169 = vdwg.mxu0
    %6170 = vmatpush.bf16.msra.mxu0 %v2963
    %6171 = vmatpush.bf16.msra.mxu0 %v2959
    %6172 = vmatpush.bf16.msra.mxu0 %v2955
    %6173 = vmatpush.bf16.msra.mxu0 %v2951
    %6174 = vmatpush.bf16.msra.mxu0 %v2947
    %6175 = vmatpush.bf16.msra.mxu0 %v2943
    %6176 = vmatpush.bf16.msra.mxu0 %v2939
    %6177 = vmatpush.bf16.msra.mxu0 %v2935
    %6178 = vmatmul.bf16.gmra.mxu0 %v6090
    %v6179 = vpop.f32.mrf.mxu0
    %v6180 = vadd.f32 %v2735, %v6179
    %v6181 = vpop.f32.mrf.mxu0
    %6182 = vdwg.mxu0
    %6183 = vmatpush.bf16.msra.mxu0 %v2995
    %6184 = vmatpush.bf16.msra.mxu0 %v2991
    %6185 = vmatpush.bf16.msra.mxu0 %v2987
    %6186 = vmatpush.bf16.msra.mxu0 %v2983
    %6187 = vmatpush.bf16.msra.mxu0 %v2979
    %6188 = vmatpush.bf16.msra.mxu0 %v2975
    %6189 = vmatpush.bf16.msra.mxu0 %v2971
    %6190 = vmatpush.bf16.msra.mxu0 %v2967
    %6191 = vmatmul.bf16.gmra.mxu0 %v6091
    %v6192 = vpop.f32.mrf.mxu0
    %v6193 = vadd.f32 %v6180, %v6192
    %v6194 = vpop.f32.mrf.mxu0
    %6195 = vdwg.mxu0
    %v6196 = vxor.u32 %v6115, 2147483648
    %v6197 = vmul.f32 %v6196, 1.442695
    %v6198 = vpow.pop %v6197
    %v6199 = vadd.f32 %v6198, 1.0
    %v6200 = vrcp.pop %v6199
    %v6201 = vmul.f32 %v6199, %v6200
    %v6202 = vsub.f32 1.0, %v6201
    %v6203 = vmul.f32 %v6200, %v6202
    %v6204 = vadd.f32 %v6200, %v6203
    %vm6205 = vweird.f32 %v6199
    %vm6206 = vweird.f32 %v6200
    %vm6207 = vmor %vm6205, %vm6206
    %v6208 = vsel %vm6207, %v6200, %v6204
    %v6209 = vand.u32 2147483647, %v6199
    %vm6210 = vcmp.eq.f32.partialorder %v6209, 8.507059e+37
    %v6211 = vand.u32 %v6199, 2147483648
    %v6212 = vor.u32 1.1754944e-38, %v6211
    %v6213 = vsel %vm6210, %v6212, %v6208
    %v6214 = vmul.f32 1.0, %v6213
    %v6215 = vxor.u32 %v6141, 2147483648
    %v6216 = vmul.f32 %v6215, 1.442695
    %v6217 = vpow.pop %v6216
    %v6218 = vadd.f32 %v6217, 1.0
    %v6219 = vrcp.pop %v6218
    %v6220 = vmul.f32 %v6218, %v6219
    %v6221 = vsub.f32 1.0, %v6220
    %v6222 = vmul.f32 %v6219, %v6221
    %v6223 = vadd.f32 %v6219, %v6222
    %vm6224 = vweird.f32 %v6218
    %vm6225 = vweird.f32 %v6219
    %vm6226 = vmor %vm6224, %vm6225
    %v6227 = vsel %vm6226, %v6219, %v6223
    %v6228 = vand.u32 2147483647, %v6218
    %vm6229 = vcmp.eq.f32.partialorder %v6228, 8.507059e+37
    %v6230 = vand.u32 %v6218, 2147483648
    %v6231 = vor.u32 1.1754944e-38, %v6230
    %v6232 = vsel %vm6229, %v6231, %v6227
    %v6233 = vmul.f32 1.0, %v6232
    %v6234 = vtanh.pop %v6167
    %v6235 = vxor.u32 %v6193, 2147483648
    %v6236 = vmul.f32 %v6235, 1.442695
    %v6237 = vpow.pop %v6236
    %v6238 = vadd.f32 %v6237, 1.0
    %v6239 = vrcp.pop %v6238
    %v6240 = vmul.f32 %v6238, %v6239
    %v6241 = vsub.f32 1.0, %v6240
    %v6242 = vmul.f32 %v6239, %v6241
    %v6243 = vadd.f32 %v6239, %v6242
    %vm6244 = vweird.f32 %v6238
    %vm6245 = vweird.f32 %v6239
    %vm6246 = vmor %vm6244, %vm6245
    %v6247 = vsel %vm6246, %v6239, %v6243
    %v6248 = vand.u32 2147483647, %v6238
    %vm6249 = vcmp.eq.f32.partialorder %v6248, 8.507059e+37
    %v6250 = vand.u32 %v6238, 2147483648
    %v6251 = vor.u32 1.1754944e-38, %v6250
    %v6252 = vsel %vm6249, %v6251, %v6247
    %v6253 = vmul.f32 1.0, %v6252
    %v6254 = vmul.f32 %v6233, %v5498
    %v6255 = vmul.f32 %v6214, %v6234
    %v6256 = vadd.f32 %v6254, %v6255
    %v6257 = vtanh.pop %v6256
    %v6258 = vmul.f32 %v6253, %v6257
    %v6259 = vpack.c.bf16 %v5836, %v5836
    %6260 = vmatpush.bf16.msra.mxu0 %v1975
    %6261 = vmatpush.bf16.msra.mxu0 %v1971
    %6262 = vmatpush.bf16.msra.mxu0 %v1967
    %6263 = vmatpush.bf16.msra.mxu0 %v1963
    %6264 = vmatpush.bf16.msra.mxu0 %v1959
    %6265 = vmatpush.bf16.msra.mxu0 %v1955
    %6266 = vmatpush.bf16.msra.mxu0 %v1951
    %6267 = vmatpush.bf16.msra.mxu0 %v1947
    %6268 = vmatmul.bf16.gmra.mxu0 %v6259
    %v6269 = vpop.f32.mrf.mxu0
    %v6270 = vadd.f32 %v1747, %v6269
    %v6271 = vpop.f32.mrf.mxu0
    %6272 = vdwg.mxu0
    %6273 = vmatpush.bf16.msra.mxu0 %v2007
    %6274 = vmatpush.bf16.msra.mxu0 %v2003
    %6275 = vmatpush.bf16.msra.mxu0 %v1999
    %6276 = vmatpush.bf16.msra.mxu0 %v1995
    %6277 = vmatpush.bf16.msra.mxu0 %v1991
    %6278 = vmatpush.bf16.msra.mxu0 %v1987
    %6279 = vmatpush.bf16.msra.mxu0 %v1983
    %6280 = vmatpush.bf16.msra.mxu0 %v1979
    %6281 = vmatmul.bf16.gmra.mxu0 %v6090
    %v6282 = vpop.f32.mrf.mxu0
    %v6283 = vadd.f32 %v6270, %v6282
    %v6284 = vpop.f32.mrf.mxu0
    %6285 = vdwg.mxu0
    %6286 = vmatpush.bf16.msra.mxu0 %v1976
    %6287 = vmatpush.bf16.msra.mxu0 %v1972
    %6288 = vmatpush.bf16.msra.mxu0 %v1968
    %6289 = vmatpush.bf16.msra.mxu0 %v1964
    %6290 = vmatpush.bf16.msra.mxu0 %v1960
    %6291 = vmatpush.bf16.msra.mxu0 %v1956
    %6292 = vmatpush.bf16.msra.mxu0 %v1952
    %6293 = vmatpush.bf16.msra.mxu0 %v1948
    %6294 = vmatmul.bf16.gmra.mxu0 %v6259
    %v6295 = vpop.f32.mrf.mxu0
    %v6296 = vadd.f32 %v1748, %v6295
    %v6297 = vpop.f32.mrf.mxu0
    %6298 = vdwg.mxu0
    %6299 = vmatpush.bf16.msra.mxu0 %v2008
    %6300 = vmatpush.bf16.msra.mxu0 %v2004
    %6301 = vmatpush.bf16.msra.mxu0 %v2000
    %6302 = vmatpush.bf16.msra.mxu0 %v1996
    %6303 = vmatpush.bf16.msra.mxu0 %v1992
    %6304 = vmatpush.bf16.msra.mxu0 %v1988
    %6305 = vmatpush.bf16.msra.mxu0 %v1984
    %6306 = vmatpush.bf16.msra.mxu0 %v1980
    %6307 = vmatmul.bf16.gmra.mxu0 %v6090
    %v6308 = vpop.f32.mrf.mxu0
    %v6309 = vadd.f32 %v6296, %v6308
    %v6310 = vpop.f32.mrf.mxu0
    %6311 = vdwg.mxu0
    %6312 = vmatpush.bf16.msra.mxu0 %v1977
    %6313 = vmatpush.bf16.msra.mxu0 %v1973
    %6314 = vmatpush.bf16.msra.mxu0 %v1969
    %6315 = vmatpush.bf16.msra.mxu0 %v1965
    %6316 = vmatpush.bf16.msra.mxu0 %v1961
    %6317 = vmatpush.bf16.msra.mxu0 %v1957
    %6318 = vmatpush.bf16.msra.mxu0 %v1953
    %6319 = vmatpush.bf16.msra.mxu0 %v1949
    %6320 = vmatmul.bf16.gmra.mxu0 %v6259
    %v6321 = vpop.f32.mrf.mxu0
    %v6322 = vadd.f32 %v1749, %v6321
    %v6323 = vpop.f32.mrf.mxu0
    %6324 = vdwg.mxu0
    %6325 = vmatpush.bf16.msra.mxu0 %v2009
    %6326 = vmatpush.bf16.msra.mxu0 %v2005
    %6327 = vmatpush.bf16.msra.mxu0 %v2001
    %6328 = vmatpush.bf16.msra.mxu0 %v1997
    %6329 = vmatpush.bf16.msra.mxu0 %v1993
    %6330 = vmatpush.bf16.msra.mxu0 %v1989
    %6331 = vmatpush.bf16.msra.mxu0 %v1985
    %6332 = vmatpush.bf16.msra.mxu0 %v1981
    %6333 = vmatmul.bf16.gmra.mxu0 %v6090
    %v6334 = vpop.f32.mrf.mxu0
    %v6335 = vadd.f32 %v6322, %v6334
    %v6336 = vpop.f32.mrf.mxu0
    %6337 = vdwg.mxu0
    %6338 = vmatpush.bf16.msra.mxu0 %v1978
    %6339 = vmatpush.bf16.msra.mxu0 %v1974
    %6340 = vmatpush.bf16.msra.mxu0 %v1970
    %6341 = vmatpush.bf16.msra.mxu0 %v1966
    %6342 = vmatpush.bf16.msra.mxu0 %v1962
    %6343 = vmatpush.bf16.msra.mxu0 %v1958
    %6344 = vmatpush.bf16.msra.mxu0 %v1954
    %6345 = vmatpush.bf16.msra.mxu0 %v1950
    %6346 = vmatmul.bf16.gmra.mxu0 %v6259
    %v6347 = vpop.f32.mrf.mxu0
    %v6348 = vadd.f32 %v1750, %v6347
    %v6349 = vpop.f32.mrf.mxu0
    %6350 = vdwg.mxu0
    %6351 = vmatpush.bf16.msra.mxu0 %v2010
    %6352 = vmatpush.bf16.msra.mxu0 %v2006
    %6353 = vmatpush.bf16.msra.mxu0 %v2002
    %6354 = vmatpush.bf16.msra.mxu0 %v1998
    %6355 = vmatpush.bf16.msra.mxu0 %v1994
    %6356 = vmatpush.bf16.msra.mxu0 %v1990
    %6357 = vmatpush.bf16.msra.mxu0 %v1986
    %6358 = vmatpush.bf16.msra.mxu0 %v1982
    %6359 = vmatmul.bf16.gmra.mxu0 %v6090
    %v6360 = vpop.f32.mrf.mxu0
    %v6361 = vadd.f32 %v6348, %v6360
    %v6362 = vpop.f32.mrf.mxu0
    %6363 = vdwg.mxu0
    %v6364 = vxor.u32 %v6283, 2147483648
    %v6365 = vmul.f32 %v6364, 1.442695
    %v6366 = vpow.pop %v6365
    %v6367 = vadd.f32 %v6366, 1.0
    %v6368 = vrcp.pop %v6367
    %v6369 = vmul.f32 %v6367, %v6368
    %v6370 = vsub.f32 1.0, %v6369
    %v6371 = vmul.f32 %v6368, %v6370
    %v6372 = vadd.f32 %v6368, %v6371
    %vm6373 = vweird.f32 %v6367
    %vm6374 = vweird.f32 %v6368
    %vm6375 = vmor %vm6373, %vm6374
    %v6376 = vsel %vm6375, %v6368, %v6372
    %v6377 = vand.u32 2147483647, %v6367
    %vm6378 = vcmp.eq.f32.partialorder %v6377, 8.507059e+37
    %v6379 = vand.u32 %v6367, 2147483648
    %v6380 = vor.u32 1.1754944e-38, %v6379
    %v6381 = vsel %vm6378, %v6380, %v6376
    %v6382 = vmul.f32 1.0, %v6381
    %v6383 = vxor.u32 %v6309, 2147483648
    %v6384 = vmul.f32 %v6383, 1.442695
    %v6385 = vpow.pop %v6384
    %v6386 = vadd.f32 %v6385, 1.0
    %v6387 = vrcp.pop %v6386
    %v6388 = vmul.f32 %v6386, %v6387
    %v6389 = vsub.f32 1.0, %v6388
    %v6390 = vmul.f32 %v6387, %v6389
    %v6391 = vadd.f32 %v6387, %v6390
    %vm6392 = vweird.f32 %v6386
    %vm6393 = vweird.f32 %v6387
    %vm6394 = vmor %vm6392, %vm6393
    %v6395 = vsel %vm6394, %v6387, %v6391
    %v6396 = vand.u32 2147483647, %v6386
    %vm6397 = vcmp.eq.f32.partialorder %v6396, 8.507059e+37
    %v6398 = vand.u32 %v6386, 2147483648
    %v6399 = vor.u32 1.1754944e-38, %v6398
    %v6400 = vsel %vm6397, %v6399, %v6395
    %v6401 = vmul.f32 1.0, %v6400
    %v6402 = vtanh.pop %v6335
    %v6403 = vxor.u32 %v6361, 2147483648
    %v6404 = vmul.f32 %v6403, 1.442695
    %v6405 = vpow.pop %v6404
    %v6406 = vadd.f32 %v6405, 1.0
    %v6407 = vrcp.pop %v6406
    %v6408 = vmul.f32 %v6406, %v6407
    %v6409 = vsub.f32 1.0, %v6408
    %v6410 = vmul.f32 %v6407, %v6409
    %v6411 = vadd.f32 %v6407, %v6410
    %vm6412 = vweird.f32 %v6406
    %vm6413 = vweird.f32 %v6407
    %vm6414 = vmor %vm6412, %vm6413
    %v6415 = vsel %vm6414, %v6407, %v6411
    %v6416 = vand.u32 2147483647, %v6406
    %vm6417 = vcmp.eq.f32.partialorder %v6416, 8.507059e+37
    %v6418 = vand.u32 %v6406, 2147483648
    %v6419 = vor.u32 1.1754944e-38, %v6418
    %v6420 = vsel %vm6417, %v6419, %v6415
    %v6421 = vmul.f32 1.0, %v6420
    %v6422 = vmul.f32 %v6401, %v5666
    %v6423 = vmul.f32 %v6382, %v6402
    %v6424 = vadd.f32 %v6422, %v6423
    %v6425 = vtanh.pop %v6424
    %v6426 = vmul.f32 %v6421, %v6425
    %v6427 = vpack.c.bf16 %v5959, %v5959
    %6428 = vmatpush.bf16.msra.mxu0 %v1128
    %6429 = vmatpush.bf16.msra.mxu0 %v1124
    %6430 = vmatpush.bf16.msra.mxu0 %v1120
    %6431 = vmatpush.bf16.msra.mxu0 %v1116
    %6432 = vmatpush.bf16.msra.mxu0 %v1112
    %6433 = vmatpush.bf16.msra.mxu0 %v1108
    %6434 = vmatpush.bf16.msra.mxu0 %v1104
    %6435 = vmatpush.bf16.msra.mxu0 %v1100
    %6436 = vmatmul.bf16.gmra.mxu0 %v6427
    %v6437 = vpop.f32.mrf.mxu0
    %v6438 = vadd.f32 %v900, %v6437
    %v6439 = vpop.f32.mrf.mxu0
    %6440 = vdwg.mxu0
    %6441 = vmatpush.bf16.msra.mxu0 %v1160
    %6442 = vmatpush.bf16.msra.mxu0 %v1156
    %6443 = vmatpush.bf16.msra.mxu0 %v1152
    %6444 = vmatpush.bf16.msra.mxu0 %v1148
    %6445 = vmatpush.bf16.msra.mxu0 %v1144
    %6446 = vmatpush.bf16.msra.mxu0 %v1140
    %6447 = vmatpush.bf16.msra.mxu0 %v1136
    %6448 = vmatpush.bf16.msra.mxu0 %v1132
    %6449 = vmatmul.bf16.gmra.mxu0 %v6259
    %v6450 = vpop.f32.mrf.mxu0
    %v6451 = vadd.f32 %v6438, %v6450
    %v6452 = vpop.f32.mrf.mxu0
    %6453 = vdwg.mxu0
    %6454 = vmatpush.bf16.msra.mxu0 %v1129
    %6455 = vmatpush.bf16.msra.mxu0 %v1125
    %6456 = vmatpush.bf16.msra.mxu0 %v1121
    %6457 = vmatpush.bf16.msra.mxu0 %v1117
    %6458 = vmatpush.bf16.msra.mxu0 %v1113
    %6459 = vmatpush.bf16.msra.mxu0 %v1109
    %6460 = vmatpush.bf16.msra.mxu0 %v1105
    %6461 = vmatpush.bf16.msra.mxu0 %v1101
    %6462 = vmatmul.bf16.gmra.mxu0 %v6427
    %v6463 = vpop.f32.mrf.mxu0
    %v6464 = vadd.f32 %v901, %v6463
    %v6465 = vpop.f32.mrf.mxu0
    %6466 = vdwg.mxu0
    %6467 = vmatpush.bf16.msra.mxu0 %v1161
    %6468 = vmatpush.bf16.msra.mxu0 %v1157
    %6469 = vmatpush.bf16.msra.mxu0 %v1153
    %6470 = vmatpush.bf16.msra.mxu0 %v1149
    %6471 = vmatpush.bf16.msra.mxu0 %v1145
    %6472 = vmatpush.bf16.msra.mxu0 %v1141
    %6473 = vmatpush.bf16.msra.mxu0 %v1137
    %6474 = vmatpush.bf16.msra.mxu0 %v1133
    %6475 = vmatmul.bf16.gmra.mxu0 %v6259
    %v6476 = vpop.f32.mrf.mxu0
    %v6477 = vadd.f32 %v6464, %v6476
    %v6478 = vpop.f32.mrf.mxu0
    %6479 = vdwg.mxu0
    %6480 = vmatpush.bf16.msra.mxu0 %v1130
    %6481 = vmatpush.bf16.msra.mxu0 %v1126
    %6482 = vmatpush.bf16.msra.mxu0 %v1122
    %6483 = vmatpush.bf16.msra.mxu0 %v1118
    %6484 = vmatpush.bf16.msra.mxu0 %v1114
    %6485 = vmatpush.bf16.msra.mxu0 %v1110
    %6486 = vmatpush.bf16.msra.mxu0 %v1106
    %6487 = vmatpush.bf16.msra.mxu0 %v1102
    %6488 = vmatmul.bf16.gmra.mxu0 %v6427
    %v6489 = vpop.f32.mrf.mxu0
    %v6490 = vadd.f32 %v902, %v6489
    %v6491 = vpop.f32.mrf.mxu0
    %6492 = vdwg.mxu0
    %6493 = vmatpush.bf16.msra.mxu0 %v1162
    %6494 = vmatpush.bf16.msra.mxu0 %v1158
    %6495 = vmatpush.bf16.msra.mxu0 %v1154
    %6496 = vmatpush.bf16.msra.mxu0 %v1150
    %6497 = vmatpush.bf16.msra.mxu0 %v1146
    %6498 = vmatpush.bf16.msra.mxu0 %v1142
    %6499 = vmatpush.bf16.msra.mxu0 %v1138
    %6500 = vmatpush.bf16.msra.mxu0 %v1134
    %6501 = vmatmul.bf16.gmra.mxu0 %v6259
    %v6502 = vpop.f32.mrf.mxu0
    %v6503 = vadd.f32 %v6490, %v6502
    %v6504 = vpop.f32.mrf.mxu0
    %6505 = vdwg.mxu0
    %6506 = vmatpush.bf16.msra.mxu0 %v1131
    %6507 = vmatpush.bf16.msra.mxu0 %v1127
    %6508 = vmatpush.bf16.msra.mxu0 %v1123
    %6509 = vmatpush.bf16.msra.mxu0 %v1119
    %6510 = vmatpush.bf16.msra.mxu0 %v1115
    %6511 = vmatpush.bf16.msra.mxu0 %v1111
    %6512 = vmatpush.bf16.msra.mxu0 %v1107
    %6513 = vmatpush.bf16.msra.mxu0 %v1103
    %6514 = vmatmul.bf16.gmra.mxu0 %v6427
    %v6515 = vpop.f32.mrf.mxu0
    %v6516 = vadd.f32 %v903, %v6515
    %v6517 = vpop.f32.mrf.mxu0
    %6518 = vdwg.mxu0
    %6519 = vmatpush.bf16.msra.mxu0 %v1163
    %6520 = vmatpush.bf16.msra.mxu0 %v1159
    %6521 = vmatpush.bf16.msra.mxu0 %v1155
    %6522 = vmatpush.bf16.msra.mxu0 %v1151
    %6523 = vmatpush.bf16.msra.mxu0 %v1147
    %6524 = vmatpush.bf16.msra.mxu0 %v1143
    %6525 = vmatpush.bf16.msra.mxu0 %v1139
    %6526 = vmatpush.bf16.msra.mxu0 %v1135
    %6527 = vmatmul.bf16.gmra.mxu0 %v6259
    %v6528 = vpop.f32.mrf.mxu0
    %v6529 = vadd.f32 %v6516, %v6528
    %v6530 = vpop.f32.mrf.mxu0
    %6531 = vdwg.mxu0
    %v6532 = vxor.u32 %v6451, 2147483648
    %v6533 = vmul.f32 %v6532, 1.442695
    %v6534 = vpow.pop %v6533
    %v6535 = vadd.f32 %v6534, 1.0
    %v6536 = vrcp.pop %v6535
    %v6537 = vmul.f32 %v6535, %v6536
    %v6538 = vsub.f32 1.0, %v6537
    %v6539 = vmul.f32 %v6536, %v6538
    %v6540 = vadd.f32 %v6536, %v6539
    %vm6541 = vweird.f32 %v6535
    %vm6542 = vweird.f32 %v6536
    %vm6543 = vmor %vm6541, %vm6542
    %v6544 = vsel %vm6543, %v6536, %v6540
    %v6545 = vand.u32 2147483647, %v6535
    %vm6546 = vcmp.eq.f32.partialorder %v6545, 8.507059e+37
    %v6547 = vand.u32 %v6535, 2147483648
    %v6548 = vor.u32 1.1754944e-38, %v6547
    %v6549 = vsel %vm6546, %v6548, %v6544
    %v6550 = vmul.f32 1.0, %v6549
    %v6551 = vxor.u32 %v6477, 2147483648
    %v6552 = vmul.f32 %v6551, 1.442695
    %v6553 = vpow.pop %v6552
    %v6554 = vadd.f32 %v6553, 1.0
    %v6555 = vrcp.pop %v6554
    %v6556 = vmul.f32 %v6554, %v6555
    %v6557 = vsub.f32 1.0, %v6556
    %v6558 = vmul.f32 %v6555, %v6557
    %v6559 = vadd.f32 %v6555, %v6558
    %vm6560 = vweird.f32 %v6554
    %vm6561 = vweird.f32 %v6555
    %vm6562 = vmor %vm6560, %vm6561
    %v6563 = vsel %vm6562, %v6555, %v6559
    %v6564 = vand.u32 2147483647, %v6554
    %vm6565 = vcmp.eq.f32.partialorder %v6564, 8.507059e+37
    %v6566 = vand.u32 %v6554, 2147483648
    %v6567 = vor.u32 1.1754944e-38, %v6566
    %v6568 = vsel %vm6565, %v6567, %v6563
    %v6569 = vmul.f32 1.0, %v6568
    %v6570 = vtanh.pop %v6503
    %v6571 = vxor.u32 %v6529, 2147483648
    %v6572 = vmul.f32 %v6571, 1.442695
    %v6573 = vpow.pop %v6572
    %v6574 = vadd.f32 %v6573, 1.0
    %v6575 = vrcp.pop %v6574
    %v6576 = vmul.f32 %v6574, %v6575
    %v6577 = vsub.f32 1.0, %v6576
    %v6578 = vmul.f32 %v6575, %v6577
    %v6579 = vadd.f32 %v6575, %v6578
    %vm6580 = vweird.f32 %v6574
    %vm6581 = vweird.f32 %v6575
    %vm6582 = vmor %vm6580, %vm6581
    %v6583 = vsel %vm6582, %v6575, %v6579
    %v6584 = vand.u32 2147483647, %v6574
    %vm6585 = vcmp.eq.f32.partialorder %v6584, 8.507059e+37
    %v6586 = vand.u32 %v6574, 2147483648
    %v6587 = vor.u32 1.1754944e-38, %v6586
    %v6588 = vsel %vm6585, %v6587, %v6583
    %v6589 = vmul.f32 1.0, %v6588
    %v6590 = vmul.f32 %v6569, %v5834
    %v6591 = vmul.f32 %v6550, %v6570
    %v6592 = vadd.f32 %v6590, %v6591
    %v6593 = vtanh.pop %v6592
    %v6594 = vmul.f32 %v6589, %v6593
    %v6595 = vld [vmem:[#allocation2 + $0xe0] sm:$0xff]
    %v6596 = vld [vmem:[#allocation2 + $0xe8] sm:$0xff]
    %v6597 = vld [vmem:[#allocation2 + $0xf0] sm:$0xff]
    %v6598 = vld [vmem:[#allocation2 + $0xf8] sm:$0xff]
    %6599 = vmatpush.bf16.msra.mxu0 %v604
    %6600 = vmatpush.bf16.msra.mxu0 %v600
    %6601 = vmatpush.bf16.msra.mxu0 %v596
    %6602 = vmatpush.bf16.msra.mxu0 %v592
    %6603 = vmatpush.bf16.msra.mxu0 %v588
    %6604 = vmatpush.bf16.msra.mxu0 %v584
    %6605 = vmatpush.bf16.msra.mxu0 %v580
    %6606 = vmatpush.bf16.msra.mxu0 %v576
    %6607 = vmatmul.bf16.gmra.mxu0 %v6427
    %v6608 = vpop.f32.mrf.mxu0
    %v6609 = vadd.f32 0.0, %v6608
    %v6610 = vpop.f32.mrf.mxu0
    %6611 = vdwg.mxu0
    %6612 = vmatpush.bf16.msra.mxu0 %v605
    %6613 = vmatpush.bf16.msra.mxu0 %v601
    %6614 = vmatpush.bf16.msra.mxu0 %v597
    %6615 = vmatpush.bf16.msra.mxu0 %v593
    %6616 = vmatpush.bf16.msra.mxu0 %v589
    %6617 = vmatpush.bf16.msra.mxu0 %v585
    %6618 = vmatpush.bf16.msra.mxu0 %v581
    %6619 = vmatpush.bf16.msra.mxu0 %v577
    %6620 = vmatmul.bf16.gmra.mxu0 %v6427
    %v6621 = vpop.f32.mrf.mxu0
    %v6622 = vadd.f32 0.0, %v6621
    %v6623 = vpop.f32.mrf.mxu0
    %6624 = vdwg.mxu0
    %6625 = vmatpush.bf16.msra.mxu0 %v606
    %6626 = vmatpush.bf16.msra.mxu0 %v602
    %6627 = vmatpush.bf16.msra.mxu0 %v598
    %6628 = vmatpush.bf16.msra.mxu0 %v594
    %6629 = vmatpush.bf16.msra.mxu0 %v590
    %6630 = vmatpush.bf16.msra.mxu0 %v586
    %6631 = vmatpush.bf16.msra.mxu0 %v582
    %6632 = vmatpush.bf16.msra.mxu0 %v578
    %6633 = vmatmul.bf16.gmra.mxu0 %v6427
    %v6634 = vpop.f32.mrf.mxu0
    %v6635 = vadd.f32 0.0, %v6634
    %v6636 = vpop.f32.mrf.mxu0
    %6637 = vdwg.mxu0
    %6638 = vmatpush.bf16.msra.mxu0 %v607
    %6639 = vmatpush.bf16.msra.mxu0 %v603
    %6640 = vmatpush.bf16.msra.mxu0 %v599
    %6641 = vmatpush.bf16.msra.mxu0 %v595
    %6642 = vmatpush.bf16.msra.mxu0 %v591
    %6643 = vmatpush.bf16.msra.mxu0 %v587
    %6644 = vmatpush.bf16.msra.mxu0 %v583
    %6645 = vmatpush.bf16.msra.mxu0 %v579
    %6646 = vmatmul.bf16.gmra.mxu0 %v6427
    %v6647 = vpop.f32.mrf.mxu0
    %v6648 = vadd.f32 0.0, %v6647
    %v6649 = vpop.f32.mrf.mxu0
    %6650 = vdwg.mxu0
    %v6651 = vadd.f32 %v6595, %v6609
    %v6652 = vadd.f32 %v6596, %v6622
    %v6653 = vadd.f32 %v6597, %v6635
    %v6654 = vadd.f32 %v6598, %v6648
    %v6655 = vxor.u32 %v6651, 2147483648
    %v6656 = vmul.f32 %v6655, 1.442695
    %v6657 = vpow.pop %v6656
    %v6658 = vadd.f32 %v6657, 1.0
    %v6659 = vrcp.pop %v6658
    %v6660 = vmul.f32 %v6658, %v6659
    %v6661 = vsub.f32 1.0, %v6660
    %v6662 = vmul.f32 %v6659, %v6661
    %v6663 = vadd.f32 %v6659, %v6662
    %vm6664 = vweird.f32 %v6658
    %vm6665 = vweird.f32 %v6659
    %vm6666 = vmor %vm6664, %vm6665
    %v6667 = vsel %vm6666, %v6659, %v6663
    %v6668 = vand.u32 2147483647, %v6658
    %vm6669 = vcmp.eq.f32.partialorder %v6668, 8.507059e+37
    %v6670 = vand.u32 %v6658, 2147483648
    %v6671 = vor.u32 1.1754944e-38, %v6670
    %v6672 = vsel %vm6669, %v6671, %v6667
    %v6673 = vmul.f32 1.0, %v6672
    %v6674 = vxor.u32 %v6652, 2147483648
    %v6675 = vmul.f32 %v6674, 1.442695
    %v6676 = vpow.pop %v6675
    %v6677 = vadd.f32 %v6676, 1.0
    %v6678 = vrcp.pop %v6677
    %v6679 = vmul.f32 %v6677, %v6678
    %v6680 = vsub.f32 1.0, %v6679
    %v6681 = vmul.f32 %v6678, %v6680
    %v6682 = vadd.f32 %v6678, %v6681
    %vm6683 = vweird.f32 %v6677
    %vm6684 = vweird.f32 %v6678
    %vm6685 = vmor %vm6683, %vm6684
    %v6686 = vsel %vm6685, %v6678, %v6682
    %v6687 = vand.u32 2147483647, %v6677
    %vm6688 = vcmp.eq.f32.partialorder %v6687, 8.507059e+37
    %v6689 = vand.u32 %v6677, 2147483648
    %v6690 = vor.u32 1.1754944e-38, %v6689
    %v6691 = vsel %vm6688, %v6690, %v6686
    %v6692 = vmul.f32 1.0, %v6691
    %v6693 = vtanh.pop %v6653
    %v6694 = vxor.u32 %v6654, 2147483648
    %v6695 = vmul.f32 %v6694, 1.442695
    %v6696 = vpow.pop %v6695
    %v6697 = vadd.f32 %v6696, 1.0
    %v6698 = vrcp.pop %v6697
    %v6699 = vmul.f32 %v6697, %v6698
    %v6700 = vsub.f32 1.0, %v6699
    %v6701 = vmul.f32 %v6698, %v6700
    %v6702 = vadd.f32 %v6698, %v6701
    %vm6703 = vweird.f32 %v6697
    %vm6704 = vweird.f32 %v6698
    %vm6705 = vmor %vm6703, %vm6704
    %v6706 = vsel %vm6705, %v6698, %v6702
    %v6707 = vand.u32 2147483647, %v6697
    %vm6708 = vcmp.eq.f32.partialorder %v6707, 8.507059e+37
    %v6709 = vand.u32 %v6697, 2147483648
    %v6710 = vor.u32 1.1754944e-38, %v6709
    %v6711 = vsel %vm6708, %v6710, %v6706
    %v6712 = vmul.f32 1.0, %v6711
    %v6713 = vmul.f32 %v6692, %v5957
    %v6714 = vmul.f32 %v6673, %v6693
    %v6715 = vadd.f32 %v6713, %v6714
    %v6716 = vtanh.pop %v6715
    %v6717 = vmul.f32 %v6712, %v6716
    %v6718 = vpack.c.bf16 %v6089, %v6089
    %v6719 = vpack.c.bf16 %v6037, %v6037
    %6721 = vrot.lane.b32.xlu0 %v6719, 32
    %v6722 = vpop.permute.xlu0 %6721
    %v6724 = vsel %vm776, %v6722, 0
    %6726 = vmatpush.bf16.msra.mxu0 0
    %6727 = vmatpush.bf16.msra.mxu0 0
    %6728 = vmatpush.bf16.msra.mxu0 0
    %6729 = vmatpush.bf16.msra.mxu0 0
    %6730 = vmatpush.bf16.msra.mxu0 0
    %6731 = vmatpush.bf16.msra.mxu0 0
    %6732 = vmatpush.bf16.msra.mxu0 %v1536
    %6733 = vmatpush.bf16.msra.mxu0 %v1535
    %6734 = vmatmul.bf16.gmra.mxu0 %v6724
    %v6735 = vpop.f32.mrf.mxu0
    %v6736 = vadd.f32 0.0, %v6735
    %v6737 = vpop.f32.mrf.mxu0
    %6738 = vdwg.mxu0
    %6740 = vrot.lane.b32.xlu0 %v6718, 32
    %v6741 = vpop.permute.xlu0 %6740
    %v6743 = vsel %vm776, %v6741, 0
    %6745 = vmatpush.bf16.msra.mxu0 0
    %6746 = vmatpush.bf16.msra.mxu0 0
    %6747 = vmatpush.bf16.msra.mxu0 0
    %6748 = vmatpush.bf16.msra.mxu0 0
    %6749 = vmatpush.bf16.msra.mxu0 0
    %6750 = vmatpush.bf16.msra.mxu0 0
    %6751 = vmatpush.bf16.msra.mxu0 %v1564
    %6752 = vmatpush.bf16.msra.mxu0 %v1563
    %6753 = vmatmul.bf16.gmra.mxu0 %v6743
    %v6754 = vpop.f32.mrf.mxu0
    %v6755 = vadd.f32 %v6736, %v6754
    %v6756 = vpop.f32.mrf.mxu0
    %6757 = vdwg.mxu0
    %v6758 = vadd.f32 %v6755, %v1586
    %v6759 = vxor.u32 %v6758, 2147483648
    %v6760 = vmul.f32 %v6759, 1.442695
    %v6761 = vpow.pop %v6760
    %v6762 = vadd.f32 %v6761, 1.0
    %v6763 = vrcp.pop %v6762
    %v6764 = vmul.f32 %v6762, %v6763
    %v6765 = vsub.f32 1.0, %v6764
    %v6766 = vmul.f32 %v6763, %v6765
    %v6767 = vadd.f32 %v6763, %v6766
    %vm6768 = vweird.f32 %v6762
    %vm6769 = vweird.f32 %v6763
    %vm6770 = vmor %vm6768, %vm6769
    %v6771 = vsel %vm6770, %v6763, %v6767
    %v6772 = vand.u32 2147483647, %v6762
    %vm6773 = vcmp.eq.f32.partialorder %v6772, 8.507059e+37
    %v6774 = vand.u32 %v6762, 2147483648
    %v6775 = vor.u32 1.1754944e-38, %v6774
    %v6776 = vsel %vm6773, %v6775, %v6771
    %v6777 = vmul.f32 1.0, %v6776
    %v6778 = vtanh.pop %v6758
    %v6779 = vmul.f32 %v6777, %v6031
    %6781 = vrot.lane.b32.xlu0 %v6778, 64
    %v6782 = vpop.permute.xlu0 %6781
    %v6784 = vmul.f32 %v6777, %v6782
    %6786 = vrot.lane.b32.xlu0 %v6784, 32
    %v6787 = vpop.permute.xlu0 %6786
    %v6789 = vadd.f32 %v6779, %v6787
    %v6790 = vtanh.pop %v6789
    %6792 = vrot.lane.b32.xlu0 %v6790, 64
    %v6793 = vpop.permute.xlu0 %6792
    %v6795 = vmul.f32 %v6777, %v6793
    %v6796 = vld [vmem:[#allocation3 + $0x38] sm:$0xff]
    %6797 = vmatpush.bf16.msra.mxu0 0
    %6798 = vmatpush.bf16.msra.mxu0 0
    %6799 = vmatpush.bf16.msra.mxu0 0
    %6800 = vmatpush.bf16.msra.mxu0 0
    %6801 = vmatpush.bf16.msra.mxu0 0
    %6802 = vmatpush.bf16.msra.mxu0 0
    %6803 = vmatpush.bf16.msra.mxu0 %v773
    %6804 = vmatpush.bf16.msra.mxu0 %v772
    %6805 = vmatmul.bf16.gmra.mxu0 %v6743
    %v6806 = vpop.f32.mrf.mxu0
    %v6807 = vadd.f32 0.0, %v6806
    %v6808 = vpop.f32.mrf.mxu0
    %6809 = vdwg.mxu0
    %v6810 = vadd.f32 %v6796, %v6807
    %v6811 = vxor.u32 %v6810, 2147483648
    %v6812 = vmul.f32 %v6811, 1.442695
    %v6813 = vpow.pop %v6812
    %v6814 = vadd.f32 %v6813, 1.0
    %v6815 = vrcp.pop %v6814
    %v6816 = vmul.f32 %v6814, %v6815
    %v6817 = vsub.f32 1.0, %v6816
    %v6818 = vmul.f32 %v6815, %v6817
    %v6819 = vadd.f32 %v6815, %v6818
    %vm6820 = vweird.f32 %v6814
    %vm6821 = vweird.f32 %v6815
    %vm6822 = vmor %vm6820, %vm6821
    %v6823 = vsel %vm6822, %v6815, %v6819
    %v6824 = vand.u32 2147483647, %v6814
    %vm6825 = vcmp.eq.f32.partialorder %v6824, 8.507059e+37
    %v6826 = vand.u32 %v6814, 2147483648
    %v6827 = vor.u32 1.1754944e-38, %v6826
    %v6828 = vsel %vm6825, %v6827, %v6823
    %v6829 = vmul.f32 1.0, %v6828
    %v6830 = vtanh.pop %v6810
    %v6831 = vmul.f32 %v6829, %v6083
    %6833 = vrot.lane.b32.xlu0 %v6830, 64
    %v6834 = vpop.permute.xlu0 %6833
    %v6836 = vmul.f32 %v6829, %v6834
    %6838 = vrot.lane.b32.xlu0 %v6836, 32
    %v6839 = vpop.permute.xlu0 %6838
    %v6841 = vadd.f32 %v6831, %v6839
    %v6842 = vtanh.pop %v6841
    %6844 = vrot.lane.b32.xlu0 %v6842, 64
    %v6845 = vpop.permute.xlu0 %6844
    %v6847 = vmul.f32 %v6829, %v6845
    %v6848 = vpack.c.bf16 %v6426, %v6426
    %v6849 = vpack.c.bf16 %v6258, %v6258
    %6850 = vmatpush.bf16.msra.mxu0 %v2960
    %6851 = vmatpush.bf16.msra.mxu0 %v2956
    %6852 = vmatpush.bf16.msra.mxu0 %v2952
    %6853 = vmatpush.bf16.msra.mxu0 %v2948
    %6854 = vmatpush.bf16.msra.mxu0 %v2944
    %6855 = vmatpush.bf16.msra.mxu0 %v2940
    %6856 = vmatpush.bf16.msra.mxu0 %v2936
    %6857 = vmatpush.bf16.msra.mxu0 %v2932
    %6858 = vmatmul.bf16.gmra.mxu0 %v6848
    %v6859 = vpop.f32.mrf.mxu0
    %v6860 = vadd.f32 %v2732, %v6859
    %v6861 = vpop.f32.mrf.mxu0
    %6862 = vdwg.mxu0
    %6863 = vmatpush.bf16.msra.mxu0 %v2992
    %6864 = vmatpush.bf16.msra.mxu0 %v2988
    %6865 = vmatpush.bf16.msra.mxu0 %v2984
    %6866 = vmatpush.bf16.msra.mxu0 %v2980
    %6867 = vmatpush.bf16.msra.mxu0 %v2976
    %6868 = vmatpush.bf16.msra.mxu0 %v2972
    %6869 = vmatpush.bf16.msra.mxu0 %v2968
    %6870 = vmatpush.bf16.msra.mxu0 %v2964
    %6871 = vmatmul.bf16.gmra.mxu0 %v6849
    %v6872 = vpop.f32.mrf.mxu0
    %v6873 = vadd.f32 %v6860, %v6872
    %v6874 = vpop.f32.mrf.mxu0
    %6875 = vdwg.mxu0
    %6876 = vmatpush.bf16.msra.mxu0 %v2961
    %6877 = vmatpush.bf16.msra.mxu0 %v2957
    %6878 = vmatpush.bf16.msra.mxu0 %v2953
    %6879 = vmatpush.bf16.msra.mxu0 %v2949
    %6880 = vmatpush.bf16.msra.mxu0 %v2945
    %6881 = vmatpush.bf16.msra.mxu0 %v2941
    %6882 = vmatpush.bf16.msra.mxu0 %v2937
    %6883 = vmatpush.bf16.msra.mxu0 %v2933
    %6884 = vmatmul.bf16.gmra.mxu0 %v6848
    %v6885 = vpop.f32.mrf.mxu0
    %v6886 = vadd.f32 %v2733, %v6885
    %v6887 = vpop.f32.mrf.mxu0
    %6888 = vdwg.mxu0
    %6889 = vmatpush.bf16.msra.mxu0 %v2993
    %6890 = vmatpush.bf16.msra.mxu0 %v2989
    %6891 = vmatpush.bf16.msra.mxu0 %v2985
    %6892 = vmatpush.bf16.msra.mxu0 %v2981
    %6893 = vmatpush.bf16.msra.mxu0 %v2977
    %6894 = vmatpush.bf16.msra.mxu0 %v2973
    %6895 = vmatpush.bf16.msra.mxu0 %v2969
    %6896 = vmatpush.bf16.msra.mxu0 %v2965
    %6897 = vmatmul.bf16.gmra.mxu0 %v6849
    %v6898 = vpop.f32.mrf.mxu0
    %v6899 = vadd.f32 %v6886, %v6898
    %v6900 = vpop.f32.mrf.mxu0
    %6901 = vdwg.mxu0
    %6902 = vmatpush.bf16.msra.mxu0 %v2962
    %6903 = vmatpush.bf16.msra.mxu0 %v2958
    %6904 = vmatpush.bf16.msra.mxu0 %v2954
    %6905 = vmatpush.bf16.msra.mxu0 %v2950
    %6906 = vmatpush.bf16.msra.mxu0 %v2946
    %6907 = vmatpush.bf16.msra.mxu0 %v2942
    %6908 = vmatpush.bf16.msra.mxu0 %v2938
    %6909 = vmatpush.bf16.msra.mxu0 %v2934
    %6910 = vmatmul.bf16.gmra.mxu0 %v6848
    %v6911 = vpop.f32.mrf.mxu0
    %v6912 = vadd.f32 %v2734, %v6911
    %v6913 = vpop.f32.mrf.mxu0
    %6914 = vdwg.mxu0
    %6915 = vmatpush.bf16.msra.mxu0 %v2994
    %6916 = vmatpush.bf16.msra.mxu0 %v2990
    %6917 = vmatpush.bf16.msra.mxu0 %v2986
    %6918 = vmatpush.bf16.msra.mxu0 %v2982
    %6919 = vmatpush.bf16.msra.mxu0 %v2978
    %6920 = vmatpush.bf16.msra.mxu0 %v2974
    %6921 = vmatpush.bf16.msra.mxu0 %v2970
    %6922 = vmatpush.bf16.msra.mxu0 %v2966
    %6923 = vmatmul.bf16.gmra.mxu0 %v6849
    %v6924 = vpop.f32.mrf.mxu0
    %v6925 = vadd.f32 %v6912, %v6924
    %v6926 = vpop.f32.mrf.mxu0
    %6927 = vdwg.mxu0
    %6928 = vmatpush.bf16.msra.mxu0 %v2963
    %6929 = vmatpush.bf16.msra.mxu0 %v2959
    %6930 = vmatpush.bf16.msra.mxu0 %v2955
    %6931 = vmatpush.bf16.msra.mxu0 %v2951
    %6932 = vmatpush.bf16.msra.mxu0 %v2947
    %6933 = vmatpush.bf16.msra.mxu0 %v2943
    %6934 = vmatpush.bf16.msra.mxu0 %v2939
    %6935 = vmatpush.bf16.msra.mxu0 %v2935
    %6936 = vmatmul.bf16.gmra.mxu0 %v6848
    %v6937 = vpop.f32.mrf.mxu0
    %v6938 = vadd.f32 %v2735, %v6937
    %v6939 = vpop.f32.mrf.mxu0
    %6940 = vdwg.mxu0
    %6941 = vmatpush.bf16.msra.mxu0 %v2995
    %6942 = vmatpush.bf16.msra.mxu0 %v2991
    %6943 = vmatpush.bf16.msra.mxu0 %v2987
    %6944 = vmatpush.bf16.msra.mxu0 %v2983
    %6945 = vmatpush.bf16.msra.mxu0 %v2979
    %6946 = vmatpush.bf16.msra.mxu0 %v2975
    %6947 = vmatpush.bf16.msra.mxu0 %v2971
    %6948 = vmatpush.bf16.msra.mxu0 %v2967
    %6949 = vmatmul.bf16.gmra.mxu0 %v6849
    %v6950 = vpop.f32.mrf.mxu0
    %v6951 = vadd.f32 %v6938, %v6950
    %v6952 = vpop.f32.mrf.mxu0
    %6953 = vdwg.mxu0
    %v6954 = vxor.u32 %v6873, 2147483648
    %v6955 = vmul.f32 %v6954, 1.442695
    %v6956 = vpow.pop %v6955
    %v6957 = vadd.f32 %v6956, 1.0
    %v6958 = vrcp.pop %v6957
    %v6959 = vmul.f32 %v6957, %v6958
    %v6960 = vsub.f32 1.0, %v6959
    %v6961 = vmul.f32 %v6958, %v6960
    %v6962 = vadd.f32 %v6958, %v6961
    %vm6963 = vweird.f32 %v6957
    %vm6964 = vweird.f32 %v6958
    %vm6965 = vmor %vm6963, %vm6964
    %v6966 = vsel %vm6965, %v6958, %v6962
    %v6967 = vand.u32 2147483647, %v6957
    %vm6968 = vcmp.eq.f32.partialorder %v6967, 8.507059e+37
    %v6969 = vand.u32 %v6957, 2147483648
    %v6970 = vor.u32 1.1754944e-38, %v6969
    %v6971 = vsel %vm6968, %v6970, %v6966
    %v6972 = vmul.f32 1.0, %v6971
    %v6973 = vxor.u32 %v6899, 2147483648
    %v6974 = vmul.f32 %v6973, 1.442695
    %v6975 = vpow.pop %v6974
    %v6976 = vadd.f32 %v6975, 1.0
    %v6977 = vrcp.pop %v6976
    %v6978 = vmul.f32 %v6976, %v6977
    %v6979 = vsub.f32 1.0, %v6978
    %v6980 = vmul.f32 %v6977, %v6979
    %v6981 = vadd.f32 %v6977, %v6980
    %vm6982 = vweird.f32 %v6976
    %vm6983 = vweird.f32 %v6977
    %vm6984 = vmor %vm6982, %vm6983
    %v6985 = vsel %vm6984, %v6977, %v6981
    %v6986 = vand.u32 2147483647, %v6976
    %vm6987 = vcmp.eq.f32.partialorder %v6986, 8.507059e+37
    %v6988 = vand.u32 %v6976, 2147483648
    %v6989 = vor.u32 1.1754944e-38, %v6988
    %v6990 = vsel %vm6987, %v6989, %v6985
    %v6991 = vmul.f32 1.0, %v6990
    %v6992 = vtanh.pop %v6925
    %v6993 = vxor.u32 %v6951, 2147483648
    %v6994 = vmul.f32 %v6993, 1.442695
    %v6995 = vpow.pop %v6994
    %v6996 = vadd.f32 %v6995, 1.0
    %v6997 = vrcp.pop %v6996
    %v6998 = vmul.f32 %v6996, %v6997
    %v6999 = vsub.f32 1.0, %v6998
    %v7000 = vmul.f32 %v6997, %v6999
    %v7001 = vadd.f32 %v6997, %v7000
    %vm7002 = vweird.f32 %v6996
    %vm7003 = vweird.f32 %v6997
    %vm7004 = vmor %vm7002, %vm7003
    %v7005 = vsel %vm7004, %v6997, %v7001
    %v7006 = vand.u32 2147483647, %v6996
    %vm7007 = vcmp.eq.f32.partialorder %v7006, 8.507059e+37
    %v7008 = vand.u32 %v6996, 2147483648
    %v7009 = vor.u32 1.1754944e-38, %v7008
    %v7010 = vsel %vm7007, %v7009, %v7005
    %v7011 = vmul.f32 1.0, %v7010
    %v7012 = vmul.f32 %v6991, %v6256
    %v7013 = vmul.f32 %v6972, %v6992
    %v7014 = vadd.f32 %v7012, %v7013
    %v7015 = vtanh.pop %v7014
    %v7016 = vmul.f32 %v7011, %v7015
    %v7017 = vpack.c.bf16 %v6594, %v6594
    %7018 = vmatpush.bf16.msra.mxu0 %v1975
    %7019 = vmatpush.bf16.msra.mxu0 %v1971
    %7020 = vmatpush.bf16.msra.mxu0 %v1967
    %7021 = vmatpush.bf16.msra.mxu0 %v1963
    %7022 = vmatpush.bf16.msra.mxu0 %v1959
    %7023 = vmatpush.bf16.msra.mxu0 %v1955
    %7024 = vmatpush.bf16.msra.mxu0 %v1951
    %7025 = vmatpush.bf16.msra.mxu0 %v1947
    %7026 = vmatmul.bf16.gmra.mxu0 %v7017
    %v7027 = vpop.f32.mrf.mxu0
    %v7028 = vadd.f32 %v1747, %v7027
    %v7029 = vpop.f32.mrf.mxu0
    %7030 = vdwg.mxu0
    %7031 = vmatpush.bf16.msra.mxu0 %v2007
    %7032 = vmatpush.bf16.msra.mxu0 %v2003
    %7033 = vmatpush.bf16.msra.mxu0 %v1999
    %7034 = vmatpush.bf16.msra.mxu0 %v1995
    %7035 = vmatpush.bf16.msra.mxu0 %v1991
    %7036 = vmatpush.bf16.msra.mxu0 %v1987
    %7037 = vmatpush.bf16.msra.mxu0 %v1983
    %7038 = vmatpush.bf16.msra.mxu0 %v1979
    %7039 = vmatmul.bf16.gmra.mxu0 %v6848
    %v7040 = vpop.f32.mrf.mxu0
    %v7041 = vadd.f32 %v7028, %v7040
    %v7042 = vpop.f32.mrf.mxu0
    %7043 = vdwg.mxu0
    %7044 = vmatpush.bf16.msra.mxu0 %v1976
    %7045 = vmatpush.bf16.msra.mxu0 %v1972
    %7046 = vmatpush.bf16.msra.mxu0 %v1968
    %7047 = vmatpush.bf16.msra.mxu0 %v1964
    %7048 = vmatpush.bf16.msra.mxu0 %v1960
    %7049 = vmatpush.bf16.msra.mxu0 %v1956
    %7050 = vmatpush.bf16.msra.mxu0 %v1952
    %7051 = vmatpush.bf16.msra.mxu0 %v1948
    %7052 = vmatmul.bf16.gmra.mxu0 %v7017
    %v7053 = vpop.f32.mrf.mxu0
    %v7054 = vadd.f32 %v1748, %v7053
    %v7055 = vpop.f32.mrf.mxu0
    %7056 = vdwg.mxu0
    %7057 = vmatpush.bf16.msra.mxu0 %v2008
    %7058 = vmatpush.bf16.msra.mxu0 %v2004
    %7059 = vmatpush.bf16.msra.mxu0 %v2000
    %7060 = vmatpush.bf16.msra.mxu0 %v1996
    %7061 = vmatpush.bf16.msra.mxu0 %v1992
    %7062 = vmatpush.bf16.msra.mxu0 %v1988
    %7063 = vmatpush.bf16.msra.mxu0 %v1984
    %7064 = vmatpush.bf16.msra.mxu0 %v1980
    %7065 = vmatmul.bf16.gmra.mxu0 %v6848
    %v7066 = vpop.f32.mrf.mxu0
    %v7067 = vadd.f32 %v7054, %v7066
    %v7068 = vpop.f32.mrf.mxu0
    %7069 = vdwg.mxu0
    %7070 = vmatpush.bf16.msra.mxu0 %v1977
    %7071 = vmatpush.bf16.msra.mxu0 %v1973
    %7072 = vmatpush.bf16.msra.mxu0 %v1969
    %7073 = vmatpush.bf16.msra.mxu0 %v1965
    %7074 = vmatpush.bf16.msra.mxu0 %v1961
    %7075 = vmatpush.bf16.msra.mxu0 %v1957
    %7076 = vmatpush.bf16.msra.mxu0 %v1953
    %7077 = vmatpush.bf16.msra.mxu0 %v1949
    %7078 = vmatmul.bf16.gmra.mxu0 %v7017
    %v7079 = vpop.f32.mrf.mxu0
    %v7080 = vadd.f32 %v1749, %v7079
    %v7081 = vpop.f32.mrf.mxu0
    %7082 = vdwg.mxu0
    %7083 = vmatpush.bf16.msra.mxu0 %v2009
    %7084 = vmatpush.bf16.msra.mxu0 %v2005
    %7085 = vmatpush.bf16.msra.mxu0 %v2001
    %7086 = vmatpush.bf16.msra.mxu0 %v1997
    %7087 = vmatpush.bf16.msra.mxu0 %v1993
    %7088 = vmatpush.bf16.msra.mxu0 %v1989
    %7089 = vmatpush.bf16.msra.mxu0 %v1985
    %7090 = vmatpush.bf16.msra.mxu0 %v1981
    %7091 = vmatmul.bf16.gmra.mxu0 %v6848
    %v7092 = vpop.f32.mrf.mxu0
    %v7093 = vadd.f32 %v7080, %v7092
    %v7094 = vpop.f32.mrf.mxu0
    %7095 = vdwg.mxu0
    %7096 = vmatpush.bf16.msra.mxu0 %v1978
    %7097 = vmatpush.bf16.msra.mxu0 %v1974
    %7098 = vmatpush.bf16.msra.mxu0 %v1970
    %7099 = vmatpush.bf16.msra.mxu0 %v1966
    %7100 = vmatpush.bf16.msra.mxu0 %v1962
    %7101 = vmatpush.bf16.msra.mxu0 %v1958
    %7102 = vmatpush.bf16.msra.mxu0 %v1954
    %7103 = vmatpush.bf16.msra.mxu0 %v1950
    %7104 = vmatmul.bf16.gmra.mxu0 %v7017
    %v7105 = vpop.f32.mrf.mxu0
    %v7106 = vadd.f32 %v1750, %v7105
    %v7107 = vpop.f32.mrf.mxu0
    %7108 = vdwg.mxu0
    %7109 = vmatpush.bf16.msra.mxu0 %v2010
    %7110 = vmatpush.bf16.msra.mxu0 %v2006
    %7111 = vmatpush.bf16.msra.mxu0 %v2002
    %7112 = vmatpush.bf16.msra.mxu0 %v1998
    %7113 = vmatpush.bf16.msra.mxu0 %v1994
    %7114 = vmatpush.bf16.msra.mxu0 %v1990
    %7115 = vmatpush.bf16.msra.mxu0 %v1986
    %7116 = vmatpush.bf16.msra.mxu0 %v1982
    %7117 = vmatmul.bf16.gmra.mxu0 %v6848
    %v7118 = vpop.f32.mrf.mxu0
    %v7119 = vadd.f32 %v7106, %v7118
    %v7120 = vpop.f32.mrf.mxu0
    %7121 = vdwg.mxu0
    %v7122 = vxor.u32 %v7041, 2147483648
    %v7123 = vmul.f32 %v7122, 1.442695
    %v7124 = vpow.pop %v7123
    %v7125 = vadd.f32 %v7124, 1.0
    %v7126 = vrcp.pop %v7125
    %v7127 = vmul.f32 %v7125, %v7126
    %v7128 = vsub.f32 1.0, %v7127
    %v7129 = vmul.f32 %v7126, %v7128
    %v7130 = vadd.f32 %v7126, %v7129
    %vm7131 = vweird.f32 %v7125
    %vm7132 = vweird.f32 %v7126
    %vm7133 = vmor %vm7131, %vm7132
    %v7134 = vsel %vm7133, %v7126, %v7130
    %v7135 = vand.u32 2147483647, %v7125
    %vm7136 = vcmp.eq.f32.partialorder %v7135, 8.507059e+37
    %v7137 = vand.u32 %v7125, 2147483648
    %v7138 = vor.u32 1.1754944e-38, %v7137
    %v7139 = vsel %vm7136, %v7138, %v7134
    %v7140 = vmul.f32 1.0, %v7139
    %v7141 = vxor.u32 %v7067, 2147483648
    %v7142 = vmul.f32 %v7141, 1.442695
    %v7143 = vpow.pop %v7142
    %v7144 = vadd.f32 %v7143, 1.0
    %v7145 = vrcp.pop %v7144
    %v7146 = vmul.f32 %v7144, %v7145
    %v7147 = vsub.f32 1.0, %v7146
    %v7148 = vmul.f32 %v7145, %v7147
    %v7149 = vadd.f32 %v7145, %v7148
    %vm7150 = vweird.f32 %v7144
    %vm7151 = vweird.f32 %v7145
    %vm7152 = vmor %vm7150, %vm7151
    %v7153 = vsel %vm7152, %v7145, %v7149
    %v7154 = vand.u32 2147483647, %v7144
    %vm7155 = vcmp.eq.f32.partialorder %v7154, 8.507059e+37
    %v7156 = vand.u32 %v7144, 2147483648
    %v7157 = vor.u32 1.1754944e-38, %v7156
    %v7158 = vsel %vm7155, %v7157, %v7153
    %v7159 = vmul.f32 1.0, %v7158
    %v7160 = vtanh.pop %v7093
    %v7161 = vxor.u32 %v7119, 2147483648
    %v7162 = vmul.f32 %v7161, 1.442695
    %v7163 = vpow.pop %v7162
    %v7164 = vadd.f32 %v7163, 1.0
    %v7165 = vrcp.pop %v7164
    %v7166 = vmul.f32 %v7164, %v7165
    %v7167 = vsub.f32 1.0, %v7166
    %v7168 = vmul.f32 %v7165, %v7167
    %v7169 = vadd.f32 %v7165, %v7168
    %vm7170 = vweird.f32 %v7164
    %vm7171 = vweird.f32 %v7165
    %vm7172 = vmor %vm7170, %vm7171
    %v7173 = vsel %vm7172, %v7165, %v7169
    %v7174 = vand.u32 2147483647, %v7164
    %vm7175 = vcmp.eq.f32.partialorder %v7174, 8.507059e+37
    %v7176 = vand.u32 %v7164, 2147483648
    %v7177 = vor.u32 1.1754944e-38, %v7176
    %v7178 = vsel %vm7175, %v7177, %v7173
    %v7179 = vmul.f32 1.0, %v7178
    %v7180 = vmul.f32 %v7159, %v6424
    %v7181 = vmul.f32 %v7140, %v7160
    %v7182 = vadd.f32 %v7180, %v7181
    %v7183 = vtanh.pop %v7182
    %v7184 = vmul.f32 %v7179, %v7183
    %v7185 = vpack.c.bf16 %v6717, %v6717
    %7186 = vmatpush.bf16.msra.mxu0 %v1128
    %7187 = vmatpush.bf16.msra.mxu0 %v1124
    %7188 = vmatpush.bf16.msra.mxu0 %v1120
    %7189 = vmatpush.bf16.msra.mxu0 %v1116
    %7190 = vmatpush.bf16.msra.mxu0 %v1112
    %7191 = vmatpush.bf16.msra.mxu0 %v1108
    %7192 = vmatpush.bf16.msra.mxu0 %v1104
    %7193 = vmatpush.bf16.msra.mxu0 %v1100
    %7194 = vmatmul.bf16.gmra.mxu0 %v7185
    %v7195 = vpop.f32.mrf.mxu0
    %v7196 = vadd.f32 %v900, %v7195
    %v7197 = vpop.f32.mrf.mxu0
    %7198 = vdwg.mxu0
    %7199 = vmatpush.bf16.msra.mxu0 %v1160
    %7200 = vmatpush.bf16.msra.mxu0 %v1156
    %7201 = vmatpush.bf16.msra.mxu0 %v1152
    %7202 = vmatpush.bf16.msra.mxu0 %v1148
    %7203 = vmatpush.bf16.msra.mxu0 %v1144
    %7204 = vmatpush.bf16.msra.mxu0 %v1140
    %7205 = vmatpush.bf16.msra.mxu0 %v1136
    %7206 = vmatpush.bf16.msra.mxu0 %v1132
    %7207 = vmatmul.bf16.gmra.mxu0 %v7017
    %v7208 = vpop.f32.mrf.mxu0
    %v7209 = vadd.f32 %v7196, %v7208
    %v7210 = vpop.f32.mrf.mxu0
    %7211 = vdwg.mxu0
    %7212 = vmatpush.bf16.msra.mxu0 %v1129
    %7213 = vmatpush.bf16.msra.mxu0 %v1125
    %7214 = vmatpush.bf16.msra.mxu0 %v1121
    %7215 = vmatpush.bf16.msra.mxu0 %v1117
    %7216 = vmatpush.bf16.msra.mxu0 %v1113
    %7217 = vmatpush.bf16.msra.mxu0 %v1109
    %7218 = vmatpush.bf16.msra.mxu0 %v1105
    %7219 = vmatpush.bf16.msra.mxu0 %v1101
    %7220 = vmatmul.bf16.gmra.mxu0 %v7185
    %v7221 = vpop.f32.mrf.mxu0
    %v7222 = vadd.f32 %v901, %v7221
    %v7223 = vpop.f32.mrf.mxu0
    %7224 = vdwg.mxu0
    %7225 = vmatpush.bf16.msra.mxu0 %v1161
    %7226 = vmatpush.bf16.msra.mxu0 %v1157
    %7227 = vmatpush.bf16.msra.mxu0 %v1153
    %7228 = vmatpush.bf16.msra.mxu0 %v1149
    %7229 = vmatpush.bf16.msra.mxu0 %v1145
    %7230 = vmatpush.bf16.msra.mxu0 %v1141
    %7231 = vmatpush.bf16.msra.mxu0 %v1137
    %7232 = vmatpush.bf16.msra.mxu0 %v1133
    %7233 = vmatmul.bf16.gmra.mxu0 %v7017
    %v7234 = vpop.f32.mrf.mxu0
    %v7235 = vadd.f32 %v7222, %v7234
    %v7236 = vpop.f32.mrf.mxu0
    %7237 = vdwg.mxu0
    %7238 = vmatpush.bf16.msra.mxu0 %v1130
    %7239 = vmatpush.bf16.msra.mxu0 %v1126
    %7240 = vmatpush.bf16.msra.mxu0 %v1122
    %7241 = vmatpush.bf16.msra.mxu0 %v1118
    %7242 = vmatpush.bf16.msra.mxu0 %v1114
    %7243 = vmatpush.bf16.msra.mxu0 %v1110
    %7244 = vmatpush.bf16.msra.mxu0 %v1106
    %7245 = vmatpush.bf16.msra.mxu0 %v1102
    %7246 = vmatmul.bf16.gmra.mxu0 %v7185
    %v7247 = vpop.f32.mrf.mxu0
    %v7248 = vadd.f32 %v902, %v7247
    %v7249 = vpop.f32.mrf.mxu0
    %7250 = vdwg.mxu0
    %7251 = vmatpush.bf16.msra.mxu0 %v1162
    %7252 = vmatpush.bf16.msra.mxu0 %v1158
    %7253 = vmatpush.bf16.msra.mxu0 %v1154
    %7254 = vmatpush.bf16.msra.mxu0 %v1150
    %7255 = vmatpush.bf16.msra.mxu0 %v1146
    %7256 = vmatpush.bf16.msra.mxu0 %v1142
    %7257 = vmatpush.bf16.msra.mxu0 %v1138
    %7258 = vmatpush.bf16.msra.mxu0 %v1134
    %7259 = vmatmul.bf16.gmra.mxu0 %v7017
    %v7260 = vpop.f32.mrf.mxu0
    %v7261 = vadd.f32 %v7248, %v7260
    %v7262 = vpop.f32.mrf.mxu0
    %7263 = vdwg.mxu0
    %7264 = vmatpush.bf16.msra.mxu0 %v1131
    %7265 = vmatpush.bf16.msra.mxu0 %v1127
    %7266 = vmatpush.bf16.msra.mxu0 %v1123
    %7267 = vmatpush.bf16.msra.mxu0 %v1119
    %7268 = vmatpush.bf16.msra.mxu0 %v1115
    %7269 = vmatpush.bf16.msra.mxu0 %v1111
    %7270 = vmatpush.bf16.msra.mxu0 %v1107
    %7271 = vmatpush.bf16.msra.mxu0 %v1103
    %7272 = vmatmul.bf16.gmra.mxu0 %v7185
    %v7273 = vpop.f32.mrf.mxu0
    %v7274 = vadd.f32 %v903, %v7273
    %v7275 = vpop.f32.mrf.mxu0
    %7276 = vdwg.mxu0
    %7277 = vmatpush.bf16.msra.mxu0 %v1163
    %7278 = vmatpush.bf16.msra.mxu0 %v1159
    %7279 = vmatpush.bf16.msra.mxu0 %v1155
    %7280 = vmatpush.bf16.msra.mxu0 %v1151
    %7281 = vmatpush.bf16.msra.mxu0 %v1147
    %7282 = vmatpush.bf16.msra.mxu0 %v1143
    %7283 = vmatpush.bf16.msra.mxu0 %v1139
    %7284 = vmatpush.bf16.msra.mxu0 %v1135
    %7285 = vmatmul.bf16.gmra.mxu0 %v7017
    %v7286 = vpop.f32.mrf.mxu0
    %v7287 = vadd.f32 %v7274, %v7286
    %v7288 = vpop.f32.mrf.mxu0
    %7289 = vdwg.mxu0
    %v7290 = vxor.u32 %v7209, 2147483648
    %v7291 = vmul.f32 %v7290, 1.442695
    %v7292 = vpow.pop %v7291
    %v7293 = vadd.f32 %v7292, 1.0
    %v7294 = vrcp.pop %v7293
    %v7295 = vmul.f32 %v7293, %v7294
    %v7296 = vsub.f32 1.0, %v7295
    %v7297 = vmul.f32 %v7294, %v7296
    %v7298 = vadd.f32 %v7294, %v7297
    %vm7299 = vweird.f32 %v7293
    %vm7300 = vweird.f32 %v7294
    %vm7301 = vmor %vm7299, %vm7300
    %v7302 = vsel %vm7301, %v7294, %v7298
    %v7303 = vand.u32 2147483647, %v7293
    %vm7304 = vcmp.eq.f32.partialorder %v7303, 8.507059e+37
    %v7305 = vand.u32 %v7293, 2147483648
    %v7306 = vor.u32 1.1754944e-38, %v7305
    %v7307 = vsel %vm7304, %v7306, %v7302
    %v7308 = vmul.f32 1.0, %v7307
    %v7309 = vxor.u32 %v7235, 2147483648
    %v7310 = vmul.f32 %v7309, 1.442695
    %v7311 = vpow.pop %v7310
    %v7312 = vadd.f32 %v7311, 1.0
    %v7313 = vrcp.pop %v7312
    %v7314 = vmul.f32 %v7312, %v7313
    %v7315 = vsub.f32 1.0, %v7314
    %v7316 = vmul.f32 %v7313, %v7315
    %v7317 = vadd.f32 %v7313, %v7316
    %vm7318 = vweird.f32 %v7312
    %vm7319 = vweird.f32 %v7313
    %vm7320 = vmor %vm7318, %vm7319
    %v7321 = vsel %vm7320, %v7313, %v7317
    %v7322 = vand.u32 2147483647, %v7312
    %vm7323 = vcmp.eq.f32.partialorder %v7322, 8.507059e+37
    %v7324 = vand.u32 %v7312, 2147483648
    %v7325 = vor.u32 1.1754944e-38, %v7324
    %v7326 = vsel %vm7323, %v7325, %v7321
    %v7327 = vmul.f32 1.0, %v7326
    %v7328 = vtanh.pop %v7261
    %v7329 = vxor.u32 %v7287, 2147483648
    %v7330 = vmul.f32 %v7329, 1.442695
    %v7331 = vpow.pop %v7330
    %v7332 = vadd.f32 %v7331, 1.0
    %v7333 = vrcp.pop %v7332
    %v7334 = vmul.f32 %v7332, %v7333
    %v7335 = vsub.f32 1.0, %v7334
    %v7336 = vmul.f32 %v7333, %v7335
    %v7337 = vadd.f32 %v7333, %v7336
    %vm7338 = vweird.f32 %v7332
    %vm7339 = vweird.f32 %v7333
    %vm7340 = vmor %vm7338, %vm7339
    %v7341 = vsel %vm7340, %v7333, %v7337
    %v7342 = vand.u32 2147483647, %v7332
    %vm7343 = vcmp.eq.f32.partialorder %v7342, 8.507059e+37
    %v7344 = vand.u32 %v7332, 2147483648
    %v7345 = vor.u32 1.1754944e-38, %v7344
    %v7346 = vsel %vm7343, %v7345, %v7341
    %v7347 = vmul.f32 1.0, %v7346
    %v7348 = vmul.f32 %v7327, %v6592
    %v7349 = vmul.f32 %v7308, %v7328
    %v7350 = vadd.f32 %v7348, %v7349
    %v7351 = vtanh.pop %v7350
    %v7352 = vmul.f32 %v7347, %v7351
    %v7353 = vpack.c.bf16 %v6847, %v6847
    %v7354 = vpack.c.bf16 %v6795, %v6795
    %7356 = vrot.lane.b32.xlu0 %v7354, 32
    %v7357 = vpop.permute.xlu0 %7356
    %v7359 = vsel %vm776, %v7357, 0
    %7361 = vmatpush.bf16.msra.mxu0 0
    %7362 = vmatpush.bf16.msra.mxu0 0
    %7363 = vmatpush.bf16.msra.mxu0 0
    %7364 = vmatpush.bf16.msra.mxu0 0
    %7365 = vmatpush.bf16.msra.mxu0 0
    %7366 = vmatpush.bf16.msra.mxu0 0
    %7367 = vmatpush.bf16.msra.mxu0 %v1536
    %7368 = vmatpush.bf16.msra.mxu0 %v1535
    %7369 = vmatmul.bf16.gmra.mxu0 %v7359
    %v7370 = vpop.f32.mrf.mxu0
    %v7371 = vadd.f32 0.0, %v7370
    %v7372 = vpop.f32.mrf.mxu0
    %7373 = vdwg.mxu0
    %7375 = vrot.lane.b32.xlu0 %v7353, 32
    %v7376 = vpop.permute.xlu0 %7375
    %v7378 = vsel %vm776, %v7376, 0
    %7380 = vmatpush.bf16.msra.mxu0 0
    %7381 = vmatpush.bf16.msra.mxu0 0
    %7382 = vmatpush.bf16.msra.mxu0 0
    %7383 = vmatpush.bf16.msra.mxu0 0
    %7384 = vmatpush.bf16.msra.mxu0 0
    %7385 = vmatpush.bf16.msra.mxu0 0
    %7386 = vmatpush.bf16.msra.mxu0 %v1564
    %7387 = vmatpush.bf16.msra.mxu0 %v1563
    %7388 = vmatmul.bf16.gmra.mxu0 %v7378
    %v7389 = vpop.f32.mrf.mxu0
    %v7390 = vadd.f32 %v7371, %v7389
    %v7391 = vpop.f32.mrf.mxu0
    %7392 = vdwg.mxu0
    %v7393 = vadd.f32 %v7390, %v1586
    %v7394 = vxor.u32 %v7393, 2147483648
    %v7395 = vmul.f32 %v7394, 1.442695
    %v7396 = vpow.pop %v7395
    %v7397 = vadd.f32 %v7396, 1.0
    %v7398 = vrcp.pop %v7397
    %v7399 = vmul.f32 %v7397, %v7398
    %v7400 = vsub.f32 1.0, %v7399
    %v7401 = vmul.f32 %v7398, %v7400
    %v7402 = vadd.f32 %v7398, %v7401
    %vm7403 = vweird.f32 %v7397
    %vm7404 = vweird.f32 %v7398
    %vm7405 = vmor %vm7403, %vm7404
    %v7406 = vsel %vm7405, %v7398, %v7402
    %v7407 = vand.u32 2147483647, %v7397
    %vm7408 = vcmp.eq.f32.partialorder %v7407, 8.507059e+37
    %v7409 = vand.u32 %v7397, 2147483648
    %v7410 = vor.u32 1.1754944e-38, %v7409
    %v7411 = vsel %vm7408, %v7410, %v7406
    %v7412 = vmul.f32 1.0, %v7411
    %v7413 = vtanh.pop %v7393
    %v7414 = vmul.f32 %v7412, %v6789
    %7416 = vrot.lane.b32.xlu0 %v7413, 64
    %v7417 = vpop.permute.xlu0 %7416
    %v7419 = vmul.f32 %v7412, %v7417
    %7421 = vrot.lane.b32.xlu0 %v7419, 32
    %v7422 = vpop.permute.xlu0 %7421
    %v7424 = vadd.f32 %v7414, %v7422
    %v7425 = vtanh.pop %v7424
    %7427 = vrot.lane.b32.xlu0 %v7425, 64
    %v7428 = vpop.permute.xlu0 %7427
    %v7430 = vmul.f32 %v7412, %v7428
    %v7431 = vpack.c.bf16 %v7184, %v7184
    %v7432 = vpack.c.bf16 %v7016, %v7016
    %7433 = vmatpush.bf16.msra.mxu0 %v2960
    %7434 = vmatpush.bf16.msra.mxu0 %v2956
    %7435 = vmatpush.bf16.msra.mxu0 %v2952
    %7436 = vmatpush.bf16.msra.mxu0 %v2948
    %7437 = vmatpush.bf16.msra.mxu0 %v2944
    %7438 = vmatpush.bf16.msra.mxu0 %v2940
    %7439 = vmatpush.bf16.msra.mxu0 %v2936
    %7440 = vmatpush.bf16.msra.mxu0 %v2932
    %7441 = vmatmul.bf16.gmra.mxu0 %v7431
    %v7442 = vpop.f32.mrf.mxu0
    %v7443 = vadd.f32 %v2732, %v7442
    %v7444 = vpop.f32.mrf.mxu0
    %7445 = vdwg.mxu0
    %7446 = vmatpush.bf16.msra.mxu0 %v2992
    %7447 = vmatpush.bf16.msra.mxu0 %v2988
    %7448 = vmatpush.bf16.msra.mxu0 %v2984
    %7449 = vmatpush.bf16.msra.mxu0 %v2980
    %7450 = vmatpush.bf16.msra.mxu0 %v2976
    %7451 = vmatpush.bf16.msra.mxu0 %v2972
    %7452 = vmatpush.bf16.msra.mxu0 %v2968
    %7453 = vmatpush.bf16.msra.mxu0 %v2964
    %7454 = vmatmul.bf16.gmra.mxu0 %v7432
    %v7455 = vpop.f32.mrf.mxu0
    %v7456 = vadd.f32 %v7443, %v7455
    %v7457 = vpop.f32.mrf.mxu0
    %7458 = vdwg.mxu0
    %7459 = vmatpush.bf16.msra.mxu0 %v2961
    %7460 = vmatpush.bf16.msra.mxu0 %v2957
    %7461 = vmatpush.bf16.msra.mxu0 %v2953
    %7462 = vmatpush.bf16.msra.mxu0 %v2949
    %7463 = vmatpush.bf16.msra.mxu0 %v2945
    %7464 = vmatpush.bf16.msra.mxu0 %v2941
    %7465 = vmatpush.bf16.msra.mxu0 %v2937
    %7466 = vmatpush.bf16.msra.mxu0 %v2933
    %7467 = vmatmul.bf16.gmra.mxu0 %v7431
    %v7468 = vpop.f32.mrf.mxu0
    %v7469 = vadd.f32 %v2733, %v7468
    %v7470 = vpop.f32.mrf.mxu0
    %7471 = vdwg.mxu0
    %7472 = vmatpush.bf16.msra.mxu0 %v2993
    %7473 = vmatpush.bf16.msra.mxu0 %v2989
    %7474 = vmatpush.bf16.msra.mxu0 %v2985
    %7475 = vmatpush.bf16.msra.mxu0 %v2981
    %7476 = vmatpush.bf16.msra.mxu0 %v2977
    %7477 = vmatpush.bf16.msra.mxu0 %v2973
    %7478 = vmatpush.bf16.msra.mxu0 %v2969
    %7479 = vmatpush.bf16.msra.mxu0 %v2965
    %7480 = vmatmul.bf16.gmra.mxu0 %v7432
    %v7481 = vpop.f32.mrf.mxu0
    %v7482 = vadd.f32 %v7469, %v7481
    %v7483 = vpop.f32.mrf.mxu0
    %7484 = vdwg.mxu0
    %7485 = vmatpush.bf16.msra.mxu0 %v2962
    %7486 = vmatpush.bf16.msra.mxu0 %v2958
    %7487 = vmatpush.bf16.msra.mxu0 %v2954
    %7488 = vmatpush.bf16.msra.mxu0 %v2950
    %7489 = vmatpush.bf16.msra.mxu0 %v2946
    %7490 = vmatpush.bf16.msra.mxu0 %v2942
    %7491 = vmatpush.bf16.msra.mxu0 %v2938
    %7492 = vmatpush.bf16.msra.mxu0 %v2934
    %7493 = vmatmul.bf16.gmra.mxu0 %v7431
    %v7494 = vpop.f32.mrf.mxu0
    %v7495 = vadd.f32 %v2734, %v7494
    %v7496 = vpop.f32.mrf.mxu0
    %7497 = vdwg.mxu0
    %7498 = vmatpush.bf16.msra.mxu0 %v2994
    %7499 = vmatpush.bf16.msra.mxu0 %v2990
    %7500 = vmatpush.bf16.msra.mxu0 %v2986
    %7501 = vmatpush.bf16.msra.mxu0 %v2982
    %7502 = vmatpush.bf16.msra.mxu0 %v2978
    %7503 = vmatpush.bf16.msra.mxu0 %v2974
    %7504 = vmatpush.bf16.msra.mxu0 %v2970
    %7505 = vmatpush.bf16.msra.mxu0 %v2966
    %7506 = vmatmul.bf16.gmra.mxu0 %v7432
    %v7507 = vpop.f32.mrf.mxu0
    %v7508 = vadd.f32 %v7495, %v7507
    %v7509 = vpop.f32.mrf.mxu0
    %7510 = vdwg.mxu0
    %7511 = vmatpush.bf16.msra.mxu0 %v2963
    %7512 = vmatpush.bf16.msra.mxu0 %v2959
    %7513 = vmatpush.bf16.msra.mxu0 %v2955
    %7514 = vmatpush.bf16.msra.mxu0 %v2951
    %7515 = vmatpush.bf16.msra.mxu0 %v2947
    %7516 = vmatpush.bf16.msra.mxu0 %v2943
    %7517 = vmatpush.bf16.msra.mxu0 %v2939
    %7518 = vmatpush.bf16.msra.mxu0 %v2935
    %7519 = vmatmul.bf16.gmra.mxu0 %v7431
    %v7520 = vpop.f32.mrf.mxu0
    %v7521 = vadd.f32 %v2735, %v7520
    %v7522 = vpop.f32.mrf.mxu0
    %7523 = vdwg.mxu0
    %7524 = vmatpush.bf16.msra.mxu0 %v2995
    %7525 = vmatpush.bf16.msra.mxu0 %v2991
    %7526 = vmatpush.bf16.msra.mxu0 %v2987
    %7527 = vmatpush.bf16.msra.mxu0 %v2983
    %7528 = vmatpush.bf16.msra.mxu0 %v2979
    %7529 = vmatpush.bf16.msra.mxu0 %v2975
    %7530 = vmatpush.bf16.msra.mxu0 %v2971
    %7531 = vmatpush.bf16.msra.mxu0 %v2967
    %7532 = vmatmul.bf16.gmra.mxu0 %v7432
    %v7533 = vpop.f32.mrf.mxu0
    %v7534 = vadd.f32 %v7521, %v7533
    %v7535 = vpop.f32.mrf.mxu0
    %7536 = vdwg.mxu0
    %v7537 = vxor.u32 %v7456, 2147483648
    %v7538 = vmul.f32 %v7537, 1.442695
    %v7539 = vpow.pop %v7538
    %v7540 = vadd.f32 %v7539, 1.0
    %v7541 = vrcp.pop %v7540
    %v7542 = vmul.f32 %v7540, %v7541
    %v7543 = vsub.f32 1.0, %v7542
    %v7544 = vmul.f32 %v7541, %v7543
    %v7545 = vadd.f32 %v7541, %v7544
    %vm7546 = vweird.f32 %v7540
    %vm7547 = vweird.f32 %v7541
    %vm7548 = vmor %vm7546, %vm7547
    %v7549 = vsel %vm7548, %v7541, %v7545
    %v7550 = vand.u32 2147483647, %v7540
    %vm7551 = vcmp.eq.f32.partialorder %v7550, 8.507059e+37
    %v7552 = vand.u32 %v7540, 2147483648
    %v7553 = vor.u32 1.1754944e-38, %v7552
    %v7554 = vsel %vm7551, %v7553, %v7549
    %v7555 = vmul.f32 1.0, %v7554
    %v7556 = vxor.u32 %v7482, 2147483648
    %v7557 = vmul.f32 %v7556, 1.442695
    %v7558 = vpow.pop %v7557
    %v7559 = vadd.f32 %v7558, 1.0
    %v7560 = vrcp.pop %v7559
    %v7561 = vmul.f32 %v7559, %v7560
    %v7562 = vsub.f32 1.0, %v7561
    %v7563 = vmul.f32 %v7560, %v7562
    %v7564 = vadd.f32 %v7560, %v7563
    %vm7565 = vweird.f32 %v7559
    %vm7566 = vweird.f32 %v7560
    %vm7567 = vmor %vm7565, %vm7566
    %v7568 = vsel %vm7567, %v7560, %v7564
    %v7569 = vand.u32 2147483647, %v7559
    %vm7570 = vcmp.eq.f32.partialorder %v7569, 8.507059e+37
    %v7571 = vand.u32 %v7559, 2147483648
    %v7572 = vor.u32 1.1754944e-38, %v7571
    %v7573 = vsel %vm7570, %v7572, %v7568
    %v7574 = vmul.f32 1.0, %v7573
    %v7575 = vtanh.pop %v7508
    %v7576 = vxor.u32 %v7534, 2147483648
    %v7577 = vmul.f32 %v7576, 1.442695
    %v7578 = vpow.pop %v7577
    %v7579 = vadd.f32 %v7578, 1.0
    %v7580 = vrcp.pop %v7579
    %v7581 = vmul.f32 %v7579, %v7580
    %v7582 = vsub.f32 1.0, %v7581
    %v7583 = vmul.f32 %v7580, %v7582
    %v7584 = vadd.f32 %v7580, %v7583
    %vm7585 = vweird.f32 %v7579
    %vm7586 = vweird.f32 %v7580
    %vm7587 = vmor %vm7585, %vm7586
    %v7588 = vsel %vm7587, %v7580, %v7584
    %v7589 = vand.u32 2147483647, %v7579
    %vm7590 = vcmp.eq.f32.partialorder %v7589, 8.507059e+37
    %v7591 = vand.u32 %v7579, 2147483648
    %v7592 = vor.u32 1.1754944e-38, %v7591
    %v7593 = vsel %vm7590, %v7592, %v7588
    %v7594 = vmul.f32 1.0, %v7593
    %v7595 = vmul.f32 %v7574, %v7014
    %v7596 = vmul.f32 %v7555, %v7575
    %v7597 = vadd.f32 %v7595, %v7596
    %v7598 = vtanh.pop %v7597
    %v7599 = vmul.f32 %v7594, %v7598
    %v7600 = vpack.c.bf16 %v7352, %v7352
    %7601 = vmatpush.bf16.msra.mxu0 %v1975
    %7602 = vmatpush.bf16.msra.mxu0 %v1971
    %7603 = vmatpush.bf16.msra.mxu0 %v1967
    %7604 = vmatpush.bf16.msra.mxu0 %v1963
    %7605 = vmatpush.bf16.msra.mxu0 %v1959
    %7606 = vmatpush.bf16.msra.mxu0 %v1955
    %7607 = vmatpush.bf16.msra.mxu0 %v1951
    %7608 = vmatpush.bf16.msra.mxu0 %v1947
    %7609 = vmatmul.bf16.gmra.mxu0 %v7600
    %v7610 = vpop.f32.mrf.mxu0
    %v7611 = vadd.f32 %v1747, %v7610
    %v7612 = vpop.f32.mrf.mxu0
    %7613 = vdwg.mxu0
    %7614 = vmatpush.bf16.msra.mxu0 %v2007
    %7615 = vmatpush.bf16.msra.mxu0 %v2003
    %7616 = vmatpush.bf16.msra.mxu0 %v1999
    %7617 = vmatpush.bf16.msra.mxu0 %v1995
    %7618 = vmatpush.bf16.msra.mxu0 %v1991
    %7619 = vmatpush.bf16.msra.mxu0 %v1987
    %7620 = vmatpush.bf16.msra.mxu0 %v1983
    %7621 = vmatpush.bf16.msra.mxu0 %v1979
    %7622 = vmatmul.bf16.gmra.mxu0 %v7431
    %v7623 = vpop.f32.mrf.mxu0
    %v7624 = vadd.f32 %v7611, %v7623
    %v7625 = vpop.f32.mrf.mxu0
    %7626 = vdwg.mxu0
    %7627 = vmatpush.bf16.msra.mxu0 %v1976
    %7628 = vmatpush.bf16.msra.mxu0 %v1972
    %7629 = vmatpush.bf16.msra.mxu0 %v1968
    %7630 = vmatpush.bf16.msra.mxu0 %v1964
    %7631 = vmatpush.bf16.msra.mxu0 %v1960
    %7632 = vmatpush.bf16.msra.mxu0 %v1956
    %7633 = vmatpush.bf16.msra.mxu0 %v1952
    %7634 = vmatpush.bf16.msra.mxu0 %v1948
    %7635 = vmatmul.bf16.gmra.mxu0 %v7600
    %v7636 = vpop.f32.mrf.mxu0
    %v7637 = vadd.f32 %v1748, %v7636
    %v7638 = vpop.f32.mrf.mxu0
    %7639 = vdwg.mxu0
    %7640 = vmatpush.bf16.msra.mxu0 %v2008
    %7641 = vmatpush.bf16.msra.mxu0 %v2004
    %7642 = vmatpush.bf16.msra.mxu0 %v2000
    %7643 = vmatpush.bf16.msra.mxu0 %v1996
    %7644 = vmatpush.bf16.msra.mxu0 %v1992
    %7645 = vmatpush.bf16.msra.mxu0 %v1988
    %7646 = vmatpush.bf16.msra.mxu0 %v1984
    %7647 = vmatpush.bf16.msra.mxu0 %v1980
    %7648 = vmatmul.bf16.gmra.mxu0 %v7431
    %v7649 = vpop.f32.mrf.mxu0
    %v7650 = vadd.f32 %v7637, %v7649
    %v7651 = vpop.f32.mrf.mxu0
    %7652 = vdwg.mxu0
    %7653 = vmatpush.bf16.msra.mxu0 %v1977
    %7654 = vmatpush.bf16.msra.mxu0 %v1973
    %7655 = vmatpush.bf16.msra.mxu0 %v1969
    %7656 = vmatpush.bf16.msra.mxu0 %v1965
    %7657 = vmatpush.bf16.msra.mxu0 %v1961
    %7658 = vmatpush.bf16.msra.mxu0 %v1957
    %7659 = vmatpush.bf16.msra.mxu0 %v1953
    %7660 = vmatpush.bf16.msra.mxu0 %v1949
    %7661 = vmatmul.bf16.gmra.mxu0 %v7600
    %v7662 = vpop.f32.mrf.mxu0
    %v7663 = vadd.f32 %v1749, %v7662
    %v7664 = vpop.f32.mrf.mxu0
    %7665 = vdwg.mxu0
    %7666 = vmatpush.bf16.msra.mxu0 %v2009
    %7667 = vmatpush.bf16.msra.mxu0 %v2005
    %7668 = vmatpush.bf16.msra.mxu0 %v2001
    %7669 = vmatpush.bf16.msra.mxu0 %v1997
    %7670 = vmatpush.bf16.msra.mxu0 %v1993
    %7671 = vmatpush.bf16.msra.mxu0 %v1989
    %7672 = vmatpush.bf16.msra.mxu0 %v1985
    %7673 = vmatpush.bf16.msra.mxu0 %v1981
    %7674 = vmatmul.bf16.gmra.mxu0 %v7431
    %v7675 = vpop.f32.mrf.mxu0
    %v7676 = vadd.f32 %v7663, %v7675
    %v7677 = vpop.f32.mrf.mxu0
    %7678 = vdwg.mxu0
    %7679 = vmatpush.bf16.msra.mxu0 %v1978
    %7680 = vmatpush.bf16.msra.mxu0 %v1974
    %7681 = vmatpush.bf16.msra.mxu0 %v1970
    %7682 = vmatpush.bf16.msra.mxu0 %v1966
    %7683 = vmatpush.bf16.msra.mxu0 %v1962
    %7684 = vmatpush.bf16.msra.mxu0 %v1958
    %7685 = vmatpush.bf16.msra.mxu0 %v1954
    %7686 = vmatpush.bf16.msra.mxu0 %v1950
    %7687 = vmatmul.bf16.gmra.mxu0 %v7600
    %v7688 = vpop.f32.mrf.mxu0
    %v7689 = vadd.f32 %v1750, %v7688
    %v7690 = vpop.f32.mrf.mxu0
    %7691 = vdwg.mxu0
    %7692 = vmatpush.bf16.msra.mxu0 %v2010
    %7693 = vmatpush.bf16.msra.mxu0 %v2006
    %7694 = vmatpush.bf16.msra.mxu0 %v2002
    %7695 = vmatpush.bf16.msra.mxu0 %v1998
    %7696 = vmatpush.bf16.msra.mxu0 %v1994
    %7697 = vmatpush.bf16.msra.mxu0 %v1990
    %7698 = vmatpush.bf16.msra.mxu0 %v1986
    %7699 = vmatpush.bf16.msra.mxu0 %v1982
    %7700 = vmatmul.bf16.gmra.mxu0 %v7431
    %v7701 = vpop.f32.mrf.mxu0
    %v7702 = vadd.f32 %v7689, %v7701
    %v7703 = vpop.f32.mrf.mxu0
    %7704 = vdwg.mxu0
    %v7705 = vxor.u32 %v7624, 2147483648
    %v7706 = vmul.f32 %v7705, 1.442695
    %v7707 = vpow.pop %v7706
    %v7708 = vadd.f32 %v7707, 1.0
    %v7709 = vrcp.pop %v7708
    %v7710 = vmul.f32 %v7708, %v7709
    %v7711 = vsub.f32 1.0, %v7710
    %v7712 = vmul.f32 %v7709, %v7711
    %v7713 = vadd.f32 %v7709, %v7712
    %vm7714 = vweird.f32 %v7708
    %vm7715 = vweird.f32 %v7709
    %vm7716 = vmor %vm7714, %vm7715
    %v7717 = vsel %vm7716, %v7709, %v7713
    %v7718 = vand.u32 2147483647, %v7708
    %vm7719 = vcmp.eq.f32.partialorder %v7718, 8.507059e+37
    %v7720 = vand.u32 %v7708, 2147483648
    %v7721 = vor.u32 1.1754944e-38, %v7720
    %v7722 = vsel %vm7719, %v7721, %v7717
    %v7723 = vmul.f32 1.0, %v7722
    %v7724 = vxor.u32 %v7650, 2147483648
    %v7725 = vmul.f32 %v7724, 1.442695
    %v7726 = vpow.pop %v7725
    %v7727 = vadd.f32 %v7726, 1.0
    %v7728 = vrcp.pop %v7727
    %v7729 = vmul.f32 %v7727, %v7728
    %v7730 = vsub.f32 1.0, %v7729
    %v7731 = vmul.f32 %v7728, %v7730
    %v7732 = vadd.f32 %v7728, %v7731
    %vm7733 = vweird.f32 %v7727
    %vm7734 = vweird.f32 %v7728
    %vm7735 = vmor %vm7733, %vm7734
    %v7736 = vsel %vm7735, %v7728, %v7732
    %v7737 = vand.u32 2147483647, %v7727
    %vm7738 = vcmp.eq.f32.partialorder %v7737, 8.507059e+37
    %v7739 = vand.u32 %v7727, 2147483648
    %v7740 = vor.u32 1.1754944e-38, %v7739
    %v7741 = vsel %vm7738, %v7740, %v7736
    %v7742 = vmul.f32 1.0, %v7741
    %v7743 = vtanh.pop %v7676
    %v7744 = vxor.u32 %v7702, 2147483648
    %v7745 = vmul.f32 %v7744, 1.442695
    %v7746 = vpow.pop %v7745
    %v7747 = vadd.f32 %v7746, 1.0
    %v7748 = vrcp.pop %v7747
    %v7749 = vmul.f32 %v7747, %v7748
    %v7750 = vsub.f32 1.0, %v7749
    %v7751 = vmul.f32 %v7748, %v7750
    %v7752 = vadd.f32 %v7748, %v7751
    %vm7753 = vweird.f32 %v7747
    %vm7754 = vweird.f32 %v7748
    %vm7755 = vmor %vm7753, %vm7754
    %v7756 = vsel %vm7755, %v7748, %v7752
    %v7757 = vand.u32 2147483647, %v7747
    %vm7758 = vcmp.eq.f32.partialorder %v7757, 8.507059e+37
    %v7759 = vand.u32 %v7747, 2147483648
    %v7760 = vor.u32 1.1754944e-38, %v7759
    %v7761 = vsel %vm7758, %v7760, %v7756
    %v7762 = vmul.f32 1.0, %v7761
    %v7763 = vmul.f32 %v7742, %v7182
    %v7764 = vmul.f32 %v7723, %v7743
    %v7765 = vadd.f32 %v7763, %v7764
    %v7766 = vtanh.pop %v7765
    %v7767 = vmul.f32 %v7762, %v7766
    %v7768 = vpack.c.bf16 %v7767, %v7767
    %v7769 = vpack.c.bf16 %v7599, %v7599
    %7770 = vmatpush.bf16.msra.mxu0 %v2960
    %7771 = vmatpush.bf16.msra.mxu0 %v2956
    %7772 = vmatpush.bf16.msra.mxu0 %v2952
    %7773 = vmatpush.bf16.msra.mxu0 %v2948
    %7774 = vmatpush.bf16.msra.mxu0 %v2944
    %7775 = vmatpush.bf16.msra.mxu0 %v2940
    %7776 = vmatpush.bf16.msra.mxu0 %v2936
    %7777 = vmatpush.bf16.msra.mxu0 %v2932
    %7778 = vmatmul.bf16.gmra.mxu0 %v7768
    %v7779 = vpop.f32.mrf.mxu0
    %v7780 = vadd.f32 %v2732, %v7779
    %v7781 = vpop.f32.mrf.mxu0
    %7782 = vdwg.mxu0
    %7783 = vmatpush.bf16.msra.mxu0 %v2992
    %7784 = vmatpush.bf16.msra.mxu0 %v2988
    %7785 = vmatpush.bf16.msra.mxu0 %v2984
    %7786 = vmatpush.bf16.msra.mxu0 %v2980
    %7787 = vmatpush.bf16.msra.mxu0 %v2976
    %7788 = vmatpush.bf16.msra.mxu0 %v2972
    %7789 = vmatpush.bf16.msra.mxu0 %v2968
    %7790 = vmatpush.bf16.msra.mxu0 %v2964
    %7791 = vmatmul.bf16.gmra.mxu0 %v7769
    %v7792 = vpop.f32.mrf.mxu0
    %v7793 = vadd.f32 %v7780, %v7792
    %v7794 = vpop.f32.mrf.mxu0
    %7795 = vdwg.mxu0
    %7796 = vmatpush.bf16.msra.mxu0 %v2961
    %7797 = vmatpush.bf16.msra.mxu0 %v2957
    %7798 = vmatpush.bf16.msra.mxu0 %v2953
    %7799 = vmatpush.bf16.msra.mxu0 %v2949
    %7800 = vmatpush.bf16.msra.mxu0 %v2945
    %7801 = vmatpush.bf16.msra.mxu0 %v2941
    %7802 = vmatpush.bf16.msra.mxu0 %v2937
    %7803 = vmatpush.bf16.msra.mxu0 %v2933
    %7804 = vmatmul.bf16.gmra.mxu0 %v7768
    %v7805 = vpop.f32.mrf.mxu0
    %v7806 = vadd.f32 %v2733, %v7805
    %v7807 = vpop.f32.mrf.mxu0
    %7808 = vdwg.mxu0
    %7809 = vmatpush.bf16.msra.mxu0 %v2993
    %7810 = vmatpush.bf16.msra.mxu0 %v2989
    %7811 = vmatpush.bf16.msra.mxu0 %v2985
    %7812 = vmatpush.bf16.msra.mxu0 %v2981
    %7813 = vmatpush.bf16.msra.mxu0 %v2977
    %7814 = vmatpush.bf16.msra.mxu0 %v2973
    %7815 = vmatpush.bf16.msra.mxu0 %v2969
    %7816 = vmatpush.bf16.msra.mxu0 %v2965
    %7817 = vmatmul.bf16.gmra.mxu0 %v7769
    %v7818 = vpop.f32.mrf.mxu0
    %v7819 = vadd.f32 %v7806, %v7818
    %v7820 = vpop.f32.mrf.mxu0
    %7821 = vdwg.mxu0
    %7822 = vmatpush.bf16.msra.mxu0 %v2962
    %7823 = vmatpush.bf16.msra.mxu0 %v2958
    %7824 = vmatpush.bf16.msra.mxu0 %v2954
    %7825 = vmatpush.bf16.msra.mxu0 %v2950
    %7826 = vmatpush.bf16.msra.mxu0 %v2946
    %7827 = vmatpush.bf16.msra.mxu0 %v2942
    %7828 = vmatpush.bf16.msra.mxu0 %v2938
    %7829 = vmatpush.bf16.msra.mxu0 %v2934
    %7830 = vmatmul.bf16.gmra.mxu0 %v7768
    %v7831 = vpop.f32.mrf.mxu0
    %v7832 = vadd.f32 %v2734, %v7831
    %v7833 = vpop.f32.mrf.mxu0
    %7834 = vdwg.mxu0
    %7835 = vmatpush.bf16.msra.mxu0 %v2994
    %7836 = vmatpush.bf16.msra.mxu0 %v2990
    %7837 = vmatpush.bf16.msra.mxu0 %v2986
    %7838 = vmatpush.bf16.msra.mxu0 %v2982
    %7839 = vmatpush.bf16.msra.mxu0 %v2978
    %7840 = vmatpush.bf16.msra.mxu0 %v2974
    %7841 = vmatpush.bf16.msra.mxu0 %v2970
    %7842 = vmatpush.bf16.msra.mxu0 %v2966
    %7843 = vmatmul.bf16.gmra.mxu0 %v7769
    %v7844 = vpop.f32.mrf.mxu0
    %v7845 = vadd.f32 %v7832, %v7844
    %v7846 = vpop.f32.mrf.mxu0
    %7847 = vdwg.mxu0
    %7848 = vmatpush.bf16.msra.mxu0 %v2963
    %7849 = vmatpush.bf16.msra.mxu0 %v2959
    %7850 = vmatpush.bf16.msra.mxu0 %v2955
    %7851 = vmatpush.bf16.msra.mxu0 %v2951
    %7852 = vmatpush.bf16.msra.mxu0 %v2947
    %7853 = vmatpush.bf16.msra.mxu0 %v2943
    %7854 = vmatpush.bf16.msra.mxu0 %v2939
    %7855 = vmatpush.bf16.msra.mxu0 %v2935
    %7856 = vmatmul.bf16.gmra.mxu0 %v7768
    %v7857 = vpop.f32.mrf.mxu0
    %v7858 = vadd.f32 %v2735, %v7857
    %v7859 = vpop.f32.mrf.mxu0
    %7860 = vdwg.mxu0
    %7861 = vmatpush.bf16.msra.mxu0 %v2995
    %7862 = vmatpush.bf16.msra.mxu0 %v2991
    %7863 = vmatpush.bf16.msra.mxu0 %v2987
    %7864 = vmatpush.bf16.msra.mxu0 %v2983
    %7865 = vmatpush.bf16.msra.mxu0 %v2979
    %7866 = vmatpush.bf16.msra.mxu0 %v2975
    %7867 = vmatpush.bf16.msra.mxu0 %v2971
    %7868 = vmatpush.bf16.msra.mxu0 %v2967
    %7869 = vmatmul.bf16.gmra.mxu0 %v7769
    %v7870 = vpop.f32.mrf.mxu0
    %v7871 = vadd.f32 %v7858, %v7870
    %v7872 = vpop.f32.mrf.mxu0
    %7873 = vdwg.mxu0
    %v7874 = vxor.u32 %v7793, 2147483648
    %v7875 = vmul.f32 %v7874, 1.442695
    %v7876 = vpow.pop %v7875
    %v7877 = vadd.f32 %v7876, 1.0
    %v7878 = vrcp.pop %v7877
    %v7879 = vmul.f32 %v7877, %v7878
    %v7880 = vsub.f32 1.0, %v7879
    %v7881 = vmul.f32 %v7878, %v7880
    %v7882 = vadd.f32 %v7878, %v7881
    %vm7883 = vweird.f32 %v7877
    %vm7884 = vweird.f32 %v7878
    %vm7885 = vmor %vm7883, %vm7884
    %v7886 = vsel %vm7885, %v7878, %v7882
    %v7887 = vand.u32 2147483647, %v7877
    %vm7888 = vcmp.eq.f32.partialorder %v7887, 8.507059e+37
    %v7889 = vand.u32 %v7877, 2147483648
    %v7890 = vor.u32 1.1754944e-38, %v7889
    %v7891 = vsel %vm7888, %v7890, %v7886
    %v7892 = vmul.f32 1.0, %v7891
    %v7893 = vxor.u32 %v7819, 2147483648
    %v7894 = vmul.f32 %v7893, 1.442695
    %v7895 = vpow.pop %v7894
    %v7896 = vadd.f32 %v7895, 1.0
    %v7897 = vrcp.pop %v7896
    %v7898 = vmul.f32 %v7896, %v7897
    %v7899 = vsub.f32 1.0, %v7898
    %v7900 = vmul.f32 %v7897, %v7899
    %v7901 = vadd.f32 %v7897, %v7900
    %vm7902 = vweird.f32 %v7896
    %vm7903 = vweird.f32 %v7897
    %vm7904 = vmor %vm7902, %vm7903
    %v7905 = vsel %vm7904, %v7897, %v7901
    %v7906 = vand.u32 2147483647, %v7896
    %vm7907 = vcmp.eq.f32.partialorder %v7906, 8.507059e+37
    %v7908 = vand.u32 %v7896, 2147483648
    %v7909 = vor.u32 1.1754944e-38, %v7908
    %v7910 = vsel %vm7907, %v7909, %v7905
    %v7911 = vmul.f32 1.0, %v7910
    %v7912 = vtanh.pop %v7845
    %v7913 = vxor.u32 %v7871, 2147483648
    %v7914 = vmul.f32 %v7913, 1.442695
    %v7915 = vpow.pop %v7914
    %v7916 = vadd.f32 %v7915, 1.0
    %v7917 = vrcp.pop %v7916
    %v7918 = vmul.f32 %v7916, %v7917
    %v7919 = vsub.f32 1.0, %v7918
    %v7920 = vmul.f32 %v7917, %v7919
    %v7921 = vadd.f32 %v7917, %v7920
    %vm7922 = vweird.f32 %v7916
    %vm7923 = vweird.f32 %v7917
    %vm7924 = vmor %vm7922, %vm7923
    %v7925 = vsel %vm7924, %v7917, %v7921
    %v7926 = vand.u32 2147483647, %v7916
    %vm7927 = vcmp.eq.f32.partialorder %v7926, 8.507059e+37
    %v7928 = vand.u32 %v7916, 2147483648
    %v7929 = vor.u32 1.1754944e-38, %v7928
    %v7930 = vsel %vm7927, %v7929, %v7925
    %v7931 = vmul.f32 1.0, %v7930
    %v7932 = vmul.f32 %v7911, %v7597
    %v7933 = vmul.f32 %v7892, %v7912
    %v7934 = vadd.f32 %v7932, %v7933
    %v7935 = vtanh.pop %v7934
    %v7936 = vmul.f32 %v7931, %v7935
    %v7937 = vpack.c.bf16 %v7936, %v7936
    %v7938 = vld [vmem:[%s10] sm:$0xf]
    %v7939 = vld [vmem:[%s10 + $0x4] sm:$0xf]
    %v7940 = vld [vmem:[%s10 + $0x8] sm:$0xf]
    %v7941 = vld [vmem:[%s10 + $0xc] sm:$0xf]
    %v7942 = vld [vmem:[%s10 + $0x10] sm:$0xf]
    %v7943 = vld [vmem:[%s10 + $0x14] sm:$0xf]
    %v7944 = vld [vmem:[%s10 + $0x18] sm:$0xf]
    %v7945 = vld [vmem:[%s10 + $0x1c] sm:$0xf]
    %v7946 = vld [vmem:[%s10 + $0x20] sm:$0xf]
    %v7947 = vld [vmem:[%s10 + $0x24] sm:$0xf]
    %v7948 = vld [vmem:[%s10 + $0x28] sm:$0xf]
    %v7949 = vld [vmem:[%s10 + $0x2c] sm:$0xf]
    %v7950 = vld [vmem:[%s10 + $0x30] sm:$0xf]
    %v7951 = vld [vmem:[%s10 + $0x34] sm:$0xf]
    %v7952 = vld [vmem:[%s10 + $0x38] sm:$0xf]
    %v7953 = vld [vmem:[%s10 + $0x3c] sm:$0xf]
    %v7954 = vpack.c.bf16 %v7430, %v7430
    %v7955 = vld [vmem:[%s11] sm:$0xf]
    %v7956 = vld [vmem:[%s11 + $0x4] sm:$0xf]
    %v7957 = vld [vmem:[%s11 + $0x8] sm:$0xf]
    %v7958 = vld [vmem:[%s11 + $0xc] sm:$0xf]
    %7960 = vrot.lane.b32.xlu0 %v7954, 32
    %v7961 = vpop.permute.xlu0 %7960
    %v7966 = vunpack.c.l.b16 %v7955
    %v7967 = vunpack.c.l.b16 %v7956
    %v7968 = vunpack.c.l.b16 %v7957
    %v7969 = vunpack.c.l.b16 %v7958
    %v7970 = vpack.c.b16 %v7967, %v7966
    %v7971 = vpack.c.b16 %v7969, %v7968
    %v7975 = vsel %vm776, %v7961, 0
    %7977 = vmatpush.bf16.msra.mxu0 0
    %7978 = vmatpush.bf16.msra.mxu0 0
    %7979 = vmatpush.bf16.msra.mxu0 0
    %7980 = vmatpush.bf16.msra.mxu0 0
    %7981 = vmatpush.bf16.msra.mxu0 0
    %7982 = vmatpush.bf16.msra.mxu0 0
    %7983 = vmatpush.bf16.msra.mxu0 %v7971
    %7984 = vmatpush.bf16.msra.mxu0 %v7970
    %7985 = vmatmul.bf16.gmra.mxu0 %v7975
    %v7986 = vpop.f32.mrf.mxu0
    %v7987 = vadd.f32 0.0, %v7986
    %v7988 = vpop.f32.mrf.mxu0
    %7989 = vdwg.mxu0
    %v8006 = vunpack.c.l.b16 %v7938
    %v8007 = vunpack.c.l.b16 %v7939
    %v8008 = vunpack.c.l.b16 %v7940
    %v8009 = vunpack.c.l.b16 %v7941
    %v8010 = vunpack.c.l.b16 %v7942
    %v8011 = vunpack.c.l.b16 %v7943
    %v8012 = vunpack.c.l.b16 %v7944
    %v8013 = vunpack.c.l.b16 %v7945
    %v8014 = vunpack.c.l.b16 %v7946
    %v8015 = vunpack.c.l.b16 %v7947
    %v8016 = vunpack.c.l.b16 %v7948
    %v8017 = vunpack.c.l.b16 %v7949
    %v8018 = vunpack.c.l.b16 %v7950
    %v8019 = vunpack.c.l.b16 %v7951
    %v8020 = vunpack.c.l.b16 %v7952
    %v8021 = vunpack.c.l.b16 %v7953
    %v8022 = vpack.c.b16 %v8007, %v8006
    %v8023 = vpack.c.b16 %v8009, %v8008
    %v8024 = vpack.c.b16 %v8011, %v8010
    %v8025 = vpack.c.b16 %v8013, %v8012
    %v8026 = vpack.c.b16 %v8015, %v8014
    %v8027 = vpack.c.b16 %v8017, %v8016
    %v8028 = vpack.c.b16 %v8019, %v8018
    %v8029 = vpack.c.b16 %v8021, %v8020
    %8038 = vmatpush.bf16.msra.mxu0 %v8029
    %8039 = vmatpush.bf16.msra.mxu0 %v8028
    %8040 = vmatpush.bf16.msra.mxu0 %v8027
    %8041 = vmatpush.bf16.msra.mxu0 %v8026
    %8042 = vmatpush.bf16.msra.mxu0 %v8025
    %8043 = vmatpush.bf16.msra.mxu0 %v8024
    %8044 = vmatpush.bf16.msra.mxu0 %v8023
    %8045 = vmatpush.bf16.msra.mxu0 %v8022
    %8046 = vmatmul.bf16.gmra.mxu0 %v7937
    %v8047 = vpop.f32.mrf.mxu0
    %v8048 = vadd.f32 %v7987, %v8047
    %v8049 = vpop.f32.mrf.mxu0
    %8050 = vdwg.mxu0
    %v8051 = vld [vmem:[%s12] sm:$0x1]
    %v8053 = vperm.slane %v8051, 0
    %v8055 = vadd.f32 %v8048, %v8053
    %v8056 = vmax.f32 %v8055, 0.0
    %v8057 = vpack.c.bf16 %v8056, %v8056
    %v8058 = vld [vmem:[%s13] sm:$0xf]
    %v8059 = vld [vmem:[%s13 + $0x4] sm:$0xf]
    %v8060 = vld [vmem:[%s13 + $0x8] sm:$0xf]
    %v8061 = vld [vmem:[%s13 + $0xc] sm:$0xf]
    %v8062 = vld [vmem:[%s13 + $0x10] sm:$0xf]
    %v8063 = vld [vmem:[%s13 + $0x14] sm:$0xf]
    %v8064 = vld [vmem:[%s13 + $0x18] sm:$0xf]
    %v8065 = vld [vmem:[%s13 + $0x1c] sm:$0xf]
    %v8066 = vld [vmem:[%s13 + $0x20] sm:$0xf]
    %v8067 = vld [vmem:[%s13 + $0x24] sm:$0xf]
    %v8068 = vld [vmem:[%s13 + $0x28] sm:$0xf]
    %v8069 = vld [vmem:[%s13 + $0x2c] sm:$0xf]
    %v8070 = vld [vmem:[%s13 + $0x30] sm:$0xf]
    %v8071 = vld [vmem:[%s13 + $0x34] sm:$0xf]
    %v8072 = vld [vmem:[%s13 + $0x38] sm:$0xf]
    %v8073 = vld [vmem:[%s13 + $0x3c] sm:$0xf]
    %v8074 = vld [vmem:[%s14] sm:$0x1]
    %v8076 = vperm.slane %v8074, 0
    %v8094 = vunpack.c.l.b16 %v8058
    %v8095 = vunpack.c.l.b16 %v8059
    %v8096 = vunpack.c.l.b16 %v8060
    %v8097 = vunpack.c.l.b16 %v8061
    %v8098 = vunpack.c.l.b16 %v8062
    %v8099 = vunpack.c.l.b16 %v8063
    %v8100 = vunpack.c.l.b16 %v8064
    %v8101 = vunpack.c.l.b16 %v8065
    %v8102 = vunpack.c.l.b16 %v8066
    %v8103 = vunpack.c.l.b16 %v8067
    %v8104 = vunpack.c.l.b16 %v8068
    %v8105 = vunpack.c.l.b16 %v8069
    %v8106 = vunpack.c.l.b16 %v8070
    %v8107 = vunpack.c.l.b16 %v8071
    %v8108 = vunpack.c.l.b16 %v8072
    %v8109 = vunpack.c.l.b16 %v8073
    %v8110 = vpack.c.b16 %v8095, %v8094
    %v8111 = vpack.c.b16 %v8097, %v8096
    %v8112 = vpack.c.b16 %v8099, %v8098
    %v8113 = vpack.c.b16 %v8101, %v8100
    %v8114 = vpack.c.b16 %v8103, %v8102
    %v8115 = vpack.c.b16 %v8105, %v8104
    %v8116 = vpack.c.b16 %v8107, %v8106
    %v8117 = vpack.c.b16 %v8109, %v8108
    %8126 = vmatpush.bf16.msra.mxu0 %v8117
    %8127 = vmatpush.bf16.msra.mxu0 %v8116
    %8128 = vmatpush.bf16.msra.mxu0 %v8115
    %8129 = vmatpush.bf16.msra.mxu0 %v8114
    %8130 = vmatpush.bf16.msra.mxu0 %v8113
    %8131 = vmatpush.bf16.msra.mxu0 %v8112
    %8132 = vmatpush.bf16.msra.mxu0 %v8111
    %8133 = vmatpush.bf16.msra.mxu0 %v8110
    %8134 = vmatmul.bf16.gmra.mxu0 %v8057
    %v8135 = vpop.f32.mrf.mxu0
    %v8136 = vadd.f32 %v8076, %v8135
    %v8137 = vpop.f32.mrf.mxu0
    %8138 = vdwg.mxu0
    %v8139 = vmax.f32 %v8136, 0.0
    %v8140 = vpack.c.bf16 %v8139, %v8139
    %v8141 = vld [vmem:[%s15] sm:$0xf]
    %v8142 = vld [vmem:[%s15 + $0x4] sm:$0xf]
    %v8143 = vld [vmem:[%s15 + $0x8] sm:$0xf]
    %v8144 = vld [vmem:[%s15 + $0xc] sm:$0xf]
    %v8145 = vld [vmem:[%s15 + $0x10] sm:$0xf]
    %v8146 = vld [vmem:[%s15 + $0x14] sm:$0xf]
    %v8147 = vld [vmem:[%s15 + $0x18] sm:$0xf]
    %v8148 = vld [vmem:[%s15 + $0x1c] sm:$0xf]
    %v8149 = vld [vmem:[%s16] sm:$0x1]
    %v8151 = vperm.slane %v8149, 0
    %v8161 = vunpack.c.l.b16 %v8141
    %v8162 = vunpack.c.l.b16 %v8142
    %v8163 = vunpack.c.l.b16 %v8143
    %v8164 = vunpack.c.l.b16 %v8144
    %v8165 = vunpack.c.l.b16 %v8145
    %v8166 = vunpack.c.l.b16 %v8146
    %v8167 = vunpack.c.l.b16 %v8147
    %v8168 = vunpack.c.l.b16 %v8148
    %v8169 = vpack.c.b16 %v8162, %v8161
    %v8170 = vpack.c.b16 %v8164, %v8163
    %v8171 = vpack.c.b16 %v8166, %v8165
    %v8172 = vpack.c.b16 %v8168, %v8167
    %vm8177 = vcmask 523264
    %v8179 = vsel %vm8177, %v8140, 0
    %8181 = vmatpush.bf16.msra.mxu0 0
    %8182 = vmatpush.bf16.msra.mxu0 0
    %8183 = vmatpush.bf16.msra.mxu0 0
    %8184 = vmatpush.bf16.msra.mxu0 0
    %8185 = vmatpush.bf16.msra.mxu0 %v8172
    %8186 = vmatpush.bf16.msra.mxu0 %v8171
    %8187 = vmatpush.bf16.msra.mxu0 %v8170
    %8188 = vmatpush.bf16.msra.mxu0 %v8169
    %8189 = vmatmul.bf16.gmra.mxu0 %v8179
    %v8190 = vpop.f32.mrf.mxu0
    %v8191 = vadd.f32 %v8151, %v8190
    %v8192 = vpop.f32.mrf.mxu0
    %8193 = vdwg.mxu0
    %v8194 = vmax.f32 %v8191, 0.0
    %v8195 = vld [vmem:[%s17] sm:$0x1]
    %v8197 = vperm.slane %v8195, 0
    %v8199 = vmul.f32 %v8194, %v8197
    %v8200 = vsel %vm776, %v8199, 0.0
    %8201 = vadd.xlane.f32.xlu0 %v8200
    %v8202 = vpop.xlane.xlu0 %8201
    %v8203 = vld [vmem:[#allocation4] sm:$0x1]
    %v8205 = vperm.slane %v8203, 0
    %v8207 = vadd.f32 %v8202, %v8205
    %vm8208 = vcmask 7168
    %8209 = vst.msk [vmem:[%s19] sm:$0xff] %vm8208, %v8207
    // Predicated region
    $region86: #{simple_nn_forward.1} parent=1 // pred_check
      _
    $region87: #{simple_nn_forward.1} parent=1 // pred_check_branch
      %8211 = sbr.rel (0) target = $region89
    $region88: #{simple_nn_forward.1} parent=1 // pred_region
      _
    $region89: #{simple_nn_forward.1} parent=1 // pred_fallthru
      _
    // Predicated region
    $region90: #{simple_nn_forward.1} parent=1 // pred_check
      _
    $region91: #{simple_nn_forward.1} parent=1 // pred_check_branch
      %8213 = sbr.rel (0) target = $region93
    $region92: #{simple_nn_forward.1} parent=1 // pred_region
      _
    $region93: #{simple_nn_forward.1} parent=1 // pred_fallthru
      _
    %8214 = vsyncpa [#allocation6], 1
    %8215 = vsyncpa [#allocation8], 1

</llo_original>
